<compile_context>
chip_gen: v7x
topology: tpu7x:2x2x1
jax: 0.10.0
libtpu: 0.0.40
codegen_flags: <defaults>
</compile_context>

<pallas_src>
import functools

import jax
import jax.numpy as jnp
from jax.experimental import pallas as pl
from jax.experimental.pallas import tpu as pltpu

EMBED_DIM = 64
NUM_HEADS = 4
NUM_LAYERS = 2
VOCAB_SIZE = 100001
D_MODEL = 2 * EMBED_DIM              # 128
HEAD_DIM = D_MODEL // NUM_HEADS      # 32
FFN_DIM = 2048                       # nn.TransformerDecoderLayer default
FFN_CHUNK = 512                      # FFN hidden processed in 512-wide slices
EPS = 1e-5

# Single-buffer the constant (per-grid-step invariant) weight operands if this
# jax build exposes BlockSpec.pipeline_mode; otherwise fall back to default
# double-buffering (pure VMEM-headroom optimization, not required for
# correctness).
try:
    pl.BlockSpec((8, 128), lambda i: (0, 0),
                 pipeline_mode=pl.Buffered(buffer_count=1))
    _WEIGHT_SPEC_KWARGS = dict(pipeline_mode=pl.Buffered(buffer_count=1))
except Exception:  # pragma: no cover - older BlockSpec signature
    _WEIGHT_SPEC_KWARGS = {}


# ---------------------------------------------------------------------------
# Fused decoder-tower kernel (one grid step processes a tile of whole batches)
# ---------------------------------------------------------------------------
def _tower_kernel(x_ref,
                  wqkv_s_ref, bqkv_s_ref, wo_s_ref, bo_s_ref,
                  wq_c_ref, bq_c_ref, wkv_c_ref, bkv_c_ref, wo_c_ref, bo_c_ref,
                  w1_ref, b1_ref, w2_ref, b2_ref,
                  ln_g_ref, ln_b_ref,
                  o_ref):
    TB, S, D = x_ref.shape
    R = TB * S
    scale = 1.0 / float(HEAD_DIM) ** 0.5

    # Row-flatten the whole batch tile once; every position-wise matmul below
    # runs on a (R, 128) LHS. Residual stream `x` stays f32.
    x = x_ref[...].astype(jnp.float32).reshape(R, D)
    mem_b = x.astype(jnp.bfloat16)   # decoder memory == initial embedding

    def layer_norm(y, g, b):
        mean = jnp.mean(y, axis=-1, keepdims=True)
        yc = y - mean
        var = jnp.mean(yc * yc, axis=-1, keepdims=True)
        return yc * jax.lax.rsqrt(var + EPS) * g + b

    def attention(q, k, v, wo, bo):
        # q, k, v: (R, D) f32. Heads are a static unroll over tiny (S x S)
        # score blocks (3-D batched einsums, batch = TB); the per-head
        # contexts are lane-concatenated so the output projection is a single
        # (R,128)x(128,128) MXU matmul with K=128 (full MXU depth) instead of
        # four accumulated K=32 matmuls.
        q3 = q.reshape(TB, S, D).astype(jnp.bfloat16)
        k3 = k.reshape(TB, S, D).astype(jnp.bfloat16)
        v3 = v.reshape(TB, S, D).astype(jnp.bfloat16)
        ctx = []
        for h in range(NUM_HEADS):
            sl = slice(h * HEAD_DIM, (h + 1) * HEAD_DIM)
            s = jnp.einsum("bqd,bkd->bqk", q3[:, :, sl], k3[:, :, sl],
                           preferred_element_type=jnp.float32) * scale
            s = s - jnp.max(s, axis=-1, keepdims=True)
            p = jnp.exp(s)
            den = jnp.sum(p, axis=-1, keepdims=True)
            r = pl.reciprocal(den, approx=True)       # EUP slot
            r = r * (2.0 - den * r)                   # Newton step -> f32-exact
            p = p * r
            ctx.append(jnp.einsum("bqk,bkd->bqd", p.astype(jnp.bfloat16),
                                  v3[:, :, sl],
                                  preferred_element_type=jnp.float32))
        ctx = jnp.concatenate(ctx, axis=-1).reshape(R, D)      # (R, 128) f32
        return jnp.dot(ctx.astype(jnp.bfloat16), wo,
                       preferred_element_type=jnp.float32) + bo

    for l in range(NUM_LAYERS):
        # ---- self attention (fused QKV projection; bf16 in, f32 acc) ----
        xb = x.astype(jnp.bfloat16)
        qkv = jnp.dot(xb, wqkv_s_ref[l],
                      preferred_element_type=jnp.float32) + bqkv_s_ref[l]
        a = attention(qkv[:, 0 * D:1 * D], qkv[:, 1 * D:2 * D],
                      qkv[:, 2 * D:3 * D], wo_s_ref[l], bo_s_ref[l])
        x = layer_norm(x + a, ln_g_ref[l, 0], ln_b_ref[l, 0])

        # ---- cross attention (Q from x, fused K/V from memory) ----
        xb = x.astype(jnp.bfloat16)
        qc = jnp.dot(xb, wq_c_ref[l],
                     preferred_element_type=jnp.float32) + bq_c_ref[l]
        kvc = jnp.dot(mem_b, wkv_c_ref[l],
                      preferred_element_type=jnp.float32) + bkv_c_ref[l]
        c = attention(qc, kvc[:, 0 * D:1 * D], kvc[:, 1 * D:2 * D],
                      wo_c_ref[l], bo_c_ref[l])
        x = layer_norm(x + c, ln_g_ref[l, 1], ln_b_ref[l, 1])

        # ---- feed-forward (relu), chunked over FFN_DIM so the f32 hidden
        #      activation is only (R, FFN_CHUNK); per-chunk weight slices are
        #      loaded from the ref inside the loop ----
        xb = x.astype(jnp.bfloat16)
        f = jnp.zeros((R, D), jnp.float32)
        for c0 in range(0, FFN_DIM, FFN_CHUNK):
            w1c = w1_ref[l, :, c0:c0 + FFN_CHUNK]              # (D, CH) bf16
            b1c = b1_ref[l, :, c0:c0 + FFN_CHUNK]              # (1, CH) f32
            h1 = jnp.maximum(
                jnp.dot(xb, w1c, preferred_element_type=jnp.float32) + b1c, 0.0)
            f = f + jnp.dot(h1.astype(jnp.bfloat16),
                            w2_ref[l, c0:c0 + FFN_CHUNK, :],   # (CH, D) bf16
                            preferred_element_type=jnp.float32)
        x = layer_norm(x + f + b2_ref[l], ln_g_ref[l, 2], ln_b_ref[l, 2])

    o_ref[...] = x.reshape(TB, S, D).astype(o_ref.dtype)


def _choose_batch_tile(B, S, target_rows=512, min_grid=2):
    """Largest divisor of B whose tile has <= ~target_rows rows, but prefer
    at least `min_grid` grid steps so ("parallel",) can feed both v7x
    TensorCores (extra step costs only ~0.35us on 1-TC v5e/v6e)."""
    tb = max(1, min(B, target_rows // max(S, 1)))
    while B % tb:
        tb -= 1
    if B >= min_grid and B // tb < min_grid:
        tb = max(1, B // min_grid)
        while B % tb:
            tb -= 1
    return tb


def decoder_tower(combined, params):
    """combined: (B, S, D) f32. Runs both decoder layers in one pallas_call."""
    B, S, D = combined.shape
    TB = _choose_batch_tile(B, S)
    grid = (B // TB,)

    act_spec = pl.BlockSpec((TB, S, D), lambda b: (b, 0, 0))

    def w_spec(arr):
        nd = arr.ndim
        return pl.BlockSpec(arr.shape, lambda b, _nd=nd: (0,) * _nd,
                            **_WEIGHT_SPEC_KWARGS)

    weight_args = [
        params["wqkv_self"], params["bqkv_self"],
        params["wo_self"], params["bo_self"],
        params["wq_cross"], params["bq_cross"],
        params["wkv_cross"], params["bkv_cross"],
        params["wo_cross"], params["bo_cross"],
        params["w1"], params["b1"], params["w2"], params["b2"],
        params["ln_g"], params["ln_b"],
    ]

    return pl.pallas_call(
        _tower_kernel,
        out_shape=jax.ShapeDtypeStruct((B, S, D), combined.dtype),
        grid=grid,
        in_specs=[act_spec] + [w_spec(w) for w in weight_args],
        out_specs=act_spec,
        compiler_params=pltpu.CompilerParams(
            dimension_semantics=("parallel",),
            # Budget: bf16 weights ~2.6 MB (single-buffered) + f32 biases/LN
            # (~35 KB) + double-buffered (TB,S,128) f32 in/out tiles (~1 MB at
            # 512 rows) + unrolled f32 temporaries incl. (R,FFN_CHUNK) hidden
            # (~4 MB).  40 MiB leaves wide margin and stays safely under
            # v7x's 64 MiB physical VMEM (v5e/v6e have 128 MiB).
            vmem_limit_bytes=40 * 1024 * 1024,
        ),
    )(combined, *weight_args)


# ---------------------------------------------------------------------------
# Parameter init + full forward
# ---------------------------------------------------------------------------
def init_params(key):
    keys = iter(jax.random.split(key, 64))

    def nrm(shape, scale=0.02, dtype=jnp.bfloat16):
        return (scale * jax.random.normal(next(keys), shape)).astype(dtype)

    L, D, F = NUM_LAYERS, D_MODEL, FFN_DIM
    f32 = jnp.float32
    return {
        # embedding tables stay f32 in HBM (gathered outside the kernel)
        "item_embedding": nrm((VOCAB_SIZE, EMBED_DIM), 1.0, f32),
        "category_embedding": nrm((VOCAB_SIZE, EMBED_DIM), 1.0, f32),
        # self-attn: fused (Q|K|V) projection — weights bf16, biases f32
        "wqkv_self": nrm((L, D, 3 * D)), "bqkv_self": nrm((L, 1, 3 * D), dtype=f32),
        "wo_self": nrm((L, D, D)), "bo_self": nrm((L, 1, D), dtype=f32),
        # cross-attn: Q from x, fused (K|V) from memory
        "wq_cross": nrm((L, D, D)), "bq_cross": nrm((L, 1, D), dtype=f32),
        "wkv_cross": nrm((L, D, 2 * D)), "bkv_cross": nrm((L, 1, 2 * D), dtype=f32),
        "wo_cross": nrm((L, D, D)), "bo_cross": nrm((L, 1, D), dtype=f32),
        # FFN
        "w1": nrm((L, D, F)), "b1": nrm((L, 1, F), dtype=f32),
        "w2": nrm((L, F, D)), "b2": nrm((L, 1, D), dtype=f32),
        # LayerNorms: 0 = after self-attn, 1 = after cross-attn, 2 = after FFN
        "ln_g": jnp.ones((L, 3, 1, D), f32),
        "ln_b": jnp.zeros((L, 3, 1, D), f32),
    }


def user_tower_forward(params, item_seq_item, item_seq_category):
    # Embedding gathers (glue, plain JAX — 100001-row tables live in HBM)
    item_emb = jnp.take(params["item_embedding"], item_seq_item, axis=0)         # (B, S, 64)
    cat_emb = jnp.take(params["category_embedding"], item_seq_category, axis=0)  # (B, S, 64)
    combined = jnp.concatenate([item_emb, cat_emb], axis=-1)                     # (B, S, 128)
    return decoder_tower(combined, params)


# ---------------------------------------------------------------------------
# Pure-JAX reference (f32 math on the same bf16-stored weights)
# ---------------------------------------------------------------------------
def _ref_mha(x_q, x_kv, wq, bq, wk, bk, wv, bv, wo, bo):
    B, S, _ = x_q.shape
    q = (x_q @ wq + bq).reshape(B, S, NUM_HEADS, HEAD_DIM).transpose(0, 2, 1, 3)
    k = (x_kv @ wk + bk).reshape(B, S, NUM_HEADS, HEAD_DIM).transpose(0, 2, 1, 3)
    v = (x_kv @ wv + bv).reshape(B, S, NUM_HEADS, HEAD_DIM).transpose(0, 2, 1, 3)
    s = jnp.einsum("bhqd,bhkd->bhqk", q, k) / (HEAD_DIM ** 0.5)
    p = jax.nn.softmax(s, axis=-1)
    o = jnp.einsum("bhqk,bhkd->bhqd", p, v).transpose(0, 2, 1, 3).reshape(B, S, D_MODEL)
    return o @ wo + bo


def _ref_ln(x, g, b):
    mean = jnp.mean(x, axis=-1, keepdims=True)
    var = jnp.mean((x - mean) ** 2, axis=-1, keepdims=True)
    return (x - mean) * jax.lax.rsqrt(var + EPS) * g + b


def reference_forward(params, item_seq_item, item_seq_category):
    D = D_MODEL
    p32 = {k: v.astype(jnp.float32) for k, v in params.items()}  # bf16->f32 exact
    item_emb = jnp.take(p32["item_embedding"], item_seq_item, axis=0)
    cat_emb = jnp.take(p32["category_embedding"], item_seq_category, axis=0)
    x = jnp.concatenate([item_emb, cat_emb], axis=-1)
    memory = x
    for l in range(NUM_LAYERS):
        wqkv, bqkv = p32["wqkv_self"][l], p32["bqkv_self"][l]
        a = _ref_mha(x, x,
                     wqkv[:, :D], bqkv[:, :D],
                     wqkv[:, D:2 * D], bqkv[:, D:2 * D],
                     wqkv[:, 2 * D:], bqkv[:, 2 * D:],
                     p32["wo_self"][l], p32["bo_self"][l])
        x = _ref_ln(x + a, p32["ln_g"][l, 0], p32["ln_b"][l, 0])

        wkv, bkv = p32["wkv_cross"][l], p32["bkv_cross"][l]
        c = _ref_mha(x, memory,
                     p32["wq_cross"][l], p32["bq_cross"][l],
                     wkv[:, :D], bkv[:, :D],
                     wkv[:, D:], bkv[:, D:],
                     p32["wo_cross"][l], p32["bo_cross"][l])
        x = _ref_ln(x + c, p32["ln_g"][l, 1], p32["ln_b"][l, 1])

        h = jnp.maximum(x @ p32["w1"][l] + p32["b1"][l], 0.0)
        f = h @ p32["w2"][l] + p32["b2"][l]
        x = _ref_ln(x + f, p32["ln_g"][l, 2], p32["ln_b"][l, 2])
    return x


# ---------------------------------------------------------------------------
if __name__ == "__main__":
    key = jax.random.PRNGKey(0)
    k_param, k_item, k_cat = jax.random.split(key, 3)

    params = init_params(k_param)

    B, S = 2, 8
    item_seq_item = jax.random.randint(k_item, (B, S), 0, VOCAB_SIZE, dtype=jnp.int32)
    item_seq_category = jax.random.randint(k_cat, (B, S), 0, VOCAB_SIZE, dtype=jnp.int32)

    fwd = jax.jit(functools.partial(user_tower_forward, params))
    out = jax.block_until_ready(fwd(item_seq_item, item_seq_category))

    ref = reference_forward(params, item_seq_item, item_seq_category)
    assert out.shape == (B, S, D_MODEL), out.shape
    max_err = float(jnp.max(jnp.abs(out - ref)))
    # bf16 matmul operands (f32 accumulation) vs the all-f32 reference:
    # expected agreement ~1e-3..1e-2 on the LN-normalized (O(1)) outputs.
    assert jnp.allclose(out, ref, atol=3e-2, rtol=3e-2), max_err

    print("KERNEL_OK")
</pallas_src>

<mosaic_0001>
module attributes {stable_mosaic.version = 11 : i64} {
  func.func @_tower_kernel(%arg0: i32, %arg1: memref<1x8x128xf32, #tpu.memory_space<vmem>>, %arg2: memref<2x128x384xbf16, #tpu.memory_space<vmem>>, %arg3: memref<2x1x384xf32, #tpu.memory_space<vmem>>, %arg4: memref<2x128x128xbf16, #tpu.memory_space<vmem>>, %arg5: memref<2x1x128xf32, #tpu.memory_space<vmem>>, %arg6: memref<2x128x128xbf16, #tpu.memory_space<vmem>>, %arg7: memref<2x1x128xf32, #tpu.memory_space<vmem>>, %arg8: memref<2x128x256xbf16, #tpu.memory_space<vmem>>, %arg9: memref<2x1x256xf32, #tpu.memory_space<vmem>>, %arg10: memref<2x128x128xbf16, #tpu.memory_space<vmem>>, %arg11: memref<2x1x128xf32, #tpu.memory_space<vmem>>, %arg12: memref<2x128x2048xbf16, #tpu.memory_space<vmem>>, %arg13: memref<2x1x2048xf32, #tpu.memory_space<vmem>>, %arg14: memref<2x2048x128xbf16, #tpu.memory_space<vmem>>, %arg15: memref<2x1x128xf32, #tpu.memory_space<vmem>>, %arg16: memref<2x3x1x128xf32, #tpu.memory_space<vmem>>, %arg17: memref<2x3x1x128xf32, #tpu.memory_space<vmem>>, %arg18: memref<1x8x128xf32, #tpu.memory_space<vmem>>) attributes {dimension_semantics = [#tpu.dimension_semantics<parallel>], iteration_bounds = array<i64: 2>, scalar_prefetch = 0 : i64, scratch_operands = 0 : i64, tpu.core_type = #tpu.core_type<tc>, window_params = [{transform_indices = @transform_0, window_bounds = array<i64: 1, 8, 128>}, {pipeline_mode = #tpu.pipeline_mode<synchronous>, transform_indices = @transform_1, window_bounds = array<i64: 2, 128, 384>}, {pipeline_mode = #tpu.pipeline_mode<synchronous>, transform_indices = @transform_2, window_bounds = array<i64: 2, 1, 384>}, {pipeline_mode = #tpu.pipeline_mode<synchronous>, transform_indices = @transform_3, window_bounds = array<i64: 2, 128, 128>}, {pipeline_mode = #tpu.pipeline_mode<synchronous>, transform_indices = @transform_4, window_bounds = array<i64: 2, 1, 128>}, {pipeline_mode = #tpu.pipeline_mode<synchronous>, transform_indices = @transform_5, window_bounds = array<i64: 2, 128, 128>}, {pipeline_mode = #tpu.pipeline_mode<synchronous>, transform_indices = @transform_6, window_bounds = array<i64: 2, 1, 128>}, {pipeline_mode = #tpu.pipeline_mode<synchronous>, transform_indices = @transform_7, window_bounds = array<i64: 2, 128, 256>}, {pipeline_mode = #tpu.pipeline_mode<synchronous>, transform_indices = @transform_8, window_bounds = array<i64: 2, 1, 256>}, {pipeline_mode = #tpu.pipeline_mode<synchronous>, transform_indices = @transform_9, window_bounds = array<i64: 2, 128, 128>}, {pipeline_mode = #tpu.pipeline_mode<synchronous>, transform_indices = @transform_10, window_bounds = array<i64: 2, 1, 128>}, {pipeline_mode = #tpu.pipeline_mode<synchronous>, transform_indices = @transform_11, window_bounds = array<i64: 2, 128, 2048>}, {pipeline_mode = #tpu.pipeline_mode<synchronous>, transform_indices = @transform_12, window_bounds = array<i64: 2, 1, 2048>}, {pipeline_mode = #tpu.pipeline_mode<synchronous>, transform_indices = @transform_13, window_bounds = array<i64: 2, 2048, 128>}, {pipeline_mode = #tpu.pipeline_mode<synchronous>, transform_indices = @transform_14, window_bounds = array<i64: 2, 1, 128>}, {pipeline_mode = #tpu.pipeline_mode<synchronous>, transform_indices = @transform_15, window_bounds = array<i64: 2, 3, 1, 128>}, {pipeline_mode = #tpu.pipeline_mode<synchronous>, transform_indices = @transform_16, window_bounds = array<i64: 2, 3, 1, 128>}, {transform_indices = @transform_17, window_bounds = array<i64: 1, 8, 128>}]} {
    %c0 = arith.constant 0 : index
    %c0_0 = arith.constant 0 : index
    %c0_1 = arith.constant 0 : index
    %0 = vector.load %arg1[%c0, %c0_0, %c0_1] : memref<1x8x128xf32, #tpu.memory_space<vmem>>, vector<1x8x128xf32>
    %1 = vector.shape_cast %0 : vector<1x8x128xf32> to vector<8x128xf32>
    %2 = arith.truncf %1 : vector<8x128xf32> to vector<8x128xbf16>
    %3 = arith.truncf %1 : vector<8x128xf32> to vector<8x128xbf16>
    %c0_2 = arith.constant 0 : index
    %c0_3 = arith.constant 0 : index
    %c0_4 = arith.constant 0 : index
    %4 = vector.load %arg2[%c0_2, %c0_3, %c0_4] : memref<2x128x384xbf16, #tpu.memory_space<vmem>>, vector<1x128x384xbf16>
    %5 = vector.shape_cast %4 : vector<1x128x384xbf16> to vector<128x384xbf16>
    %cst = arith.constant dense<0.000000e+00> : vector<8x384xf32>
    %6 = tpu.matmul %3, %5, %cst {dimension_numbers = #tpu.dot_dimension_numbers<[1], [0], [0], [1], [0, 0, 1, 1], [], []>} : vector<8x128xbf16>, vector<128x384xbf16>, vector<8x384xf32> -> vector<8x384xf32>
    %c0_5 = arith.constant 0 : index
    %c0_6 = arith.constant 0 : index
    %c0_7 = arith.constant 0 : index
    %7 = vector.load %arg3[%c0_5, %c0_6, %c0_7] : memref<2x1x384xf32, #tpu.memory_space<vmem>>, vector<1x1x384xf32>
    %8 = vector.shape_cast %7 : vector<1x1x384xf32> to vector<1x384xf32>
    %9 = vector.broadcast %8 : vector<1x384xf32> to vector<8x384xf32>
    %10 = arith.addf %6, %9 : vector<8x384xf32>
    %11 = vector.extract_strided_slice %10 {offsets = [0, 0], sizes = [8, 128], strides = [1, 1]} : vector<8x384xf32> to vector<8x128xf32>
    %12 = vector.extract_strided_slice %10 {offsets = [0, 128], sizes = [8, 128], strides = [1, 1]} : vector<8x384xf32> to vector<8x128xf32>
    %13 = vector.extract_strided_slice %10 {offsets = [0, 256], sizes = [8, 128], strides = [1, 1]} : vector<8x384xf32> to vector<8x128xf32>
    %c0_8 = arith.constant 0 : index
    %c0_9 = arith.constant 0 : index
    %c0_10 = arith.constant 0 : index
    %14 = vector.load %arg4[%c0_8, %c0_9, %c0_10] : memref<2x128x128xbf16, #tpu.memory_space<vmem>>, vector<1x128x128xbf16>
    %15 = vector.shape_cast %14 : vector<1x128x128xbf16> to vector<128x128xbf16>
    %c0_11 = arith.constant 0 : index
    %c0_12 = arith.constant 0 : index
    %c0_13 = arith.constant 0 : index
    %16 = vector.load %arg5[%c0_11, %c0_12, %c0_13] : memref<2x1x128xf32, #tpu.memory_space<vmem>>, vector<1x1x128xf32>
    %17 = vector.shape_cast %16 : vector<1x1x128xf32> to vector<1x128xf32>
    %18 = vector.shape_cast %11 : vector<8x128xf32> to vector<1x8x128xf32>
    %19 = arith.truncf %18 : vector<1x8x128xf32> to vector<1x8x128xbf16>
    %20 = vector.shape_cast %12 : vector<8x128xf32> to vector<1x8x128xf32>
    %21 = arith.truncf %20 : vector<1x8x128xf32> to vector<1x8x128xbf16>
    %22 = vector.shape_cast %13 : vector<8x128xf32> to vector<1x8x128xf32>
    %23 = arith.truncf %22 : vector<1x8x128xf32> to vector<1x8x128xbf16>
    %24 = vector.extract_strided_slice %19 {offsets = [0, 0, 0], sizes = [1, 8, 32], strides = [1, 1, 1]} : vector<1x8x128xbf16> to vector<1x8x32xbf16>
    %25 = vector.extract_strided_slice %21 {offsets = [0, 0, 0], sizes = [1, 8, 32], strides = [1, 1, 1]} : vector<1x8x128xbf16> to vector<1x8x32xbf16>
    "tpu.trace_start"() <{level = 10 : i32, message = "bqd,bkd->bqk"}> : () -> ()
    %cst_14 = arith.constant dense<0.000000e+00> : vector<1x8x8xf32>
    %26 = tpu.matmul %24, %25, %cst_14 {dimension_numbers = #tpu.dot_dimension_numbers<[2], [2], [1], [1], [0, 0, 0, 1, 1, 1], [0], [0]>} : vector<1x8x32xbf16>, vector<1x8x32xbf16>, vector<1x8x8xf32> -> vector<1x8x8xf32>
    "tpu.trace_stop"() : () -> ()
    %cst_15 = arith.constant 0.176776692 : f32
    %27 = vector.broadcast %cst_15 : f32 to vector<1x8x8xf32>
    %28 = arith.mulf %26, %27 : vector<1x8x8xf32>
    %cst_16 = arith.constant dense<0xFF800000> : vector<1x8xf32>
    %29 = vector.multi_reduction <maximumf>, %28, %cst_16 [2] : vector<1x8x8xf32> to vector<1x8xf32>
    %30 = vector.shape_cast %29 : vector<1x8xf32> to vector<1x8x1xf32>
    %31 = vector.broadcast %30 : vector<1x8x1xf32> to vector<1x8x8xf32>
    %32 = arith.subf %28, %31 : vector<1x8x8xf32>
    %33 = math.exp %32 : vector<1x8x8xf32>
    %cst_17 = arith.constant dense<0.000000e+00> : vector<1x8xf32>
    %34 = vector.multi_reduction <add>, %33, %cst_17 [2] : vector<1x8x8xf32> to vector<1x8xf32>
    %35 = vector.shape_cast %34 : vector<1x8xf32> to vector<1x8x1xf32>
    %36 = tpu.reciprocal %35 {approx = true} : vector<1x8x1xf32> -> vector<1x8x1xf32>
    %37 = arith.mulf %35, %36 : vector<1x8x1xf32>
    %cst_18 = arith.constant 2.000000e+00 : f32
    %38 = vector.broadcast %cst_18 : f32 to vector<1x8x1xf32>
    %39 = arith.subf %38, %37 : vector<1x8x1xf32>
    %40 = arith.mulf %36, %39 : vector<1x8x1xf32>
    %41 = vector.broadcast %40 : vector<1x8x1xf32> to vector<1x8x8xf32>
    %42 = arith.mulf %33, %41 : vector<1x8x8xf32>
    %43 = arith.truncf %42 : vector<1x8x8xf32> to vector<1x8x8xbf16>
    %44 = vector.extract_strided_slice %23 {offsets = [0, 0, 0], sizes = [1, 8, 32], strides = [1, 1, 1]} : vector<1x8x128xbf16> to vector<1x8x32xbf16>
    "tpu.trace_start"() <{level = 10 : i32, message = "bqk,bkd->bqd"}> : () -> ()
    %cst_19 = arith.constant dense<0.000000e+00> : vector<1x8x32xf32>
    %45 = tpu.matmul %43, %44, %cst_19 {dimension_numbers = #tpu.dot_dimension_numbers<[2], [1], [1], [2], [0, 0, 0, 1, 1, 2], [0], [0]>} : vector<1x8x8xbf16>, vector<1x8x32xbf16>, vector<1x8x32xf32> -> vector<1x8x32xf32>
    "tpu.trace_stop"() : () -> ()
    %46 = vector.extract_strided_slice %19 {offsets = [0, 0, 32], sizes = [1, 8, 32], strides = [1, 1, 1]} : vector<1x8x128xbf16> to vector<1x8x32xbf16>
    %47 = vector.extract_strided_slice %21 {offsets = [0, 0, 32], sizes = [1, 8, 32], strides = [1, 1, 1]} : vector<1x8x128xbf16> to vector<1x8x32xbf16>
    "tpu.trace_start"() <{level = 10 : i32, message = "bqd,bkd->bqk"}> : () -> ()
    %cst_20 = arith.constant dense<0.000000e+00> : vector<1x8x8xf32>
    %48 = tpu.matmul %46, %47, %cst_20 {dimension_numbers = #tpu.dot_dimension_numbers<[2], [2], [1], [1], [0, 0, 0, 1, 1, 1], [0], [0]>} : vector<1x8x32xbf16>, vector<1x8x32xbf16>, vector<1x8x8xf32> -> vector<1x8x8xf32>
    "tpu.trace_stop"() : () -> ()
    %cst_21 = arith.constant 0.176776692 : f32
    %49 = vector.broadcast %cst_21 : f32 to vector<1x8x8xf32>
    %50 = arith.mulf %48, %49 : vector<1x8x8xf32>
    %cst_22 = arith.constant dense<0xFF800000> : vector<1x8xf32>
    %51 = vector.multi_reduction <maximumf>, %50, %cst_22 [2] : vector<1x8x8xf32> to vector<1x8xf32>
    %52 = vector.shape_cast %51 : vector<1x8xf32> to vector<1x8x1xf32>
    %53 = vector.broadcast %52 : vector<1x8x1xf32> to vector<1x8x8xf32>
    %54 = arith.subf %50, %53 : vector<1x8x8xf32>
    %55 = math.exp %54 : vector<1x8x8xf32>
    %cst_23 = arith.constant dense<0.000000e+00> : vector<1x8xf32>
    %56 = vector.multi_reduction <add>, %55, %cst_23 [2] : vector<1x8x8xf32> to vector<1x8xf32>
    %57 = vector.shape_cast %56 : vector<1x8xf32> to vector<1x8x1xf32>
    %58 = tpu.reciprocal %57 {approx = true} : vector<1x8x1xf32> -> vector<1x8x1xf32>
    %59 = arith.mulf %57, %58 : vector<1x8x1xf32>
    %cst_24 = arith.constant 2.000000e+00 : f32
    %60 = vector.broadcast %cst_24 : f32 to vector<1x8x1xf32>
    %61 = arith.subf %60, %59 : vector<1x8x1xf32>
    %62 = arith.mulf %58, %61 : vector<1x8x1xf32>
    %63 = vector.broadcast %62 : vector<1x8x1xf32> to vector<1x8x8xf32>
    %64 = arith.mulf %55, %63 : vector<1x8x8xf32>
    %65 = arith.truncf %64 : vector<1x8x8xf32> to vector<1x8x8xbf16>
    %66 = vector.extract_strided_slice %23 {offsets = [0, 0, 32], sizes = [1, 8, 32], strides = [1, 1, 1]} : vector<1x8x128xbf16> to vector<1x8x32xbf16>
    "tpu.trace_start"() <{level = 10 : i32, message = "bqk,bkd->bqd"}> : () -> ()
    %cst_25 = arith.constant dense<0.000000e+00> : vector<1x8x32xf32>
    %67 = tpu.matmul %65, %66, %cst_25 {dimension_numbers = #tpu.dot_dimension_numbers<[2], [1], [1], [2], [0, 0, 0, 1, 1, 2], [0], [0]>} : vector<1x8x8xbf16>, vector<1x8x32xbf16>, vector<1x8x32xf32> -> vector<1x8x32xf32>
    "tpu.trace_stop"() : () -> ()
    %68 = vector.extract_strided_slice %19 {offsets = [0, 0, 64], sizes = [1, 8, 32], strides = [1, 1, 1]} : vector<1x8x128xbf16> to vector<1x8x32xbf16>
    %69 = vector.extract_strided_slice %21 {offsets = [0, 0, 64], sizes = [1, 8, 32], strides = [1, 1, 1]} : vector<1x8x128xbf16> to vector<1x8x32xbf16>
    "tpu.trace_start"() <{level = 10 : i32, message = "bqd,bkd->bqk"}> : () -> ()
    %cst_26 = arith.constant dense<0.000000e+00> : vector<1x8x8xf32>
    %70 = tpu.matmul %68, %69, %cst_26 {dimension_numbers = #tpu.dot_dimension_numbers<[2], [2], [1], [1], [0, 0, 0, 1, 1, 1], [0], [0]>} : vector<1x8x32xbf16>, vector<1x8x32xbf16>, vector<1x8x8xf32> -> vector<1x8x8xf32>
    "tpu.trace_stop"() : () -> ()
    %cst_27 = arith.constant 0.176776692 : f32
    %71 = vector.broadcast %cst_27 : f32 to vector<1x8x8xf32>
    %72 = arith.mulf %70, %71 : vector<1x8x8xf32>
    %cst_28 = arith.constant dense<0xFF800000> : vector<1x8xf32>
    %73 = vector.multi_reduction <maximumf>, %72, %cst_28 [2] : vector<1x8x8xf32> to vector<1x8xf32>
    %74 = vector.shape_cast %73 : vector<1x8xf32> to vector<1x8x1xf32>
    %75 = vector.broadcast %74 : vector<1x8x1xf32> to vector<1x8x8xf32>
    %76 = arith.subf %72, %75 : vector<1x8x8xf32>
    %77 = math.exp %76 : vector<1x8x8xf32>
    %cst_29 = arith.constant dense<0.000000e+00> : vector<1x8xf32>
    %78 = vector.multi_reduction <add>, %77, %cst_29 [2] : vector<1x8x8xf32> to vector<1x8xf32>
    %79 = vector.shape_cast %78 : vector<1x8xf32> to vector<1x8x1xf32>
    %80 = tpu.reciprocal %79 {approx = true} : vector<1x8x1xf32> -> vector<1x8x1xf32>
    %81 = arith.mulf %79, %80 : vector<1x8x1xf32>
    %cst_30 = arith.constant 2.000000e+00 : f32
    %82 = vector.broadcast %cst_30 : f32 to vector<1x8x1xf32>
    %83 = arith.subf %82, %81 : vector<1x8x1xf32>
    %84 = arith.mulf %80, %83 : vector<1x8x1xf32>
    %85 = vector.broadcast %84 : vector<1x8x1xf32> to vector<1x8x8xf32>
    %86 = arith.mulf %77, %85 : vector<1x8x8xf32>
    %87 = arith.truncf %86 : vector<1x8x8xf32> to vector<1x8x8xbf16>
    %88 = vector.extract_strided_slice %23 {offsets = [0, 0, 64], sizes = [1, 8, 32], strides = [1, 1, 1]} : vector<1x8x128xbf16> to vector<1x8x32xbf16>
    "tpu.trace_start"() <{level = 10 : i32, message = "bqk,bkd->bqd"}> : () -> ()
    %cst_31 = arith.constant dense<0.000000e+00> : vector<1x8x32xf32>
    %89 = tpu.matmul %87, %88, %cst_31 {dimension_numbers = #tpu.dot_dimension_numbers<[2], [1], [1], [2], [0, 0, 0, 1, 1, 2], [0], [0]>} : vector<1x8x8xbf16>, vector<1x8x32xbf16>, vector<1x8x32xf32> -> vector<1x8x32xf32>
    "tpu.trace_stop"() : () -> ()
    %90 = vector.extract_strided_slice %19 {offsets = [0, 0, 96], sizes = [1, 8, 32], strides = [1, 1, 1]} : vector<1x8x128xbf16> to vector<1x8x32xbf16>
    %91 = vector.extract_strided_slice %21 {offsets = [0, 0, 96], sizes = [1, 8, 32], strides = [1, 1, 1]} : vector<1x8x128xbf16> to vector<1x8x32xbf16>
    "tpu.trace_start"() <{level = 10 : i32, message = "bqd,bkd->bqk"}> : () -> ()
    %cst_32 = arith.constant dense<0.000000e+00> : vector<1x8x8xf32>
    %92 = tpu.matmul %90, %91, %cst_32 {dimension_numbers = #tpu.dot_dimension_numbers<[2], [2], [1], [1], [0, 0, 0, 1, 1, 1], [0], [0]>} : vector<1x8x32xbf16>, vector<1x8x32xbf16>, vector<1x8x8xf32> -> vector<1x8x8xf32>
    "tpu.trace_stop"() : () -> ()
    %cst_33 = arith.constant 0.176776692 : f32
    %93 = vector.broadcast %cst_33 : f32 to vector<1x8x8xf32>
    %94 = arith.mulf %92, %93 : vector<1x8x8xf32>
    %cst_34 = arith.constant dense<0xFF800000> : vector<1x8xf32>
    %95 = vector.multi_reduction <maximumf>, %94, %cst_34 [2] : vector<1x8x8xf32> to vector<1x8xf32>
    %96 = vector.shape_cast %95 : vector<1x8xf32> to vector<1x8x1xf32>
    %97 = vector.broadcast %96 : vector<1x8x1xf32> to vector<1x8x8xf32>
    %98 = arith.subf %94, %97 : vector<1x8x8xf32>
    %99 = math.exp %98 : vector<1x8x8xf32>
    %cst_35 = arith.constant dense<0.000000e+00> : vector<1x8xf32>
    %100 = vector.multi_reduction <add>, %99, %cst_35 [2] : vector<1x8x8xf32> to vector<1x8xf32>
    %101 = vector.shape_cast %100 : vector<1x8xf32> to vector<1x8x1xf32>
    %102 = tpu.reciprocal %101 {approx = true} : vector<1x8x1xf32> -> vector<1x8x1xf32>
    %103 = arith.mulf %101, %102 : vector<1x8x1xf32>
    %cst_36 = arith.constant 2.000000e+00 : f32
    %104 = vector.broadcast %cst_36 : f32 to vector<1x8x1xf32>
    %105 = arith.subf %104, %103 : vector<1x8x1xf32>
    %106 = arith.mulf %102, %105 : vector<1x8x1xf32>
    %107 = vector.broadcast %106 : vector<1x8x1xf32> to vector<1x8x8xf32>
    %108 = arith.mulf %99, %107 : vector<1x8x8xf32>
    %109 = arith.truncf %108 : vector<1x8x8xf32> to vector<1x8x8xbf16>
    %110 = vector.extract_strided_slice %23 {offsets = [0, 0, 96], sizes = [1, 8, 32], strides = [1, 1, 1]} : vector<1x8x128xbf16> to vector<1x8x32xbf16>
    "tpu.trace_start"() <{level = 10 : i32, message = "bqk,bkd->bqd"}> : () -> ()
    %cst_37 = arith.constant dense<0.000000e+00> : vector<1x8x32xf32>
    %111 = tpu.matmul %109, %110, %cst_37 {dimension_numbers = #tpu.dot_dimension_numbers<[2], [1], [1], [2], [0, 0, 0, 1, 1, 2], [0], [0]>} : vector<1x8x8xbf16>, vector<1x8x32xbf16>, vector<1x8x32xf32> -> vector<1x8x32xf32>
    "tpu.trace_stop"() : () -> ()
    %112 = tpu.concatenate %45, %67, %89, %111 in 2 : vector<1x8x32xf32>, vector<1x8x32xf32>, vector<1x8x32xf32>, vector<1x8x32xf32> -> vector<1x8x128xf32>
    %113 = vector.shape_cast %112 : vector<1x8x128xf32> to vector<8x128xf32>
    %114 = arith.truncf %113 : vector<8x128xf32> to vector<8x128xbf16>
    %cst_38 = arith.constant dense<0.000000e+00> : vector<8x128xf32>
    %115 = tpu.matmul %114, %15, %cst_38 {dimension_numbers = #tpu.dot_dimension_numbers<[1], [0], [0], [1], [0, 0, 1, 1], [], []>} : vector<8x128xbf16>, vector<128x128xbf16>, vector<8x128xf32> -> vector<8x128xf32>
    %116 = vector.broadcast %17 : vector<1x128xf32> to vector<8x128xf32>
    %117 = arith.addf %115, %116 : vector<8x128xf32>
    %118 = arith.addf %1, %117 : vector<8x128xf32>
    %c0_39 = arith.constant 0 : index
    %c0_40 = arith.constant 0 : index
    %c0_41 = arith.constant 0 : index
    %c0_42 = arith.constant 0 : index
    %119 = vector.load %arg16[%c0_39, %c0_40, %c0_41, %c0_42] : memref<2x3x1x128xf32, #tpu.memory_space<vmem>>, vector<1x1x1x128xf32>
    %120 = vector.shape_cast %119 : vector<1x1x1x128xf32> to vector<1x128xf32>
    %c0_43 = arith.constant 0 : index
    %c0_44 = arith.constant 0 : index
    %c0_45 = arith.constant 0 : index
    %c0_46 = arith.constant 0 : index
    %121 = vector.load %arg17[%c0_43, %c0_44, %c0_45, %c0_46] : memref<2x3x1x128xf32, #tpu.memory_space<vmem>>, vector<1x1x1x128xf32>
    %122 = vector.shape_cast %121 : vector<1x1x1x128xf32> to vector<1x128xf32>
    %cst_47 = arith.constant dense<0.000000e+00> : vector<8xf32>
    %123 = vector.multi_reduction <add>, %118, %cst_47 [1] : vector<8x128xf32> to vector<8xf32>
    %124 = vector.shape_cast %123 : vector<8xf32> to vector<8x1xf32>
    %cst_48 = arith.constant 1.280000e+02 : f32
    %125 = vector.broadcast %cst_48 : f32 to vector<8x1xf32>
    %126 = arith.divf %124, %125 : vector<8x1xf32>
    %127 = vector.broadcast %126 : vector<8x1xf32> to vector<8x128xf32>
    %128 = arith.subf %118, %127 : vector<8x128xf32>
    %129 = arith.mulf %128, %128 : vector<8x128xf32>
    %cst_49 = arith.constant dense<0.000000e+00> : vector<8xf32>
    %130 = vector.multi_reduction <add>, %129, %cst_49 [1] : vector<8x128xf32> to vector<8xf32>
    %131 = vector.shape_cast %130 : vector<8xf32> to vector<8x1xf32>
    %cst_50 = arith.constant 1.280000e+02 : f32
    %132 = vector.broadcast %cst_50 : f32 to vector<8x1xf32>
    %133 = arith.divf %131, %132 : vector<8x1xf32>
    %cst_51 = arith.constant 9.99999974E-6 : f32
    %134 = vector.broadcast %cst_51 : f32 to vector<8x1xf32>
    %135 = arith.addf %133, %134 : vector<8x1xf32>
    %136 = math.rsqrt %135 : vector<8x1xf32>
    %137 = vector.broadcast %136 : vector<8x1xf32> to vector<8x128xf32>
    %138 = arith.mulf %128, %137 : vector<8x128xf32>
    %139 = vector.broadcast %120 : vector<1x128xf32> to vector<8x128xf32>
    %140 = arith.mulf %138, %139 : vector<8x128xf32>
    %141 = vector.broadcast %122 : vector<1x128xf32> to vector<8x128xf32>
    %142 = arith.addf %140, %141 : vector<8x128xf32>
    %143 = arith.truncf %142 : vector<8x128xf32> to vector<8x128xbf16>
    %c0_52 = arith.constant 0 : index
    %c0_53 = arith.constant 0 : index
    %c0_54 = arith.constant 0 : index
    %144 = vector.load %arg6[%c0_52, %c0_53, %c0_54] : memref<2x128x128xbf16, #tpu.memory_space<vmem>>, vector<1x128x128xbf16>
    %145 = vector.shape_cast %144 : vector<1x128x128xbf16> to vector<128x128xbf16>
    %cst_55 = arith.constant dense<0.000000e+00> : vector<8x128xf32>
    %146 = tpu.matmul %143, %145, %cst_55 {dimension_numbers = #tpu.dot_dimension_numbers<[1], [0], [0], [1], [0, 0, 1, 1], [], []>} : vector<8x128xbf16>, vector<128x128xbf16>, vector<8x128xf32> -> vector<8x128xf32>
    %c0_56 = arith.constant 0 : index
    %c0_57 = arith.constant 0 : index
    %c0_58 = arith.constant 0 : index
    %147 = vector.load %arg7[%c0_56, %c0_57, %c0_58] : memref<2x1x128xf32, #tpu.memory_space<vmem>>, vector<1x1x128xf32>
    %148 = vector.shape_cast %147 : vector<1x1x128xf32> to vector<1x128xf32>
    %149 = vector.broadcast %148 : vector<1x128xf32> to vector<8x128xf32>
    %150 = arith.addf %146, %149 : vector<8x128xf32>
    %c0_59 = arith.constant 0 : index
    %c0_60 = arith.constant 0 : index
    %c0_61 = arith.constant 0 : index
    %151 = vector.load %arg8[%c0_59, %c0_60, %c0_61] : memref<2x128x256xbf16, #tpu.memory_space<vmem>>, vector<1x128x256xbf16>
    %152 = vector.shape_cast %151 : vector<1x128x256xbf16> to vector<128x256xbf16>
    %cst_62 = arith.constant dense<0.000000e+00> : vector<8x256xf32>
    %153 = tpu.matmul %2, %152, %cst_62 {dimension_numbers = #tpu.dot_dimension_numbers<[1], [0], [0], [1], [0, 0, 1, 1], [], []>} : vector<8x128xbf16>, vector<128x256xbf16>, vector<8x256xf32> -> vector<8x256xf32>
    %c0_63 = arith.constant 0 : index
    %c0_64 = arith.constant 0 : index
    %c0_65 = arith.constant 0 : index
    %154 = vector.load %arg9[%c0_63, %c0_64, %c0_65] : memref<2x1x256xf32, #tpu.memory_space<vmem>>, vector<1x1x256xf32>
    %155 = vector.shape_cast %154 : vector<1x1x256xf32> to vector<1x256xf32>
    %156 = vector.broadcast %155 : vector<1x256xf32> to vector<8x256xf32>
    %157 = arith.addf %153, %156 : vector<8x256xf32>
    %158 = vector.extract_strided_slice %157 {offsets = [0, 0], sizes = [8, 128], strides = [1, 1]} : vector<8x256xf32> to vector<8x128xf32>
    %159 = vector.extract_strided_slice %157 {offsets = [0, 128], sizes = [8, 128], strides = [1, 1]} : vector<8x256xf32> to vector<8x128xf32>
    %c0_66 = arith.constant 0 : index
    %c0_67 = arith.constant 0 : index
    %c0_68 = arith.constant 0 : index
    %160 = vector.load %arg10[%c0_66, %c0_67, %c0_68] : memref<2x128x128xbf16, #tpu.memory_space<vmem>>, vector<1x128x128xbf16>
    %161 = vector.shape_cast %160 : vector<1x128x128xbf16> to vector<128x128xbf16>
    %c0_69 = arith.constant 0 : index
    %c0_70 = arith.constant 0 : index
    %c0_71 = arith.constant 0 : index
    %162 = vector.load %arg11[%c0_69, %c0_70, %c0_71] : memref<2x1x128xf32, #tpu.memory_space<vmem>>, vector<1x1x128xf32>
    %163 = vector.shape_cast %162 : vector<1x1x128xf32> to vector<1x128xf32>
    %164 = vector.shape_cast %150 : vector<8x128xf32> to vector<1x8x128xf32>
    %165 = arith.truncf %164 : vector<1x8x128xf32> to vector<1x8x128xbf16>
    %166 = vector.shape_cast %158 : vector<8x128xf32> to vector<1x8x128xf32>
    %167 = arith.truncf %166 : vector<1x8x128xf32> to vector<1x8x128xbf16>
    %168 = vector.shape_cast %159 : vector<8x128xf32> to vector<1x8x128xf32>
    %169 = arith.truncf %168 : vector<1x8x128xf32> to vector<1x8x128xbf16>
    %170 = vector.extract_strided_slice %165 {offsets = [0, 0, 0], sizes = [1, 8, 32], strides = [1, 1, 1]} : vector<1x8x128xbf16> to vector<1x8x32xbf16>
    %171 = vector.extract_strided_slice %167 {offsets = [0, 0, 0], sizes = [1, 8, 32], strides = [1, 1, 1]} : vector<1x8x128xbf16> to vector<1x8x32xbf16>
    "tpu.trace_start"() <{level = 10 : i32, message = "bqd,bkd->bqk"}> : () -> ()
    %cst_72 = arith.constant dense<0.000000e+00> : vector<1x8x8xf32>
    %172 = tpu.matmul %170, %171, %cst_72 {dimension_numbers = #tpu.dot_dimension_numbers<[2], [2], [1], [1], [0, 0, 0, 1, 1, 1], [0], [0]>} : vector<1x8x32xbf16>, vector<1x8x32xbf16>, vector<1x8x8xf32> -> vector<1x8x8xf32>
    "tpu.trace_stop"() : () -> ()
    %cst_73 = arith.constant 0.176776692 : f32
    %173 = vector.broadcast %cst_73 : f32 to vector<1x8x8xf32>
    %174 = arith.mulf %172, %173 : vector<1x8x8xf32>
    %cst_74 = arith.constant dense<0xFF800000> : vector<1x8xf32>
    %175 = vector.multi_reduction <maximumf>, %174, %cst_74 [2] : vector<1x8x8xf32> to vector<1x8xf32>
    %176 = vector.shape_cast %175 : vector<1x8xf32> to vector<1x8x1xf32>
    %177 = vector.broadcast %176 : vector<1x8x1xf32> to vector<1x8x8xf32>
    %178 = arith.subf %174, %177 : vector<1x8x8xf32>
    %179 = math.exp %178 : vector<1x8x8xf32>
    %cst_75 = arith.constant dense<0.000000e+00> : vector<1x8xf32>
    %180 = vector.multi_reduction <add>, %179, %cst_75 [2] : vector<1x8x8xf32> to vector<1x8xf32>
    %181 = vector.shape_cast %180 : vector<1x8xf32> to vector<1x8x1xf32>
    %182 = tpu.reciprocal %181 {approx = true} : vector<1x8x1xf32> -> vector<1x8x1xf32>
    %183 = arith.mulf %181, %182 : vector<1x8x1xf32>
    %cst_76 = arith.constant 2.000000e+00 : f32
    %184 = vector.broadcast %cst_76 : f32 to vector<1x8x1xf32>
    %185 = arith.subf %184, %183 : vector<1x8x1xf32>
    %186 = arith.mulf %182, %185 : vector<1x8x1xf32>
    %187 = vector.broadcast %186 : vector<1x8x1xf32> to vector<1x8x8xf32>
    %188 = arith.mulf %179, %187 : vector<1x8x8xf32>
    %189 = arith.truncf %188 : vector<1x8x8xf32> to vector<1x8x8xbf16>
    %190 = vector.extract_strided_slice %169 {offsets = [0, 0, 0], sizes = [1, 8, 32], strides = [1, 1, 1]} : vector<1x8x128xbf16> to vector<1x8x32xbf16>
    "tpu.trace_start"() <{level = 10 : i32, message = "bqk,bkd->bqd"}> : () -> ()
    %cst_77 = arith.constant dense<0.000000e+00> : vector<1x8x32xf32>
    %191 = tpu.matmul %189, %190, %cst_77 {dimension_numbers = #tpu.dot_dimension_numbers<[2], [1], [1], [2], [0, 0, 0, 1, 1, 2], [0], [0]>} : vector<1x8x8xbf16>, vector<1x8x32xbf16>, vector<1x8x32xf32> -> vector<1x8x32xf32>
    "tpu.trace_stop"() : () -> ()
    %192 = vector.extract_strided_slice %165 {offsets = [0, 0, 32], sizes = [1, 8, 32], strides = [1, 1, 1]} : vector<1x8x128xbf16> to vector<1x8x32xbf16>
    %193 = vector.extract_strided_slice %167 {offsets = [0, 0, 32], sizes = [1, 8, 32], strides = [1, 1, 1]} : vector<1x8x128xbf16> to vector<1x8x32xbf16>
    "tpu.trace_start"() <{level = 10 : i32, message = "bqd,bkd->bqk"}> : () -> ()
    %cst_78 = arith.constant dense<0.000000e+00> : vector<1x8x8xf32>
    %194 = tpu.matmul %192, %193, %cst_78 {dimension_numbers = #tpu.dot_dimension_numbers<[2], [2], [1], [1], [0, 0, 0, 1, 1, 1], [0], [0]>} : vector<1x8x32xbf16>, vector<1x8x32xbf16>, vector<1x8x8xf32> -> vector<1x8x8xf32>
    "tpu.trace_stop"() : () -> ()
    %cst_79 = arith.constant 0.176776692 : f32
    %195 = vector.broadcast %cst_79 : f32 to vector<1x8x8xf32>
    %196 = arith.mulf %194, %195 : vector<1x8x8xf32>
    %cst_80 = arith.constant dense<0xFF800000> : vector<1x8xf32>
    %197 = vector.multi_reduction <maximumf>, %196, %cst_80 [2] : vector<1x8x8xf32> to vector<1x8xf32>
    %198 = vector.shape_cast %197 : vector<1x8xf32> to vector<1x8x1xf32>
    %199 = vector.broadcast %198 : vector<1x8x1xf32> to vector<1x8x8xf32>
    %200 = arith.subf %196, %199 : vector<1x8x8xf32>
    %201 = math.exp %200 : vector<1x8x8xf32>
    %cst_81 = arith.constant dense<0.000000e+00> : vector<1x8xf32>
    %202 = vector.multi_reduction <add>, %201, %cst_81 [2] : vector<1x8x8xf32> to vector<1x8xf32>
    %203 = vector.shape_cast %202 : vector<1x8xf32> to vector<1x8x1xf32>
    %204 = tpu.reciprocal %203 {approx = true} : vector<1x8x1xf32> -> vector<1x8x1xf32>
    %205 = arith.mulf %203, %204 : vector<1x8x1xf32>
    %cst_82 = arith.constant 2.000000e+00 : f32
    %206 = vector.broadcast %cst_82 : f32 to vector<1x8x1xf32>
    %207 = arith.subf %206, %205 : vector<1x8x1xf32>
    %208 = arith.mulf %204, %207 : vector<1x8x1xf32>
    %209 = vector.broadcast %208 : vector<1x8x1xf32> to vector<1x8x8xf32>
    %210 = arith.mulf %201, %209 : vector<1x8x8xf32>
    %211 = arith.truncf %210 : vector<1x8x8xf32> to vector<1x8x8xbf16>
    %212 = vector.extract_strided_slice %169 {offsets = [0, 0, 32], sizes = [1, 8, 32], strides = [1, 1, 1]} : vector<1x8x128xbf16> to vector<1x8x32xbf16>
    "tpu.trace_start"() <{level = 10 : i32, message = "bqk,bkd->bqd"}> : () -> ()
    %cst_83 = arith.constant dense<0.000000e+00> : vector<1x8x32xf32>
    %213 = tpu.matmul %211, %212, %cst_83 {dimension_numbers = #tpu.dot_dimension_numbers<[2], [1], [1], [2], [0, 0, 0, 1, 1, 2], [0], [0]>} : vector<1x8x8xbf16>, vector<1x8x32xbf16>, vector<1x8x32xf32> -> vector<1x8x32xf32>
    "tpu.trace_stop"() : () -> ()
    %214 = vector.extract_strided_slice %165 {offsets = [0, 0, 64], sizes = [1, 8, 32], strides = [1, 1, 1]} : vector<1x8x128xbf16> to vector<1x8x32xbf16>
    %215 = vector.extract_strided_slice %167 {offsets = [0, 0, 64], sizes = [1, 8, 32], strides = [1, 1, 1]} : vector<1x8x128xbf16> to vector<1x8x32xbf16>
    "tpu.trace_start"() <{level = 10 : i32, message = "bqd,bkd->bqk"}> : () -> ()
    %cst_84 = arith.constant dense<0.000000e+00> : vector<1x8x8xf32>
    %216 = tpu.matmul %214, %215, %cst_84 {dimension_numbers = #tpu.dot_dimension_numbers<[2], [2], [1], [1], [0, 0, 0, 1, 1, 1], [0], [0]>} : vector<1x8x32xbf16>, vector<1x8x32xbf16>, vector<1x8x8xf32> -> vector<1x8x8xf32>
    "tpu.trace_stop"() : () -> ()
    %cst_85 = arith.constant 0.176776692 : f32
    %217 = vector.broadcast %cst_85 : f32 to vector<1x8x8xf32>
    %218 = arith.mulf %216, %217 : vector<1x8x8xf32>
    %cst_86 = arith.constant dense<0xFF800000> : vector<1x8xf32>
    %219 = vector.multi_reduction <maximumf>, %218, %cst_86 [2] : vector<1x8x8xf32> to vector<1x8xf32>
    %220 = vector.shape_cast %219 : vector<1x8xf32> to vector<1x8x1xf32>
    %221 = vector.broadcast %220 : vector<1x8x1xf32> to vector<1x8x8xf32>
    %222 = arith.subf %218, %221 : vector<1x8x8xf32>
    %223 = math.exp %222 : vector<1x8x8xf32>
    %cst_87 = arith.constant dense<0.000000e+00> : vector<1x8xf32>
    %224 = vector.multi_reduction <add>, %223, %cst_87 [2] : vector<1x8x8xf32> to vector<1x8xf32>
    %225 = vector.shape_cast %224 : vector<1x8xf32> to vector<1x8x1xf32>
    %226 = tpu.reciprocal %225 {approx = true} : vector<1x8x1xf32> -> vector<1x8x1xf32>
    %227 = arith.mulf %225, %226 : vector<1x8x1xf32>
    %cst_88 = arith.constant 2.000000e+00 : f32
    %228 = vector.broadcast %cst_88 : f32 to vector<1x8x1xf32>
    %229 = arith.subf %228, %227 : vector<1x8x1xf32>
    %230 = arith.mulf %226, %229 : vector<1x8x1xf32>
    %231 = vector.broadcast %230 : vector<1x8x1xf32> to vector<1x8x8xf32>
    %232 = arith.mulf %223, %231 : vector<1x8x8xf32>
    %233 = arith.truncf %232 : vector<1x8x8xf32> to vector<1x8x8xbf16>
    %234 = vector.extract_strided_slice %169 {offsets = [0, 0, 64], sizes = [1, 8, 32], strides = [1, 1, 1]} : vector<1x8x128xbf16> to vector<1x8x32xbf16>
    "tpu.trace_start"() <{level = 10 : i32, message = "bqk,bkd->bqd"}> : () -> ()
    %cst_89 = arith.constant dense<0.000000e+00> : vector<1x8x32xf32>
    %235 = tpu.matmul %233, %234, %cst_89 {dimension_numbers = #tpu.dot_dimension_numbers<[2], [1], [1], [2], [0, 0, 0, 1, 1, 2], [0], [0]>} : vector<1x8x8xbf16>, vector<1x8x32xbf16>, vector<1x8x32xf32> -> vector<1x8x32xf32>
    "tpu.trace_stop"() : () -> ()
    %236 = vector.extract_strided_slice %165 {offsets = [0, 0, 96], sizes = [1, 8, 32], strides = [1, 1, 1]} : vector<1x8x128xbf16> to vector<1x8x32xbf16>
    %237 = vector.extract_strided_slice %167 {offsets = [0, 0, 96], sizes = [1, 8, 32], strides = [1, 1, 1]} : vector<1x8x128xbf16> to vector<1x8x32xbf16>
    "tpu.trace_start"() <{level = 10 : i32, message = "bqd,bkd->bqk"}> : () -> ()
    %cst_90 = arith.constant dense<0.000000e+00> : vector<1x8x8xf32>
    %238 = tpu.matmul %236, %237, %cst_90 {dimension_numbers = #tpu.dot_dimension_numbers<[2], [2], [1], [1], [0, 0, 0, 1, 1, 1], [0], [0]>} : vector<1x8x32xbf16>, vector<1x8x32xbf16>, vector<1x8x8xf32> -> vector<1x8x8xf32>
    "tpu.trace_stop"() : () -> ()
    %cst_91 = arith.constant 0.176776692 : f32
    %239 = vector.broadcast %cst_91 : f32 to vector<1x8x8xf32>
    %240 = arith.mulf %238, %239 : vector<1x8x8xf32>
    %cst_92 = arith.constant dense<0xFF800000> : vector<1x8xf32>
    %241 = vector.multi_reduction <maximumf>, %240, %cst_92 [2] : vector<1x8x8xf32> to vector<1x8xf32>
    %242 = vector.shape_cast %241 : vector<1x8xf32> to vector<1x8x1xf32>
    %243 = vector.broadcast %242 : vector<1x8x1xf32> to vector<1x8x8xf32>
    %244 = arith.subf %240, %243 : vector<1x8x8xf32>
    %245 = math.exp %244 : vector<1x8x8xf32>
    %cst_93 = arith.constant dense<0.000000e+00> : vector<1x8xf32>
    %246 = vector.multi_reduction <add>, %245, %cst_93 [2] : vector<1x8x8xf32> to vector<1x8xf32>
    %247 = vector.shape_cast %246 : vector<1x8xf32> to vector<1x8x1xf32>
    %248 = tpu.reciprocal %247 {approx = true} : vector<1x8x1xf32> -> vector<1x8x1xf32>
    %249 = arith.mulf %247, %248 : vector<1x8x1xf32>
    %cst_94 = arith.constant 2.000000e+00 : f32
    %250 = vector.broadcast %cst_94 : f32 to vector<1x8x1xf32>
    %251 = arith.subf %250, %249 : vector<1x8x1xf32>
    %252 = arith.mulf %248, %251 : vector<1x8x1xf32>
    %253 = vector.broadcast %252 : vector<1x8x1xf32> to vector<1x8x8xf32>
    %254 = arith.mulf %245, %253 : vector<1x8x8xf32>
    %255 = arith.truncf %254 : vector<1x8x8xf32> to vector<1x8x8xbf16>
    %256 = vector.extract_strided_slice %169 {offsets = [0, 0, 96], sizes = [1, 8, 32], strides = [1, 1, 1]} : vector<1x8x128xbf16> to vector<1x8x32xbf16>
    "tpu.trace_start"() <{level = 10 : i32, message = "bqk,bkd->bqd"}> : () -> ()
    %cst_95 = arith.constant dense<0.000000e+00> : vector<1x8x32xf32>
    %257 = tpu.matmul %255, %256, %cst_95 {dimension_numbers = #tpu.dot_dimension_numbers<[2], [1], [1], [2], [0, 0, 0, 1, 1, 2], [0], [0]>} : vector<1x8x8xbf16>, vector<1x8x32xbf16>, vector<1x8x32xf32> -> vector<1x8x32xf32>
    "tpu.trace_stop"() : () -> ()
    %258 = tpu.concatenate %191, %213, %235, %257 in 2 : vector<1x8x32xf32>, vector<1x8x32xf32>, vector<1x8x32xf32>, vector<1x8x32xf32> -> vector<1x8x128xf32>
    %259 = vector.shape_cast %258 : vector<1x8x128xf32> to vector<8x128xf32>
    %260 = arith.truncf %259 : vector<8x128xf32> to vector<8x128xbf16>
    %cst_96 = arith.constant dense<0.000000e+00> : vector<8x128xf32>
    %261 = tpu.matmul %260, %161, %cst_96 {dimension_numbers = #tpu.dot_dimension_numbers<[1], [0], [0], [1], [0, 0, 1, 1], [], []>} : vector<8x128xbf16>, vector<128x128xbf16>, vector<8x128xf32> -> vector<8x128xf32>
    %262 = vector.broadcast %163 : vector<1x128xf32> to vector<8x128xf32>
    %263 = arith.addf %261, %262 : vector<8x128xf32>
    %264 = arith.addf %142, %263 : vector<8x128xf32>
    %c0_97 = arith.constant 0 : index
    %c1 = arith.constant 1 : index
    %c0_98 = arith.constant 0 : index
    %c0_99 = arith.constant 0 : index
    %265 = vector.load %arg16[%c0_97, %c1, %c0_98, %c0_99] : memref<2x3x1x128xf32, #tpu.memory_space<vmem>>, vector<1x1x1x128xf32>
    %266 = vector.shape_cast %265 : vector<1x1x1x128xf32> to vector<1x128xf32>
    %c0_100 = arith.constant 0 : index
    %c1_101 = arith.constant 1 : index
    %c0_102 = arith.constant 0 : index
    %c0_103 = arith.constant 0 : index
    %267 = vector.load %arg17[%c0_100, %c1_101, %c0_102, %c0_103] : memref<2x3x1x128xf32, #tpu.memory_space<vmem>>, vector<1x1x1x128xf32>
    %268 = vector.shape_cast %267 : vector<1x1x1x128xf32> to vector<1x128xf32>
    %cst_104 = arith.constant dense<0.000000e+00> : vector<8xf32>
    %269 = vector.multi_reduction <add>, %264, %cst_104 [1] : vector<8x128xf32> to vector<8xf32>
    %270 = vector.shape_cast %269 : vector<8xf32> to vector<8x1xf32>
    %cst_105 = arith.constant 1.280000e+02 : f32
    %271 = vector.broadcast %cst_105 : f32 to vector<8x1xf32>
    %272 = arith.divf %270, %271 : vector<8x1xf32>
    %273 = vector.broadcast %272 : vector<8x1xf32> to vector<8x128xf32>
    %274 = arith.subf %264, %273 : vector<8x128xf32>
    %275 = arith.mulf %274, %274 : vector<8x128xf32>
    %cst_106 = arith.constant dense<0.000000e+00> : vector<8xf32>
    %276 = vector.multi_reduction <add>, %275, %cst_106 [1] : vector<8x128xf32> to vector<8xf32>
    %277 = vector.shape_cast %276 : vector<8xf32> to vector<8x1xf32>
    %cst_107 = arith.constant 1.280000e+02 : f32
    %278 = vector.broadcast %cst_107 : f32 to vector<8x1xf32>
    %279 = arith.divf %277, %278 : vector<8x1xf32>
    %cst_108 = arith.constant 9.99999974E-6 : f32
    %280 = vector.broadcast %cst_108 : f32 to vector<8x1xf32>
    %281 = arith.addf %279, %280 : vector<8x1xf32>
    %282 = math.rsqrt %281 : vector<8x1xf32>
    %283 = vector.broadcast %282 : vector<8x1xf32> to vector<8x128xf32>
    %284 = arith.mulf %274, %283 : vector<8x128xf32>
    %285 = vector.broadcast %266 : vector<1x128xf32> to vector<8x128xf32>
    %286 = arith.mulf %284, %285 : vector<8x128xf32>
    %287 = vector.broadcast %268 : vector<1x128xf32> to vector<8x128xf32>
    %288 = arith.addf %286, %287 : vector<8x128xf32>
    %289 = arith.truncf %288 : vector<8x128xf32> to vector<8x128xbf16>
    %cst_109 = arith.constant 0.000000e+00 : f32
    %290 = vector.broadcast %cst_109 : f32 to vector<8x128xf32>
    %c0_110 = arith.constant 0 : index
    %c0_111 = arith.constant 0 : index
    %c0_112 = arith.constant 0 : index
    %291 = vector.load %arg12[%c0_110, %c0_111, %c0_112] : memref<2x128x2048xbf16, #tpu.memory_space<vmem>>, vector<1x128x512xbf16>
    %292 = vector.shape_cast %291 : vector<1x128x512xbf16> to vector<128x512xbf16>
    %c0_113 = arith.constant 0 : index
    %c0_114 = arith.constant 0 : index
    %c0_115 = arith.constant 0 : index
    %293 = vector.load %arg13[%c0_113, %c0_114, %c0_115] : memref<2x1x2048xf32, #tpu.memory_space<vmem>>, vector<1x1x512xf32>
    %294 = vector.shape_cast %293 : vector<1x1x512xf32> to vector<1x512xf32>
    %cst_116 = arith.constant dense<0.000000e+00> : vector<8x512xf32>
    %295 = tpu.matmul %289, %292, %cst_116 {dimension_numbers = #tpu.dot_dimension_numbers<[1], [0], [0], [1], [0, 0, 1, 1], [], []>} : vector<8x128xbf16>, vector<128x512xbf16>, vector<8x512xf32> -> vector<8x512xf32>
    %296 = vector.broadcast %294 : vector<1x512xf32> to vector<8x512xf32>
    %297 = arith.addf %295, %296 : vector<8x512xf32>
    %cst_117 = arith.constant 0.000000e+00 : f32
    %298 = vector.broadcast %cst_117 : f32 to vector<8x512xf32>
    %299 = arith.maximumf %297, %298 : vector<8x512xf32>
    %300 = arith.truncf %299 : vector<8x512xf32> to vector<8x512xbf16>
    %c0_118 = arith.constant 0 : index
    %c0_119 = arith.constant 0 : index
    %c0_120 = arith.constant 0 : index
    %301 = vector.load %arg14[%c0_118, %c0_119, %c0_120] : memref<2x2048x128xbf16, #tpu.memory_space<vmem>>, vector<1x512x128xbf16>
    %302 = vector.shape_cast %301 : vector<1x512x128xbf16> to vector<512x128xbf16>
    %cst_121 = arith.constant dense<0.000000e+00> : vector<8x128xf32>
    %303 = tpu.matmul %300, %302, %cst_121 {dimension_numbers = #tpu.dot_dimension_numbers<[1], [0], [0], [1], [0, 0, 1, 1], [], []>} : vector<8x512xbf16>, vector<512x128xbf16>, vector<8x128xf32> -> vector<8x128xf32>
    %304 = arith.addf %290, %303 : vector<8x128xf32>
    %c0_122 = arith.constant 0 : index
    %c0_123 = arith.constant 0 : index
    %c512 = arith.constant 512 : index
    %305 = vector.load %arg12[%c0_122, %c0_123, %c512] : memref<2x128x2048xbf16, #tpu.memory_space<vmem>>, vector<1x128x512xbf16>
    %306 = vector.shape_cast %305 : vector<1x128x512xbf16> to vector<128x512xbf16>
    %c0_124 = arith.constant 0 : index
    %c0_125 = arith.constant 0 : index
    %c512_126 = arith.constant 512 : index
    %307 = vector.load %arg13[%c0_124, %c0_125, %c512_126] : memref<2x1x2048xf32, #tpu.memory_space<vmem>>, vector<1x1x512xf32>
    %308 = vector.shape_cast %307 : vector<1x1x512xf32> to vector<1x512xf32>
    %cst_127 = arith.constant dense<0.000000e+00> : vector<8x512xf32>
    %309 = tpu.matmul %289, %306, %cst_127 {dimension_numbers = #tpu.dot_dimension_numbers<[1], [0], [0], [1], [0, 0, 1, 1], [], []>} : vector<8x128xbf16>, vector<128x512xbf16>, vector<8x512xf32> -> vector<8x512xf32>
    %310 = vector.broadcast %308 : vector<1x512xf32> to vector<8x512xf32>
    %311 = arith.addf %309, %310 : vector<8x512xf32>
    %cst_128 = arith.constant 0.000000e+00 : f32
    %312 = vector.broadcast %cst_128 : f32 to vector<8x512xf32>
    %313 = arith.maximumf %311, %312 : vector<8x512xf32>
    %314 = arith.truncf %313 : vector<8x512xf32> to vector<8x512xbf16>
    %c0_129 = arith.constant 0 : index
    %c512_130 = arith.constant 512 : index
    %c0_131 = arith.constant 0 : index
    %315 = vector.load %arg14[%c0_129, %c512_130, %c0_131] : memref<2x2048x128xbf16, #tpu.memory_space<vmem>>, vector<1x512x128xbf16>
    %316 = vector.shape_cast %315 : vector<1x512x128xbf16> to vector<512x128xbf16>
    %cst_132 = arith.constant dense<0.000000e+00> : vector<8x128xf32>
    %317 = tpu.matmul %314, %316, %cst_132 {dimension_numbers = #tpu.dot_dimension_numbers<[1], [0], [0], [1], [0, 0, 1, 1], [], []>} : vector<8x512xbf16>, vector<512x128xbf16>, vector<8x128xf32> -> vector<8x128xf32>
    %318 = arith.addf %304, %317 : vector<8x128xf32>
    %c0_133 = arith.constant 0 : index
    %c0_134 = arith.constant 0 : index
    %c1024 = arith.constant 1024 : index
    %319 = vector.load %arg12[%c0_133, %c0_134, %c1024] : memref<2x128x2048xbf16, #tpu.memory_space<vmem>>, vector<1x128x512xbf16>
    %320 = vector.shape_cast %319 : vector<1x128x512xbf16> to vector<128x512xbf16>
    %c0_135 = arith.constant 0 : index
    %c0_136 = arith.constant 0 : index
    %c1024_137 = arith.constant 1024 : index
    %321 = vector.load %arg13[%c0_135, %c0_136, %c1024_137] : memref<2x1x2048xf32, #tpu.memory_space<vmem>>, vector<1x1x512xf32>
    %322 = vector.shape_cast %321 : vector<1x1x512xf32> to vector<1x512xf32>
    %cst_138 = arith.constant dense<0.000000e+00> : vector<8x512xf32>
    %323 = tpu.matmul %289, %320, %cst_138 {dimension_numbers = #tpu.dot_dimension_numbers<[1], [0], [0], [1], [0, 0, 1, 1], [], []>} : vector<8x128xbf16>, vector<128x512xbf16>, vector<8x512xf32> -> vector<8x512xf32>
    %324 = vector.broadcast %322 : vector<1x512xf32> to vector<8x512xf32>
    %325 = arith.addf %323, %324 : vector<8x512xf32>
    %cst_139 = arith.constant 0.000000e+00 : f32
    %326 = vector.broadcast %cst_139 : f32 to vector<8x512xf32>
    %327 = arith.maximumf %325, %326 : vector<8x512xf32>
    %328 = arith.truncf %327 : vector<8x512xf32> to vector<8x512xbf16>
    %c0_140 = arith.constant 0 : index
    %c1024_141 = arith.constant 1024 : index
    %c0_142 = arith.constant 0 : index
    %329 = vector.load %arg14[%c0_140, %c1024_141, %c0_142] : memref<2x2048x128xbf16, #tpu.memory_space<vmem>>, vector<1x512x128xbf16>
    %330 = vector.shape_cast %329 : vector<1x512x128xbf16> to vector<512x128xbf16>
    %cst_143 = arith.constant dense<0.000000e+00> : vector<8x128xf32>
    %331 = tpu.matmul %328, %330, %cst_143 {dimension_numbers = #tpu.dot_dimension_numbers<[1], [0], [0], [1], [0, 0, 1, 1], [], []>} : vector<8x512xbf16>, vector<512x128xbf16>, vector<8x128xf32> -> vector<8x128xf32>
    %332 = arith.addf %318, %331 : vector<8x128xf32>
    %c0_144 = arith.constant 0 : index
    %c0_145 = arith.constant 0 : index
    %c1536 = arith.constant 1536 : index
    %333 = vector.load %arg12[%c0_144, %c0_145, %c1536] : memref<2x128x2048xbf16, #tpu.memory_space<vmem>>, vector<1x128x512xbf16>
    %334 = vector.shape_cast %333 : vector<1x128x512xbf16> to vector<128x512xbf16>
    %c0_146 = arith.constant 0 : index
    %c0_147 = arith.constant 0 : index
    %c1536_148 = arith.constant 1536 : index
    %335 = vector.load %arg13[%c0_146, %c0_147, %c1536_148] : memref<2x1x2048xf32, #tpu.memory_space<vmem>>, vector<1x1x512xf32>
    %336 = vector.shape_cast %335 : vector<1x1x512xf32> to vector<1x512xf32>
    %cst_149 = arith.constant dense<0.000000e+00> : vector<8x512xf32>
    %337 = tpu.matmul %289, %334, %cst_149 {dimension_numbers = #tpu.dot_dimension_numbers<[1], [0], [0], [1], [0, 0, 1, 1], [], []>} : vector<8x128xbf16>, vector<128x512xbf16>, vector<8x512xf32> -> vector<8x512xf32>
    %338 = vector.broadcast %336 : vector<1x512xf32> to vector<8x512xf32>
    %339 = arith.addf %337, %338 : vector<8x512xf32>
    %cst_150 = arith.constant 0.000000e+00 : f32
    %340 = vector.broadcast %cst_150 : f32 to vector<8x512xf32>
    %341 = arith.maximumf %339, %340 : vector<8x512xf32>
    %342 = arith.truncf %341 : vector<8x512xf32> to vector<8x512xbf16>
    %c0_151 = arith.constant 0 : index
    %c1536_152 = arith.constant 1536 : index
    %c0_153 = arith.constant 0 : index
    %343 = vector.load %arg14[%c0_151, %c1536_152, %c0_153] : memref<2x2048x128xbf16, #tpu.memory_space<vmem>>, vector<1x512x128xbf16>
    %344 = vector.shape_cast %343 : vector<1x512x128xbf16> to vector<512x128xbf16>
    %cst_154 = arith.constant dense<0.000000e+00> : vector<8x128xf32>
    %345 = tpu.matmul %342, %344, %cst_154 {dimension_numbers = #tpu.dot_dimension_numbers<[1], [0], [0], [1], [0, 0, 1, 1], [], []>} : vector<8x512xbf16>, vector<512x128xbf16>, vector<8x128xf32> -> vector<8x128xf32>
    %346 = arith.addf %332, %345 : vector<8x128xf32>
    %347 = arith.addf %288, %346 : vector<8x128xf32>
    %c0_155 = arith.constant 0 : index
    %c0_156 = arith.constant 0 : index
    %c0_157 = arith.constant 0 : index
    %348 = vector.load %arg15[%c0_155, %c0_156, %c0_157] : memref<2x1x128xf32, #tpu.memory_space<vmem>>, vector<1x1x128xf32>
    %349 = vector.shape_cast %348 : vector<1x1x128xf32> to vector<1x128xf32>
    %350 = vector.broadcast %349 : vector<1x128xf32> to vector<8x128xf32>
    %351 = arith.addf %347, %350 : vector<8x128xf32>
    %c0_158 = arith.constant 0 : index
    %c2 = arith.constant 2 : index
    %c0_159 = arith.constant 0 : index
    %c0_160 = arith.constant 0 : index
    %352 = vector.load %arg16[%c0_158, %c2, %c0_159, %c0_160] : memref<2x3x1x128xf32, #tpu.memory_space<vmem>>, vector<1x1x1x128xf32>
    %353 = vector.shape_cast %352 : vector<1x1x1x128xf32> to vector<1x128xf32>
    %c0_161 = arith.constant 0 : index
    %c2_162 = arith.constant 2 : index
    %c0_163 = arith.constant 0 : index
    %c0_164 = arith.constant 0 : index
    %354 = vector.load %arg17[%c0_161, %c2_162, %c0_163, %c0_164] : memref<2x3x1x128xf32, #tpu.memory_space<vmem>>, vector<1x1x1x128xf32>
    %355 = vector.shape_cast %354 : vector<1x1x1x128xf32> to vector<1x128xf32>
    %cst_165 = arith.constant dense<0.000000e+00> : vector<8xf32>
    %356 = vector.multi_reduction <add>, %351, %cst_165 [1] : vector<8x128xf32> to vector<8xf32>
    %357 = vector.shape_cast %356 : vector<8xf32> to vector<8x1xf32>
    %cst_166 = arith.constant 1.280000e+02 : f32
    %358 = vector.broadcast %cst_166 : f32 to vector<8x1xf32>
    %359 = arith.divf %357, %358 : vector<8x1xf32>
    %360 = vector.broadcast %359 : vector<8x1xf32> to vector<8x128xf32>
    %361 = arith.subf %351, %360 : vector<8x128xf32>
    %362 = arith.mulf %361, %361 : vector<8x128xf32>
    %cst_167 = arith.constant dense<0.000000e+00> : vector<8xf32>
    %363 = vector.multi_reduction <add>, %362, %cst_167 [1] : vector<8x128xf32> to vector<8xf32>
    %364 = vector.shape_cast %363 : vector<8xf32> to vector<8x1xf32>
    %cst_168 = arith.constant 1.280000e+02 : f32
    %365 = vector.broadcast %cst_168 : f32 to vector<8x1xf32>
    %366 = arith.divf %364, %365 : vector<8x1xf32>
    %cst_169 = arith.constant 9.99999974E-6 : f32
    %367 = vector.broadcast %cst_169 : f32 to vector<8x1xf32>
    %368 = arith.addf %366, %367 : vector<8x1xf32>
    %369 = math.rsqrt %368 : vector<8x1xf32>
    %370 = vector.broadcast %369 : vector<8x1xf32> to vector<8x128xf32>
    %371 = arith.mulf %361, %370 : vector<8x128xf32>
    %372 = vector.broadcast %353 : vector<1x128xf32> to vector<8x128xf32>
    %373 = arith.mulf %371, %372 : vector<8x128xf32>
    %374 = vector.broadcast %355 : vector<1x128xf32> to vector<8x128xf32>
    %375 = arith.addf %373, %374 : vector<8x128xf32>
    %376 = arith.truncf %375 : vector<8x128xf32> to vector<8x128xbf16>
    %c1_170 = arith.constant 1 : index
    %c0_171 = arith.constant 0 : index
    %c0_172 = arith.constant 0 : index
    %377 = vector.load %arg2[%c1_170, %c0_171, %c0_172] : memref<2x128x384xbf16, #tpu.memory_space<vmem>>, vector<1x128x384xbf16>
    %378 = vector.shape_cast %377 : vector<1x128x384xbf16> to vector<128x384xbf16>
    %cst_173 = arith.constant dense<0.000000e+00> : vector<8x384xf32>
    %379 = tpu.matmul %376, %378, %cst_173 {dimension_numbers = #tpu.dot_dimension_numbers<[1], [0], [0], [1], [0, 0, 1, 1], [], []>} : vector<8x128xbf16>, vector<128x384xbf16>, vector<8x384xf32> -> vector<8x384xf32>
    %c1_174 = arith.constant 1 : index
    %c0_175 = arith.constant 0 : index
    %c0_176 = arith.constant 0 : index
    %380 = vector.load %arg3[%c1_174, %c0_175, %c0_176] : memref<2x1x384xf32, #tpu.memory_space<vmem>>, vector<1x1x384xf32>
    %381 = vector.shape_cast %380 : vector<1x1x384xf32> to vector<1x384xf32>
    %382 = vector.broadcast %381 : vector<1x384xf32> to vector<8x384xf32>
    %383 = arith.addf %379, %382 : vector<8x384xf32>
    %384 = vector.extract_strided_slice %383 {offsets = [0, 0], sizes = [8, 128], strides = [1, 1]} : vector<8x384xf32> to vector<8x128xf32>
    %385 = vector.extract_strided_slice %383 {offsets = [0, 128], sizes = [8, 128], strides = [1, 1]} : vector<8x384xf32> to vector<8x128xf32>
    %386 = vector.extract_strided_slice %383 {offsets = [0, 256], sizes = [8, 128], strides = [1, 1]} : vector<8x384xf32> to vector<8x128xf32>
    %c1_177 = arith.constant 1 : index
    %c0_178 = arith.constant 0 : index
    %c0_179 = arith.constant 0 : index
    %387 = vector.load %arg4[%c1_177, %c0_178, %c0_179] : memref<2x128x128xbf16, #tpu.memory_space<vmem>>, vector<1x128x128xbf16>
    %388 = vector.shape_cast %387 : vector<1x128x128xbf16> to vector<128x128xbf16>
    %c1_180 = arith.constant 1 : index
    %c0_181 = arith.constant 0 : index
    %c0_182 = arith.constant 0 : index
    %389 = vector.load %arg5[%c1_180, %c0_181, %c0_182] : memref<2x1x128xf32, #tpu.memory_space<vmem>>, vector<1x1x128xf32>
    %390 = vector.shape_cast %389 : vector<1x1x128xf32> to vector<1x128xf32>
    %391 = vector.shape_cast %384 : vector<8x128xf32> to vector<1x8x128xf32>
    %392 = arith.truncf %391 : vector<1x8x128xf32> to vector<1x8x128xbf16>
    %393 = vector.shape_cast %385 : vector<8x128xf32> to vector<1x8x128xf32>
    %394 = arith.truncf %393 : vector<1x8x128xf32> to vector<1x8x128xbf16>
    %395 = vector.shape_cast %386 : vector<8x128xf32> to vector<1x8x128xf32>
    %396 = arith.truncf %395 : vector<1x8x128xf32> to vector<1x8x128xbf16>
    %397 = vector.extract_strided_slice %392 {offsets = [0, 0, 0], sizes = [1, 8, 32], strides = [1, 1, 1]} : vector<1x8x128xbf16> to vector<1x8x32xbf16>
    %398 = vector.extract_strided_slice %394 {offsets = [0, 0, 0], sizes = [1, 8, 32], strides = [1, 1, 1]} : vector<1x8x128xbf16> to vector<1x8x32xbf16>
    "tpu.trace_start"() <{level = 10 : i32, message = "bqd,bkd->bqk"}> : () -> ()
    %cst_183 = arith.constant dense<0.000000e+00> : vector<1x8x8xf32>
    %399 = tpu.matmul %397, %398, %cst_183 {dimension_numbers = #tpu.dot_dimension_numbers<[2], [2], [1], [1], [0, 0, 0, 1, 1, 1], [0], [0]>} : vector<1x8x32xbf16>, vector<1x8x32xbf16>, vector<1x8x8xf32> -> vector<1x8x8xf32>
    "tpu.trace_stop"() : () -> ()
    %cst_184 = arith.constant 0.176776692 : f32
    %400 = vector.broadcast %cst_184 : f32 to vector<1x8x8xf32>
    %401 = arith.mulf %399, %400 : vector<1x8x8xf32>
    %cst_185 = arith.constant dense<0xFF800000> : vector<1x8xf32>
    %402 = vector.multi_reduction <maximumf>, %401, %cst_185 [2] : vector<1x8x8xf32> to vector<1x8xf32>
    %403 = vector.shape_cast %402 : vector<1x8xf32> to vector<1x8x1xf32>
    %404 = vector.broadcast %403 : vector<1x8x1xf32> to vector<1x8x8xf32>
    %405 = arith.subf %401, %404 : vector<1x8x8xf32>
    %406 = math.exp %405 : vector<1x8x8xf32>
    %cst_186 = arith.constant dense<0.000000e+00> : vector<1x8xf32>
    %407 = vector.multi_reduction <add>, %406, %cst_186 [2] : vector<1x8x8xf32> to vector<1x8xf32>
    %408 = vector.shape_cast %407 : vector<1x8xf32> to vector<1x8x1xf32>
    %409 = tpu.reciprocal %408 {approx = true} : vector<1x8x1xf32> -> vector<1x8x1xf32>
    %410 = arith.mulf %408, %409 : vector<1x8x1xf32>
    %cst_187 = arith.constant 2.000000e+00 : f32
    %411 = vector.broadcast %cst_187 : f32 to vector<1x8x1xf32>
    %412 = arith.subf %411, %410 : vector<1x8x1xf32>
    %413 = arith.mulf %409, %412 : vector<1x8x1xf32>
    %414 = vector.broadcast %413 : vector<1x8x1xf32> to vector<1x8x8xf32>
    %415 = arith.mulf %406, %414 : vector<1x8x8xf32>
    %416 = arith.truncf %415 : vector<1x8x8xf32> to vector<1x8x8xbf16>
    %417 = vector.extract_strided_slice %396 {offsets = [0, 0, 0], sizes = [1, 8, 32], strides = [1, 1, 1]} : vector<1x8x128xbf16> to vector<1x8x32xbf16>
    "tpu.trace_start"() <{level = 10 : i32, message = "bqk,bkd->bqd"}> : () -> ()
    %cst_188 = arith.constant dense<0.000000e+00> : vector<1x8x32xf32>
    %418 = tpu.matmul %416, %417, %cst_188 {dimension_numbers = #tpu.dot_dimension_numbers<[2], [1], [1], [2], [0, 0, 0, 1, 1, 2], [0], [0]>} : vector<1x8x8xbf16>, vector<1x8x32xbf16>, vector<1x8x32xf32> -> vector<1x8x32xf32>
    "tpu.trace_stop"() : () -> ()
    %419 = vector.extract_strided_slice %392 {offsets = [0, 0, 32], sizes = [1, 8, 32], strides = [1, 1, 1]} : vector<1x8x128xbf16> to vector<1x8x32xbf16>
    %420 = vector.extract_strided_slice %394 {offsets = [0, 0, 32], sizes = [1, 8, 32], strides = [1, 1, 1]} : vector<1x8x128xbf16> to vector<1x8x32xbf16>
    "tpu.trace_start"() <{level = 10 : i32, message = "bqd,bkd->bqk"}> : () -> ()
    %cst_189 = arith.constant dense<0.000000e+00> : vector<1x8x8xf32>
    %421 = tpu.matmul %419, %420, %cst_189 {dimension_numbers = #tpu.dot_dimension_numbers<[2], [2], [1], [1], [0, 0, 0, 1, 1, 1], [0], [0]>} : vector<1x8x32xbf16>, vector<1x8x32xbf16>, vector<1x8x8xf32> -> vector<1x8x8xf32>
    "tpu.trace_stop"() : () -> ()
    %cst_190 = arith.constant 0.176776692 : f32
    %422 = vector.broadcast %cst_190 : f32 to vector<1x8x8xf32>
    %423 = arith.mulf %421, %422 : vector<1x8x8xf32>
    %cst_191 = arith.constant dense<0xFF800000> : vector<1x8xf32>
    %424 = vector.multi_reduction <maximumf>, %423, %cst_191 [2] : vector<1x8x8xf32> to vector<1x8xf32>
    %425 = vector.shape_cast %424 : vector<1x8xf32> to vector<1x8x1xf32>
    %426 = vector.broadcast %425 : vector<1x8x1xf32> to vector<1x8x8xf32>
    %427 = arith.subf %423, %426 : vector<1x8x8xf32>
    %428 = math.exp %427 : vector<1x8x8xf32>
    %cst_192 = arith.constant dense<0.000000e+00> : vector<1x8xf32>
    %429 = vector.multi_reduction <add>, %428, %cst_192 [2] : vector<1x8x8xf32> to vector<1x8xf32>
    %430 = vector.shape_cast %429 : vector<1x8xf32> to vector<1x8x1xf32>
    %431 = tpu.reciprocal %430 {approx = true} : vector<1x8x1xf32> -> vector<1x8x1xf32>
    %432 = arith.mulf %430, %431 : vector<1x8x1xf32>
    %cst_193 = arith.constant 2.000000e+00 : f32
    %433 = vector.broadcast %cst_193 : f32 to vector<1x8x1xf32>
    %434 = arith.subf %433, %432 : vector<1x8x1xf32>
    %435 = arith.mulf %431, %434 : vector<1x8x1xf32>
    %436 = vector.broadcast %435 : vector<1x8x1xf32> to vector<1x8x8xf32>
    %437 = arith.mulf %428, %436 : vector<1x8x8xf32>
    %438 = arith.truncf %437 : vector<1x8x8xf32> to vector<1x8x8xbf16>
    %439 = vector.extract_strided_slice %396 {offsets = [0, 0, 32], sizes = [1, 8, 32], strides = [1, 1, 1]} : vector<1x8x128xbf16> to vector<1x8x32xbf16>
    "tpu.trace_start"() <{level = 10 : i32, message = "bqk,bkd->bqd"}> : () -> ()
    %cst_194 = arith.constant dense<0.000000e+00> : vector<1x8x32xf32>
    %440 = tpu.matmul %438, %439, %cst_194 {dimension_numbers = #tpu.dot_dimension_numbers<[2], [1], [1], [2], [0, 0, 0, 1, 1, 2], [0], [0]>} : vector<1x8x8xbf16>, vector<1x8x32xbf16>, vector<1x8x32xf32> -> vector<1x8x32xf32>
    "tpu.trace_stop"() : () -> ()
    %441 = vector.extract_strided_slice %392 {offsets = [0, 0, 64], sizes = [1, 8, 32], strides = [1, 1, 1]} : vector<1x8x128xbf16> to vector<1x8x32xbf16>
    %442 = vector.extract_strided_slice %394 {offsets = [0, 0, 64], sizes = [1, 8, 32], strides = [1, 1, 1]} : vector<1x8x128xbf16> to vector<1x8x32xbf16>
    "tpu.trace_start"() <{level = 10 : i32, message = "bqd,bkd->bqk"}> : () -> ()
    %cst_195 = arith.constant dense<0.000000e+00> : vector<1x8x8xf32>
    %443 = tpu.matmul %441, %442, %cst_195 {dimension_numbers = #tpu.dot_dimension_numbers<[2], [2], [1], [1], [0, 0, 0, 1, 1, 1], [0], [0]>} : vector<1x8x32xbf16>, vector<1x8x32xbf16>, vector<1x8x8xf32> -> vector<1x8x8xf32>
    "tpu.trace_stop"() : () -> ()
    %cst_196 = arith.constant 0.176776692 : f32
    %444 = vector.broadcast %cst_196 : f32 to vector<1x8x8xf32>
    %445 = arith.mulf %443, %444 : vector<1x8x8xf32>
    %cst_197 = arith.constant dense<0xFF800000> : vector<1x8xf32>
    %446 = vector.multi_reduction <maximumf>, %445, %cst_197 [2] : vector<1x8x8xf32> to vector<1x8xf32>
    %447 = vector.shape_cast %446 : vector<1x8xf32> to vector<1x8x1xf32>
    %448 = vector.broadcast %447 : vector<1x8x1xf32> to vector<1x8x8xf32>
    %449 = arith.subf %445, %448 : vector<1x8x8xf32>
    %450 = math.exp %449 : vector<1x8x8xf32>
    %cst_198 = arith.constant dense<0.000000e+00> : vector<1x8xf32>
    %451 = vector.multi_reduction <add>, %450, %cst_198 [2] : vector<1x8x8xf32> to vector<1x8xf32>
    %452 = vector.shape_cast %451 : vector<1x8xf32> to vector<1x8x1xf32>
    %453 = tpu.reciprocal %452 {approx = true} : vector<1x8x1xf32> -> vector<1x8x1xf32>
    %454 = arith.mulf %452, %453 : vector<1x8x1xf32>
    %cst_199 = arith.constant 2.000000e+00 : f32
    %455 = vector.broadcast %cst_199 : f32 to vector<1x8x1xf32>
    %456 = arith.subf %455, %454 : vector<1x8x1xf32>
    %457 = arith.mulf %453, %456 : vector<1x8x1xf32>
    %458 = vector.broadcast %457 : vector<1x8x1xf32> to vector<1x8x8xf32>
    %459 = arith.mulf %450, %458 : vector<1x8x8xf32>
    %460 = arith.truncf %459 : vector<1x8x8xf32> to vector<1x8x8xbf16>
    %461 = vector.extract_strided_slice %396 {offsets = [0, 0, 64], sizes = [1, 8, 32], strides = [1, 1, 1]} : vector<1x8x128xbf16> to vector<1x8x32xbf16>
    "tpu.trace_start"() <{level = 10 : i32, message = "bqk,bkd->bqd"}> : () -> ()
    %cst_200 = arith.constant dense<0.000000e+00> : vector<1x8x32xf32>
    %462 = tpu.matmul %460, %461, %cst_200 {dimension_numbers = #tpu.dot_dimension_numbers<[2], [1], [1], [2], [0, 0, 0, 1, 1, 2], [0], [0]>} : vector<1x8x8xbf16>, vector<1x8x32xbf16>, vector<1x8x32xf32> -> vector<1x8x32xf32>
    "tpu.trace_stop"() : () -> ()
    %463 = vector.extract_strided_slice %392 {offsets = [0, 0, 96], sizes = [1, 8, 32], strides = [1, 1, 1]} : vector<1x8x128xbf16> to vector<1x8x32xbf16>
    %464 = vector.extract_strided_slice %394 {offsets = [0, 0, 96], sizes = [1, 8, 32], strides = [1, 1, 1]} : vector<1x8x128xbf16> to vector<1x8x32xbf16>
    "tpu.trace_start"() <{level = 10 : i32, message = "bqd,bkd->bqk"}> : () -> ()
    %cst_201 = arith.constant dense<0.000000e+00> : vector<1x8x8xf32>
    %465 = tpu.matmul %463, %464, %cst_201 {dimension_numbers = #tpu.dot_dimension_numbers<[2], [2], [1], [1], [0, 0, 0, 1, 1, 1], [0], [0]>} : vector<1x8x32xbf16>, vector<1x8x32xbf16>, vector<1x8x8xf32> -> vector<1x8x8xf32>
    "tpu.trace_stop"() : () -> ()
    %cst_202 = arith.constant 0.176776692 : f32
    %466 = vector.broadcast %cst_202 : f32 to vector<1x8x8xf32>
    %467 = arith.mulf %465, %466 : vector<1x8x8xf32>
    %cst_203 = arith.constant dense<0xFF800000> : vector<1x8xf32>
    %468 = vector.multi_reduction <maximumf>, %467, %cst_203 [2] : vector<1x8x8xf32> to vector<1x8xf32>
    %469 = vector.shape_cast %468 : vector<1x8xf32> to vector<1x8x1xf32>
    %470 = vector.broadcast %469 : vector<1x8x1xf32> to vector<1x8x8xf32>
    %471 = arith.subf %467, %470 : vector<1x8x8xf32>
    %472 = math.exp %471 : vector<1x8x8xf32>
    %cst_204 = arith.constant dense<0.000000e+00> : vector<1x8xf32>
    %473 = vector.multi_reduction <add>, %472, %cst_204 [2] : vector<1x8x8xf32> to vector<1x8xf32>
    %474 = vector.shape_cast %473 : vector<1x8xf32> to vector<1x8x1xf32>
    %475 = tpu.reciprocal %474 {approx = true} : vector<1x8x1xf32> -> vector<1x8x1xf32>
    %476 = arith.mulf %474, %475 : vector<1x8x1xf32>
    %cst_205 = arith.constant 2.000000e+00 : f32
    %477 = vector.broadcast %cst_205 : f32 to vector<1x8x1xf32>
    %478 = arith.subf %477, %476 : vector<1x8x1xf32>
    %479 = arith.mulf %475, %478 : vector<1x8x1xf32>
    %480 = vector.broadcast %479 : vector<1x8x1xf32> to vector<1x8x8xf32>
    %481 = arith.mulf %472, %480 : vector<1x8x8xf32>
    %482 = arith.truncf %481 : vector<1x8x8xf32> to vector<1x8x8xbf16>
    %483 = vector.extract_strided_slice %396 {offsets = [0, 0, 96], sizes = [1, 8, 32], strides = [1, 1, 1]} : vector<1x8x128xbf16> to vector<1x8x32xbf16>
    "tpu.trace_start"() <{level = 10 : i32, message = "bqk,bkd->bqd"}> : () -> ()
    %cst_206 = arith.constant dense<0.000000e+00> : vector<1x8x32xf32>
    %484 = tpu.matmul %482, %483, %cst_206 {dimension_numbers = #tpu.dot_dimension_numbers<[2], [1], [1], [2], [0, 0, 0, 1, 1, 2], [0], [0]>} : vector<1x8x8xbf16>, vector<1x8x32xbf16>, vector<1x8x32xf32> -> vector<1x8x32xf32>
    "tpu.trace_stop"() : () -> ()
    %485 = tpu.concatenate %418, %440, %462, %484 in 2 : vector<1x8x32xf32>, vector<1x8x32xf32>, vector<1x8x32xf32>, vector<1x8x32xf32> -> vector<1x8x128xf32>
    %486 = vector.shape_cast %485 : vector<1x8x128xf32> to vector<8x128xf32>
    %487 = arith.truncf %486 : vector<8x128xf32> to vector<8x128xbf16>
    %cst_207 = arith.constant dense<0.000000e+00> : vector<8x128xf32>
    %488 = tpu.matmul %487, %388, %cst_207 {dimension_numbers = #tpu.dot_dimension_numbers<[1], [0], [0], [1], [0, 0, 1, 1], [], []>} : vector<8x128xbf16>, vector<128x128xbf16>, vector<8x128xf32> -> vector<8x128xf32>
    %489 = vector.broadcast %390 : vector<1x128xf32> to vector<8x128xf32>
    %490 = arith.addf %488, %489 : vector<8x128xf32>
    %491 = arith.addf %375, %490 : vector<8x128xf32>
    %c1_208 = arith.constant 1 : index
    %c0_209 = arith.constant 0 : index
    %c0_210 = arith.constant 0 : index
    %c0_211 = arith.constant 0 : index
    %492 = vector.load %arg16[%c1_208, %c0_209, %c0_210, %c0_211] : memref<2x3x1x128xf32, #tpu.memory_space<vmem>>, vector<1x1x1x128xf32>
    %493 = vector.shape_cast %492 : vector<1x1x1x128xf32> to vector<1x128xf32>
    %c1_212 = arith.constant 1 : index
    %c0_213 = arith.constant 0 : index
    %c0_214 = arith.constant 0 : index
    %c0_215 = arith.constant 0 : index
    %494 = vector.load %arg17[%c1_212, %c0_213, %c0_214, %c0_215] : memref<2x3x1x128xf32, #tpu.memory_space<vmem>>, vector<1x1x1x128xf32>
    %495 = vector.shape_cast %494 : vector<1x1x1x128xf32> to vector<1x128xf32>
    %cst_216 = arith.constant dense<0.000000e+00> : vector<8xf32>
    %496 = vector.multi_reduction <add>, %491, %cst_216 [1] : vector<8x128xf32> to vector<8xf32>
    %497 = vector.shape_cast %496 : vector<8xf32> to vector<8x1xf32>
    %cst_217 = arith.constant 1.280000e+02 : f32
    %498 = vector.broadcast %cst_217 : f32 to vector<8x1xf32>
    %499 = arith.divf %497, %498 : vector<8x1xf32>
    %500 = vector.broadcast %499 : vector<8x1xf32> to vector<8x128xf32>
    %501 = arith.subf %491, %500 : vector<8x128xf32>
    %502 = arith.mulf %501, %501 : vector<8x128xf32>
    %cst_218 = arith.constant dense<0.000000e+00> : vector<8xf32>
    %503 = vector.multi_reduction <add>, %502, %cst_218 [1] : vector<8x128xf32> to vector<8xf32>
    %504 = vector.shape_cast %503 : vector<8xf32> to vector<8x1xf32>
    %cst_219 = arith.constant 1.280000e+02 : f32
    %505 = vector.broadcast %cst_219 : f32 to vector<8x1xf32>
    %506 = arith.divf %504, %505 : vector<8x1xf32>
    %cst_220 = arith.constant 9.99999974E-6 : f32
    %507 = vector.broadcast %cst_220 : f32 to vector<8x1xf32>
    %508 = arith.addf %506, %507 : vector<8x1xf32>
    %509 = math.rsqrt %508 : vector<8x1xf32>
    %510 = vector.broadcast %509 : vector<8x1xf32> to vector<8x128xf32>
    %511 = arith.mulf %501, %510 : vector<8x128xf32>
    %512 = vector.broadcast %493 : vector<1x128xf32> to vector<8x128xf32>
    %513 = arith.mulf %511, %512 : vector<8x128xf32>
    %514 = vector.broadcast %495 : vector<1x128xf32> to vector<8x128xf32>
    %515 = arith.addf %513, %514 : vector<8x128xf32>
    %516 = arith.truncf %515 : vector<8x128xf32> to vector<8x128xbf16>
    %c1_221 = arith.constant 1 : index
    %c0_222 = arith.constant 0 : index
    %c0_223 = arith.constant 0 : index
    %517 = vector.load %arg6[%c1_221, %c0_222, %c0_223] : memref<2x128x128xbf16, #tpu.memory_space<vmem>>, vector<1x128x128xbf16>
    %518 = vector.shape_cast %517 : vector<1x128x128xbf16> to vector<128x128xbf16>
    %cst_224 = arith.constant dense<0.000000e+00> : vector<8x128xf32>
    %519 = tpu.matmul %516, %518, %cst_224 {dimension_numbers = #tpu.dot_dimension_numbers<[1], [0], [0], [1], [0, 0, 1, 1], [], []>} : vector<8x128xbf16>, vector<128x128xbf16>, vector<8x128xf32> -> vector<8x128xf32>
    %c1_225 = arith.constant 1 : index
    %c0_226 = arith.constant 0 : index
    %c0_227 = arith.constant 0 : index
    %520 = vector.load %arg7[%c1_225, %c0_226, %c0_227] : memref<2x1x128xf32, #tpu.memory_space<vmem>>, vector<1x1x128xf32>
    %521 = vector.shape_cast %520 : vector<1x1x128xf32> to vector<1x128xf32>
    %522 = vector.broadcast %521 : vector<1x128xf32> to vector<8x128xf32>
    %523 = arith.addf %519, %522 : vector<8x128xf32>
    %c1_228 = arith.constant 1 : index
    %c0_229 = arith.constant 0 : index
    %c0_230 = arith.constant 0 : index
    %524 = vector.load %arg8[%c1_228, %c0_229, %c0_230] : memref<2x128x256xbf16, #tpu.memory_space<vmem>>, vector<1x128x256xbf16>
    %525 = vector.shape_cast %524 : vector<1x128x256xbf16> to vector<128x256xbf16>
    %cst_231 = arith.constant dense<0.000000e+00> : vector<8x256xf32>
    %526 = tpu.matmul %2, %525, %cst_231 {dimension_numbers = #tpu.dot_dimension_numbers<[1], [0], [0], [1], [0, 0, 1, 1], [], []>} : vector<8x128xbf16>, vector<128x256xbf16>, vector<8x256xf32> -> vector<8x256xf32>
    %c1_232 = arith.constant 1 : index
    %c0_233 = arith.constant 0 : index
    %c0_234 = arith.constant 0 : index
    %527 = vector.load %arg9[%c1_232, %c0_233, %c0_234] : memref<2x1x256xf32, #tpu.memory_space<vmem>>, vector<1x1x256xf32>
    %528 = vector.shape_cast %527 : vector<1x1x256xf32> to vector<1x256xf32>
    %529 = vector.broadcast %528 : vector<1x256xf32> to vector<8x256xf32>
    %530 = arith.addf %526, %529 : vector<8x256xf32>
    %531 = vector.extract_strided_slice %530 {offsets = [0, 0], sizes = [8, 128], strides = [1, 1]} : vector<8x256xf32> to vector<8x128xf32>
    %532 = vector.extract_strided_slice %530 {offsets = [0, 128], sizes = [8, 128], strides = [1, 1]} : vector<8x256xf32> to vector<8x128xf32>
    %c1_235 = arith.constant 1 : index
    %c0_236 = arith.constant 0 : index
    %c0_237 = arith.constant 0 : index
    %533 = vector.load %arg10[%c1_235, %c0_236, %c0_237] : memref<2x128x128xbf16, #tpu.memory_space<vmem>>, vector<1x128x128xbf16>
    %534 = vector.shape_cast %533 : vector<1x128x128xbf16> to vector<128x128xbf16>
    %c1_238 = arith.constant 1 : index
    %c0_239 = arith.constant 0 : index
    %c0_240 = arith.constant 0 : index
    %535 = vector.load %arg11[%c1_238, %c0_239, %c0_240] : memref<2x1x128xf32, #tpu.memory_space<vmem>>, vector<1x1x128xf32>
    %536 = vector.shape_cast %535 : vector<1x1x128xf32> to vector<1x128xf32>
    %537 = vector.shape_cast %523 : vector<8x128xf32> to vector<1x8x128xf32>
    %538 = arith.truncf %537 : vector<1x8x128xf32> to vector<1x8x128xbf16>
    %539 = vector.shape_cast %531 : vector<8x128xf32> to vector<1x8x128xf32>
    %540 = arith.truncf %539 : vector<1x8x128xf32> to vector<1x8x128xbf16>
    %541 = vector.shape_cast %532 : vector<8x128xf32> to vector<1x8x128xf32>
    %542 = arith.truncf %541 : vector<1x8x128xf32> to vector<1x8x128xbf16>
    %543 = vector.extract_strided_slice %538 {offsets = [0, 0, 0], sizes = [1, 8, 32], strides = [1, 1, 1]} : vector<1x8x128xbf16> to vector<1x8x32xbf16>
    %544 = vector.extract_strided_slice %540 {offsets = [0, 0, 0], sizes = [1, 8, 32], strides = [1, 1, 1]} : vector<1x8x128xbf16> to vector<1x8x32xbf16>
    "tpu.trace_start"() <{level = 10 : i32, message = "bqd,bkd->bqk"}> : () -> ()
    %cst_241 = arith.constant dense<0.000000e+00> : vector<1x8x8xf32>
    %545 = tpu.matmul %543, %544, %cst_241 {dimension_numbers = #tpu.dot_dimension_numbers<[2], [2], [1], [1], [0, 0, 0, 1, 1, 1], [0], [0]>} : vector<1x8x32xbf16>, vector<1x8x32xbf16>, vector<1x8x8xf32> -> vector<1x8x8xf32>
    "tpu.trace_stop"() : () -> ()
    %cst_242 = arith.constant 0.176776692 : f32
    %546 = vector.broadcast %cst_242 : f32 to vector<1x8x8xf32>
    %547 = arith.mulf %545, %546 : vector<1x8x8xf32>
    %cst_243 = arith.constant dense<0xFF800000> : vector<1x8xf32>
    %548 = vector.multi_reduction <maximumf>, %547, %cst_243 [2] : vector<1x8x8xf32> to vector<1x8xf32>
    %549 = vector.shape_cast %548 : vector<1x8xf32> to vector<1x8x1xf32>
    %550 = vector.broadcast %549 : vector<1x8x1xf32> to vector<1x8x8xf32>
    %551 = arith.subf %547, %550 : vector<1x8x8xf32>
    %552 = math.exp %551 : vector<1x8x8xf32>
    %cst_244 = arith.constant dense<0.000000e+00> : vector<1x8xf32>
    %553 = vector.multi_reduction <add>, %552, %cst_244 [2] : vector<1x8x8xf32> to vector<1x8xf32>
    %554 = vector.shape_cast %553 : vector<1x8xf32> to vector<1x8x1xf32>
    %555 = tpu.reciprocal %554 {approx = true} : vector<1x8x1xf32> -> vector<1x8x1xf32>
    %556 = arith.mulf %554, %555 : vector<1x8x1xf32>
    %cst_245 = arith.constant 2.000000e+00 : f32
    %557 = vector.broadcast %cst_245 : f32 to vector<1x8x1xf32>
    %558 = arith.subf %557, %556 : vector<1x8x1xf32>
    %559 = arith.mulf %555, %558 : vector<1x8x1xf32>
    %560 = vector.broadcast %559 : vector<1x8x1xf32> to vector<1x8x8xf32>
    %561 = arith.mulf %552, %560 : vector<1x8x8xf32>
    %562 = arith.truncf %561 : vector<1x8x8xf32> to vector<1x8x8xbf16>
    %563 = vector.extract_strided_slice %542 {offsets = [0, 0, 0], sizes = [1, 8, 32], strides = [1, 1, 1]} : vector<1x8x128xbf16> to vector<1x8x32xbf16>
    "tpu.trace_start"() <{level = 10 : i32, message = "bqk,bkd->bqd"}> : () -> ()
    %cst_246 = arith.constant dense<0.000000e+00> : vector<1x8x32xf32>
    %564 = tpu.matmul %562, %563, %cst_246 {dimension_numbers = #tpu.dot_dimension_numbers<[2], [1], [1], [2], [0, 0, 0, 1, 1, 2], [0], [0]>} : vector<1x8x8xbf16>, vector<1x8x32xbf16>, vector<1x8x32xf32> -> vector<1x8x32xf32>
    "tpu.trace_stop"() : () -> ()
    %565 = vector.extract_strided_slice %538 {offsets = [0, 0, 32], sizes = [1, 8, 32], strides = [1, 1, 1]} : vector<1x8x128xbf16> to vector<1x8x32xbf16>
    %566 = vector.extract_strided_slice %540 {offsets = [0, 0, 32], sizes = [1, 8, 32], strides = [1, 1, 1]} : vector<1x8x128xbf16> to vector<1x8x32xbf16>
    "tpu.trace_start"() <{level = 10 : i32, message = "bqd,bkd->bqk"}> : () -> ()
    %cst_247 = arith.constant dense<0.000000e+00> : vector<1x8x8xf32>
    %567 = tpu.matmul %565, %566, %cst_247 {dimension_numbers = #tpu.dot_dimension_numbers<[2], [2], [1], [1], [0, 0, 0, 1, 1, 1], [0], [0]>} : vector<1x8x32xbf16>, vector<1x8x32xbf16>, vector<1x8x8xf32> -> vector<1x8x8xf32>
    "tpu.trace_stop"() : () -> ()
    %cst_248 = arith.constant 0.176776692 : f32
    %568 = vector.broadcast %cst_248 : f32 to vector<1x8x8xf32>
    %569 = arith.mulf %567, %568 : vector<1x8x8xf32>
    %cst_249 = arith.constant dense<0xFF800000> : vector<1x8xf32>
    %570 = vector.multi_reduction <maximumf>, %569, %cst_249 [2] : vector<1x8x8xf32> to vector<1x8xf32>
    %571 = vector.shape_cast %570 : vector<1x8xf32> to vector<1x8x1xf32>
    %572 = vector.broadcast %571 : vector<1x8x1xf32> to vector<1x8x8xf32>
    %573 = arith.subf %569, %572 : vector<1x8x8xf32>
    %574 = math.exp %573 : vector<1x8x8xf32>
    %cst_250 = arith.constant dense<0.000000e+00> : vector<1x8xf32>
    %575 = vector.multi_reduction <add>, %574, %cst_250 [2] : vector<1x8x8xf32> to vector<1x8xf32>
    %576 = vector.shape_cast %575 : vector<1x8xf32> to vector<1x8x1xf32>
    %577 = tpu.reciprocal %576 {approx = true} : vector<1x8x1xf32> -> vector<1x8x1xf32>
    %578 = arith.mulf %576, %577 : vector<1x8x1xf32>
    %cst_251 = arith.constant 2.000000e+00 : f32
    %579 = vector.broadcast %cst_251 : f32 to vector<1x8x1xf32>
    %580 = arith.subf %579, %578 : vector<1x8x1xf32>
    %581 = arith.mulf %577, %580 : vector<1x8x1xf32>
    %582 = vector.broadcast %581 : vector<1x8x1xf32> to vector<1x8x8xf32>
    %583 = arith.mulf %574, %582 : vector<1x8x8xf32>
    %584 = arith.truncf %583 : vector<1x8x8xf32> to vector<1x8x8xbf16>
    %585 = vector.extract_strided_slice %542 {offsets = [0, 0, 32], sizes = [1, 8, 32], strides = [1, 1, 1]} : vector<1x8x128xbf16> to vector<1x8x32xbf16>
    "tpu.trace_start"() <{level = 10 : i32, message = "bqk,bkd->bqd"}> : () -> ()
    %cst_252 = arith.constant dense<0.000000e+00> : vector<1x8x32xf32>
    %586 = tpu.matmul %584, %585, %cst_252 {dimension_numbers = #tpu.dot_dimension_numbers<[2], [1], [1], [2], [0, 0, 0, 1, 1, 2], [0], [0]>} : vector<1x8x8xbf16>, vector<1x8x32xbf16>, vector<1x8x32xf32> -> vector<1x8x32xf32>
    "tpu.trace_stop"() : () -> ()
    %587 = vector.extract_strided_slice %538 {offsets = [0, 0, 64], sizes = [1, 8, 32], strides = [1, 1, 1]} : vector<1x8x128xbf16> to vector<1x8x32xbf16>
    %588 = vector.extract_strided_slice %540 {offsets = [0, 0, 64], sizes = [1, 8, 32], strides = [1, 1, 1]} : vector<1x8x128xbf16> to vector<1x8x32xbf16>
    "tpu.trace_start"() <{level = 10 : i32, message = "bqd,bkd->bqk"}> : () -> ()
    %cst_253 = arith.constant dense<0.000000e+00> : vector<1x8x8xf32>
    %589 = tpu.matmul %587, %588, %cst_253 {dimension_numbers = #tpu.dot_dimension_numbers<[2], [2], [1], [1], [0, 0, 0, 1, 1, 1], [0], [0]>} : vector<1x8x32xbf16>, vector<1x8x32xbf16>, vector<1x8x8xf32> -> vector<1x8x8xf32>
    "tpu.trace_stop"() : () -> ()
    %cst_254 = arith.constant 0.176776692 : f32
    %590 = vector.broadcast %cst_254 : f32 to vector<1x8x8xf32>
    %591 = arith.mulf %589, %590 : vector<1x8x8xf32>
    %cst_255 = arith.constant dense<0xFF800000> : vector<1x8xf32>
    %592 = vector.multi_reduction <maximumf>, %591, %cst_255 [2] : vector<1x8x8xf32> to vector<1x8xf32>
    %593 = vector.shape_cast %592 : vector<1x8xf32> to vector<1x8x1xf32>
    %594 = vector.broadcast %593 : vector<1x8x1xf32> to vector<1x8x8xf32>
    %595 = arith.subf %591, %594 : vector<1x8x8xf32>
    %596 = math.exp %595 : vector<1x8x8xf32>
    %cst_256 = arith.constant dense<0.000000e+00> : vector<1x8xf32>
    %597 = vector.multi_reduction <add>, %596, %cst_256 [2] : vector<1x8x8xf32> to vector<1x8xf32>
    %598 = vector.shape_cast %597 : vector<1x8xf32> to vector<1x8x1xf32>
    %599 = tpu.reciprocal %598 {approx = true} : vector<1x8x1xf32> -> vector<1x8x1xf32>
    %600 = arith.mulf %598, %599 : vector<1x8x1xf32>
    %cst_257 = arith.constant 2.000000e+00 : f32
    %601 = vector.broadcast %cst_257 : f32 to vector<1x8x1xf32>
    %602 = arith.subf %601, %600 : vector<1x8x1xf32>
    %603 = arith.mulf %599, %602 : vector<1x8x1xf32>
    %604 = vector.broadcast %603 : vector<1x8x1xf32> to vector<1x8x8xf32>
    %605 = arith.mulf %596, %604 : vector<1x8x8xf32>
    %606 = arith.truncf %605 : vector<1x8x8xf32> to vector<1x8x8xbf16>
    %607 = vector.extract_strided_slice %542 {offsets = [0, 0, 64], sizes = [1, 8, 32], strides = [1, 1, 1]} : vector<1x8x128xbf16> to vector<1x8x32xbf16>
    "tpu.trace_start"() <{level = 10 : i32, message = "bqk,bkd->bqd"}> : () -> ()
    %cst_258 = arith.constant dense<0.000000e+00> : vector<1x8x32xf32>
    %608 = tpu.matmul %606, %607, %cst_258 {dimension_numbers = #tpu.dot_dimension_numbers<[2], [1], [1], [2], [0, 0, 0, 1, 1, 2], [0], [0]>} : vector<1x8x8xbf16>, vector<1x8x32xbf16>, vector<1x8x32xf32> -> vector<1x8x32xf32>
    "tpu.trace_stop"() : () -> ()
    %609 = vector.extract_strided_slice %538 {offsets = [0, 0, 96], sizes = [1, 8, 32], strides = [1, 1, 1]} : vector<1x8x128xbf16> to vector<1x8x32xbf16>
    %610 = vector.extract_strided_slice %540 {offsets = [0, 0, 96], sizes = [1, 8, 32], strides = [1, 1, 1]} : vector<1x8x128xbf16> to vector<1x8x32xbf16>
    "tpu.trace_start"() <{level = 10 : i32, message = "bqd,bkd->bqk"}> : () -> ()
    %cst_259 = arith.constant dense<0.000000e+00> : vector<1x8x8xf32>
    %611 = tpu.matmul %609, %610, %cst_259 {dimension_numbers = #tpu.dot_dimension_numbers<[2], [2], [1], [1], [0, 0, 0, 1, 1, 1], [0], [0]>} : vector<1x8x32xbf16>, vector<1x8x32xbf16>, vector<1x8x8xf32> -> vector<1x8x8xf32>
    "tpu.trace_stop"() : () -> ()
    %cst_260 = arith.constant 0.176776692 : f32
    %612 = vector.broadcast %cst_260 : f32 to vector<1x8x8xf32>
    %613 = arith.mulf %611, %612 : vector<1x8x8xf32>
    %cst_261 = arith.constant dense<0xFF800000> : vector<1x8xf32>
    %614 = vector.multi_reduction <maximumf>, %613, %cst_261 [2] : vector<1x8x8xf32> to vector<1x8xf32>
    %615 = vector.shape_cast %614 : vector<1x8xf32> to vector<1x8x1xf32>
    %616 = vector.broadcast %615 : vector<1x8x1xf32> to vector<1x8x8xf32>
    %617 = arith.subf %613, %616 : vector<1x8x8xf32>
    %618 = math.exp %617 : vector<1x8x8xf32>
    %cst_262 = arith.constant dense<0.000000e+00> : vector<1x8xf32>
    %619 = vector.multi_reduction <add>, %618, %cst_262 [2] : vector<1x8x8xf32> to vector<1x8xf32>
    %620 = vector.shape_cast %619 : vector<1x8xf32> to vector<1x8x1xf32>
    %621 = tpu.reciprocal %620 {approx = true} : vector<1x8x1xf32> -> vector<1x8x1xf32>
    %622 = arith.mulf %620, %621 : vector<1x8x1xf32>
    %cst_263 = arith.constant 2.000000e+00 : f32
    %623 = vector.broadcast %cst_263 : f32 to vector<1x8x1xf32>
    %624 = arith.subf %623, %622 : vector<1x8x1xf32>
    %625 = arith.mulf %621, %624 : vector<1x8x1xf32>
    %626 = vector.broadcast %625 : vector<1x8x1xf32> to vector<1x8x8xf32>
    %627 = arith.mulf %618, %626 : vector<1x8x8xf32>
    %628 = arith.truncf %627 : vector<1x8x8xf32> to vector<1x8x8xbf16>
    %629 = vector.extract_strided_slice %542 {offsets = [0, 0, 96], sizes = [1, 8, 32], strides = [1, 1, 1]} : vector<1x8x128xbf16> to vector<1x8x32xbf16>
    "tpu.trace_start"() <{level = 10 : i32, message = "bqk,bkd->bqd"}> : () -> ()
    %cst_264 = arith.constant dense<0.000000e+00> : vector<1x8x32xf32>
    %630 = tpu.matmul %628, %629, %cst_264 {dimension_numbers = #tpu.dot_dimension_numbers<[2], [1], [1], [2], [0, 0, 0, 1, 1, 2], [0], [0]>} : vector<1x8x8xbf16>, vector<1x8x32xbf16>, vector<1x8x32xf32> -> vector<1x8x32xf32>
    "tpu.trace_stop"() : () -> ()
    %631 = tpu.concatenate %564, %586, %608, %630 in 2 : vector<1x8x32xf32>, vector<1x8x32xf32>, vector<1x8x32xf32>, vector<1x8x32xf32> -> vector<1x8x128xf32>
    %632 = vector.shape_cast %631 : vector<1x8x128xf32> to vector<8x128xf32>
    %633 = arith.truncf %632 : vector<8x128xf32> to vector<8x128xbf16>
    %cst_265 = arith.constant dense<0.000000e+00> : vector<8x128xf32>
    %634 = tpu.matmul %633, %534, %cst_265 {dimension_numbers = #tpu.dot_dimension_numbers<[1], [0], [0], [1], [0, 0, 1, 1], [], []>} : vector<8x128xbf16>, vector<128x128xbf16>, vector<8x128xf32> -> vector<8x128xf32>
    %635 = vector.broadcast %536 : vector<1x128xf32> to vector<8x128xf32>
    %636 = arith.addf %634, %635 : vector<8x128xf32>
    %637 = arith.addf %515, %636 : vector<8x128xf32>
    %c1_266 = arith.constant 1 : index
    %c1_267 = arith.constant 1 : index
    %c0_268 = arith.constant 0 : index
    %c0_269 = arith.constant 0 : index
    %638 = vector.load %arg16[%c1_266, %c1_267, %c0_268, %c0_269] : memref<2x3x1x128xf32, #tpu.memory_space<vmem>>, vector<1x1x1x128xf32>
    %639 = vector.shape_cast %638 : vector<1x1x1x128xf32> to vector<1x128xf32>
    %c1_270 = arith.constant 1 : index
    %c1_271 = arith.constant 1 : index
    %c0_272 = arith.constant 0 : index
    %c0_273 = arith.constant 0 : index
    %640 = vector.load %arg17[%c1_270, %c1_271, %c0_272, %c0_273] : memref<2x3x1x128xf32, #tpu.memory_space<vmem>>, vector<1x1x1x128xf32>
    %641 = vector.shape_cast %640 : vector<1x1x1x128xf32> to vector<1x128xf32>
    %cst_274 = arith.constant dense<0.000000e+00> : vector<8xf32>
    %642 = vector.multi_reduction <add>, %637, %cst_274 [1] : vector<8x128xf32> to vector<8xf32>
    %643 = vector.shape_cast %642 : vector<8xf32> to vector<8x1xf32>
    %cst_275 = arith.constant 1.280000e+02 : f32
    %644 = vector.broadcast %cst_275 : f32 to vector<8x1xf32>
    %645 = arith.divf %643, %644 : vector<8x1xf32>
    %646 = vector.broadcast %645 : vector<8x1xf32> to vector<8x128xf32>
    %647 = arith.subf %637, %646 : vector<8x128xf32>
    %648 = arith.mulf %647, %647 : vector<8x128xf32>
    %cst_276 = arith.constant dense<0.000000e+00> : vector<8xf32>
    %649 = vector.multi_reduction <add>, %648, %cst_276 [1] : vector<8x128xf32> to vector<8xf32>
    %650 = vector.shape_cast %649 : vector<8xf32> to vector<8x1xf32>
    %cst_277 = arith.constant 1.280000e+02 : f32
    %651 = vector.broadcast %cst_277 : f32 to vector<8x1xf32>
    %652 = arith.divf %650, %651 : vector<8x1xf32>
    %cst_278 = arith.constant 9.99999974E-6 : f32
    %653 = vector.broadcast %cst_278 : f32 to vector<8x1xf32>
    %654 = arith.addf %652, %653 : vector<8x1xf32>
    %655 = math.rsqrt %654 : vector<8x1xf32>
    %656 = vector.broadcast %655 : vector<8x1xf32> to vector<8x128xf32>
    %657 = arith.mulf %647, %656 : vector<8x128xf32>
    %658 = vector.broadcast %639 : vector<1x128xf32> to vector<8x128xf32>
    %659 = arith.mulf %657, %658 : vector<8x128xf32>
    %660 = vector.broadcast %641 : vector<1x128xf32> to vector<8x128xf32>
    %661 = arith.addf %659, %660 : vector<8x128xf32>
    %662 = arith.truncf %661 : vector<8x128xf32> to vector<8x128xbf16>
    %cst_279 = arith.constant 0.000000e+00 : f32
    %663 = vector.broadcast %cst_279 : f32 to vector<8x128xf32>
    %c1_280 = arith.constant 1 : index
    %c0_281 = arith.constant 0 : index
    %c0_282 = arith.constant 0 : index
    %664 = vector.load %arg12[%c1_280, %c0_281, %c0_282] : memref<2x128x2048xbf16, #tpu.memory_space<vmem>>, vector<1x128x512xbf16>
    %665 = vector.shape_cast %664 : vector<1x128x512xbf16> to vector<128x512xbf16>
    %c1_283 = arith.constant 1 : index
    %c0_284 = arith.constant 0 : index
    %c0_285 = arith.constant 0 : index
    %666 = vector.load %arg13[%c1_283, %c0_284, %c0_285] : memref<2x1x2048xf32, #tpu.memory_space<vmem>>, vector<1x1x512xf32>
    %667 = vector.shape_cast %666 : vector<1x1x512xf32> to vector<1x512xf32>
    %cst_286 = arith.constant dense<0.000000e+00> : vector<8x512xf32>
    %668 = tpu.matmul %662, %665, %cst_286 {dimension_numbers = #tpu.dot_dimension_numbers<[1], [0], [0], [1], [0, 0, 1, 1], [], []>} : vector<8x128xbf16>, vector<128x512xbf16>, vector<8x512xf32> -> vector<8x512xf32>
    %669 = vector.broadcast %667 : vector<1x512xf32> to vector<8x512xf32>
    %670 = arith.addf %668, %669 : vector<8x512xf32>
    %cst_287 = arith.constant 0.000000e+00 : f32
    %671 = vector.broadcast %cst_287 : f32 to vector<8x512xf32>
    %672 = arith.maximumf %670, %671 : vector<8x512xf32>
    %673 = arith.truncf %672 : vector<8x512xf32> to vector<8x512xbf16>
    %c1_288 = arith.constant 1 : index
    %c0_289 = arith.constant 0 : index
    %c0_290 = arith.constant 0 : index
    %674 = vector.load %arg14[%c1_288, %c0_289, %c0_290] : memref<2x2048x128xbf16, #tpu.memory_space<vmem>>, vector<1x512x128xbf16>
    %675 = vector.shape_cast %674 : vector<1x512x128xbf16> to vector<512x128xbf16>
    %cst_291 = arith.constant dense<0.000000e+00> : vector<8x128xf32>
    %676 = tpu.matmul %673, %675, %cst_291 {dimension_numbers = #tpu.dot_dimension_numbers<[1], [0], [0], [1], [0, 0, 1, 1], [], []>} : vector<8x512xbf16>, vector<512x128xbf16>, vector<8x128xf32> -> vector<8x128xf32>
    %677 = arith.addf %663, %676 : vector<8x128xf32>
    %c1_292 = arith.constant 1 : index
    %c0_293 = arith.constant 0 : index
    %c512_294 = arith.constant 512 : index
    %678 = vector.load %arg12[%c1_292, %c0_293, %c512_294] : memref<2x128x2048xbf16, #tpu.memory_space<vmem>>, vector<1x128x512xbf16>
    %679 = vector.shape_cast %678 : vector<1x128x512xbf16> to vector<128x512xbf16>
    %c1_295 = arith.constant 1 : index
    %c0_296 = arith.constant 0 : index
    %c512_297 = arith.constant 512 : index
    %680 = vector.load %arg13[%c1_295, %c0_296, %c512_297] : memref<2x1x2048xf32, #tpu.memory_space<vmem>>, vector<1x1x512xf32>
    %681 = vector.shape_cast %680 : vector<1x1x512xf32> to vector<1x512xf32>
    %cst_298 = arith.constant dense<0.000000e+00> : vector<8x512xf32>
    %682 = tpu.matmul %662, %679, %cst_298 {dimension_numbers = #tpu.dot_dimension_numbers<[1], [0], [0], [1], [0, 0, 1, 1], [], []>} : vector<8x128xbf16>, vector<128x512xbf16>, vector<8x512xf32> -> vector<8x512xf32>
    %683 = vector.broadcast %681 : vector<1x512xf32> to vector<8x512xf32>
    %684 = arith.addf %682, %683 : vector<8x512xf32>
    %cst_299 = arith.constant 0.000000e+00 : f32
    %685 = vector.broadcast %cst_299 : f32 to vector<8x512xf32>
    %686 = arith.maximumf %684, %685 : vector<8x512xf32>
    %687 = arith.truncf %686 : vector<8x512xf32> to vector<8x512xbf16>
    %c1_300 = arith.constant 1 : index
    %c512_301 = arith.constant 512 : index
    %c0_302 = arith.constant 0 : index
    %688 = vector.load %arg14[%c1_300, %c512_301, %c0_302] : memref<2x2048x128xbf16, #tpu.memory_space<vmem>>, vector<1x512x128xbf16>
    %689 = vector.shape_cast %688 : vector<1x512x128xbf16> to vector<512x128xbf16>
    %cst_303 = arith.constant dense<0.000000e+00> : vector<8x128xf32>
    %690 = tpu.matmul %687, %689, %cst_303 {dimension_numbers = #tpu.dot_dimension_numbers<[1], [0], [0], [1], [0, 0, 1, 1], [], []>} : vector<8x512xbf16>, vector<512x128xbf16>, vector<8x128xf32> -> vector<8x128xf32>
    %691 = arith.addf %677, %690 : vector<8x128xf32>
    %c1_304 = arith.constant 1 : index
    %c0_305 = arith.constant 0 : index
    %c1024_306 = arith.constant 1024 : index
    %692 = vector.load %arg12[%c1_304, %c0_305, %c1024_306] : memref<2x128x2048xbf16, #tpu.memory_space<vmem>>, vector<1x128x512xbf16>
    %693 = vector.shape_cast %692 : vector<1x128x512xbf16> to vector<128x512xbf16>
    %c1_307 = arith.constant 1 : index
    %c0_308 = arith.constant 0 : index
    %c1024_309 = arith.constant 1024 : index
    %694 = vector.load %arg13[%c1_307, %c0_308, %c1024_309] : memref<2x1x2048xf32, #tpu.memory_space<vmem>>, vector<1x1x512xf32>
    %695 = vector.shape_cast %694 : vector<1x1x512xf32> to vector<1x512xf32>
    %cst_310 = arith.constant dense<0.000000e+00> : vector<8x512xf32>
    %696 = tpu.matmul %662, %693, %cst_310 {dimension_numbers = #tpu.dot_dimension_numbers<[1], [0], [0], [1], [0, 0, 1, 1], [], []>} : vector<8x128xbf16>, vector<128x512xbf16>, vector<8x512xf32> -> vector<8x512xf32>
    %697 = vector.broadcast %695 : vector<1x512xf32> to vector<8x512xf32>
    %698 = arith.addf %696, %697 : vector<8x512xf32>
    %cst_311 = arith.constant 0.000000e+00 : f32
    %699 = vector.broadcast %cst_311 : f32 to vector<8x512xf32>
    %700 = arith.maximumf %698, %699 : vector<8x512xf32>
    %701 = arith.truncf %700 : vector<8x512xf32> to vector<8x512xbf16>
    %c1_312 = arith.constant 1 : index
    %c1024_313 = arith.constant 1024 : index
    %c0_314 = arith.constant 0 : index
    %702 = vector.load %arg14[%c1_312, %c1024_313, %c0_314] : memref<2x2048x128xbf16, #tpu.memory_space<vmem>>, vector<1x512x128xbf16>
    %703 = vector.shape_cast %702 : vector<1x512x128xbf16> to vector<512x128xbf16>
    %cst_315 = arith.constant dense<0.000000e+00> : vector<8x128xf32>
    %704 = tpu.matmul %701, %703, %cst_315 {dimension_numbers = #tpu.dot_dimension_numbers<[1], [0], [0], [1], [0, 0, 1, 1], [], []>} : vector<8x512xbf16>, vector<512x128xbf16>, vector<8x128xf32> -> vector<8x128xf32>
    %705 = arith.addf %691, %704 : vector<8x128xf32>
    %c1_316 = arith.constant 1 : index
    %c0_317 = arith.constant 0 : index
    %c1536_318 = arith.constant 1536 : index
    %706 = vector.load %arg12[%c1_316, %c0_317, %c1536_318] : memref<2x128x2048xbf16, #tpu.memory_space<vmem>>, vector<1x128x512xbf16>
    %707 = vector.shape_cast %706 : vector<1x128x512xbf16> to vector<128x512xbf16>
    %c1_319 = arith.constant 1 : index
    %c0_320 = arith.constant 0 : index
    %c1536_321 = arith.constant 1536 : index
    %708 = vector.load %arg13[%c1_319, %c0_320, %c1536_321] : memref<2x1x2048xf32, #tpu.memory_space<vmem>>, vector<1x1x512xf32>
    %709 = vector.shape_cast %708 : vector<1x1x512xf32> to vector<1x512xf32>
    %cst_322 = arith.constant dense<0.000000e+00> : vector<8x512xf32>
    %710 = tpu.matmul %662, %707, %cst_322 {dimension_numbers = #tpu.dot_dimension_numbers<[1], [0], [0], [1], [0, 0, 1, 1], [], []>} : vector<8x128xbf16>, vector<128x512xbf16>, vector<8x512xf32> -> vector<8x512xf32>
    %711 = vector.broadcast %709 : vector<1x512xf32> to vector<8x512xf32>
    %712 = arith.addf %710, %711 : vector<8x512xf32>
    %cst_323 = arith.constant 0.000000e+00 : f32
    %713 = vector.broadcast %cst_323 : f32 to vector<8x512xf32>
    %714 = arith.maximumf %712, %713 : vector<8x512xf32>
    %715 = arith.truncf %714 : vector<8x512xf32> to vector<8x512xbf16>
    %c1_324 = arith.constant 1 : index
    %c1536_325 = arith.constant 1536 : index
    %c0_326 = arith.constant 0 : index
    %716 = vector.load %arg14[%c1_324, %c1536_325, %c0_326] : memref<2x2048x128xbf16, #tpu.memory_space<vmem>>, vector<1x512x128xbf16>
    %717 = vector.shape_cast %716 : vector<1x512x128xbf16> to vector<512x128xbf16>
    %cst_327 = arith.constant dense<0.000000e+00> : vector<8x128xf32>
    %718 = tpu.matmul %715, %717, %cst_327 {dimension_numbers = #tpu.dot_dimension_numbers<[1], [0], [0], [1], [0, 0, 1, 1], [], []>} : vector<8x512xbf16>, vector<512x128xbf16>, vector<8x128xf32> -> vector<8x128xf32>
    %719 = arith.addf %705, %718 : vector<8x128xf32>
    %720 = arith.addf %661, %719 : vector<8x128xf32>
    %c1_328 = arith.constant 1 : index
    %c0_329 = arith.constant 0 : index
    %c0_330 = arith.constant 0 : index
    %721 = vector.load %arg15[%c1_328, %c0_329, %c0_330] : memref<2x1x128xf32, #tpu.memory_space<vmem>>, vector<1x1x128xf32>
    %722 = vector.shape_cast %721 : vector<1x1x128xf32> to vector<1x128xf32>
    %723 = vector.broadcast %722 : vector<1x128xf32> to vector<8x128xf32>
    %724 = arith.addf %720, %723 : vector<8x128xf32>
    %c1_331 = arith.constant 1 : index
    %c2_332 = arith.constant 2 : index
    %c0_333 = arith.constant 0 : index
    %c0_334 = arith.constant 0 : index
    %725 = vector.load %arg16[%c1_331, %c2_332, %c0_333, %c0_334] : memref<2x3x1x128xf32, #tpu.memory_space<vmem>>, vector<1x1x1x128xf32>
    %726 = vector.shape_cast %725 : vector<1x1x1x128xf32> to vector<1x128xf32>
    %c1_335 = arith.constant 1 : index
    %c2_336 = arith.constant 2 : index
    %c0_337 = arith.constant 0 : index
    %c0_338 = arith.constant 0 : index
    %727 = vector.load %arg17[%c1_335, %c2_336, %c0_337, %c0_338] : memref<2x3x1x128xf32, #tpu.memory_space<vmem>>, vector<1x1x1x128xf32>
    %728 = vector.shape_cast %727 : vector<1x1x1x128xf32> to vector<1x128xf32>
    %cst_339 = arith.constant dense<0.000000e+00> : vector<8xf32>
    %729 = vector.multi_reduction <add>, %724, %cst_339 [1] : vector<8x128xf32> to vector<8xf32>
    %730 = vector.shape_cast %729 : vector<8xf32> to vector<8x1xf32>
    %cst_340 = arith.constant 1.280000e+02 : f32
    %731 = vector.broadcast %cst_340 : f32 to vector<8x1xf32>
    %732 = arith.divf %730, %731 : vector<8x1xf32>
    %733 = vector.broadcast %732 : vector<8x1xf32> to vector<8x128xf32>
    %734 = arith.subf %724, %733 : vector<8x128xf32>
    %735 = arith.mulf %734, %734 : vector<8x128xf32>
    %cst_341 = arith.constant dense<0.000000e+00> : vector<8xf32>
    %736 = vector.multi_reduction <add>, %735, %cst_341 [1] : vector<8x128xf32> to vector<8xf32>
    %737 = vector.shape_cast %736 : vector<8xf32> to vector<8x1xf32>
    %cst_342 = arith.constant 1.280000e+02 : f32
    %738 = vector.broadcast %cst_342 : f32 to vector<8x1xf32>
    %739 = arith.divf %737, %738 : vector<8x1xf32>
    %cst_343 = arith.constant 9.99999974E-6 : f32
    %740 = vector.broadcast %cst_343 : f32 to vector<8x1xf32>
    %741 = arith.addf %739, %740 : vector<8x1xf32>
    %742 = math.rsqrt %741 : vector<8x1xf32>
    %743 = vector.broadcast %742 : vector<8x1xf32> to vector<8x128xf32>
    %744 = arith.mulf %734, %743 : vector<8x128xf32>
    %745 = vector.broadcast %726 : vector<1x128xf32> to vector<8x128xf32>
    %746 = arith.mulf %744, %745 : vector<8x128xf32>
    %747 = vector.broadcast %728 : vector<1x128xf32> to vector<8x128xf32>
    %748 = arith.addf %746, %747 : vector<8x128xf32>
    %749 = vector.shape_cast %748 : vector<8x128xf32> to vector<1x8x128xf32>
    %c0_344 = arith.constant 0 : index
    %c0_345 = arith.constant 0 : index
    %c0_346 = arith.constant 0 : index
    %750 = vector.load %arg18[%c0_344, %c0_345, %c0_346] : memref<1x8x128xf32, #tpu.memory_space<vmem>>, vector<1x8x128xf32>
    tpu.vector_store %arg18[%c0_344, %c0_345, %c0_346], %749 {strides = array<i32>} : memref<1x8x128xf32, #tpu.memory_space<vmem>>, vector<1x8x128xf32>,
    return
  }
  func.func @transform_0(%arg0: i32) -> (i32, i32, i32) {
    %c0_i32 = arith.constant 0 : i32
    %c0_i32_0 = arith.constant 0 : i32
    %c0_i32_1 = arith.constant 0 : i32
    return %arg0, %c0_i32, %c0_i32_0 : i32, i32, i32
  }
  func.func @transform_1(%arg0: i32) -> (i32, i32, i32) {
    %c0_i32 = arith.constant 0 : i32
    %c0_i32_0 = arith.constant 0 : i32
    %c0_i32_1 = arith.constant 0 : i32
    %c0_i32_2 = arith.constant 0 : i32
    return %c0_i32, %c0_i32_0, %c0_i32_1 : i32, i32, i32
  }
  func.func @transform_2(%arg0: i32) -> (i32, i32, i32) {
    %c0_i32 = arith.constant 0 : i32
    %c0_i32_0 = arith.constant 0 : i32
    %c0_i32_1 = arith.constant 0 : i32
    %c0_i32_2 = arith.constant 0 : i32
    return %c0_i32, %c0_i32_0, %c0_i32_1 : i32, i32, i32
  }
  func.func @transform_3(%arg0: i32) -> (i32, i32, i32) {
    %c0_i32 = arith.constant 0 : i32
    %c0_i32_0 = arith.constant 0 : i32
    %c0_i32_1 = arith.constant 0 : i32
    %c0_i32_2 = arith.constant 0 : i32
    return %c0_i32, %c0_i32_0, %c0_i32_1 : i32, i32, i32
  }
  func.func @transform_4(%arg0: i32) -> (i32, i32, i32) {
    %c0_i32 = arith.constant 0 : i32
    %c0_i32_0 = arith.constant 0 : i32
    %c0_i32_1 = arith.constant 0 : i32
    %c0_i32_2 = arith.constant 0 : i32
    return %c0_i32, %c0_i32_0, %c0_i32_1 : i32, i32, i32
  }
  func.func @transform_5(%arg0: i32) -> (i32, i32, i32) {
    %c0_i32 = arith.constant 0 : i32
    %c0_i32_0 = arith.constant 0 : i32
    %c0_i32_1 = arith.constant 0 : i32
    %c0_i32_2 = arith.constant 0 : i32
    return %c0_i32, %c0_i32_0, %c0_i32_1 : i32, i32, i32
  }
  func.func @transform_6(%arg0: i32) -> (i32, i32, i32) {
    %c0_i32 = arith.constant 0 : i32
    %c0_i32_0 = arith.constant 0 : i32
    %c0_i32_1 = arith.constant 0 : i32
    %c0_i32_2 = arith.constant 0 : i32
    return %c0_i32, %c0_i32_0, %c0_i32_1 : i32, i32, i32
  }
  func.func @transform_7(%arg0: i32) -> (i32, i32, i32) {
    %c0_i32 = arith.constant 0 : i32
    %c0_i32_0 = arith.constant 0 : i32
    %c0_i32_1 = arith.constant 0 : i32
    %c0_i32_2 = arith.constant 0 : i32
    return %c0_i32, %c0_i32_0, %c0_i32_1 : i32, i32, i32
  }
  func.func @transform_8(%arg0: i32) -> (i32, i32, i32) {
    %c0_i32 = arith.constant 0 : i32
    %c0_i32_0 = arith.constant 0 : i32
    %c0_i32_1 = arith.constant 0 : i32
    %c0_i32_2 = arith.constant 0 : i32
    return %c0_i32, %c0_i32_0, %c0_i32_1 : i32, i32, i32
  }
  func.func @transform_9(%arg0: i32) -> (i32, i32, i32) {
    %c0_i32 = arith.constant 0 : i32
    %c0_i32_0 = arith.constant 0 : i32
    %c0_i32_1 = arith.constant 0 : i32
    %c0_i32_2 = arith.constant 0 : i32
    return %c0_i32, %c0_i32_0, %c0_i32_1 : i32, i32, i32
  }
  func.func @transform_10(%arg0: i32) -> (i32, i32, i32) {
    %c0_i32 = arith.constant 0 : i32
    %c0_i32_0 = arith.constant 0 : i32
    %c0_i32_1 = arith.constant 0 : i32
    %c0_i32_2 = arith.constant 0 : i32
    return %c0_i32, %c0_i32_0, %c0_i32_1 : i32, i32, i32
  }
  func.func @transform_11(%arg0: i32) -> (i32, i32, i32) {
    %c0_i32 = arith.constant 0 : i32
    %c0_i32_0 = arith.constant 0 : i32
    %c0_i32_1 = arith.constant 0 : i32
    %c0_i32_2 = arith.constant 0 : i32
    return %c0_i32, %c0_i32_0, %c0_i32_1 : i32, i32, i32
  }
  func.func @transform_12(%arg0: i32) -> (i32, i32, i32) {
    %c0_i32 = arith.constant 0 : i32
    %c0_i32_0 = arith.constant 0 : i32
    %c0_i32_1 = arith.constant 0 : i32
    %c0_i32_2 = arith.constant 0 : i32
    return %c0_i32, %c0_i32_0, %c0_i32_1 : i32, i32, i32
  }
  func.func @transform_13(%arg0: i32) -> (i32, i32, i32) {
    %c0_i32 = arith.constant 0 : i32
    %c0_i32_0 = arith.constant 0 : i32
    %c0_i32_1 = arith.constant 0 : i32
    %c0_i32_2 = arith.constant 0 : i32
    return %c0_i32, %c0_i32_0, %c0_i32_1 : i32, i32, i32
  }
  func.func @transform_14(%arg0: i32) -> (i32, i32, i32) {
    %c0_i32 = arith.constant 0 : i32
    %c0_i32_0 = arith.constant 0 : i32
    %c0_i32_1 = arith.constant 0 : i32
    %c0_i32_2 = arith.constant 0 : i32
    return %c0_i32, %c0_i32_0, %c0_i32_1 : i32, i32, i32
  }
  func.func @transform_15(%arg0: i32) -> (i32, i32, i32, i32) {
    %c0_i32 = arith.constant 0 : i32
    %c0_i32_0 = arith.constant 0 : i32
    %c0_i32_1 = arith.constant 0 : i32
    %c0_i32_2 = arith.constant 0 : i32
    %c0_i32_3 = arith.constant 0 : i32
    return %c0_i32, %c0_i32_0, %c0_i32_1, %c0_i32_2 : i32, i32, i32, i32
  }
  func.func @transform_16(%arg0: i32) -> (i32, i32, i32, i32) {
    %c0_i32 = arith.constant 0 : i32
    %c0_i32_0 = arith.constant 0 : i32
    %c0_i32_1 = arith.constant 0 : i32
    %c0_i32_2 = arith.constant 0 : i32
    %c0_i32_3 = arith.constant 0 : i32
    return %c0_i32, %c0_i32_0, %c0_i32_1, %c0_i32_2 : i32, i32, i32, i32
  }
  func.func @transform_17(%arg0: i32) -> (i32, i32, i32) {
    %c0_i32 = arith.constant 0 : i32
    %c0_i32_0 = arith.constant 0 : i32
    %c0_i32_1 = arith.constant 0 : i32
    return %arg0, %c0_i32, %c0_i32_0 : i32, i32, i32
  }
}

</mosaic_0001>

<llo_original>
// kernel: user_tower_forward.1
$region0: #{user_tower_forward.1}
  #allocation0 [shape = 'u32[]', space=smem, size = 0x4, offset = 0x4, fixed_abs, tag = 'smem constant byte address 0x4 - core index']
  #allocation1 [shape = 'u32[144,128]{1,0:T(1,128)}', space=vmem, size = 0x12000, scoped, tag = 'internal scratch']
  %s0 = inlined_call_operand.vmem [shape: f32[2,8,128], index: 0, kind: input, shape index: {}]
  %s1 = inlined_call_operand.vmem [shape: bf16[2,128,384], index: 1, kind: input, shape index: {}]
  %s2 = inlined_call_operand.hbm [shape: f32[2,1,384], index: 2, kind: input, shape index: {}]
  %s3 = inlined_call_operand.hbm [shape: bf16[2,128,128], index: 3, kind: input, shape index: {}]
  %s4 = inlined_call_operand.hbm [shape: f32[2,1,128], index: 4, kind: input, shape index: {}]
  %s5 = inlined_call_operand.hbm [shape: bf16[2,128,128], index: 5, kind: input, shape index: {}]
  %s6 = inlined_call_operand.hbm [shape: f32[2,1,128], index: 6, kind: input, shape index: {}]
  %s7 = inlined_call_operand.vmem [shape: bf16[2,128,256], index: 7, kind: input, shape index: {}]
  %s8 = inlined_call_operand.hbm [shape: f32[2,1,256], index: 8, kind: input, shape index: {}]
  %s9 = inlined_call_operand.hbm [shape: bf16[2,128,128], index: 9, kind: input, shape index: {}]
  %s10 = inlined_call_operand.hbm [shape: f32[2,1,128], index: 10, kind: input, shape index: {}]
  %s11 = inlined_call_operand.vmem [shape: bf16[2,128,2048], index: 11, kind: input, shape index: {}]
  %s12 = inlined_call_operand.hbm [shape: f32[2,1,2048], index: 12, kind: input, shape index: {}]
  %s13 = inlined_call_operand.hbm [shape: bf16[2,2048,128], index: 13, kind: input, shape index: {}]
  %s14 = inlined_call_operand.hbm [shape: f32[2,1,128], index: 14, kind: input, shape index: {}]
  %s15 = inlined_call_operand.vmem [shape: f32[2,3,1,128], index: 15, kind: input, shape index: {}]
  %s16 = inlined_call_operand.vmem [shape: f32[2,3,1,128], index: 16, kind: input, shape index: {}]
  %s17 = inlined_call_operand.hbm [shape: f32[2,8,128], index: 17, kind: output, shape index: {}]
  %s18 = sld [smem:[#allocation0]]
  $region145: #{user_tower_forward.1} parent=0
    _
  %s20 = ssub.s32 1, %s18
  %s21 = scalar_select 0, %s20, %s18
  $region1: #{user_tower_forward.1} parent=0
    #allocation2 [shape = 'u8[3072]{0}', space=vmem, size = 0xc00, scoped, tag = 'input window, operand 2, single buffered']
    #allocation3 [shape = 's32[2]{0}', space=sflag, size = 0x8, scoped, tag = 'scoped memory for user_tower_forward.1']
    #allocation4 [shape = 's32[2]{0}', space=sflag, size = 0x8, scoped, tag = 'scoped memory for user_tower_forward.1']
    #allocation5 [shape = 'u8[65536]{0}', space=vmem, size = 0x10000, scoped, tag = 'input window, operand 3, single buffered']
    #allocation6 [shape = 's32[1]{0}', space=sflag, size = 0x4, scoped, tag = 'scoped memory for user_tower_forward.1']
    #allocation7 [shape = 'u8[1024]{0}', space=vmem, size = 0x400, scoped, tag = 'input window, operand 4, single buffered']
    #allocation8 [shape = 'u8[65536]{0}', space=vmem, size = 0x10000, scoped, tag = 'input window, operand 5, single buffered']
    #allocation9 [shape = 's32[1]{0}', space=sflag, size = 0x4, scoped, tag = 'scoped memory for user_tower_forward.1']
    #allocation10 [shape = 'u8[1024]{0}', space=vmem, size = 0x400, scoped, tag = 'input window, operand 6, single buffered']
    #allocation11 [shape = 'u8[2048]{0}', space=vmem, size = 0x800, scoped, tag = 'input window, operand 8, single buffered']
    #allocation12 [shape = 's32[1]{0}', space=sflag, size = 0x4, scoped, tag = 'scoped memory for user_tower_forward.1']
    #allocation13 [shape = 'u8[65536]{0}', space=vmem, size = 0x10000, scoped, tag = 'input window, operand 9, single buffered']
    #allocation14 [shape = 'u8[1024]{0}', space=vmem, size = 0x400, scoped, tag = 'input window, operand 10, single buffered']
    #allocation15 [shape = 's32[1]{0}', space=sflag, size = 0x4, scoped, tag = 'scoped memory for user_tower_forward.1']
    #allocation16 [shape = 'u8[16384]{0}', space=vmem, size = 0x4000, scoped, tag = 'input window, operand 12, single buffered']
    #allocation17 [shape = 'u8[1048576]{0}', space=vmem, size = 0x100000, scoped, tag = 'input window, operand 13, single buffered']
    #allocation18 [shape = 's32[1]{0}', space=sflag, size = 0x4, scoped, tag = 'scoped memory for user_tower_forward.1']
    #allocation19 [shape = 'u8[1024]{0}', space=vmem, size = 0x400, scoped, tag = 'input window, operand 14, single buffered']
    #allocation20 [shape = 'u8[8192]{0}', space=vmem, size = 0x2000, scoped, tag = 'output window, operand 0']
    %22 = vsyncpa [#allocation3], 0
    %23 = vsyncpa [#allocation6], 0
    %24 = vsyncpa [#allocation9], 0
    %25 = vsyncpa [#allocation12], 0
    %26 = vsyncpa [#allocation15], 0
    %27 = vsyncpa [#allocation18], 0
    %28 = vsyncpa [#allocation4], 0
    %s29 = scalar_lea.sflag [#allocation4], 1
    %30 = vsyncpa %s29, 0
    loop: start=0, step=1, limit=4
    $region2: #{user_tower_forward.1} parent=1 // loop_pre_header
      _
    $region3: #{user_tower_forward.1} parent=1 // loop_header
      %s32 = sphi 0, %s36
      %p33 = scmp.ge.s32.totalorder %s32, 4
      %s42 = sphi 0, %s44
      %s45 = sphi 0, %s42
      %s46 = sphi 0, %s45
      %s62 = sphi 0, %s46
      %s66 = sphi 0, %s66
      %s68 = sphi 0, %s66
      %s69 = sphi 0, %s68
      %s83 = sphi 0, %s69
      %s87 = sphi 0, %s87
      %s89 = sphi 0, %s87
      %s90 = sphi 0, %s89
      %s104 = sphi 0, %s90
      %s108 = sphi 0, %s108
      %s110 = sphi 0, %s108
      %s111 = sphi 0, %s110
      %s125 = sphi 0, %s111
      %s129 = sphi 0, %s129
      %s131 = sphi 0, %s129
      %s132 = sphi 0, %s131
      %s146 = sphi 0, %s132
      %s150 = sphi 0, %s150
      %s152 = sphi 0, %s150
      %s153 = sphi 0, %s152
      %s167 = sphi 0, %s153
      %s171 = sphi 0, %s171
      %s173 = sphi 0, %s171
      %s174 = sphi 0, %s173
      %s188 = sphi 0, %s174
      %s192 = sphi 0, %s192
      %s194 = sphi 0, %s192
      %s195 = sphi 0, %s194
      %s209 = sphi 0, %s195
      %s213 = sphi 0, %s213
      %s215 = sphi 0, %s213
      %s216 = sphi 0, %s215
      %s230 = sphi 0, %s216
      %s234 = sphi 0, %s234
      %s236 = sphi 0, %s234
      %s237 = sphi 0, %s236
      %s251 = sphi 0, %s237
      %s255 = sphi 0, %s255
      %s257 = sphi 0, %s255
      %s258 = sphi 0, %s257
      %s272 = sphi 0, %s258
      %s276 = sphi 0, %s276
      %s278 = sphi 0, %s276
      %s279 = sphi 0, %s278
      %s293 = sphi 0, %s279
      %s297 = sphi 0, %s297
      %s299 = sphi 0, %s297
      %s300 = sphi 0, %s299
      %s314 = sphi 0, %s300
      %s318 = sphi 0, %s318
      %s320 = sphi 0, %s318
      %s321 = sphi 0, %s320
      %s335 = sphi 0, %s321
      %s339 = sphi 0, %s339
      %s341 = sphi 0, %s339
      %s342 = sphi 0, %s341
      %s356 = sphi 0, %s342
      %s360 = sphi 0, %s360
      %s362 = sphi 0, %s360
      %s363 = sphi 0, %s362
      %s377 = sphi 0, %s363
      %s381 = sphi 0, %s381
      %s383 = sphi 0, %s381
      %s384 = sphi 0, %s383
      %s398 = sphi 0, %s384
      %s404 = sphi 0, %s406
      %s407 = sphi 0, %s404
      %s408 = sphi 0, %s407
      %s424 = sphi 0, %s408
    $region4: #{user_tower_forward.1} parent=1 // loop_header_branch
      %35 = sbr.rel (%p33) target = $region8
    $region5: #{user_tower_forward.1} parent=1 // loop_body
      %s37 = ssub.s32 %s32, 1
      %s38 = ssub.s32 %s32, 2
      %s39 = sadd.s32 %s32, 1
      %s40 = ssub.s32 %s32, %s39
      %p41 = scmp.eq.s32.totalorder %s40, 0
      %s43 = sadd.s32 %s42, 1
      %s44 = scalar_select %p41, %s42, %s43
      %p47 = pneg %p41
      %p48 = scmp.eq.s32.totalorder %s32, 1
      %p49 = por %p47, %p48
      %p50 = scmp.ne.s32.totalorder %s42, %s45
      %p51 = scmp.eq.s32.totalorder %s32, 0
      %p52 = por %p50, %p51
      %p53 = scmp.ne.s32.totalorder %s42, %s45
      %p54 = scmp.eq.s32.totalorder %s37, 1
      %p55 = por %p53, %p54
      %p56 = scmp.ne.s32.totalorder %s45, %s46
      %p57 = scmp.eq.s32.totalorder %s37, 0
      %p58 = por %p56, %p57
      %p59 = scmp.ne.s32.totalorder %s45, %s46
      %p60 = scmp.eq.s32.totalorder %s38, 1
      %p61 = por %p59, %p60
      %p63 = scmp.ne.s32.totalorder %s46, %s62
      %p64 = scmp.eq.s32.totalorder %s38, 0
      %p65 = por %p63, %p64
      %s67 = sadd.s32 %s66, 1
      %p70 = scmp.eq.s32.totalorder %s32, 1
      %p71 = scmp.ne.s32.totalorder %s66, %s68
      %p72 = scmp.eq.s32.totalorder %s32, 0
      %p73 = por %p71, %p72
      %p74 = scmp.ne.s32.totalorder %s66, %s68
      %p75 = scmp.eq.s32.totalorder %s37, 1
      %p76 = por %p74, %p75
      %p77 = scmp.ne.s32.totalorder %s68, %s69
      %p78 = scmp.eq.s32.totalorder %s37, 0
      %p79 = por %p77, %p78
      %p80 = scmp.ne.s32.totalorder %s68, %s69
      %p81 = scmp.eq.s32.totalorder %s38, 1
      %p82 = por %p80, %p81
      %p84 = scmp.ne.s32.totalorder %s69, %s83
      %p85 = scmp.eq.s32.totalorder %s38, 0
      %p86 = por %p84, %p85
      %s88 = sadd.s32 %s87, 1
      %p91 = scmp.eq.s32.totalorder %s32, 1
      %p92 = scmp.ne.s32.totalorder %s87, %s89
      %p93 = scmp.eq.s32.totalorder %s32, 0
      %p94 = por %p92, %p93
      %p95 = scmp.ne.s32.totalorder %s87, %s89
      %p96 = scmp.eq.s32.totalorder %s37, 1
      %p97 = por %p95, %p96
      %p98 = scmp.ne.s32.totalorder %s89, %s90
      %p99 = scmp.eq.s32.totalorder %s37, 0
      %p100 = por %p98, %p99
      %p101 = scmp.ne.s32.totalorder %s89, %s90
      %p102 = scmp.eq.s32.totalorder %s38, 1
      %p103 = por %p101, %p102
      %p105 = scmp.ne.s32.totalorder %s90, %s104
      %p106 = scmp.eq.s32.totalorder %s38, 0
      %p107 = por %p105, %p106
      %s109 = sadd.s32 %s108, 1
      %p112 = scmp.eq.s32.totalorder %s32, 1
      %p113 = scmp.ne.s32.totalorder %s108, %s110
      %p114 = scmp.eq.s32.totalorder %s32, 0
      %p115 = por %p113, %p114
      %p116 = scmp.ne.s32.totalorder %s108, %s110
      %p117 = scmp.eq.s32.totalorder %s37, 1
      %p118 = por %p116, %p117
      %p119 = scmp.ne.s32.totalorder %s110, %s111
      %p120 = scmp.eq.s32.totalorder %s37, 0
      %p121 = por %p119, %p120
      %p122 = scmp.ne.s32.totalorder %s110, %s111
      %p123 = scmp.eq.s32.totalorder %s38, 1
      %p124 = por %p122, %p123
      %p126 = scmp.ne.s32.totalorder %s111, %s125
      %p127 = scmp.eq.s32.totalorder %s38, 0
      %p128 = por %p126, %p127
      %s130 = sadd.s32 %s129, 1
      %p133 = scmp.eq.s32.totalorder %s32, 1
      %p134 = scmp.ne.s32.totalorder %s129, %s131
      %p135 = scmp.eq.s32.totalorder %s32, 0
      %p136 = por %p134, %p135
      %p137 = scmp.ne.s32.totalorder %s129, %s131
      %p138 = scmp.eq.s32.totalorder %s37, 1
      %p139 = por %p137, %p138
      %p140 = scmp.ne.s32.totalorder %s131, %s132
      %p141 = scmp.eq.s32.totalorder %s37, 0
      %p142 = por %p140, %p141
      %p143 = scmp.ne.s32.totalorder %s131, %s132
      %p144 = scmp.eq.s32.totalorder %s38, 1
      %p145 = por %p143, %p144
      %p147 = scmp.ne.s32.totalorder %s132, %s146
      %p148 = scmp.eq.s32.totalorder %s38, 0
      %p149 = por %p147, %p148
      %s151 = sadd.s32 %s150, 1
      %p154 = scmp.eq.s32.totalorder %s32, 1
      %p155 = scmp.ne.s32.totalorder %s150, %s152
      %p156 = scmp.eq.s32.totalorder %s32, 0
      %p157 = por %p155, %p156
      %p158 = scmp.ne.s32.totalorder %s150, %s152
      %p159 = scmp.eq.s32.totalorder %s37, 1
      %p160 = por %p158, %p159
      %p161 = scmp.ne.s32.totalorder %s152, %s153
      %p162 = scmp.eq.s32.totalorder %s37, 0
      %p163 = por %p161, %p162
      %p164 = scmp.ne.s32.totalorder %s152, %s153
      %p165 = scmp.eq.s32.totalorder %s38, 1
      %p166 = por %p164, %p165
      %p168 = scmp.ne.s32.totalorder %s153, %s167
      %p169 = scmp.eq.s32.totalorder %s38, 0
      %p170 = por %p168, %p169
      %s172 = sadd.s32 %s171, 1
      %p175 = scmp.eq.s32.totalorder %s32, 1
      %p176 = scmp.ne.s32.totalorder %s171, %s173
      %p177 = scmp.eq.s32.totalorder %s32, 0
      %p178 = por %p176, %p177
      %p179 = scmp.ne.s32.totalorder %s171, %s173
      %p180 = scmp.eq.s32.totalorder %s37, 1
      %p181 = por %p179, %p180
      %p182 = scmp.ne.s32.totalorder %s173, %s174
      %p183 = scmp.eq.s32.totalorder %s37, 0
      %p184 = por %p182, %p183
      %p185 = scmp.ne.s32.totalorder %s173, %s174
      %p186 = scmp.eq.s32.totalorder %s38, 1
      %p187 = por %p185, %p186
      %p189 = scmp.ne.s32.totalorder %s174, %s188
      %p190 = scmp.eq.s32.totalorder %s38, 0
      %p191 = por %p189, %p190
      %s193 = sadd.s32 %s192, 1
      %p196 = scmp.eq.s32.totalorder %s32, 1
      %p197 = scmp.ne.s32.totalorder %s192, %s194
      %p198 = scmp.eq.s32.totalorder %s32, 0
      %p199 = por %p197, %p198
      %p200 = scmp.ne.s32.totalorder %s192, %s194
      %p201 = scmp.eq.s32.totalorder %s37, 1
      %p202 = por %p200, %p201
      %p203 = scmp.ne.s32.totalorder %s194, %s195
      %p204 = scmp.eq.s32.totalorder %s37, 0
      %p205 = por %p203, %p204
      %p206 = scmp.ne.s32.totalorder %s194, %s195
      %p207 = scmp.eq.s32.totalorder %s38, 1
      %p208 = por %p206, %p207
      %p210 = scmp.ne.s32.totalorder %s195, %s209
      %p211 = scmp.eq.s32.totalorder %s38, 0
      %p212 = por %p210, %p211
      %s214 = sadd.s32 %s213, 1
      %p217 = scmp.eq.s32.totalorder %s32, 1
      %p218 = scmp.ne.s32.totalorder %s213, %s215
      %p219 = scmp.eq.s32.totalorder %s32, 0
      %p220 = por %p218, %p219
      %p221 = scmp.ne.s32.totalorder %s213, %s215
      %p222 = scmp.eq.s32.totalorder %s37, 1
      %p223 = por %p221, %p222
      %p224 = scmp.ne.s32.totalorder %s215, %s216
      %p225 = scmp.eq.s32.totalorder %s37, 0
      %p226 = por %p224, %p225
      %p227 = scmp.ne.s32.totalorder %s215, %s216
      %p228 = scmp.eq.s32.totalorder %s38, 1
      %p229 = por %p227, %p228
      %p231 = scmp.ne.s32.totalorder %s216, %s230
      %p232 = scmp.eq.s32.totalorder %s38, 0
      %p233 = por %p231, %p232
      %s235 = sadd.s32 %s234, 1
      %p238 = scmp.eq.s32.totalorder %s32, 1
      %p239 = scmp.ne.s32.totalorder %s234, %s236
      %p240 = scmp.eq.s32.totalorder %s32, 0
      %p241 = por %p239, %p240
      %p242 = scmp.ne.s32.totalorder %s234, %s236
      %p243 = scmp.eq.s32.totalorder %s37, 1
      %p244 = por %p242, %p243
      %p245 = scmp.ne.s32.totalorder %s236, %s237
      %p246 = scmp.eq.s32.totalorder %s37, 0
      %p247 = por %p245, %p246
      %p248 = scmp.ne.s32.totalorder %s236, %s237
      %p249 = scmp.eq.s32.totalorder %s38, 1
      %p250 = por %p248, %p249
      %p252 = scmp.ne.s32.totalorder %s237, %s251
      %p253 = scmp.eq.s32.totalorder %s38, 0
      %p254 = por %p252, %p253
      %s256 = sadd.s32 %s255, 1
      %p259 = scmp.eq.s32.totalorder %s32, 1
      %p260 = scmp.ne.s32.totalorder %s255, %s257
      %p261 = scmp.eq.s32.totalorder %s32, 0
      %p262 = por %p260, %p261
      %p263 = scmp.ne.s32.totalorder %s255, %s257
      %p264 = scmp.eq.s32.totalorder %s37, 1
      %p265 = por %p263, %p264
      %p266 = scmp.ne.s32.totalorder %s257, %s258
      %p267 = scmp.eq.s32.totalorder %s37, 0
      %p268 = por %p266, %p267
      %p269 = scmp.ne.s32.totalorder %s257, %s258
      %p270 = scmp.eq.s32.totalorder %s38, 1
      %p271 = por %p269, %p270
      %p273 = scmp.ne.s32.totalorder %s258, %s272
      %p274 = scmp.eq.s32.totalorder %s38, 0
      %p275 = por %p273, %p274
      %s277 = sadd.s32 %s276, 1
      %p280 = scmp.eq.s32.totalorder %s32, 1
      %p281 = scmp.ne.s32.totalorder %s276, %s278
      %p282 = scmp.eq.s32.totalorder %s32, 0
      %p283 = por %p281, %p282
      %p284 = scmp.ne.s32.totalorder %s276, %s278
      %p285 = scmp.eq.s32.totalorder %s37, 1
      %p286 = por %p284, %p285
      %p287 = scmp.ne.s32.totalorder %s278, %s279
      %p288 = scmp.eq.s32.totalorder %s37, 0
      %p289 = por %p287, %p288
      %p290 = scmp.ne.s32.totalorder %s278, %s279
      %p291 = scmp.eq.s32.totalorder %s38, 1
      %p292 = por %p290, %p291
      %p294 = scmp.ne.s32.totalorder %s279, %s293
      %p295 = scmp.eq.s32.totalorder %s38, 0
      %p296 = por %p294, %p295
      %s298 = sadd.s32 %s297, 1
      %p301 = scmp.eq.s32.totalorder %s32, 1
      %p302 = scmp.ne.s32.totalorder %s297, %s299
      %p303 = scmp.eq.s32.totalorder %s32, 0
      %p304 = por %p302, %p303
      %p305 = scmp.ne.s32.totalorder %s297, %s299
      %p306 = scmp.eq.s32.totalorder %s37, 1
      %p307 = por %p305, %p306
      %p308 = scmp.ne.s32.totalorder %s299, %s300
      %p309 = scmp.eq.s32.totalorder %s37, 0
      %p310 = por %p308, %p309
      %p311 = scmp.ne.s32.totalorder %s299, %s300
      %p312 = scmp.eq.s32.totalorder %s38, 1
      %p313 = por %p311, %p312
      %p315 = scmp.ne.s32.totalorder %s300, %s314
      %p316 = scmp.eq.s32.totalorder %s38, 0
      %p317 = por %p315, %p316
      %s319 = sadd.s32 %s318, 1
      %p322 = scmp.eq.s32.totalorder %s32, 1
      %p323 = scmp.ne.s32.totalorder %s318, %s320
      %p324 = scmp.eq.s32.totalorder %s32, 0
      %p325 = por %p323, %p324
      %p326 = scmp.ne.s32.totalorder %s318, %s320
      %p327 = scmp.eq.s32.totalorder %s37, 1
      %p328 = por %p326, %p327
      %p329 = scmp.ne.s32.totalorder %s320, %s321
      %p330 = scmp.eq.s32.totalorder %s37, 0
      %p331 = por %p329, %p330
      %p332 = scmp.ne.s32.totalorder %s320, %s321
      %p333 = scmp.eq.s32.totalorder %s38, 1
      %p334 = por %p332, %p333
      %p336 = scmp.ne.s32.totalorder %s321, %s335
      %p337 = scmp.eq.s32.totalorder %s38, 0
      %p338 = por %p336, %p337
      %s340 = sadd.s32 %s339, 1
      %p343 = scmp.eq.s32.totalorder %s32, 1
      %p344 = scmp.ne.s32.totalorder %s339, %s341
      %p345 = scmp.eq.s32.totalorder %s32, 0
      %p346 = por %p344, %p345
      %p347 = scmp.ne.s32.totalorder %s339, %s341
      %p348 = scmp.eq.s32.totalorder %s37, 1
      %p349 = por %p347, %p348
      %p350 = scmp.ne.s32.totalorder %s341, %s342
      %p351 = scmp.eq.s32.totalorder %s37, 0
      %p352 = por %p350, %p351
      %p353 = scmp.ne.s32.totalorder %s341, %s342
      %p354 = scmp.eq.s32.totalorder %s38, 1
      %p355 = por %p353, %p354
      %p357 = scmp.ne.s32.totalorder %s342, %s356
      %p358 = scmp.eq.s32.totalorder %s38, 0
      %p359 = por %p357, %p358
      %s361 = sadd.s32 %s360, 1
      %p364 = scmp.eq.s32.totalorder %s32, 1
      %p365 = scmp.ne.s32.totalorder %s360, %s362
      %p366 = scmp.eq.s32.totalorder %s32, 0
      %p367 = por %p365, %p366
      %p368 = scmp.ne.s32.totalorder %s360, %s362
      %p369 = scmp.eq.s32.totalorder %s37, 1
      %p370 = por %p368, %p369
      %p371 = scmp.ne.s32.totalorder %s362, %s363
      %p372 = scmp.eq.s32.totalorder %s37, 0
      %p373 = por %p371, %p372
      %p374 = scmp.ne.s32.totalorder %s362, %s363
      %p375 = scmp.eq.s32.totalorder %s38, 1
      %p376 = por %p374, %p375
      %p378 = scmp.ne.s32.totalorder %s363, %s377
      %p379 = scmp.eq.s32.totalorder %s38, 0
      %p380 = por %p378, %p379
      %s382 = sadd.s32 %s381, 1
      %p385 = scmp.eq.s32.totalorder %s32, 1
      %p386 = scmp.ne.s32.totalorder %s381, %s383
      %p387 = scmp.eq.s32.totalorder %s32, 0
      %p388 = por %p386, %p387
      %p389 = scmp.ne.s32.totalorder %s381, %s383
      %p390 = scmp.eq.s32.totalorder %s37, 1
      %p391 = por %p389, %p390
      %p392 = scmp.ne.s32.totalorder %s383, %s384
      %p393 = scmp.eq.s32.totalorder %s37, 0
      %p394 = por %p392, %p393
      %p395 = scmp.ne.s32.totalorder %s383, %s384
      %p396 = scmp.eq.s32.totalorder %s38, 1
      %p397 = por %p395, %p396
      %p399 = scmp.ne.s32.totalorder %s384, %s398
      %p400 = scmp.eq.s32.totalorder %s38, 0
      %p401 = por %p399, %p400
      %s402 = ssub.s32 %s32, %s39
      %p403 = scmp.eq.s32.totalorder %s402, 0
      %s405 = sadd.s32 %s404, 1
      %s406 = scalar_select %p403, %s404, %s405
      %p409 = pneg %p403
      %p410 = scmp.eq.s32.totalorder %s32, 1
      %p411 = por %p409, %p410
      %p412 = scmp.ne.s32.totalorder %s404, %s407
      %p413 = scmp.eq.s32.totalorder %s32, 0
      %p414 = por %p412, %p413
      %p415 = scmp.ne.s32.totalorder %s404, %s407
      %p416 = scmp.eq.s32.totalorder %s37, 1
      %p417 = por %p415, %p416
      %p418 = scmp.ne.s32.totalorder %s407, %s408
      %p419 = scmp.eq.s32.totalorder %s37, 0
      %p420 = por %p418, %p419
      %p421 = scmp.ne.s32.totalorder %s407, %s408
      %p422 = scmp.eq.s32.totalorder %s38, 1
      %p423 = por %p421, %p422
      %p425 = scmp.ne.s32.totalorder %s408, %s424
      %p426 = scmp.eq.s32.totalorder %s38, 0
      %p427 = por %p425, %p426
      %p428 = scmp.le.s32.totalorder 1, %s32
      %p429 = scmp.lt.s32.totalorder %s32, 3
      %p430 = pnand %p428, %p429
      %p431 = pneg %p430
      // Predicated region
      $region9: #{user_tower_forward.1} parent=5 // pred_check
        _
      $region10: #{user_tower_forward.1} parent=5 // pred_check_branch
        %433 = sbr.rel (%p430) target = $region12
      $region11: #{user_tower_forward.1} parent=5 // pred_region
        %s434 = ssub.s32 %s32, 1
        // Predicated region
        $region13: #{user_tower_forward.1} parent=11 // pred_check
          %p435 = pneg %p79
        $region14: #{user_tower_forward.1} parent=11 // pred_check_branch
          %437 = sbr.rel (%p435) target = $region16
        $region15: #{user_tower_forward.1} parent=11 // pred_region
          _
        $region16: #{user_tower_forward.1} parent=11 // pred_fallthru
          _
        // Predicated region
        $region17: #{user_tower_forward.1} parent=11 // pred_check
          %p438 = pneg %p100
        $region18: #{user_tower_forward.1} parent=11 // pred_check_branch
          %440 = sbr.rel (%p438) target = $region20
        $region19: #{user_tower_forward.1} parent=11 // pred_region
          %s442 = ssub.s32 96, 96
          %443 = vsyncadd [#allocation3], %s442
          %s444 = sshll.u32 [#allocation2], 4
          %s445 = int_to_ptr.vmem [resolvable:$true] %s444
          %450 = dma.hbm_to_vmem [thread:$0]  %s2, 96, %s445, [#allocation3], 48, 48, 3
        $region20: #{user_tower_forward.1} parent=11 // pred_fallthru
          _
        // Predicated region
        $region21: #{user_tower_forward.1} parent=11 // pred_check
          %p451 = pneg %p121
        $region22: #{user_tower_forward.1} parent=11 // pred_check_branch
          %453 = sbr.rel (%p451) target = $region24
        $region23: #{user_tower_forward.1} parent=11 // pred_region
          %s455 = ssub.s32 2048, 2048
          %456 = vsyncadd [#allocation6], %s455
          %s457 = sshll.u32 [#allocation5], 4
          %s458 = int_to_ptr.vmem [resolvable:$true] %s457
          %463 = dma.hbm_to_vmem [thread:$0]  %s3, 2048, %s458, [#allocation6], 64, 64, 4
        $region24: #{user_tower_forward.1} parent=11 // pred_fallthru
          _
        // Predicated region
        $region25: #{user_tower_forward.1} parent=11 // pred_check
          %p464 = pneg %p142
        $region26: #{user_tower_forward.1} parent=11 // pred_check_branch
          %466 = sbr.rel (%p464) target = $region28
        $region27: #{user_tower_forward.1} parent=11 // pred_region
          %s468 = ssub.s32 32, 32
          %469 = vsyncadd [#allocation6], %s468
          %s470 = sshll.u32 [#allocation7], 4
          %s471 = int_to_ptr.vmem [resolvable:$true] %s470
          %476 = dma.hbm_to_vmem [thread:$0]  %s4, 32, %s471, [#allocation6], 16, 16, 1
        $region28: #{user_tower_forward.1} parent=11 // pred_fallthru
          _
        // Predicated region
        $region29: #{user_tower_forward.1} parent=11 // pred_check
          %p477 = pneg %p163
        $region30: #{user_tower_forward.1} parent=11 // pred_check_branch
          %479 = sbr.rel (%p477) target = $region32
        $region31: #{user_tower_forward.1} parent=11 // pred_region
          %s481 = ssub.s32 2048, 2048
          %482 = vsyncadd [#allocation9], %s481
          %s483 = sshll.u32 [#allocation8], 4
          %s484 = int_to_ptr.vmem [resolvable:$true] %s483
          %489 = dma.hbm_to_vmem [thread:$0]  %s5, 2048, %s484, [#allocation9], 64, 64, 4
        $region32: #{user_tower_forward.1} parent=11 // pred_fallthru
          _
        // Predicated region
        $region33: #{user_tower_forward.1} parent=11 // pred_check
          %p490 = pneg %p184
        $region34: #{user_tower_forward.1} parent=11 // pred_check_branch
          %492 = sbr.rel (%p490) target = $region36
        $region35: #{user_tower_forward.1} parent=11 // pred_region
          %s494 = ssub.s32 32, 32
          %495 = vsyncadd [#allocation9], %s494
          %s496 = sshll.u32 [#allocation10], 4
          %s497 = int_to_ptr.vmem [resolvable:$true] %s496
          %502 = dma.hbm_to_vmem [thread:$0]  %s6, 32, %s497, [#allocation9], 16, 16, 1
        $region36: #{user_tower_forward.1} parent=11 // pred_fallthru
          _
        // Predicated region
        $region37: #{user_tower_forward.1} parent=11 // pred_check
          %p503 = pneg %p205
        $region38: #{user_tower_forward.1} parent=11 // pred_check_branch
          %505 = sbr.rel (%p503) target = $region40
        $region39: #{user_tower_forward.1} parent=11 // pred_region
          _
        $region40: #{user_tower_forward.1} parent=11 // pred_fallthru
          _
        // Predicated region
        $region41: #{user_tower_forward.1} parent=11 // pred_check
          %p506 = pneg %p226
        $region42: #{user_tower_forward.1} parent=11 // pred_check_branch
          %508 = sbr.rel (%p506) target = $region44
        $region43: #{user_tower_forward.1} parent=11 // pred_region
          %s510 = ssub.s32 64, 64
          %511 = vsyncadd [#allocation12], %s510
          %s512 = sshll.u32 [#allocation11], 4
          %s513 = int_to_ptr.vmem [resolvable:$true] %s512
          %518 = dma.hbm_to_vmem [thread:$0]  %s8, 64, %s513, [#allocation12], 32, 32, 2
        $region44: #{user_tower_forward.1} parent=11 // pred_fallthru
          _
        // Predicated region
        $region45: #{user_tower_forward.1} parent=11 // pred_check
          %p519 = pneg %p247
        $region46: #{user_tower_forward.1} parent=11 // pred_check_branch
          %521 = sbr.rel (%p519) target = $region48
        $region47: #{user_tower_forward.1} parent=11 // pred_region
          %s523 = ssub.s32 2048, 2048
          %524 = vsyncadd [#allocation12], %s523
          %s525 = sshll.u32 [#allocation13], 4
          %s526 = int_to_ptr.vmem [resolvable:$true] %s525
          %531 = dma.hbm_to_vmem [thread:$0]  %s9, 2048, %s526, [#allocation12], 64, 64, 4
        $region48: #{user_tower_forward.1} parent=11 // pred_fallthru
          _
        // Predicated region
        $region49: #{user_tower_forward.1} parent=11 // pred_check
          %p532 = pneg %p268
        $region50: #{user_tower_forward.1} parent=11 // pred_check_branch
          %534 = sbr.rel (%p532) target = $region52
        $region51: #{user_tower_forward.1} parent=11 // pred_region
          %s536 = ssub.s32 32, 32
          %537 = vsyncadd [#allocation15], %s536
          %s538 = sshll.u32 [#allocation14], 4
          %s539 = int_to_ptr.vmem [resolvable:$true] %s538
          %544 = dma.hbm_to_vmem [thread:$0]  %s10, 32, %s539, [#allocation15], 16, 16, 1
        $region52: #{user_tower_forward.1} parent=11 // pred_fallthru
          _
        // Predicated region
        $region53: #{user_tower_forward.1} parent=11 // pred_check
          %p545 = pneg %p289
        $region54: #{user_tower_forward.1} parent=11 // pred_check_branch
          %547 = sbr.rel (%p545) target = $region56
        $region55: #{user_tower_forward.1} parent=11 // pred_region
          _
        $region56: #{user_tower_forward.1} parent=11 // pred_fallthru
          _
        // Predicated region
        $region57: #{user_tower_forward.1} parent=11 // pred_check
          %p548 = pneg %p310
        $region58: #{user_tower_forward.1} parent=11 // pred_check_branch
          %550 = sbr.rel (%p548) target = $region60
        $region59: #{user_tower_forward.1} parent=11 // pred_region
          %s552 = ssub.s32 512, 512
          %553 = vsyncadd [#allocation15], %s552
          %s554 = sshll.u32 [#allocation16], 4
          %s555 = int_to_ptr.vmem [resolvable:$true] %s554
          %560 = dma.hbm_to_vmem [thread:$0]  %s12, 512, %s555, [#allocation15], 256, 256, 16
        $region60: #{user_tower_forward.1} parent=11 // pred_fallthru
          _
        // Predicated region
        $region61: #{user_tower_forward.1} parent=11 // pred_check
          %p561 = pneg %p331
        $region62: #{user_tower_forward.1} parent=11 // pred_check_branch
          %563 = sbr.rel (%p561) target = $region64
        $region63: #{user_tower_forward.1} parent=11 // pred_region
          %s565 = ssub.s32 32768, 32768
          %566 = vsyncadd [#allocation18], %s565
          %s567 = sshll.u32 [#allocation17], 4
          %s568 = int_to_ptr.vmem [resolvable:$true] %s567
          %573 = dma.hbm_to_vmem [thread:$0]  %s13, 32768, %s568, [#allocation18], 64, 64, 4
        $region64: #{user_tower_forward.1} parent=11 // pred_fallthru
          _
        // Predicated region
        $region65: #{user_tower_forward.1} parent=11 // pred_check
          %p574 = pneg %p352
        $region66: #{user_tower_forward.1} parent=11 // pred_check_branch
          %576 = sbr.rel (%p574) target = $region68
        $region67: #{user_tower_forward.1} parent=11 // pred_region
          %s578 = ssub.s32 32, 32
          %579 = vsyncadd [#allocation18], %s578
          %s580 = sshll.u32 [#allocation19], 4
          %s581 = int_to_ptr.vmem [resolvable:$true] %s580
          %586 = dma.hbm_to_vmem [thread:$0]  %s14, 32, %s581, [#allocation18], 16, 16, 1
        $region68: #{user_tower_forward.1} parent=11 // pred_fallthru
          _
        // Predicated region
        $region69: #{user_tower_forward.1} parent=11 // pred_check
          %p587 = pneg %p373
        $region70: #{user_tower_forward.1} parent=11 // pred_check_branch
          %589 = sbr.rel (%p587) target = $region72
        $region71: #{user_tower_forward.1} parent=11 // pred_region
          _
        $region72: #{user_tower_forward.1} parent=11 // pred_fallthru
          _
        // Predicated region
        $region73: #{user_tower_forward.1} parent=11 // pred_check
          %p590 = pneg %p394
        $region74: #{user_tower_forward.1} parent=11 // pred_check_branch
          %592 = sbr.rel (%p590) target = $region76
        $region75: #{user_tower_forward.1} parent=11 // pred_region
          _
        $region76: #{user_tower_forward.1} parent=11 // pred_fallthru
          _
      $region12: #{user_tower_forward.1} parent=5 // pred_fallthru
        _
      %p593 = scmp.lt.s32.totalorder %s32, 2
      // Predicated region
      $region77: #{user_tower_forward.1} parent=5 // pred_check
        %p594 = pneg %p593
      $region78: #{user_tower_forward.1} parent=5 // pred_check_branch
        %596 = sbr.rel (%p594) target = $region80
      $region79: #{user_tower_forward.1} parent=5 // pred_region
        // Predicated region
        $region81: #{user_tower_forward.1} parent=79 // pred_check
          %p597 = pneg %p52
        $region82: #{user_tower_forward.1} parent=79 // pred_check_branch
          %599 = sbr.rel (%p597) target = $region84
        $region83: #{user_tower_forward.1} parent=79 // pred_region
          %p600 = scmp.lt.s32.totalorder %s32, 1
          %s601 = scalar_select %p600, %s32, 1
          %s602 = smul.addr %s601, 8
          %s603 = scalar_lea.vmem %s0, %s602
        $region84: #{user_tower_forward.1} parent=79 // pred_fallthru
          _
      $region80: #{user_tower_forward.1} parent=5 // pred_fallthru
        _
      %p604 = scmp.le.s32.totalorder 1, %s32
      %p605 = scmp.lt.s32.totalorder %s32, 3
      %p606 = pnand %p604, %p605
      %p607 = pneg %p606
      // Predicated region
      $region85: #{user_tower_forward.1} parent=5 // pred_check
        _
      $region86: #{user_tower_forward.1} parent=5 // pred_check_branch
        %609 = sbr.rel (%p606) target = $region88
      $region87: #{user_tower_forward.1} parent=5 // pred_region
        %s610 = ssub.s32 %s32, 1
        // Predicated region
        $region89: #{user_tower_forward.1} parent=87 // pred_check
          %p611 = pneg %p100
        $region90: #{user_tower_forward.1} parent=87 // pred_check_branch
          %613 = sbr.rel (%p611) target = $region92
        $region91: #{user_tower_forward.1} parent=87 // pred_region
          %614 = dma.done [#allocation3], 96
        $region92: #{user_tower_forward.1} parent=87 // pred_fallthru
          _
        // Predicated region
        $region93: #{user_tower_forward.1} parent=87 // pred_check
          %p615 = pneg %p121
        $region94: #{user_tower_forward.1} parent=87 // pred_check_branch
          %617 = sbr.rel (%p615) target = $region96
        $region95: #{user_tower_forward.1} parent=87 // pred_region
          %618 = dma.done [#allocation6], 2048
        $region96: #{user_tower_forward.1} parent=87 // pred_fallthru
          _
        // Predicated region
        $region97: #{user_tower_forward.1} parent=87 // pred_check
          %p619 = pneg %p142
        $region98: #{user_tower_forward.1} parent=87 // pred_check_branch
          %621 = sbr.rel (%p619) target = $region100
        $region99: #{user_tower_forward.1} parent=87 // pred_region
          %622 = dma.done [#allocation6], 32
        $region100: #{user_tower_forward.1} parent=87 // pred_fallthru
          _
        // Predicated region
        $region101: #{user_tower_forward.1} parent=87 // pred_check
          %p623 = pneg %p163
        $region102: #{user_tower_forward.1} parent=87 // pred_check_branch
          %625 = sbr.rel (%p623) target = $region104
        $region103: #{user_tower_forward.1} parent=87 // pred_region
          %626 = dma.done [#allocation9], 2048
        $region104: #{user_tower_forward.1} parent=87 // pred_fallthru
          _
        // Predicated region
        $region105: #{user_tower_forward.1} parent=87 // pred_check
          %p627 = pneg %p184
        $region106: #{user_tower_forward.1} parent=87 // pred_check_branch
          %629 = sbr.rel (%p627) target = $region108
        $region107: #{user_tower_forward.1} parent=87 // pred_region
          %630 = dma.done [#allocation9], 32
        $region108: #{user_tower_forward.1} parent=87 // pred_fallthru
          _
        // Predicated region
        $region109: #{user_tower_forward.1} parent=87 // pred_check
          %p631 = pneg %p226
        $region110: #{user_tower_forward.1} parent=87 // pred_check_branch
          %633 = sbr.rel (%p631) target = $region112
        $region111: #{user_tower_forward.1} parent=87 // pred_region
          %634 = dma.done [#allocation12], 64
        $region112: #{user_tower_forward.1} parent=87 // pred_fallthru
          _
        // Predicated region
        $region113: #{user_tower_forward.1} parent=87 // pred_check
          %p635 = pneg %p247
        $region114: #{user_tower_forward.1} parent=87 // pred_check_branch
          %637 = sbr.rel (%p635) target = $region116
        $region115: #{user_tower_forward.1} parent=87 // pred_region
          %638 = dma.done [#allocation12], 2048
        $region116: #{user_tower_forward.1} parent=87 // pred_fallthru
          _
        // Predicated region
        $region117: #{user_tower_forward.1} parent=87 // pred_check
          %p639 = pneg %p268
        $region118: #{user_tower_forward.1} parent=87 // pred_check_branch
          %641 = sbr.rel (%p639) target = $region120
        $region119: #{user_tower_forward.1} parent=87 // pred_region
          %642 = dma.done [#allocation15], 32
        $region120: #{user_tower_forward.1} parent=87 // pred_fallthru
          _
        // Predicated region
        $region121: #{user_tower_forward.1} parent=87 // pred_check
          %p643 = pneg %p310
        $region122: #{user_tower_forward.1} parent=87 // pred_check_branch
          %645 = sbr.rel (%p643) target = $region124
        $region123: #{user_tower_forward.1} parent=87 // pred_region
          %646 = dma.done [#allocation15], 512
        $region124: #{user_tower_forward.1} parent=87 // pred_fallthru
          _
        // Predicated region
        $region125: #{user_tower_forward.1} parent=87 // pred_check
          %p647 = pneg %p331
        $region126: #{user_tower_forward.1} parent=87 // pred_check_branch
          %649 = sbr.rel (%p647) target = $region128
        $region127: #{user_tower_forward.1} parent=87 // pred_region
          %650 = dma.done [#allocation18], 32768
        $region128: #{user_tower_forward.1} parent=87 // pred_fallthru
          _
        // Predicated region
        $region129: #{user_tower_forward.1} parent=87 // pred_check
          %p651 = pneg %p352
        $region130: #{user_tower_forward.1} parent=87 // pred_check_branch
          %653 = sbr.rel (%p651) target = $region132
        $region131: #{user_tower_forward.1} parent=87 // pred_region
          %654 = dma.done [#allocation18], 32
        $region132: #{user_tower_forward.1} parent=87 // pred_fallthru
          _
        %p655 = scmp.lt.s32.totalorder %s37, 1
        %s656 = scalar_select %p655, %s37, 1
        %s657 = smul.addr %s656, 8
        %s658 = scalar_lea.vmem %s0, %s657
        %p659 = pneg %p58
        %p660 = pneg %p55
        %p661 = pneg %p79
        %p662 = pneg %p76
        %p663 = pneg %p100
        %p664 = pneg %p97
        %p665 = pneg %p121
        %p666 = pneg %p118
        %p667 = pneg %p142
        %p668 = pneg %p139
        %p669 = pneg %p163
        %p670 = pneg %p160
        %p671 = pneg %p184
        %p672 = pneg %p181
        %p673 = pneg %p205
        %p674 = pneg %p202
        %p675 = pneg %p226
        %p676 = pneg %p223
        %p677 = pneg %p247
        %p678 = pneg %p244
        %p679 = pneg %p268
        %p680 = pneg %p265
        %p681 = pneg %p289
        %p682 = pneg %p286
        %p683 = pneg %p310
        %p684 = pneg %p307
        %p685 = pneg %p331
        %p686 = pneg %p328
        %p687 = pneg %p352
        %p688 = pneg %p349
        %p689 = pneg %p373
        %p690 = pneg %p370
        %p691 = pneg %p394
        %p692 = pneg %p391
        %p693 = pneg %p420
        %p694 = pneg %p417
        %s695 = sand.u32 %s407, 1
        %s696 = scalar_lea.sflag [#allocation4], %s695
        %s697 = sand.u32 %s407, 1
        %s698 = smul.addr %s697, 8
        %s699 = scalar_lea.vmem [#allocation20], %s698
        %p700 = scmp.lt.s32.totalorder %s37, 1
        %s701 = scalar_select %p700, %s37, 1
        %s702 = smul.addr %s701, 8
        %s703 = scalar_lea.vmem %s0, %s702
        %v705 = vld [vmem:[%s703] sm:$0xff]
        %v706 = vpack.c.bf16 %v705, %v705
        %v707 = vld [vmem:[%s1] sm:$0xff]
        %v708 = vld [vmem:[%s1 + $0x8] sm:$0xf]
        %v709 = vld [vmem:[%s1 + $0xc] sm:$0xff]
        %v710 = vld [vmem:[%s1 + $0x14] sm:$0xf]
        %v711 = vld [vmem:[%s1 + $0x18] sm:$0xff]
        %v712 = vld [vmem:[%s1 + $0x20] sm:$0xf]
        %v713 = vld [vmem:[%s1 + $0x24] sm:$0xff]
        %v714 = vld [vmem:[%s1 + $0x2c] sm:$0xf]
        %v715 = vld [vmem:[%s1 + $0x30] sm:$0xff]
        %v716 = vld [vmem:[%s1 + $0x38] sm:$0xf]
        %v717 = vld [vmem:[%s1 + $0x3c] sm:$0xff]
        %v718 = vld [vmem:[%s1 + $0x44] sm:$0xf]
        %v719 = vld [vmem:[%s1 + $0x48] sm:$0xff]
        %v720 = vld [vmem:[%s1 + $0x50] sm:$0xf]
        %v721 = vld [vmem:[%s1 + $0x54] sm:$0xff]
        %v722 = vld [vmem:[%s1 + $0x5c] sm:$0xf]
        %v723 = vld [vmem:[%s1 + $0x60] sm:$0xff]
        %v724 = vld [vmem:[%s1 + $0x68] sm:$0xf]
        %v725 = vld [vmem:[%s1 + $0x6c] sm:$0xff]
        %v726 = vld [vmem:[%s1 + $0x74] sm:$0xf]
        %v727 = vld [vmem:[%s1 + $0x78] sm:$0xff]
        %v728 = vld [vmem:[%s1 + $0x80] sm:$0xf]
        %v729 = vld [vmem:[%s1 + $0x84] sm:$0xff]
        %v730 = vld [vmem:[%s1 + $0x8c] sm:$0xf]
        %v731 = vld [vmem:[%s1 + $0x90] sm:$0xff]
        %v732 = vld [vmem:[%s1 + $0x98] sm:$0xf]
        %v733 = vld [vmem:[%s1 + $0x9c] sm:$0xff]
        %v734 = vld [vmem:[%s1 + $0xa4] sm:$0xf]
        %v735 = vld [vmem:[%s1 + $0xa8] sm:$0xff]
        %v736 = vld [vmem:[%s1 + $0xb0] sm:$0xf]
        %v737 = vld [vmem:[%s1 + $0xb4] sm:$0xff]
        %v738 = vld [vmem:[%s1 + $0xbc] sm:$0xf]
        %v739 = vld [vmem:[#allocation2] sm:$0x7]
        %v741 = vlaneseq
        %v742 = vshrl.u32 %v741, 7
        %v743 = vsub.s32 0, %v742
        %v744 = vrot.slane %v739, %v743
        %v745 = vlaneseq
        %v746 = vshrl.u32 %v745, 7
        %v747 = vsub.s32 1, %v746
        %v748 = vrot.slane %v739, %v747
        %v749 = vlaneseq
        %v750 = vshrl.u32 %v749, 7
        %v751 = vsub.s32 2, %v750
        %v752 = vrot.slane %v739, %v751
        %v788 = vunpack.c.l.b16 %v707
        %v789 = vunpack.c.h.b16 %v707
        %v790 = vunpack.c.l.b16 %v708
        %v791 = vunpack.c.l.b16 %v709
        %v792 = vunpack.c.h.b16 %v709
        %v793 = vunpack.c.l.b16 %v710
        %v794 = vunpack.c.l.b16 %v711
        %v795 = vunpack.c.h.b16 %v711
        %v796 = vunpack.c.l.b16 %v712
        %v797 = vunpack.c.l.b16 %v713
        %v798 = vunpack.c.h.b16 %v713
        %v799 = vunpack.c.l.b16 %v714
        %v800 = vunpack.c.l.b16 %v715
        %v801 = vunpack.c.h.b16 %v715
        %v802 = vunpack.c.l.b16 %v716
        %v803 = vunpack.c.l.b16 %v717
        %v804 = vunpack.c.h.b16 %v717
        %v805 = vunpack.c.l.b16 %v718
        %v806 = vunpack.c.l.b16 %v719
        %v807 = vunpack.c.h.b16 %v719
        %v808 = vunpack.c.l.b16 %v720
        %v809 = vunpack.c.l.b16 %v721
        %v810 = vunpack.c.h.b16 %v721
        %v811 = vunpack.c.l.b16 %v722
        %v812 = vunpack.c.l.b16 %v723
        %v813 = vunpack.c.h.b16 %v723
        %v814 = vunpack.c.l.b16 %v724
        %v815 = vunpack.c.l.b16 %v725
        %v816 = vunpack.c.h.b16 %v725
        %v817 = vunpack.c.l.b16 %v726
        %v818 = vunpack.c.l.b16 %v727
        %v819 = vunpack.c.h.b16 %v727
        %v820 = vunpack.c.l.b16 %v728
        %v821 = vunpack.c.l.b16 %v729
        %v822 = vunpack.c.h.b16 %v729
        %v823 = vunpack.c.l.b16 %v730
        %v824 = vunpack.c.l.b16 %v731
        %v825 = vunpack.c.h.b16 %v731
        %v826 = vunpack.c.l.b16 %v732
        %v827 = vunpack.c.l.b16 %v733
        %v828 = vunpack.c.h.b16 %v733
        %v829 = vunpack.c.l.b16 %v734
        %v830 = vunpack.c.l.b16 %v735
        %v831 = vunpack.c.h.b16 %v735
        %v832 = vunpack.c.l.b16 %v736
        %v833 = vunpack.c.l.b16 %v737
        %v834 = vunpack.c.h.b16 %v737
        %v835 = vunpack.c.l.b16 %v738
        %v836 = vpack.c.b16 %v791, %v788
        %v837 = vpack.c.b16 %v792, %v789
        %v838 = vpack.c.b16 %v793, %v790
        %v839 = vpack.c.b16 %v797, %v794
        %v840 = vpack.c.b16 %v798, %v795
        %v841 = vpack.c.b16 %v799, %v796
        %v842 = vpack.c.b16 %v803, %v800
        %v843 = vpack.c.b16 %v804, %v801
        %v844 = vpack.c.b16 %v805, %v802
        %v845 = vpack.c.b16 %v809, %v806
        %v846 = vpack.c.b16 %v810, %v807
        %v847 = vpack.c.b16 %v811, %v808
        %v848 = vpack.c.b16 %v815, %v812
        %v849 = vpack.c.b16 %v816, %v813
        %v850 = vpack.c.b16 %v817, %v814
        %v851 = vpack.c.b16 %v821, %v818
        %v852 = vpack.c.b16 %v822, %v819
        %v853 = vpack.c.b16 %v823, %v820
        %v854 = vpack.c.b16 %v827, %v824
        %v855 = vpack.c.b16 %v828, %v825
        %v856 = vpack.c.b16 %v829, %v826
        %v857 = vpack.c.b16 %v833, %v830
        %v858 = vpack.c.b16 %v834, %v831
        %v859 = vpack.c.b16 %v835, %v832
        %884 = vmatprep.subr.bf16.mxu0 %v837
        %885 = vmatpush1.bf16.msra.mxu0 %v836
        %886 = vmatprep.subr.bf16.mxu0 %v840
        %887 = vmatpush1.bf16.msra.mxu0 %v839
        %888 = vmatprep.subr.bf16.mxu0 %v843
        %889 = vmatpush1.bf16.msra.mxu0 %v842
        %890 = vmatprep.subr.bf16.mxu0 %v846
        %891 = vmatpush1.bf16.msra.mxu0 %v845
        %892 = vmatprep.subr.bf16.mxu0 %v849
        %893 = vmatpush1.bf16.msra.mxu0 %v848
        %894 = vmatprep.subr.bf16.mxu0 %v852
        %895 = vmatpush1.bf16.msra.mxu0 %v851
        %896 = vmatprep.subr.bf16.mxu0 %v855
        %897 = vmatpush1.bf16.msra.mxu0 %v854
        %898 = vmatprep.subr.bf16.mxu0 %v858
        %899 = vmatpush1.bf16.msra.mxu0 %v857
        %900 = vmatprep.subr.bf16.mxu0 0
        %901 = vmatpush1.bf16.msra.mxu0 0
        %902 = vmatprep.subr.bf16.mxu0 0
        %903 = vmatpush1.bf16.msra.mxu0 0
        %904 = vmatprep.subr.bf16.mxu0 0
        %905 = vmatpush1.bf16.msra.mxu0 0
        %906 = vmatprep.subr.bf16.mxu0 0
        %907 = vmatpush1.bf16.msra.mxu0 0
        %908 = vmatprep.subr.bf16.mxu0 0
        %909 = vmatpush1.bf16.msra.mxu0 0
        %910 = vmatprep.subr.bf16.mxu0 0
        %911 = vmatpush1.bf16.msra.mxu0 0
        %912 = vmatprep.subr.bf16.mxu0 0
        %913 = vmatpush1.bf16.msra.mxu0 0
        %914 = vmatprep.subr.bf16.mxu0 0
        %915 = vmatpush1.bf16.msra.mxu0 0
        %916 = vmatprep.mubr.bf16.mxu0 0
        %917 = vmatmul.mubr.bf16.gmra.mrb[0].mxu0 %v706
        %v918 = vpop.f32.mrb[0].mxu0
        %v919 = vadd.f32 %v744, %v918
        %v920 = vpop.f32.mrb[0].mxu0
        %v921 = vadd.f32 %v748, %v920
        %v922 = vpop.f32.mrb[0].mxu0
        %v923 = vpop.f32.mrb[0].mxu0
        %924 = vdwg.mxu0
        %925 = vmatprep.subr.bf16.mxu0 0
        %926 = vmatpush1.bf16.msra.mxu0 %v838
        %927 = vmatprep.subr.bf16.mxu0 0
        %928 = vmatpush1.bf16.msra.mxu0 %v841
        %929 = vmatprep.subr.bf16.mxu0 0
        %930 = vmatpush1.bf16.msra.mxu0 %v844
        %931 = vmatprep.subr.bf16.mxu0 0
        %932 = vmatpush1.bf16.msra.mxu0 %v847
        %933 = vmatprep.subr.bf16.mxu0 0
        %934 = vmatpush1.bf16.msra.mxu0 %v850
        %935 = vmatprep.subr.bf16.mxu0 0
        %936 = vmatpush1.bf16.msra.mxu0 %v853
        %937 = vmatprep.subr.bf16.mxu0 0
        %938 = vmatpush1.bf16.msra.mxu0 %v856
        %939 = vmatprep.subr.bf16.mxu0 0
        %940 = vmatpush1.bf16.msra.mxu0 %v859
        %941 = vmatprep.subr.bf16.mxu0 0
        %942 = vmatpush1.bf16.msra.mxu0 0
        %943 = vmatprep.subr.bf16.mxu0 0
        %944 = vmatpush1.bf16.msra.mxu0 0
        %945 = vmatprep.subr.bf16.mxu0 0
        %946 = vmatpush1.bf16.msra.mxu0 0
        %947 = vmatprep.subr.bf16.mxu0 0
        %948 = vmatpush1.bf16.msra.mxu0 0
        %949 = vmatprep.subr.bf16.mxu0 0
        %950 = vmatpush1.bf16.msra.mxu0 0
        %951 = vmatprep.subr.bf16.mxu0 0
        %952 = vmatpush1.bf16.msra.mxu0 0
        %953 = vmatprep.subr.bf16.mxu0 0
        %954 = vmatpush1.bf16.msra.mxu0 0
        %955 = vmatprep.subr.bf16.mxu0 0
        %956 = vmatpush1.bf16.msra.mxu0 0
        %957 = vmatprep.mubr.bf16.mxu0 0
        %958 = vmatmul.mubr.bf16.gmra.mrb[0].mxu0 %v706
        %v959 = vpop.f32.mrb[0].mxu0
        %v960 = vadd.f32 %v752, %v959
        %v961 = vpop.f32.mrb[0].mxu0
        %v962 = vpop.f32.mrb[0].mxu0
        %v963 = vpop.f32.mrb[0].mxu0
        %964 = vdwg.mxu0
        %v965 = vld [vmem:[#allocation5] sm:$0xf]
        %v966 = vld [vmem:[#allocation5 + $0x4] sm:$0xf]
        %v967 = vld [vmem:[#allocation5 + $0x8] sm:$0xf]
        %v968 = vld [vmem:[#allocation5 + $0xc] sm:$0xf]
        %v969 = vld [vmem:[#allocation5 + $0x10] sm:$0xf]
        %v970 = vld [vmem:[#allocation5 + $0x14] sm:$0xf]
        %v971 = vld [vmem:[#allocation5 + $0x18] sm:$0xf]
        %v972 = vld [vmem:[#allocation5 + $0x1c] sm:$0xf]
        %v973 = vld [vmem:[#allocation5 + $0x20] sm:$0xf]
        %v974 = vld [vmem:[#allocation5 + $0x24] sm:$0xf]
        %v975 = vld [vmem:[#allocation5 + $0x28] sm:$0xf]
        %v976 = vld [vmem:[#allocation5 + $0x2c] sm:$0xf]
        %v977 = vld [vmem:[#allocation5 + $0x30] sm:$0xf]
        %v978 = vld [vmem:[#allocation5 + $0x34] sm:$0xf]
        %v979 = vld [vmem:[#allocation5 + $0x38] sm:$0xf]
        %v980 = vld [vmem:[#allocation5 + $0x3c] sm:$0xf]
        %v981 = vld [vmem:[#allocation7] sm:$0x1]
        %v982 = vpack.c.bf16 %v919, %v919
        %v983 = vpack.c.bf16 %v921, %v921
        %v984 = vpack.c.bf16 %v960, %v960
        %vm985 = vcmask 261120
        %v987 = vsel %vm985, %v982, 0
        %v990 = vsel %vm985, %v983, 0
        %992 = vmatprep.subr.bf16.mxu0 0
        %993 = vmatpush1.bf16.xpose.msra.mxu0 %v990
        %994 = vmatprep.subr.bf16.mxu0 0
        %995 = vmatpush1.bf16.xpose.msra.mxu0 0
        %996 = vmatprep.subr.bf16.mxu0 0
        %997 = vmatpush1.bf16.xpose.msra.mxu0 0
        %998 = vmatprep.subr.bf16.mxu0 0
        %999 = vmatpush1.bf16.xpose.msra.mxu0 0
        %1000 = vmatprep.subr.bf16.mxu0 0
        %1001 = vmatpush1.bf16.xpose.msra.mxu0 0
        %1002 = vmatprep.subr.bf16.mxu0 0
        %1003 = vmatpush1.bf16.xpose.msra.mxu0 0
        %1004 = vmatprep.subr.bf16.mxu0 0
        %1005 = vmatpush1.bf16.xpose.msra.mxu0 0
        %1006 = vmatprep.subr.bf16.mxu0 0
        %1007 = vmatpush1.bf16.xpose.msra.mxu0 0
        %1008 = vmatprep.subr.bf16.mxu0 0
        %1009 = vmatpush1.bf16.xpose.msra.mxu0 0
        %1010 = vmatprep.subr.bf16.mxu0 0
        %1011 = vmatpush1.bf16.xpose.msra.mxu0 0
        %1012 = vmatprep.subr.bf16.mxu0 0
        %1013 = vmatpush1.bf16.xpose.msra.mxu0 0
        %1014 = vmatprep.subr.bf16.mxu0 0
        %1015 = vmatpush1.bf16.xpose.msra.mxu0 0
        %1016 = vmatprep.subr.bf16.mxu0 0
        %1017 = vmatpush1.bf16.xpose.msra.mxu0 0
        %1018 = vmatprep.subr.bf16.mxu0 0
        %1019 = vmatpush1.bf16.xpose.msra.mxu0 0
        %1020 = vmatprep.subr.bf16.mxu0 0
        %1021 = vmatpush1.bf16.xpose.msra.mxu0 0
        %1022 = vmatprep.subr.bf16.mxu0 0
        %1023 = vmatpush1.bf16.xpose.msra.mxu0 0
        %1024 = vmatprep.mubr.bf16.mxu0 0
        %1025 = vmatmul.mubr.bf16.gmra.mrb[0].mxu0 %v987
        %v1026 = vpop.f32.mrb[0].mxu0
        %v1027 = vadd.f32 0.0, %v1026
        %v1028 = vpop.f32.mrb[0].mxu0
        %v1029 = vpop.f32.mrb[0].mxu0
        %v1030 = vpop.f32.mrb[0].mxu0
        %1031 = vdwg.mxu0
        %v1032 = vmul.f32 %v1027, 0.17677669
        %vm1033 = vcmask 64512
        %v1034 = vsel %vm1033, %v1032, -inf
        %1035 = vmax.xlane.f32.xlu0 %v1034
        %v1036 = vpop.xlane.xlu0 %1035
        %v1037 = vsub.f32 %v1032, %v1036
        %v1038 = vmul.f32 %v1037, 1.442695
        %v1039 = vpow.pop %v1038
        %v1040 = vsel %vm1033, %v1039, 0.0
        %1041 = vadd.xlane.f32.xlu0 %v1040
        %v1042 = vpop.xlane.xlu0 %1041
        %v1043 = vrcp.pop %v1042
        %v1044 = vmul.f32 %v1042, %v1043
        %v1045 = vsub.f32 2.0, %v1044
        %v1046 = vmul.f32 %v1043, %v1045
        %v1047 = vmul.f32 %v1039, %v1046
        %v1048 = vpack.c.bf16 %v1047, %v1047
        %v1050 = vsel %vm1033, %v1048, 0
        %vm1052 = vcmask 1043456
        %v1054 = vsel %vm1052, %v984, 0
        %1056 = vmatprep.subr.bf16.mxu0 0
        %1057 = vmatpush1.bf16.msra.mxu0 %v1054
        %1058 = vmatprep.subr.bf16.mxu0 0
        %1059 = vmatpush1.bf16.msra.mxu0 0
        %1060 = vmatprep.subr.bf16.mxu0 0
        %1061 = vmatpush1.bf16.msra.mxu0 0
        %1062 = vmatprep.subr.bf16.mxu0 0
        %1063 = vmatpush1.bf16.msra.mxu0 0
        %1064 = vmatprep.subr.bf16.mxu0 0
        %1065 = vmatpush1.bf16.msra.mxu0 0
        %1066 = vmatprep.subr.bf16.mxu0 0
        %1067 = vmatpush1.bf16.msra.mxu0 0
        %1068 = vmatprep.subr.bf16.mxu0 0
        %1069 = vmatpush1.bf16.msra.mxu0 0
        %1070 = vmatprep.subr.bf16.mxu0 0
        %1071 = vmatpush1.bf16.msra.mxu0 0
        %1072 = vmatprep.subr.bf16.mxu0 0
        %1073 = vmatpush1.bf16.msra.mxu0 0
        %1074 = vmatprep.subr.bf16.mxu0 0
        %1075 = vmatpush1.bf16.msra.mxu0 0
        %1076 = vmatprep.subr.bf16.mxu0 0
        %1077 = vmatpush1.bf16.msra.mxu0 0
        %1078 = vmatprep.subr.bf16.mxu0 0
        %1079 = vmatpush1.bf16.msra.mxu0 0
        %1080 = vmatprep.subr.bf16.mxu0 0
        %1081 = vmatpush1.bf16.msra.mxu0 0
        %1082 = vmatprep.subr.bf16.mxu0 0
        %1083 = vmatpush1.bf16.msra.mxu0 0
        %1084 = vmatprep.subr.bf16.mxu0 0
        %1085 = vmatpush1.bf16.msra.mxu0 0
        %1086 = vmatprep.subr.bf16.mxu0 0
        %1087 = vmatpush1.bf16.msra.mxu0 0
        %1088 = vmatprep.mubr.bf16.mxu0 0
        %1089 = vmatmul.mubr.bf16.gmra.mrb[0].mxu0 %v1050
        %v1090 = vpop.f32.mrb[0].mxu0
        %v1091 = vadd.f32 0.0, %v1090
        %v1092 = vpop.f32.mrb[0].mxu0
        %v1093 = vpop.f32.mrb[0].mxu0
        %v1094 = vpop.f32.mrb[0].mxu0
        %1095 = vdwg.mxu0
        %1097 = vrot.lane.b32.xlu0 %v982, 96
        %v1098 = vpop.permute.xlu0 %1097
        %1100 = vrot.lane.b32.xlu0 %v983, 96
        %v1101 = vpop.permute.xlu0 %1100
        %v1103 = vsel %vm985, %v1098, 0
        %v1106 = vsel %vm985, %v1101, 0
        %1108 = vmatprep.subr.bf16.mxu0 0
        %1109 = vmatpush1.bf16.xpose.msra.mxu0 %v1106
        %1110 = vmatprep.subr.bf16.mxu0 0
        %1111 = vmatpush1.bf16.xpose.msra.mxu0 0
        %1112 = vmatprep.subr.bf16.mxu0 0
        %1113 = vmatpush1.bf16.xpose.msra.mxu0 0
        %1114 = vmatprep.subr.bf16.mxu0 0
        %1115 = vmatpush1.bf16.xpose.msra.mxu0 0
        %1116 = vmatprep.subr.bf16.mxu0 0
        %1117 = vmatpush1.bf16.xpose.msra.mxu0 0
        %1118 = vmatprep.subr.bf16.mxu0 0
        %1119 = vmatpush1.bf16.xpose.msra.mxu0 0
        %1120 = vmatprep.subr.bf16.mxu0 0
        %1121 = vmatpush1.bf16.xpose.msra.mxu0 0
        %1122 = vmatprep.subr.bf16.mxu0 0
        %1123 = vmatpush1.bf16.xpose.msra.mxu0 0
        %1124 = vmatprep.subr.bf16.mxu0 0
        %1125 = vmatpush1.bf16.xpose.msra.mxu0 0
        %1126 = vmatprep.subr.bf16.mxu0 0
        %1127 = vmatpush1.bf16.xpose.msra.mxu0 0
        %1128 = vmatprep.subr.bf16.mxu0 0
        %1129 = vmatpush1.bf16.xpose.msra.mxu0 0
        %1130 = vmatprep.subr.bf16.mxu0 0
        %1131 = vmatpush1.bf16.xpose.msra.mxu0 0
        %1132 = vmatprep.subr.bf16.mxu0 0
        %1133 = vmatpush1.bf16.xpose.msra.mxu0 0
        %1134 = vmatprep.subr.bf16.mxu0 0
        %1135 = vmatpush1.bf16.xpose.msra.mxu0 0
        %1136 = vmatprep.subr.bf16.mxu0 0
        %1137 = vmatpush1.bf16.xpose.msra.mxu0 0
        %1138 = vmatprep.subr.bf16.mxu0 0
        %1139 = vmatpush1.bf16.xpose.msra.mxu0 0
        %1140 = vmatprep.mubr.bf16.mxu0 0
        %1141 = vmatmul.mubr.bf16.gmra.mrb[0].mxu0 %v1103
        %v1142 = vpop.f32.mrb[0].mxu0
        %v1143 = vadd.f32 0.0, %v1142
        %v1144 = vpop.f32.mrb[0].mxu0
        %v1145 = vpop.f32.mrb[0].mxu0
        %v1146 = vpop.f32.mrb[0].mxu0
        %1147 = vdwg.mxu0
        %v1148 = vmul.f32 %v1143, 0.17677669
        %v1149 = vsel %vm1033, %v1148, -inf
        %1150 = vmax.xlane.f32.xlu0 %v1149
        %v1151 = vpop.xlane.xlu0 %1150
        %v1152 = vsub.f32 %v1148, %v1151
        %v1153 = vmul.f32 %v1152, 1.442695
        %v1154 = vpow.pop %v1153
        %v1155 = vsel %vm1033, %v1154, 0.0
        %1156 = vadd.xlane.f32.xlu0 %v1155
        %v1157 = vpop.xlane.xlu0 %1156
        %v1158 = vrcp.pop %v1157
        %v1159 = vmul.f32 %v1157, %v1158
        %v1160 = vsub.f32 2.0, %v1159
        %v1161 = vmul.f32 %v1158, %v1160
        %v1162 = vmul.f32 %v1154, %v1161
        %v1163 = vpack.c.bf16 %v1162, %v1162
        %1165 = vrot.lane.b32.xlu0 %v984, 96
        %v1166 = vpop.permute.xlu0 %1165
        %v1168 = vsel %vm1033, %v1163, 0
        %v1171 = vsel %vm1052, %v1166, 0
        %1173 = vmatprep.subr.bf16.mxu0 0
        %1174 = vmatpush1.bf16.msra.mxu0 %v1171
        %1175 = vmatprep.subr.bf16.mxu0 0
        %1176 = vmatpush1.bf16.msra.mxu0 0
        %1177 = vmatprep.subr.bf16.mxu0 0
        %1178 = vmatpush1.bf16.msra.mxu0 0
        %1179 = vmatprep.subr.bf16.mxu0 0
        %1180 = vmatpush1.bf16.msra.mxu0 0
        %1181 = vmatprep.subr.bf16.mxu0 0
        %1182 = vmatpush1.bf16.msra.mxu0 0
        %1183 = vmatprep.subr.bf16.mxu0 0
        %1184 = vmatpush1.bf16.msra.mxu0 0
        %1185 = vmatprep.subr.bf16.mxu0 0
        %1186 = vmatpush1.bf16.msra.mxu0 0
        %1187 = vmatprep.subr.bf16.mxu0 0
        %1188 = vmatpush1.bf16.msra.mxu0 0
        %1189 = vmatprep.subr.bf16.mxu0 0
        %1190 = vmatpush1.bf16.msra.mxu0 0
        %1191 = vmatprep.subr.bf16.mxu0 0
        %1192 = vmatpush1.bf16.msra.mxu0 0
        %1193 = vmatprep.subr.bf16.mxu0 0
        %1194 = vmatpush1.bf16.msra.mxu0 0
        %1195 = vmatprep.subr.bf16.mxu0 0
        %1196 = vmatpush1.bf16.msra.mxu0 0
        %1197 = vmatprep.subr.bf16.mxu0 0
        %1198 = vmatpush1.bf16.msra.mxu0 0
        %1199 = vmatprep.subr.bf16.mxu0 0
        %1200 = vmatpush1.bf16.msra.mxu0 0
        %1201 = vmatprep.subr.bf16.mxu0 0
        %1202 = vmatpush1.bf16.msra.mxu0 0
        %1203 = vmatprep.subr.bf16.mxu0 0
        %1204 = vmatpush1.bf16.msra.mxu0 0
        %1205 = vmatprep.mubr.bf16.mxu0 0
        %1206 = vmatmul.mubr.bf16.gmra.mrb[0].mxu0 %v1168
        %v1207 = vpop.f32.mrb[0].mxu0
        %v1208 = vadd.f32 0.0, %v1207
        %v1209 = vpop.f32.mrb[0].mxu0
        %v1210 = vpop.f32.mrb[0].mxu0
        %v1211 = vpop.f32.mrb[0].mxu0
        %1212 = vdwg.mxu0
        %1213 = vrot.lane.b32.xlu0 %v982, 64
        %v1214 = vpop.permute.xlu0 %1213
        %1215 = vrot.lane.b32.xlu0 %v983, 64
        %v1216 = vpop.permute.xlu0 %1215
        %v1218 = vsel %vm985, %v1214, 0
        %v1221 = vsel %vm985, %v1216, 0
        %1223 = vmatprep.subr.bf16.mxu0 0
        %1224 = vmatpush1.bf16.xpose.msra.mxu0 %v1221
        %1225 = vmatprep.subr.bf16.mxu0 0
        %1226 = vmatpush1.bf16.xpose.msra.mxu0 0
        %1227 = vmatprep.subr.bf16.mxu0 0
        %1228 = vmatpush1.bf16.xpose.msra.mxu0 0
        %1229 = vmatprep.subr.bf16.mxu0 0
        %1230 = vmatpush1.bf16.xpose.msra.mxu0 0
        %1231 = vmatprep.subr.bf16.mxu0 0
        %1232 = vmatpush1.bf16.xpose.msra.mxu0 0
        %1233 = vmatprep.subr.bf16.mxu0 0
        %1234 = vmatpush1.bf16.xpose.msra.mxu0 0
        %1235 = vmatprep.subr.bf16.mxu0 0
        %1236 = vmatpush1.bf16.xpose.msra.mxu0 0
        %1237 = vmatprep.subr.bf16.mxu0 0
        %1238 = vmatpush1.bf16.xpose.msra.mxu0 0
        %1239 = vmatprep.subr.bf16.mxu0 0
        %1240 = vmatpush1.bf16.xpose.msra.mxu0 0
        %1241 = vmatprep.subr.bf16.mxu0 0
        %1242 = vmatpush1.bf16.xpose.msra.mxu0 0
        %1243 = vmatprep.subr.bf16.mxu0 0
        %1244 = vmatpush1.bf16.xpose.msra.mxu0 0
        %1245 = vmatprep.subr.bf16.mxu0 0
        %1246 = vmatpush1.bf16.xpose.msra.mxu0 0
        %1247 = vmatprep.subr.bf16.mxu0 0
        %1248 = vmatpush1.bf16.xpose.msra.mxu0 0
        %1249 = vmatprep.subr.bf16.mxu0 0
        %1250 = vmatpush1.bf16.xpose.msra.mxu0 0
        %1251 = vmatprep.subr.bf16.mxu0 0
        %1252 = vmatpush1.bf16.xpose.msra.mxu0 0
        %1253 = vmatprep.subr.bf16.mxu0 0
        %1254 = vmatpush1.bf16.xpose.msra.mxu0 0
        %1255 = vmatprep.mubr.bf16.mxu0 0
        %1256 = vmatmul.mubr.bf16.gmra.mrb[0].mxu0 %v1218
        %v1257 = vpop.f32.mrb[0].mxu0
        %v1258 = vadd.f32 0.0, %v1257
        %v1259 = vpop.f32.mrb[0].mxu0
        %v1260 = vpop.f32.mrb[0].mxu0
        %v1261 = vpop.f32.mrb[0].mxu0
        %1262 = vdwg.mxu0
        %v1263 = vmul.f32 %v1258, 0.17677669
        %v1264 = vsel %vm1033, %v1263, -inf
        %1265 = vmax.xlane.f32.xlu0 %v1264
        %v1266 = vpop.xlane.xlu0 %1265
        %v1267 = vsub.f32 %v1263, %v1266
        %v1268 = vmul.f32 %v1267, 1.442695
        %v1269 = vpow.pop %v1268
        %v1270 = vsel %vm1033, %v1269, 0.0
        %1271 = vadd.xlane.f32.xlu0 %v1270
        %v1272 = vpop.xlane.xlu0 %1271
        %v1273 = vrcp.pop %v1272
        %v1274 = vmul.f32 %v1272, %v1273
        %v1275 = vsub.f32 2.0, %v1274
        %v1276 = vmul.f32 %v1273, %v1275
        %v1277 = vmul.f32 %v1269, %v1276
        %v1278 = vpack.c.bf16 %v1277, %v1277
        %1279 = vrot.lane.b32.xlu0 %v984, 64
        %v1280 = vpop.permute.xlu0 %1279
        %v1282 = vsel %vm1033, %v1278, 0
        %v1285 = vsel %vm1052, %v1280, 0
        %1287 = vmatprep.subr.bf16.mxu0 0
        %1288 = vmatpush1.bf16.msra.mxu0 %v1285
        %1289 = vmatprep.subr.bf16.mxu0 0
        %1290 = vmatpush1.bf16.msra.mxu0 0
        %1291 = vmatprep.subr.bf16.mxu0 0
        %1292 = vmatpush1.bf16.msra.mxu0 0
        %1293 = vmatprep.subr.bf16.mxu0 0
        %1294 = vmatpush1.bf16.msra.mxu0 0
        %1295 = vmatprep.subr.bf16.mxu0 0
        %1296 = vmatpush1.bf16.msra.mxu0 0
        %1297 = vmatprep.subr.bf16.mxu0 0
        %1298 = vmatpush1.bf16.msra.mxu0 0
        %1299 = vmatprep.subr.bf16.mxu0 0
        %1300 = vmatpush1.bf16.msra.mxu0 0
        %1301 = vmatprep.subr.bf16.mxu0 0
        %1302 = vmatpush1.bf16.msra.mxu0 0
        %1303 = vmatprep.subr.bf16.mxu0 0
        %1304 = vmatpush1.bf16.msra.mxu0 0
        %1305 = vmatprep.subr.bf16.mxu0 0
        %1306 = vmatpush1.bf16.msra.mxu0 0
        %1307 = vmatprep.subr.bf16.mxu0 0
        %1308 = vmatpush1.bf16.msra.mxu0 0
        %1309 = vmatprep.subr.bf16.mxu0 0
        %1310 = vmatpush1.bf16.msra.mxu0 0
        %1311 = vmatprep.subr.bf16.mxu0 0
        %1312 = vmatpush1.bf16.msra.mxu0 0
        %1313 = vmatprep.subr.bf16.mxu0 0
        %1314 = vmatpush1.bf16.msra.mxu0 0
        %1315 = vmatprep.subr.bf16.mxu0 0
        %1316 = vmatpush1.bf16.msra.mxu0 0
        %1317 = vmatprep.subr.bf16.mxu0 0
        %1318 = vmatpush1.bf16.msra.mxu0 0
        %1319 = vmatprep.mubr.bf16.mxu0 0
        %1320 = vmatmul.mubr.bf16.gmra.mrb[0].mxu0 %v1282
        %v1321 = vpop.f32.mrb[0].mxu0
        %v1322 = vadd.f32 0.0, %v1321
        %v1323 = vpop.f32.mrb[0].mxu0
        %v1324 = vpop.f32.mrb[0].mxu0
        %v1325 = vpop.f32.mrb[0].mxu0
        %1326 = vdwg.mxu0
        %1327 = vrot.lane.b32.xlu0 %v982, 32
        %v1328 = vpop.permute.xlu0 %1327
        %1329 = vrot.lane.b32.xlu0 %v983, 32
        %v1330 = vpop.permute.xlu0 %1329
        %v1332 = vsel %vm985, %v1328, 0
        %v1335 = vsel %vm985, %v1330, 0
        %1337 = vmatprep.subr.bf16.mxu0 0
        %1338 = vmatpush1.bf16.xpose.msra.mxu0 %v1335
        %1339 = vmatprep.subr.bf16.mxu0 0
        %1340 = vmatpush1.bf16.xpose.msra.mxu0 0
        %1341 = vmatprep.subr.bf16.mxu0 0
        %1342 = vmatpush1.bf16.xpose.msra.mxu0 0
        %1343 = vmatprep.subr.bf16.mxu0 0
        %1344 = vmatpush1.bf16.xpose.msra.mxu0 0
        %1345 = vmatprep.subr.bf16.mxu0 0
        %1346 = vmatpush1.bf16.xpose.msra.mxu0 0
        %1347 = vmatprep.subr.bf16.mxu0 0
        %1348 = vmatpush1.bf16.xpose.msra.mxu0 0
        %1349 = vmatprep.subr.bf16.mxu0 0
        %1350 = vmatpush1.bf16.xpose.msra.mxu0 0
        %1351 = vmatprep.subr.bf16.mxu0 0
        %1352 = vmatpush1.bf16.xpose.msra.mxu0 0
        %1353 = vmatprep.subr.bf16.mxu0 0
        %1354 = vmatpush1.bf16.xpose.msra.mxu0 0
        %1355 = vmatprep.subr.bf16.mxu0 0
        %1356 = vmatpush1.bf16.xpose.msra.mxu0 0
        %1357 = vmatprep.subr.bf16.mxu0 0
        %1358 = vmatpush1.bf16.xpose.msra.mxu0 0
        %1359 = vmatprep.subr.bf16.mxu0 0
        %1360 = vmatpush1.bf16.xpose.msra.mxu0 0
        %1361 = vmatprep.subr.bf16.mxu0 0
        %1362 = vmatpush1.bf16.xpose.msra.mxu0 0
        %1363 = vmatprep.subr.bf16.mxu0 0
        %1364 = vmatpush1.bf16.xpose.msra.mxu0 0
        %1365 = vmatprep.subr.bf16.mxu0 0
        %1366 = vmatpush1.bf16.xpose.msra.mxu0 0
        %1367 = vmatprep.subr.bf16.mxu0 0
        %1368 = vmatpush1.bf16.xpose.msra.mxu0 0
        %1369 = vmatprep.mubr.bf16.mxu0 0
        %1370 = vmatmul.mubr.bf16.gmra.mrb[0].mxu0 %v1332
        %v1371 = vpop.f32.mrb[0].mxu0
        %v1372 = vadd.f32 0.0, %v1371
        %v1373 = vpop.f32.mrb[0].mxu0
        %v1374 = vpop.f32.mrb[0].mxu0
        %v1375 = vpop.f32.mrb[0].mxu0
        %1376 = vdwg.mxu0
        %v1377 = vmul.f32 %v1372, 0.17677669
        %v1378 = vsel %vm1033, %v1377, -inf
        %1379 = vmax.xlane.f32.xlu0 %v1378
        %v1380 = vpop.xlane.xlu0 %1379
        %v1381 = vsub.f32 %v1377, %v1380
        %v1382 = vmul.f32 %v1381, 1.442695
        %v1383 = vpow.pop %v1382
        %v1384 = vsel %vm1033, %v1383, 0.0
        %1385 = vadd.xlane.f32.xlu0 %v1384
        %v1386 = vpop.xlane.xlu0 %1385
        %v1387 = vrcp.pop %v1386
        %v1388 = vmul.f32 %v1386, %v1387
        %v1389 = vsub.f32 2.0, %v1388
        %v1390 = vmul.f32 %v1387, %v1389
        %v1391 = vmul.f32 %v1383, %v1390
        %v1392 = vpack.c.bf16 %v1391, %v1391
        %1393 = vrot.lane.b32.xlu0 %v984, 32
        %v1394 = vpop.permute.xlu0 %1393
        %v1396 = vsel %vm1033, %v1392, 0
        %v1399 = vsel %vm1052, %v1394, 0
        %1401 = vmatprep.subr.bf16.mxu0 0
        %1402 = vmatpush1.bf16.msra.mxu0 %v1399
        %1403 = vmatprep.subr.bf16.mxu0 0
        %1404 = vmatpush1.bf16.msra.mxu0 0
        %1405 = vmatprep.subr.bf16.mxu0 0
        %1406 = vmatpush1.bf16.msra.mxu0 0
        %1407 = vmatprep.subr.bf16.mxu0 0
        %1408 = vmatpush1.bf16.msra.mxu0 0
        %1409 = vmatprep.subr.bf16.mxu0 0
        %1410 = vmatpush1.bf16.msra.mxu0 0
        %1411 = vmatprep.subr.bf16.mxu0 0
        %1412 = vmatpush1.bf16.msra.mxu0 0
        %1413 = vmatprep.subr.bf16.mxu0 0
        %1414 = vmatpush1.bf16.msra.mxu0 0
        %1415 = vmatprep.subr.bf16.mxu0 0
        %1416 = vmatpush1.bf16.msra.mxu0 0
        %1417 = vmatprep.subr.bf16.mxu0 0
        %1418 = vmatpush1.bf16.msra.mxu0 0
        %1419 = vmatprep.subr.bf16.mxu0 0
        %1420 = vmatpush1.bf16.msra.mxu0 0
        %1421 = vmatprep.subr.bf16.mxu0 0
        %1422 = vmatpush1.bf16.msra.mxu0 0
        %1423 = vmatprep.subr.bf16.mxu0 0
        %1424 = vmatpush1.bf16.msra.mxu0 0
        %1425 = vmatprep.subr.bf16.mxu0 0
        %1426 = vmatpush1.bf16.msra.mxu0 0
        %1427 = vmatprep.subr.bf16.mxu0 0
        %1428 = vmatpush1.bf16.msra.mxu0 0
        %1429 = vmatprep.subr.bf16.mxu0 0
        %1430 = vmatpush1.bf16.msra.mxu0 0
        %1431 = vmatprep.subr.bf16.mxu0 0
        %1432 = vmatpush1.bf16.msra.mxu0 0
        %1433 = vmatprep.mubr.bf16.mxu0 0
        %1434 = vmatmul.mubr.bf16.gmra.mrb[0].mxu0 %v1396
        %v1435 = vpop.f32.mrb[0].mxu0
        %v1436 = vadd.f32 0.0, %v1435
        %v1437 = vpop.f32.mrb[0].mxu0
        %v1438 = vpop.f32.mrb[0].mxu0
        %v1439 = vpop.f32.mrb[0].mxu0
        %1440 = vdwg.mxu0
        %1442 = vrot.lane.b32.xlu0 %v1208, 32
        %v1443 = vpop.permute.xlu0 %1442
        %1446 = vrot.lane.b32.xlu0 %v1322, 64
        %v1447 = vpop.permute.xlu0 %1446
        %1450 = vrot.lane.b32.xlu0 %v1436, 96
        %v1451 = vpop.permute.xlu0 %1450
        %v1453 = vsel %vm985, %v1091, %v1443
        %vm1454 = vcmask 523264
        %v1455 = vsel %vm1454, %v1453, %v1447
        %vm1456 = vcmask 785408
        %v1457 = vsel %vm1456, %v1455, %v1451
        %v1458 = vpack.c.bf16 %v1457, %v1457
        %v1460 = vlaneseq
        %v1461 = vshrl.u32 %v1460, 7
        %v1462 = vsub.s32 0, %v1461
        %v1463 = vrot.slane %v981, %v1462
        %v1481 = vunpack.c.l.b16 %v965
        %v1482 = vunpack.c.l.b16 %v966
        %v1483 = vunpack.c.l.b16 %v967
        %v1484 = vunpack.c.l.b16 %v968
        %v1485 = vunpack.c.l.b16 %v969
        %v1486 = vunpack.c.l.b16 %v970
        %v1487 = vunpack.c.l.b16 %v971
        %v1488 = vunpack.c.l.b16 %v972
        %v1489 = vunpack.c.l.b16 %v973
        %v1490 = vunpack.c.l.b16 %v974
        %v1491 = vunpack.c.l.b16 %v975
        %v1492 = vunpack.c.l.b16 %v976
        %v1493 = vunpack.c.l.b16 %v977
        %v1494 = vunpack.c.l.b16 %v978
        %v1495 = vunpack.c.l.b16 %v979
        %v1496 = vunpack.c.l.b16 %v980
        %v1497 = vpack.c.b16 %v1482, %v1481
        %v1498 = vpack.c.b16 %v1484, %v1483
        %v1499 = vpack.c.b16 %v1486, %v1485
        %v1500 = vpack.c.b16 %v1488, %v1487
        %v1501 = vpack.c.b16 %v1490, %v1489
        %v1502 = vpack.c.b16 %v1492, %v1491
        %v1503 = vpack.c.b16 %v1494, %v1493
        %v1504 = vpack.c.b16 %v1496, %v1495
        %1513 = vmatprep.subr.bf16.mxu0 0
        %1514 = vmatpush1.bf16.msra.mxu0 %v1497
        %1515 = vmatprep.subr.bf16.mxu0 0
        %1516 = vmatpush1.bf16.msra.mxu0 %v1498
        %1517 = vmatprep.subr.bf16.mxu0 0
        %1518 = vmatpush1.bf16.msra.mxu0 %v1499
        %1519 = vmatprep.subr.bf16.mxu0 0
        %1520 = vmatpush1.bf16.msra.mxu0 %v1500
        %1521 = vmatprep.subr.bf16.mxu0 0
        %1522 = vmatpush1.bf16.msra.mxu0 %v1501
        %1523 = vmatprep.subr.bf16.mxu0 0
        %1524 = vmatpush1.bf16.msra.mxu0 %v1502
        %1525 = vmatprep.subr.bf16.mxu0 0
        %1526 = vmatpush1.bf16.msra.mxu0 %v1503
        %1527 = vmatprep.subr.bf16.mxu0 0
        %1528 = vmatpush1.bf16.msra.mxu0 %v1504
        %1529 = vmatprep.subr.bf16.mxu0 0
        %1530 = vmatpush1.bf16.msra.mxu0 0
        %1531 = vmatprep.subr.bf16.mxu0 0
        %1532 = vmatpush1.bf16.msra.mxu0 0
        %1533 = vmatprep.subr.bf16.mxu0 0
        %1534 = vmatpush1.bf16.msra.mxu0 0
        %1535 = vmatprep.subr.bf16.mxu0 0
        %1536 = vmatpush1.bf16.msra.mxu0 0
        %1537 = vmatprep.subr.bf16.mxu0 0
        %1538 = vmatpush1.bf16.msra.mxu0 0
        %1539 = vmatprep.subr.bf16.mxu0 0
        %1540 = vmatpush1.bf16.msra.mxu0 0
        %1541 = vmatprep.subr.bf16.mxu0 0
        %1542 = vmatpush1.bf16.msra.mxu0 0
        %1543 = vmatprep.subr.bf16.mxu0 0
        %1544 = vmatpush1.bf16.msra.mxu0 0
        %1545 = vmatprep.mubr.bf16.mxu0 0
        %1546 = vmatmul.mubr.bf16.gmra.mrb[0].mxu0 %v1458
        %v1547 = vpop.f32.mrb[0].mxu0
        %v1548 = vadd.f32 %v1463, %v1547
        %v1549 = vpop.f32.mrb[0].mxu0
        %v1550 = vpop.f32.mrb[0].mxu0
        %v1551 = vpop.f32.mrb[0].mxu0
        %1552 = vdwg.mxu0
        %v1553 = vadd.f32 %v705, %v1548
        %v1554 = vld [vmem:[%s15] sm:$0x1]
        %v1555 = vld [vmem:[%s16] sm:$0x1]
        %1556 = vadd.xlane.f32.xlu0 %v1553
        %v1557 = vpop.xlane.xlu0 %1556
        %v1558 = vrcp.pop 128.0
        %v1559 = vmul.f32 %v1557, %v1558
        %v1560 = vsub.f32 %v1553, %v1559
        %v1561 = vmul.f32 %v1560, %v1560
        %1562 = vadd.xlane.f32.xlu0 %v1561
        %v1563 = vpop.xlane.xlu0 %1562
        %v1564 = vmul.f32 %v1563, %v1558
        %v1565 = vadd.f32 %v1564, 1e-05
        %v1566 = vrsqrt.pop %v1565
        %v1567 = vmul.f32 %v1560, %v1566
        %v1569 = vlaneseq
        %v1570 = vshrl.u32 %v1569, 7
        %v1571 = vsub.s32 0, %v1570
        %v1572 = vrot.slane %v1554, %v1571
        %v1574 = vmul.f32 %v1567, %v1572
        %v1576 = vlaneseq
        %v1577 = vshrl.u32 %v1576, 7
        %v1578 = vsub.s32 0, %v1577
        %v1579 = vrot.slane %v1555, %v1578
        %v1581 = vadd.f32 %v1574, %v1579
        %v1582 = vpack.c.bf16 %v1581, %v1581
        %v1583 = vld [vmem:[#allocation8] sm:$0xf]
        %v1584 = vld [vmem:[#allocation8 + $0x4] sm:$0xf]
        %v1585 = vld [vmem:[#allocation8 + $0x8] sm:$0xf]
        %v1586 = vld [vmem:[#allocation8 + $0xc] sm:$0xf]
        %v1587 = vld [vmem:[#allocation8 + $0x10] sm:$0xf]
        %v1588 = vld [vmem:[#allocation8 + $0x14] sm:$0xf]
        %v1589 = vld [vmem:[#allocation8 + $0x18] sm:$0xf]
        %v1590 = vld [vmem:[#allocation8 + $0x1c] sm:$0xf]
        %v1591 = vld [vmem:[#allocation8 + $0x20] sm:$0xf]
        %v1592 = vld [vmem:[#allocation8 + $0x24] sm:$0xf]
        %v1593 = vld [vmem:[#allocation8 + $0x28] sm:$0xf]
        %v1594 = vld [vmem:[#allocation8 + $0x2c] sm:$0xf]
        %v1595 = vld [vmem:[#allocation8 + $0x30] sm:$0xf]
        %v1596 = vld [vmem:[#allocation8 + $0x34] sm:$0xf]
        %v1597 = vld [vmem:[#allocation8 + $0x38] sm:$0xf]
        %v1598 = vld [vmem:[#allocation8 + $0x3c] sm:$0xf]
        %v1599 = vld [vmem:[#allocation10] sm:$0x1]
        %v1601 = vlaneseq
        %v1602 = vshrl.u32 %v1601, 7
        %v1603 = vsub.s32 0, %v1602
        %v1604 = vrot.slane %v1599, %v1603
        %v1622 = vunpack.c.l.b16 %v1583
        %v1623 = vunpack.c.l.b16 %v1584
        %v1624 = vunpack.c.l.b16 %v1585
        %v1625 = vunpack.c.l.b16 %v1586
        %v1626 = vunpack.c.l.b16 %v1587
        %v1627 = vunpack.c.l.b16 %v1588
        %v1628 = vunpack.c.l.b16 %v1589
        %v1629 = vunpack.c.l.b16 %v1590
        %v1630 = vunpack.c.l.b16 %v1591
        %v1631 = vunpack.c.l.b16 %v1592
        %v1632 = vunpack.c.l.b16 %v1593
        %v1633 = vunpack.c.l.b16 %v1594
        %v1634 = vunpack.c.l.b16 %v1595
        %v1635 = vunpack.c.l.b16 %v1596
        %v1636 = vunpack.c.l.b16 %v1597
        %v1637 = vunpack.c.l.b16 %v1598
        %v1638 = vpack.c.b16 %v1623, %v1622
        %v1639 = vpack.c.b16 %v1625, %v1624
        %v1640 = vpack.c.b16 %v1627, %v1626
        %v1641 = vpack.c.b16 %v1629, %v1628
        %v1642 = vpack.c.b16 %v1631, %v1630
        %v1643 = vpack.c.b16 %v1633, %v1632
        %v1644 = vpack.c.b16 %v1635, %v1634
        %v1645 = vpack.c.b16 %v1637, %v1636
        %1654 = vmatprep.subr.bf16.mxu0 0
        %1655 = vmatpush1.bf16.msra.mxu0 %v1638
        %1656 = vmatprep.subr.bf16.mxu0 0
        %1657 = vmatpush1.bf16.msra.mxu0 %v1639
        %1658 = vmatprep.subr.bf16.mxu0 0
        %1659 = vmatpush1.bf16.msra.mxu0 %v1640
        %1660 = vmatprep.subr.bf16.mxu0 0
        %1661 = vmatpush1.bf16.msra.mxu0 %v1641
        %1662 = vmatprep.subr.bf16.mxu0 0
        %1663 = vmatpush1.bf16.msra.mxu0 %v1642
        %1664 = vmatprep.subr.bf16.mxu0 0
        %1665 = vmatpush1.bf16.msra.mxu0 %v1643
        %1666 = vmatprep.subr.bf16.mxu0 0
        %1667 = vmatpush1.bf16.msra.mxu0 %v1644
        %1668 = vmatprep.subr.bf16.mxu0 0
        %1669 = vmatpush1.bf16.msra.mxu0 %v1645
        %1670 = vmatprep.subr.bf16.mxu0 0
        %1671 = vmatpush1.bf16.msra.mxu0 0
        %1672 = vmatprep.subr.bf16.mxu0 0
        %1673 = vmatpush1.bf16.msra.mxu0 0
        %1674 = vmatprep.subr.bf16.mxu0 0
        %1675 = vmatpush1.bf16.msra.mxu0 0
        %1676 = vmatprep.subr.bf16.mxu0 0
        %1677 = vmatpush1.bf16.msra.mxu0 0
        %1678 = vmatprep.subr.bf16.mxu0 0
        %1679 = vmatpush1.bf16.msra.mxu0 0
        %1680 = vmatprep.subr.bf16.mxu0 0
        %1681 = vmatpush1.bf16.msra.mxu0 0
        %1682 = vmatprep.subr.bf16.mxu0 0
        %1683 = vmatpush1.bf16.msra.mxu0 0
        %1684 = vmatprep.subr.bf16.mxu0 0
        %1685 = vmatpush1.bf16.msra.mxu0 0
        %1686 = vmatprep.mubr.bf16.mxu0 0
        %1687 = vmatmul.mubr.bf16.gmra.mrb[0].mxu0 %v1582
        %v1688 = vpop.f32.mrb[0].mxu0
        %v1689 = vadd.f32 %v1604, %v1688
        %v1690 = vpop.f32.mrb[0].mxu0
        %v1691 = vpop.f32.mrb[0].mxu0
        %v1692 = vpop.f32.mrb[0].mxu0
        %1693 = vdwg.mxu0
        %v1694 = vld [vmem:[%s7] sm:$0xff]
        %v1695 = vld [vmem:[%s7 + $0x8] sm:$0xff]
        %v1696 = vld [vmem:[%s7 + $0x10] sm:$0xff]
        %v1697 = vld [vmem:[%s7 + $0x18] sm:$0xff]
        %v1698 = vld [vmem:[%s7 + $0x20] sm:$0xff]
        %v1699 = vld [vmem:[%s7 + $0x28] sm:$0xff]
        %v1700 = vld [vmem:[%s7 + $0x30] sm:$0xff]
        %v1701 = vld [vmem:[%s7 + $0x38] sm:$0xff]
        %v1702 = vld [vmem:[%s7 + $0x40] sm:$0xff]
        %v1703 = vld [vmem:[%s7 + $0x48] sm:$0xff]
        %v1704 = vld [vmem:[%s7 + $0x50] sm:$0xff]
        %v1705 = vld [vmem:[%s7 + $0x58] sm:$0xff]
        %v1706 = vld [vmem:[%s7 + $0x60] sm:$0xff]
        %v1707 = vld [vmem:[%s7 + $0x68] sm:$0xff]
        %v1708 = vld [vmem:[%s7 + $0x70] sm:$0xff]
        %v1709 = vld [vmem:[%s7 + $0x78] sm:$0xff]
        %v1710 = vld [vmem:[#allocation11] sm:$0x3]
        %v1712 = vlaneseq
        %v1713 = vshrl.u32 %v1712, 7
        %v1714 = vsub.s32 0, %v1713
        %v1715 = vrot.slane %v1710, %v1714
        %v1716 = vlaneseq
        %v1717 = vshrl.u32 %v1716, 7
        %v1718 = vsub.s32 1, %v1717
        %v1719 = vrot.slane %v1710, %v1718
        %v1738 = vunpack.c.l.b16 %v1694
        %v1739 = vunpack.c.h.b16 %v1694
        %v1740 = vunpack.c.l.b16 %v1695
        %v1741 = vunpack.c.h.b16 %v1695
        %v1742 = vunpack.c.l.b16 %v1696
        %v1743 = vunpack.c.h.b16 %v1696
        %v1744 = vunpack.c.l.b16 %v1697
        %v1745 = vunpack.c.h.b16 %v1697
        %v1746 = vunpack.c.l.b16 %v1698
        %v1747 = vunpack.c.h.b16 %v1698
        %v1748 = vunpack.c.l.b16 %v1699
        %v1749 = vunpack.c.h.b16 %v1699
        %v1750 = vunpack.c.l.b16 %v1700
        %v1751 = vunpack.c.h.b16 %v1700
        %v1752 = vunpack.c.l.b16 %v1701
        %v1753 = vunpack.c.h.b16 %v1701
        %v1754 = vunpack.c.l.b16 %v1702
        %v1755 = vunpack.c.h.b16 %v1702
        %v1756 = vunpack.c.l.b16 %v1703
        %v1757 = vunpack.c.h.b16 %v1703
        %v1758 = vunpack.c.l.b16 %v1704
        %v1759 = vunpack.c.h.b16 %v1704
        %v1760 = vunpack.c.l.b16 %v1705
        %v1761 = vunpack.c.h.b16 %v1705
        %v1762 = vunpack.c.l.b16 %v1706
        %v1763 = vunpack.c.h.b16 %v1706
        %v1764 = vunpack.c.l.b16 %v1707
        %v1765 = vunpack.c.h.b16 %v1707
        %v1766 = vunpack.c.l.b16 %v1708
        %v1767 = vunpack.c.h.b16 %v1708
        %v1768 = vunpack.c.l.b16 %v1709
        %v1769 = vunpack.c.h.b16 %v1709
        %v1770 = vpack.c.b16 %v1740, %v1738
        %v1771 = vpack.c.b16 %v1741, %v1739
        %v1772 = vpack.c.b16 %v1744, %v1742
        %v1773 = vpack.c.b16 %v1745, %v1743
        %v1774 = vpack.c.b16 %v1748, %v1746
        %v1775 = vpack.c.b16 %v1749, %v1747
        %v1776 = vpack.c.b16 %v1752, %v1750
        %v1777 = vpack.c.b16 %v1753, %v1751
        %v1778 = vpack.c.b16 %v1756, %v1754
        %v1779 = vpack.c.b16 %v1757, %v1755
        %v1780 = vpack.c.b16 %v1760, %v1758
        %v1781 = vpack.c.b16 %v1761, %v1759
        %v1782 = vpack.c.b16 %v1764, %v1762
        %v1783 = vpack.c.b16 %v1765, %v1763
        %v1784 = vpack.c.b16 %v1768, %v1766
        %v1785 = vpack.c.b16 %v1769, %v1767
        %1802 = vmatprep.subr.bf16.mxu0 %v1771
        %1803 = vmatpush1.bf16.msra.mxu0 %v1770
        %1804 = vmatprep.subr.bf16.mxu0 %v1773
        %1805 = vmatpush1.bf16.msra.mxu0 %v1772
        %1806 = vmatprep.subr.bf16.mxu0 %v1775
        %1807 = vmatpush1.bf16.msra.mxu0 %v1774
        %1808 = vmatprep.subr.bf16.mxu0 %v1777
        %1809 = vmatpush1.bf16.msra.mxu0 %v1776
        %1810 = vmatprep.subr.bf16.mxu0 %v1779
        %1811 = vmatpush1.bf16.msra.mxu0 %v1778
        %1812 = vmatprep.subr.bf16.mxu0 %v1781
        %1813 = vmatpush1.bf16.msra.mxu0 %v1780
        %1814 = vmatprep.subr.bf16.mxu0 %v1783
        %1815 = vmatpush1.bf16.msra.mxu0 %v1782
        %1816 = vmatprep.subr.bf16.mxu0 %v1785
        %1817 = vmatpush1.bf16.msra.mxu0 %v1784
        %1818 = vmatprep.subr.bf16.mxu0 0
        %1819 = vmatpush1.bf16.msra.mxu0 0
        %1820 = vmatprep.subr.bf16.mxu0 0
        %1821 = vmatpush1.bf16.msra.mxu0 0
        %1822 = vmatprep.subr.bf16.mxu0 0
        %1823 = vmatpush1.bf16.msra.mxu0 0
        %1824 = vmatprep.subr.bf16.mxu0 0
        %1825 = vmatpush1.bf16.msra.mxu0 0
        %1826 = vmatprep.subr.bf16.mxu0 0
        %1827 = vmatpush1.bf16.msra.mxu0 0
        %1828 = vmatprep.subr.bf16.mxu0 0
        %1829 = vmatpush1.bf16.msra.mxu0 0
        %1830 = vmatprep.subr.bf16.mxu0 0
        %1831 = vmatpush1.bf16.msra.mxu0 0
        %1832 = vmatprep.subr.bf16.mxu0 0
        %1833 = vmatpush1.bf16.msra.mxu0 0
        %1834 = vmatprep.mubr.bf16.mxu0 0
        %1835 = vmatmul.mubr.bf16.gmra.mrb[0].mxu0 %v706
        %v1836 = vpop.f32.mrb[0].mxu0
        %v1837 = vadd.f32 %v1715, %v1836
        %v1838 = vpop.f32.mrb[0].mxu0
        %v1839 = vadd.f32 %v1719, %v1838
        %v1840 = vpop.f32.mrb[0].mxu0
        %v1841 = vpop.f32.mrb[0].mxu0
        %1842 = vdwg.mxu0
        %v1843 = vld [vmem:[#allocation13] sm:$0xf]
        %v1844 = vld [vmem:[#allocation13 + $0x4] sm:$0xf]
        %v1845 = vld [vmem:[#allocation13 + $0x8] sm:$0xf]
        %v1846 = vld [vmem:[#allocation13 + $0xc] sm:$0xf]
        %v1847 = vld [vmem:[#allocation13 + $0x10] sm:$0xf]
        %v1848 = vld [vmem:[#allocation13 + $0x14] sm:$0xf]
        %v1849 = vld [vmem:[#allocation13 + $0x18] sm:$0xf]
        %v1850 = vld [vmem:[#allocation13 + $0x1c] sm:$0xf]
        %v1851 = vld [vmem:[#allocation13 + $0x20] sm:$0xf]
        %v1852 = vld [vmem:[#allocation13 + $0x24] sm:$0xf]
        %v1853 = vld [vmem:[#allocation13 + $0x28] sm:$0xf]
        %v1854 = vld [vmem:[#allocation13 + $0x2c] sm:$0xf]
        %v1855 = vld [vmem:[#allocation13 + $0x30] sm:$0xf]
        %v1856 = vld [vmem:[#allocation13 + $0x34] sm:$0xf]
        %v1857 = vld [vmem:[#allocation13 + $0x38] sm:$0xf]
        %v1858 = vld [vmem:[#allocation13 + $0x3c] sm:$0xf]
        %v1859 = vld [vmem:[#allocation14] sm:$0x1]
        %v1860 = vpack.c.bf16 %v1689, %v1689
        %v1861 = vpack.c.bf16 %v1837, %v1837
        %v1862 = vpack.c.bf16 %v1839, %v1839
        %v1864 = vsel %vm985, %v1860, 0
        %v1867 = vsel %vm985, %v1861, 0
        %1869 = vmatprep.subr.bf16.mxu0 0
        %1870 = vmatpush1.bf16.xpose.msra.mxu0 %v1867
        %1871 = vmatprep.subr.bf16.mxu0 0
        %1872 = vmatpush1.bf16.xpose.msra.mxu0 0
        %1873 = vmatprep.subr.bf16.mxu0 0
        %1874 = vmatpush1.bf16.xpose.msra.mxu0 0
        %1875 = vmatprep.subr.bf16.mxu0 0
        %1876 = vmatpush1.bf16.xpose.msra.mxu0 0
        %1877 = vmatprep.subr.bf16.mxu0 0
        %1878 = vmatpush1.bf16.xpose.msra.mxu0 0
        %1879 = vmatprep.subr.bf16.mxu0 0
        %1880 = vmatpush1.bf16.xpose.msra.mxu0 0
        %1881 = vmatprep.subr.bf16.mxu0 0
        %1882 = vmatpush1.bf16.xpose.msra.mxu0 0
        %1883 = vmatprep.subr.bf16.mxu0 0
        %1884 = vmatpush1.bf16.xpose.msra.mxu0 0
        %1885 = vmatprep.subr.bf16.mxu0 0
        %1886 = vmatpush1.bf16.xpose.msra.mxu0 0
        %1887 = vmatprep.subr.bf16.mxu0 0
        %1888 = vmatpush1.bf16.xpose.msra.mxu0 0
        %1889 = vmatprep.subr.bf16.mxu0 0
        %1890 = vmatpush1.bf16.xpose.msra.mxu0 0
        %1891 = vmatprep.subr.bf16.mxu0 0
        %1892 = vmatpush1.bf16.xpose.msra.mxu0 0
        %1893 = vmatprep.subr.bf16.mxu0 0
        %1894 = vmatpush1.bf16.xpose.msra.mxu0 0
        %1895 = vmatprep.subr.bf16.mxu0 0
        %1896 = vmatpush1.bf16.xpose.msra.mxu0 0
        %1897 = vmatprep.subr.bf16.mxu0 0
        %1898 = vmatpush1.bf16.xpose.msra.mxu0 0
        %1899 = vmatprep.subr.bf16.mxu0 0
        %1900 = vmatpush1.bf16.xpose.msra.mxu0 0
        %1901 = vmatprep.mubr.bf16.mxu0 0
        %1902 = vmatmul.mubr.bf16.gmra.mrb[0].mxu0 %v1864
        %v1903 = vpop.f32.mrb[0].mxu0
        %v1904 = vadd.f32 0.0, %v1903
        %v1905 = vpop.f32.mrb[0].mxu0
        %v1906 = vpop.f32.mrb[0].mxu0
        %v1907 = vpop.f32.mrb[0].mxu0
        %1908 = vdwg.mxu0
        %v1909 = vmul.f32 %v1904, 0.17677669
        %v1910 = vsel %vm1033, %v1909, -inf
        %1911 = vmax.xlane.f32.xlu0 %v1910
        %v1912 = vpop.xlane.xlu0 %1911
        %v1913 = vsub.f32 %v1909, %v1912
        %v1914 = vmul.f32 %v1913, 1.442695
        %v1915 = vpow.pop %v1914
        %v1916 = vsel %vm1033, %v1915, 0.0
        %1917 = vadd.xlane.f32.xlu0 %v1916
        %v1918 = vpop.xlane.xlu0 %1917
        %v1919 = vrcp.pop %v1918
        %v1920 = vmul.f32 %v1918, %v1919
        %v1921 = vsub.f32 2.0, %v1920
        %v1922 = vmul.f32 %v1919, %v1921
        %v1923 = vmul.f32 %v1915, %v1922
        %v1924 = vpack.c.bf16 %v1923, %v1923
        %v1926 = vsel %vm1033, %v1924, 0
        %v1929 = vsel %vm1052, %v1862, 0
        %1931 = vmatprep.subr.bf16.mxu0 0
        %1932 = vmatpush1.bf16.msra.mxu0 %v1929
        %1933 = vmatprep.subr.bf16.mxu0 0
        %1934 = vmatpush1.bf16.msra.mxu0 0
        %1935 = vmatprep.subr.bf16.mxu0 0
        %1936 = vmatpush1.bf16.msra.mxu0 0
        %1937 = vmatprep.subr.bf16.mxu0 0
        %1938 = vmatpush1.bf16.msra.mxu0 0
        %1939 = vmatprep.subr.bf16.mxu0 0
        %1940 = vmatpush1.bf16.msra.mxu0 0
        %1941 = vmatprep.subr.bf16.mxu0 0
        %1942 = vmatpush1.bf16.msra.mxu0 0
        %1943 = vmatprep.subr.bf16.mxu0 0
        %1944 = vmatpush1.bf16.msra.mxu0 0
        %1945 = vmatprep.subr.bf16.mxu0 0
        %1946 = vmatpush1.bf16.msra.mxu0 0
        %1947 = vmatprep.subr.bf16.mxu0 0
        %1948 = vmatpush1.bf16.msra.mxu0 0
        %1949 = vmatprep.subr.bf16.mxu0 0
        %1950 = vmatpush1.bf16.msra.mxu0 0
        %1951 = vmatprep.subr.bf16.mxu0 0
        %1952 = vmatpush1.bf16.msra.mxu0 0
        %1953 = vmatprep.subr.bf16.mxu0 0
        %1954 = vmatpush1.bf16.msra.mxu0 0
        %1955 = vmatprep.subr.bf16.mxu0 0
        %1956 = vmatpush1.bf16.msra.mxu0 0
        %1957 = vmatprep.subr.bf16.mxu0 0
        %1958 = vmatpush1.bf16.msra.mxu0 0
        %1959 = vmatprep.subr.bf16.mxu0 0
        %1960 = vmatpush1.bf16.msra.mxu0 0
        %1961 = vmatprep.subr.bf16.mxu0 0
        %1962 = vmatpush1.bf16.msra.mxu0 0
        %1963 = vmatprep.mubr.bf16.mxu0 0
        %1964 = vmatmul.mubr.bf16.gmra.mrb[0].mxu0 %v1926
        %v1965 = vpop.f32.mrb[0].mxu0
        %v1966 = vadd.f32 0.0, %v1965
        %v1967 = vpop.f32.mrb[0].mxu0
        %v1968 = vpop.f32.mrb[0].mxu0
        %v1969 = vpop.f32.mrb[0].mxu0
        %1970 = vdwg.mxu0
        %1972 = vrot.lane.b32.xlu0 %v1860, 96
        %v1973 = vpop.permute.xlu0 %1972
        %1975 = vrot.lane.b32.xlu0 %v1861, 96
        %v1976 = vpop.permute.xlu0 %1975
        %v1978 = vsel %vm985, %v1973, 0
        %v1981 = vsel %vm985, %v1976, 0
        %1983 = vmatprep.subr.bf16.mxu0 0
        %1984 = vmatpush1.bf16.xpose.msra.mxu0 %v1981
        %1985 = vmatprep.subr.bf16.mxu0 0
        %1986 = vmatpush1.bf16.xpose.msra.mxu0 0
        %1987 = vmatprep.subr.bf16.mxu0 0
        %1988 = vmatpush1.bf16.xpose.msra.mxu0 0
        %1989 = vmatprep.subr.bf16.mxu0 0
        %1990 = vmatpush1.bf16.xpose.msra.mxu0 0
        %1991 = vmatprep.subr.bf16.mxu0 0
        %1992 = vmatpush1.bf16.xpose.msra.mxu0 0
        %1993 = vmatprep.subr.bf16.mxu0 0
        %1994 = vmatpush1.bf16.xpose.msra.mxu0 0
        %1995 = vmatprep.subr.bf16.mxu0 0
        %1996 = vmatpush1.bf16.xpose.msra.mxu0 0
        %1997 = vmatprep.subr.bf16.mxu0 0
        %1998 = vmatpush1.bf16.xpose.msra.mxu0 0
        %1999 = vmatprep.subr.bf16.mxu0 0
        %2000 = vmatpush1.bf16.xpose.msra.mxu0 0
        %2001 = vmatprep.subr.bf16.mxu0 0
        %2002 = vmatpush1.bf16.xpose.msra.mxu0 0
        %2003 = vmatprep.subr.bf16.mxu0 0
        %2004 = vmatpush1.bf16.xpose.msra.mxu0 0
        %2005 = vmatprep.subr.bf16.mxu0 0
        %2006 = vmatpush1.bf16.xpose.msra.mxu0 0
        %2007 = vmatprep.subr.bf16.mxu0 0
        %2008 = vmatpush1.bf16.xpose.msra.mxu0 0
        %2009 = vmatprep.subr.bf16.mxu0 0
        %2010 = vmatpush1.bf16.xpose.msra.mxu0 0
        %2011 = vmatprep.subr.bf16.mxu0 0
        %2012 = vmatpush1.bf16.xpose.msra.mxu0 0
        %2013 = vmatprep.subr.bf16.mxu0 0
        %2014 = vmatpush1.bf16.xpose.msra.mxu0 0
        %2015 = vmatprep.mubr.bf16.mxu0 0
        %2016 = vmatmul.mubr.bf16.gmra.mrb[0].mxu0 %v1978
        %v2017 = vpop.f32.mrb[0].mxu0
        %v2018 = vadd.f32 0.0, %v2017
        %v2019 = vpop.f32.mrb[0].mxu0
        %v2020 = vpop.f32.mrb[0].mxu0
        %v2021 = vpop.f32.mrb[0].mxu0
        %2022 = vdwg.mxu0
        %v2023 = vmul.f32 %v2018, 0.17677669
        %v2024 = vsel %vm1033, %v2023, -inf
        %2025 = vmax.xlane.f32.xlu0 %v2024
        %v2026 = vpop.xlane.xlu0 %2025
        %v2027 = vsub.f32 %v2023, %v2026
        %v2028 = vmul.f32 %v2027, 1.442695
        %v2029 = vpow.pop %v2028
        %v2030 = vsel %vm1033, %v2029, 0.0
        %2031 = vadd.xlane.f32.xlu0 %v2030
        %v2032 = vpop.xlane.xlu0 %2031
        %v2033 = vrcp.pop %v2032
        %v2034 = vmul.f32 %v2032, %v2033
        %v2035 = vsub.f32 2.0, %v2034
        %v2036 = vmul.f32 %v2033, %v2035
        %v2037 = vmul.f32 %v2029, %v2036
        %v2038 = vpack.c.bf16 %v2037, %v2037
        %2040 = vrot.lane.b32.xlu0 %v1862, 96
        %v2041 = vpop.permute.xlu0 %2040
        %v2043 = vsel %vm1033, %v2038, 0
        %v2046 = vsel %vm1052, %v2041, 0
        %2048 = vmatprep.subr.bf16.mxu0 0
        %2049 = vmatpush1.bf16.msra.mxu0 %v2046
        %2050 = vmatprep.subr.bf16.mxu0 0
        %2051 = vmatpush1.bf16.msra.mxu0 0
        %2052 = vmatprep.subr.bf16.mxu0 0
        %2053 = vmatpush1.bf16.msra.mxu0 0
        %2054 = vmatprep.subr.bf16.mxu0 0
        %2055 = vmatpush1.bf16.msra.mxu0 0
        %2056 = vmatprep.subr.bf16.mxu0 0
        %2057 = vmatpush1.bf16.msra.mxu0 0
        %2058 = vmatprep.subr.bf16.mxu0 0
        %2059 = vmatpush1.bf16.msra.mxu0 0
        %2060 = vmatprep.subr.bf16.mxu0 0
        %2061 = vmatpush1.bf16.msra.mxu0 0
        %2062 = vmatprep.subr.bf16.mxu0 0
        %2063 = vmatpush1.bf16.msra.mxu0 0
        %2064 = vmatprep.subr.bf16.mxu0 0
        %2065 = vmatpush1.bf16.msra.mxu0 0
        %2066 = vmatprep.subr.bf16.mxu0 0
        %2067 = vmatpush1.bf16.msra.mxu0 0
        %2068 = vmatprep.subr.bf16.mxu0 0
        %2069 = vmatpush1.bf16.msra.mxu0 0
        %2070 = vmatprep.subr.bf16.mxu0 0
        %2071 = vmatpush1.bf16.msra.mxu0 0
        %2072 = vmatprep.subr.bf16.mxu0 0
        %2073 = vmatpush1.bf16.msra.mxu0 0
        %2074 = vmatprep.subr.bf16.mxu0 0
        %2075 = vmatpush1.bf16.msra.mxu0 0
        %2076 = vmatprep.subr.bf16.mxu0 0
        %2077 = vmatpush1.bf16.msra.mxu0 0
        %2078 = vmatprep.subr.bf16.mxu0 0
        %2079 = vmatpush1.bf16.msra.mxu0 0
        %2080 = vmatprep.mubr.bf16.mxu0 0
        %2081 = vmatmul.mubr.bf16.gmra.mrb[0].mxu0 %v2043
        %v2082 = vpop.f32.mrb[0].mxu0
        %v2083 = vadd.f32 0.0, %v2082
        %v2084 = vpop.f32.mrb[0].mxu0
        %v2085 = vpop.f32.mrb[0].mxu0
        %v2086 = vpop.f32.mrb[0].mxu0
        %2087 = vdwg.mxu0
        %2088 = vrot.lane.b32.xlu0 %v1860, 64
        %v2089 = vpop.permute.xlu0 %2088
        %2090 = vrot.lane.b32.xlu0 %v1861, 64
        %v2091 = vpop.permute.xlu0 %2090
        %v2093 = vsel %vm985, %v2089, 0
        %v2096 = vsel %vm985, %v2091, 0
        %2098 = vmatprep.subr.bf16.mxu0 0
        %2099 = vmatpush1.bf16.xpose.msra.mxu0 %v2096
        %2100 = vmatprep.subr.bf16.mxu0 0
        %2101 = vmatpush1.bf16.xpose.msra.mxu0 0
        %2102 = vmatprep.subr.bf16.mxu0 0
        %2103 = vmatpush1.bf16.xpose.msra.mxu0 0
        %2104 = vmatprep.subr.bf16.mxu0 0
        %2105 = vmatpush1.bf16.xpose.msra.mxu0 0
        %2106 = vmatprep.subr.bf16.mxu0 0
        %2107 = vmatpush1.bf16.xpose.msra.mxu0 0
        %2108 = vmatprep.subr.bf16.mxu0 0
        %2109 = vmatpush1.bf16.xpose.msra.mxu0 0
        %2110 = vmatprep.subr.bf16.mxu0 0
        %2111 = vmatpush1.bf16.xpose.msra.mxu0 0
        %2112 = vmatprep.subr.bf16.mxu0 0
        %2113 = vmatpush1.bf16.xpose.msra.mxu0 0
        %2114 = vmatprep.subr.bf16.mxu0 0
        %2115 = vmatpush1.bf16.xpose.msra.mxu0 0
        %2116 = vmatprep.subr.bf16.mxu0 0
        %2117 = vmatpush1.bf16.xpose.msra.mxu0 0
        %2118 = vmatprep.subr.bf16.mxu0 0
        %2119 = vmatpush1.bf16.xpose.msra.mxu0 0
        %2120 = vmatprep.subr.bf16.mxu0 0
        %2121 = vmatpush1.bf16.xpose.msra.mxu0 0
        %2122 = vmatprep.subr.bf16.mxu0 0
        %2123 = vmatpush1.bf16.xpose.msra.mxu0 0
        %2124 = vmatprep.subr.bf16.mxu0 0
        %2125 = vmatpush1.bf16.xpose.msra.mxu0 0
        %2126 = vmatprep.subr.bf16.mxu0 0
        %2127 = vmatpush1.bf16.xpose.msra.mxu0 0
        %2128 = vmatprep.subr.bf16.mxu0 0
        %2129 = vmatpush1.bf16.xpose.msra.mxu0 0
        %2130 = vmatprep.mubr.bf16.mxu0 0
        %2131 = vmatmul.mubr.bf16.gmra.mrb[0].mxu0 %v2093
        %v2132 = vpop.f32.mrb[0].mxu0
        %v2133 = vadd.f32 0.0, %v2132
        %v2134 = vpop.f32.mrb[0].mxu0
        %v2135 = vpop.f32.mrb[0].mxu0
        %v2136 = vpop.f32.mrb[0].mxu0
        %2137 = vdwg.mxu0
        %v2138 = vmul.f32 %v2133, 0.17677669
        %v2139 = vsel %vm1033, %v2138, -inf
        %2140 = vmax.xlane.f32.xlu0 %v2139
        %v2141 = vpop.xlane.xlu0 %2140
        %v2142 = vsub.f32 %v2138, %v2141
        %v2143 = vmul.f32 %v2142, 1.442695
        %v2144 = vpow.pop %v2143
        %v2145 = vsel %vm1033, %v2144, 0.0
        %2146 = vadd.xlane.f32.xlu0 %v2145
        %v2147 = vpop.xlane.xlu0 %2146
        %v2148 = vrcp.pop %v2147
        %v2149 = vmul.f32 %v2147, %v2148
        %v2150 = vsub.f32 2.0, %v2149
        %v2151 = vmul.f32 %v2148, %v2150
        %v2152 = vmul.f32 %v2144, %v2151
        %v2153 = vpack.c.bf16 %v2152, %v2152
        %2154 = vrot.lane.b32.xlu0 %v1862, 64
        %v2155 = vpop.permute.xlu0 %2154
        %v2157 = vsel %vm1033, %v2153, 0
        %v2160 = vsel %vm1052, %v2155, 0
        %2162 = vmatprep.subr.bf16.mxu0 0
        %2163 = vmatpush1.bf16.msra.mxu0 %v2160
        %2164 = vmatprep.subr.bf16.mxu0 0
        %2165 = vmatpush1.bf16.msra.mxu0 0
        %2166 = vmatprep.subr.bf16.mxu0 0
        %2167 = vmatpush1.bf16.msra.mxu0 0
        %2168 = vmatprep.subr.bf16.mxu0 0
        %2169 = vmatpush1.bf16.msra.mxu0 0
        %2170 = vmatprep.subr.bf16.mxu0 0
        %2171 = vmatpush1.bf16.msra.mxu0 0
        %2172 = vmatprep.subr.bf16.mxu0 0
        %2173 = vmatpush1.bf16.msra.mxu0 0
        %2174 = vmatprep.subr.bf16.mxu0 0
        %2175 = vmatpush1.bf16.msra.mxu0 0
        %2176 = vmatprep.subr.bf16.mxu0 0
        %2177 = vmatpush1.bf16.msra.mxu0 0
        %2178 = vmatprep.subr.bf16.mxu0 0
        %2179 = vmatpush1.bf16.msra.mxu0 0
        %2180 = vmatprep.subr.bf16.mxu0 0
        %2181 = vmatpush1.bf16.msra.mxu0 0
        %2182 = vmatprep.subr.bf16.mxu0 0
        %2183 = vmatpush1.bf16.msra.mxu0 0
        %2184 = vmatprep.subr.bf16.mxu0 0
        %2185 = vmatpush1.bf16.msra.mxu0 0
        %2186 = vmatprep.subr.bf16.mxu0 0
        %2187 = vmatpush1.bf16.msra.mxu0 0
        %2188 = vmatprep.subr.bf16.mxu0 0
        %2189 = vmatpush1.bf16.msra.mxu0 0
        %2190 = vmatprep.subr.bf16.mxu0 0
        %2191 = vmatpush1.bf16.msra.mxu0 0
        %2192 = vmatprep.subr.bf16.mxu0 0
        %2193 = vmatpush1.bf16.msra.mxu0 0
        %2194 = vmatprep.mubr.bf16.mxu0 0
        %2195 = vmatmul.mubr.bf16.gmra.mrb[0].mxu0 %v2157
        %v2196 = vpop.f32.mrb[0].mxu0
        %v2197 = vadd.f32 0.0, %v2196
        %v2198 = vpop.f32.mrb[0].mxu0
        %v2199 = vpop.f32.mrb[0].mxu0
        %v2200 = vpop.f32.mrb[0].mxu0
        %2201 = vdwg.mxu0
        %2202 = vrot.lane.b32.xlu0 %v1860, 32
        %v2203 = vpop.permute.xlu0 %2202
        %2204 = vrot.lane.b32.xlu0 %v1861, 32
        %v2205 = vpop.permute.xlu0 %2204
        %v2207 = vsel %vm985, %v2203, 0
        %v2210 = vsel %vm985, %v2205, 0
        %2212 = vmatprep.subr.bf16.mxu0 0
        %2213 = vmatpush1.bf16.xpose.msra.mxu0 %v2210
        %2214 = vmatprep.subr.bf16.mxu0 0
        %2215 = vmatpush1.bf16.xpose.msra.mxu0 0
        %2216 = vmatprep.subr.bf16.mxu0 0
        %2217 = vmatpush1.bf16.xpose.msra.mxu0 0
        %2218 = vmatprep.subr.bf16.mxu0 0
        %2219 = vmatpush1.bf16.xpose.msra.mxu0 0
        %2220 = vmatprep.subr.bf16.mxu0 0
        %2221 = vmatpush1.bf16.xpose.msra.mxu0 0
        %2222 = vmatprep.subr.bf16.mxu0 0
        %2223 = vmatpush1.bf16.xpose.msra.mxu0 0
        %2224 = vmatprep.subr.bf16.mxu0 0
        %2225 = vmatpush1.bf16.xpose.msra.mxu0 0
        %2226 = vmatprep.subr.bf16.mxu0 0
        %2227 = vmatpush1.bf16.xpose.msra.mxu0 0
        %2228 = vmatprep.subr.bf16.mxu0 0
        %2229 = vmatpush1.bf16.xpose.msra.mxu0 0
        %2230 = vmatprep.subr.bf16.mxu0 0
        %2231 = vmatpush1.bf16.xpose.msra.mxu0 0
        %2232 = vmatprep.subr.bf16.mxu0 0
        %2233 = vmatpush1.bf16.xpose.msra.mxu0 0
        %2234 = vmatprep.subr.bf16.mxu0 0
        %2235 = vmatpush1.bf16.xpose.msra.mxu0 0
        %2236 = vmatprep.subr.bf16.mxu0 0
        %2237 = vmatpush1.bf16.xpose.msra.mxu0 0
        %2238 = vmatprep.subr.bf16.mxu0 0
        %2239 = vmatpush1.bf16.xpose.msra.mxu0 0
        %2240 = vmatprep.subr.bf16.mxu0 0
        %2241 = vmatpush1.bf16.xpose.msra.mxu0 0
        %2242 = vmatprep.subr.bf16.mxu0 0
        %2243 = vmatpush1.bf16.xpose.msra.mxu0 0
        %2244 = vmatprep.mubr.bf16.mxu0 0
        %2245 = vmatmul.mubr.bf16.gmra.mrb[0].mxu0 %v2207
        %v2246 = vpop.f32.mrb[0].mxu0
        %v2247 = vadd.f32 0.0, %v2246
        %v2248 = vpop.f32.mrb[0].mxu0
        %v2249 = vpop.f32.mrb[0].mxu0
        %v2250 = vpop.f32.mrb[0].mxu0
        %2251 = vdwg.mxu0
        %v2252 = vmul.f32 %v2247, 0.17677669
        %v2253 = vsel %vm1033, %v2252, -inf
        %2254 = vmax.xlane.f32.xlu0 %v2253
        %v2255 = vpop.xlane.xlu0 %2254
        %v2256 = vsub.f32 %v2252, %v2255
        %v2257 = vmul.f32 %v2256, 1.442695
        %v2258 = vpow.pop %v2257
        %v2259 = vsel %vm1033, %v2258, 0.0
        %2260 = vadd.xlane.f32.xlu0 %v2259
        %v2261 = vpop.xlane.xlu0 %2260
        %v2262 = vrcp.pop %v2261
        %v2263 = vmul.f32 %v2261, %v2262
        %v2264 = vsub.f32 2.0, %v2263
        %v2265 = vmul.f32 %v2262, %v2264
        %v2266 = vmul.f32 %v2258, %v2265
        %v2267 = vpack.c.bf16 %v2266, %v2266
        %2268 = vrot.lane.b32.xlu0 %v1862, 32
        %v2269 = vpop.permute.xlu0 %2268
        %v2271 = vsel %vm1033, %v2267, 0
        %v2274 = vsel %vm1052, %v2269, 0
        %2276 = vmatprep.subr.bf16.mxu0 0
        %2277 = vmatpush1.bf16.msra.mxu0 %v2274
        %2278 = vmatprep.subr.bf16.mxu0 0
        %2279 = vmatpush1.bf16.msra.mxu0 0
        %2280 = vmatprep.subr.bf16.mxu0 0
        %2281 = vmatpush1.bf16.msra.mxu0 0
        %2282 = vmatprep.subr.bf16.mxu0 0
        %2283 = vmatpush1.bf16.msra.mxu0 0
        %2284 = vmatprep.subr.bf16.mxu0 0
        %2285 = vmatpush1.bf16.msra.mxu0 0
        %2286 = vmatprep.subr.bf16.mxu0 0
        %2287 = vmatpush1.bf16.msra.mxu0 0
        %2288 = vmatprep.subr.bf16.mxu0 0
        %2289 = vmatpush1.bf16.msra.mxu0 0
        %2290 = vmatprep.subr.bf16.mxu0 0
        %2291 = vmatpush1.bf16.msra.mxu0 0
        %2292 = vmatprep.subr.bf16.mxu0 0
        %2293 = vmatpush1.bf16.msra.mxu0 0
        %2294 = vmatprep.subr.bf16.mxu0 0
        %2295 = vmatpush1.bf16.msra.mxu0 0
        %2296 = vmatprep.subr.bf16.mxu0 0
        %2297 = vmatpush1.bf16.msra.mxu0 0
        %2298 = vmatprep.subr.bf16.mxu0 0
        %2299 = vmatpush1.bf16.msra.mxu0 0
        %2300 = vmatprep.subr.bf16.mxu0 0
        %2301 = vmatpush1.bf16.msra.mxu0 0
        %2302 = vmatprep.subr.bf16.mxu0 0
        %2303 = vmatpush1.bf16.msra.mxu0 0
        %2304 = vmatprep.subr.bf16.mxu0 0
        %2305 = vmatpush1.bf16.msra.mxu0 0
        %2306 = vmatprep.subr.bf16.mxu0 0
        %2307 = vmatpush1.bf16.msra.mxu0 0
        %2308 = vmatprep.mubr.bf16.mxu0 0
        %2309 = vmatmul.mubr.bf16.gmra.mrb[0].mxu0 %v2271
        %v2310 = vpop.f32.mrb[0].mxu0
        %v2311 = vadd.f32 0.0, %v2310
        %v2312 = vpop.f32.mrb[0].mxu0
        %v2313 = vpop.f32.mrb[0].mxu0
        %v2314 = vpop.f32.mrb[0].mxu0
        %2315 = vdwg.mxu0
        %2317 = vrot.lane.b32.xlu0 %v2083, 32
        %v2318 = vpop.permute.xlu0 %2317
        %2321 = vrot.lane.b32.xlu0 %v2197, 64
        %v2322 = vpop.permute.xlu0 %2321
        %2325 = vrot.lane.b32.xlu0 %v2311, 96
        %v2326 = vpop.permute.xlu0 %2325
        %v2328 = vsel %vm985, %v1966, %v2318
        %v2329 = vsel %vm1454, %v2328, %v2322
        %v2330 = vsel %vm1456, %v2329, %v2326
        %v2331 = vpack.c.bf16 %v2330, %v2330
        %v2333 = vlaneseq
        %v2334 = vshrl.u32 %v2333, 7
        %v2335 = vsub.s32 0, %v2334
        %v2336 = vrot.slane %v1859, %v2335
        %v2354 = vunpack.c.l.b16 %v1843
        %v2355 = vunpack.c.l.b16 %v1844
        %v2356 = vunpack.c.l.b16 %v1845
        %v2357 = vunpack.c.l.b16 %v1846
        %v2358 = vunpack.c.l.b16 %v1847
        %v2359 = vunpack.c.l.b16 %v1848
        %v2360 = vunpack.c.l.b16 %v1849
        %v2361 = vunpack.c.l.b16 %v1850
        %v2362 = vunpack.c.l.b16 %v1851
        %v2363 = vunpack.c.l.b16 %v1852
        %v2364 = vunpack.c.l.b16 %v1853
        %v2365 = vunpack.c.l.b16 %v1854
        %v2366 = vunpack.c.l.b16 %v1855
        %v2367 = vunpack.c.l.b16 %v1856
        %v2368 = vunpack.c.l.b16 %v1857
        %v2369 = vunpack.c.l.b16 %v1858
        %v2370 = vpack.c.b16 %v2355, %v2354
        %v2371 = vpack.c.b16 %v2357, %v2356
        %v2372 = vpack.c.b16 %v2359, %v2358
        %v2373 = vpack.c.b16 %v2361, %v2360
        %v2374 = vpack.c.b16 %v2363, %v2362
        %v2375 = vpack.c.b16 %v2365, %v2364
        %v2376 = vpack.c.b16 %v2367, %v2366
        %v2377 = vpack.c.b16 %v2369, %v2368
        %2386 = vmatprep.subr.bf16.mxu0 0
        %2387 = vmatpush1.bf16.msra.mxu0 %v2370
        %2388 = vmatprep.subr.bf16.mxu0 0
        %2389 = vmatpush1.bf16.msra.mxu0 %v2371
        %2390 = vmatprep.subr.bf16.mxu0 0
        %2391 = vmatpush1.bf16.msra.mxu0 %v2372
        %2392 = vmatprep.subr.bf16.mxu0 0
        %2393 = vmatpush1.bf16.msra.mxu0 %v2373
        %2394 = vmatprep.subr.bf16.mxu0 0
        %2395 = vmatpush1.bf16.msra.mxu0 %v2374
        %2396 = vmatprep.subr.bf16.mxu0 0
        %2397 = vmatpush1.bf16.msra.mxu0 %v2375
        %2398 = vmatprep.subr.bf16.mxu0 0
        %2399 = vmatpush1.bf16.msra.mxu0 %v2376
        %2400 = vmatprep.subr.bf16.mxu0 0
        %2401 = vmatpush1.bf16.msra.mxu0 %v2377
        %2402 = vmatprep.subr.bf16.mxu0 0
        %2403 = vmatpush1.bf16.msra.mxu0 0
        %2404 = vmatprep.subr.bf16.mxu0 0
        %2405 = vmatpush1.bf16.msra.mxu0 0
        %2406 = vmatprep.subr.bf16.mxu0 0
        %2407 = vmatpush1.bf16.msra.mxu0 0
        %2408 = vmatprep.subr.bf16.mxu0 0
        %2409 = vmatpush1.bf16.msra.mxu0 0
        %2410 = vmatprep.subr.bf16.mxu0 0
        %2411 = vmatpush1.bf16.msra.mxu0 0
        %2412 = vmatprep.subr.bf16.mxu0 0
        %2413 = vmatpush1.bf16.msra.mxu0 0
        %2414 = vmatprep.subr.bf16.mxu0 0
        %2415 = vmatpush1.bf16.msra.mxu0 0
        %2416 = vmatprep.subr.bf16.mxu0 0
        %2417 = vmatpush1.bf16.msra.mxu0 0
        %2418 = vmatprep.mubr.bf16.mxu0 0
        %2419 = vmatmul.mubr.bf16.gmra.mrb[0].mxu0 %v2331
        %v2420 = vpop.f32.mrb[0].mxu0
        %v2421 = vadd.f32 %v2336, %v2420
        %v2422 = vpop.f32.mrb[0].mxu0
        %v2423 = vpop.f32.mrb[0].mxu0
        %v2424 = vpop.f32.mrb[0].mxu0
        %2425 = vdwg.mxu0
        %v2426 = vadd.f32 %v1581, %v2421
        %s2427 = scalar_lea.vmem %s15, 1
        %v2428 = vld [vmem:[%s2427] sm:$0x1]
        %s2429 = scalar_lea.vmem %s16, 1
        %v2430 = vld [vmem:[%s2429] sm:$0x1]
        %2431 = vadd.xlane.f32.xlu0 %v2426
        %v2432 = vpop.xlane.xlu0 %2431
        %v2433 = vmul.f32 %v2432, %v1558
        %v2434 = vsub.f32 %v2426, %v2433
        %v2435 = vmul.f32 %v2434, %v2434
        %2436 = vadd.xlane.f32.xlu0 %v2435
        %v2437 = vpop.xlane.xlu0 %2436
        %v2438 = vmul.f32 %v2437, %v1558
        %v2439 = vadd.f32 %v2438, 1e-05
        %v2440 = vrsqrt.pop %v2439
        %v2441 = vmul.f32 %v2434, %v2440
        %v2443 = vlaneseq
        %v2444 = vshrl.u32 %v2443, 7
        %v2445 = vsub.s32 0, %v2444
        %v2446 = vrot.slane %v2428, %v2445
        %v2448 = vmul.f32 %v2441, %v2446
        %v2450 = vlaneseq
        %v2451 = vshrl.u32 %v2450, 7
        %v2452 = vsub.s32 0, %v2451
        %v2453 = vrot.slane %v2430, %v2452
        %v2455 = vadd.f32 %v2448, %v2453
        %v2456 = vpack.c.bf16 %v2455, %v2455
        %v2457 = vld [vmem:[%s11] sm:$0xff]
        %v2458 = vld [vmem:[%s11 + $0x8] sm:$0xff]
        %v2459 = vld [vmem:[%s11 + $0x40] sm:$0xff]
        %v2460 = vld [vmem:[%s11 + $0x48] sm:$0xff]
        %v2461 = vld [vmem:[%s11 + $0x80] sm:$0xff]
        %v2462 = vld [vmem:[%s11 + $0x88] sm:$0xff]
        %v2463 = vld [vmem:[%s11 + $0xc0] sm:$0xff]
        %v2464 = vld [vmem:[%s11 + $0xc8] sm:$0xff]
        %v2465 = vld [vmem:[%s11 + $0x100] sm:$0xff]
        %v2466 = vld [vmem:[%s11 + $0x108] sm:$0xff]
        %v2467 = vld [vmem:[%s11 + $0x140] sm:$0xff]
        %v2468 = vld [vmem:[%s11 + $0x148] sm:$0xff]
        %v2469 = vld [vmem:[%s11 + $0x180] sm:$0xff]
        %v2470 = vld [vmem:[%s11 + $0x188] sm:$0xff]
        %v2471 = vld [vmem:[%s11 + $0x1c0] sm:$0xff]
        %v2472 = vld [vmem:[%s11 + $0x1c8] sm:$0xff]
        %v2473 = vld [vmem:[%s11 + $0x200] sm:$0xff]
        %v2474 = vld [vmem:[%s11 + $0x208] sm:$0xff]
        %v2475 = vld [vmem:[%s11 + $0x240] sm:$0xff]
        %v2476 = vld [vmem:[%s11 + $0x248] sm:$0xff]
        %v2477 = vld [vmem:[%s11 + $0x280] sm:$0xff]
        %v2478 = vld [vmem:[%s11 + $0x288] sm:$0xff]
        %v2479 = vld [vmem:[%s11 + $0x2c0] sm:$0xff]
        %v2480 = vld [vmem:[%s11 + $0x2c8] sm:$0xff]
        %v2481 = vld [vmem:[%s11 + $0x300] sm:$0xff]
        %v2482 = vld [vmem:[%s11 + $0x308] sm:$0xff]
        %v2483 = vld [vmem:[%s11 + $0x340] sm:$0xff]
        %v2484 = vld [vmem:[%s11 + $0x348] sm:$0xff]
        %v2485 = vld [vmem:[%s11 + $0x380] sm:$0xff]
        %v2486 = vld [vmem:[%s11 + $0x388] sm:$0xff]
        %v2487 = vld [vmem:[%s11 + $0x3c0] sm:$0xff]
        %v2488 = vld [vmem:[%s11 + $0x3c8] sm:$0xff]
        %v2489 = vld [vmem:[#allocation16] sm:$0xf]
        %v2491 = vlaneseq
        %v2492 = vshrl.u32 %v2491, 7
        %v2493 = vsub.s32 0, %v2492
        %v2494 = vrot.slane %v2489, %v2493
        %v2495 = vlaneseq
        %v2496 = vshrl.u32 %v2495, 7
        %v2497 = vsub.s32 1, %v2496
        %v2498 = vrot.slane %v2489, %v2497
        %v2499 = vlaneseq
        %v2500 = vshrl.u32 %v2499, 7
        %v2501 = vsub.s32 2, %v2500
        %v2502 = vrot.slane %v2489, %v2501
        %v2503 = vlaneseq
        %v2504 = vshrl.u32 %v2503, 7
        %v2505 = vsub.s32 3, %v2504
        %v2506 = vrot.slane %v2489, %v2505
        %v2543 = vunpack.c.l.b16 %v2457
        %v2544 = vunpack.c.h.b16 %v2457
        %v2545 = vunpack.c.l.b16 %v2458
        %v2546 = vunpack.c.h.b16 %v2458
        %v2547 = vunpack.c.l.b16 %v2459
        %v2548 = vunpack.c.h.b16 %v2459
        %v2549 = vunpack.c.l.b16 %v2460
        %v2550 = vunpack.c.h.b16 %v2460
        %v2551 = vunpack.c.l.b16 %v2461
        %v2552 = vunpack.c.h.b16 %v2461
        %v2553 = vunpack.c.l.b16 %v2462
        %v2554 = vunpack.c.h.b16 %v2462
        %v2555 = vunpack.c.l.b16 %v2463
        %v2556 = vunpack.c.h.b16 %v2463
        %v2557 = vunpack.c.l.b16 %v2464
        %v2558 = vunpack.c.h.b16 %v2464
        %v2559 = vunpack.c.l.b16 %v2465
        %v2560 = vunpack.c.h.b16 %v2465
        %v2561 = vunpack.c.l.b16 %v2466
        %v2562 = vunpack.c.h.b16 %v2466
        %v2563 = vunpack.c.l.b16 %v2467
        %v2564 = vunpack.c.h.b16 %v2467
        %v2565 = vunpack.c.l.b16 %v2468
        %v2566 = vunpack.c.h.b16 %v2468
        %v2567 = vunpack.c.l.b16 %v2469
        %v2568 = vunpack.c.h.b16 %v2469
        %v2569 = vunpack.c.l.b16 %v2470
        %v2570 = vunpack.c.h.b16 %v2470
        %v2571 = vunpack.c.l.b16 %v2471
        %v2572 = vunpack.c.h.b16 %v2471
        %v2573 = vunpack.c.l.b16 %v2472
        %v2574 = vunpack.c.h.b16 %v2472
        %v2575 = vunpack.c.l.b16 %v2473
        %v2576 = vunpack.c.h.b16 %v2473
        %v2577 = vunpack.c.l.b16 %v2474
        %v2578 = vunpack.c.h.b16 %v2474
        %v2579 = vunpack.c.l.b16 %v2475
        %v2580 = vunpack.c.h.b16 %v2475
        %v2581 = vunpack.c.l.b16 %v2476
        %v2582 = vunpack.c.h.b16 %v2476
        %v2583 = vunpack.c.l.b16 %v2477
        %v2584 = vunpack.c.h.b16 %v2477
        %v2585 = vunpack.c.l.b16 %v2478
        %v2586 = vunpack.c.h.b16 %v2478
        %v2587 = vunpack.c.l.b16 %v2479
        %v2588 = vunpack.c.h.b16 %v2479
        %v2589 = vunpack.c.l.b16 %v2480
        %v2590 = vunpack.c.h.b16 %v2480
        %v2591 = vunpack.c.l.b16 %v2481
        %v2592 = vunpack.c.h.b16 %v2481
        %v2593 = vunpack.c.l.b16 %v2482
        %v2594 = vunpack.c.h.b16 %v2482
        %v2595 = vunpack.c.l.b16 %v2483
        %v2596 = vunpack.c.h.b16 %v2483
        %v2597 = vunpack.c.l.b16 %v2484
        %v2598 = vunpack.c.h.b16 %v2484
        %v2599 = vunpack.c.l.b16 %v2485
        %v2600 = vunpack.c.h.b16 %v2485
        %v2601 = vunpack.c.l.b16 %v2486
        %v2602 = vunpack.c.h.b16 %v2486
        %v2603 = vunpack.c.l.b16 %v2487
        %v2604 = vunpack.c.h.b16 %v2487
        %v2605 = vunpack.c.l.b16 %v2488
        %v2606 = vunpack.c.h.b16 %v2488
        %v2607 = vpack.c.b16 %v2547, %v2543
        %v2608 = vpack.c.b16 %v2548, %v2544
        %v2609 = vpack.c.b16 %v2549, %v2545
        %v2610 = vpack.c.b16 %v2550, %v2546
        %v2611 = vpack.c.b16 %v2555, %v2551
        %v2612 = vpack.c.b16 %v2556, %v2552
        %v2613 = vpack.c.b16 %v2557, %v2553
        %v2614 = vpack.c.b16 %v2558, %v2554
        %v2615 = vpack.c.b16 %v2563, %v2559
        %v2616 = vpack.c.b16 %v2564, %v2560
        %v2617 = vpack.c.b16 %v2565, %v2561
        %v2618 = vpack.c.b16 %v2566, %v2562
        %v2619 = vpack.c.b16 %v2571, %v2567
        %v2620 = vpack.c.b16 %v2572, %v2568
        %v2621 = vpack.c.b16 %v2573, %v2569
        %v2622 = vpack.c.b16 %v2574, %v2570
        %v2623 = vpack.c.b16 %v2579, %v2575
        %v2624 = vpack.c.b16 %v2580, %v2576
        %v2625 = vpack.c.b16 %v2581, %v2577
        %v2626 = vpack.c.b16 %v2582, %v2578
        %v2627 = vpack.c.b16 %v2587, %v2583
        %v2628 = vpack.c.b16 %v2588, %v2584
        %v2629 = vpack.c.b16 %v2589, %v2585
        %v2630 = vpack.c.b16 %v2590, %v2586
        %v2631 = vpack.c.b16 %v2595, %v2591
        %v2632 = vpack.c.b16 %v2596, %v2592
        %v2633 = vpack.c.b16 %v2597, %v2593
        %v2634 = vpack.c.b16 %v2598, %v2594
        %v2635 = vpack.c.b16 %v2603, %v2599
        %v2636 = vpack.c.b16 %v2604, %v2600
        %v2637 = vpack.c.b16 %v2605, %v2601
        %v2638 = vpack.c.b16 %v2606, %v2602
        %2671 = vmatprep.subr.bf16.mxu0 %v2608
        %2672 = vmatpush1.bf16.msra.mxu0 %v2607
        %2673 = vmatprep.subr.bf16.mxu0 %v2612
        %2674 = vmatpush1.bf16.msra.mxu0 %v2611
        %2675 = vmatprep.subr.bf16.mxu0 %v2616
        %2676 = vmatpush1.bf16.msra.mxu0 %v2615
        %2677 = vmatprep.subr.bf16.mxu0 %v2620
        %2678 = vmatpush1.bf16.msra.mxu0 %v2619
        %2679 = vmatprep.subr.bf16.mxu0 %v2624
        %2680 = vmatpush1.bf16.msra.mxu0 %v2623
        %2681 = vmatprep.subr.bf16.mxu0 %v2628
        %2682 = vmatpush1.bf16.msra.mxu0 %v2627
        %2683 = vmatprep.subr.bf16.mxu0 %v2632
        %2684 = vmatpush1.bf16.msra.mxu0 %v2631
        %2685 = vmatprep.subr.bf16.mxu0 %v2636
        %2686 = vmatpush1.bf16.msra.mxu0 %v2635
        %2687 = vmatprep.subr.bf16.mxu0 0
        %2688 = vmatpush1.bf16.msra.mxu0 0
        %2689 = vmatprep.subr.bf16.mxu0 0
        %2690 = vmatpush1.bf16.msra.mxu0 0
        %2691 = vmatprep.subr.bf16.mxu0 0
        %2692 = vmatpush1.bf16.msra.mxu0 0
        %2693 = vmatprep.subr.bf16.mxu0 0
        %2694 = vmatpush1.bf16.msra.mxu0 0
        %2695 = vmatprep.subr.bf16.mxu0 0
        %2696 = vmatpush1.bf16.msra.mxu0 0
        %2697 = vmatprep.subr.bf16.mxu0 0
        %2698 = vmatpush1.bf16.msra.mxu0 0
        %2699 = vmatprep.subr.bf16.mxu0 0
        %2700 = vmatpush1.bf16.msra.mxu0 0
        %2701 = vmatprep.subr.bf16.mxu0 0
        %2702 = vmatpush1.bf16.msra.mxu0 0
        %2703 = vmatprep.mubr.bf16.mxu0 0
        %2704 = vmatmul.mubr.bf16.gmra.mrb[0].mxu0 %v2456
        %v2705 = vpop.f32.mrb[0].mxu0
        %v2706 = vadd.f32 %v2494, %v2705
        %v2707 = vpop.f32.mrb[0].mxu0
        %v2708 = vadd.f32 %v2498, %v2707
        %v2709 = vpop.f32.mrb[0].mxu0
        %v2710 = vpop.f32.mrb[0].mxu0
        %2711 = vdwg.mxu0
        %2712 = vmatprep.subr.bf16.mxu0 %v2610
        %2713 = vmatpush1.bf16.msra.mxu0 %v2609
        %2714 = vmatprep.subr.bf16.mxu0 %v2614
        %2715 = vmatpush1.bf16.msra.mxu0 %v2613
        %2716 = vmatprep.subr.bf16.mxu0 %v2618
        %2717 = vmatpush1.bf16.msra.mxu0 %v2617
        %2718 = vmatprep.subr.bf16.mxu0 %v2622
        %2719 = vmatpush1.bf16.msra.mxu0 %v2621
        %2720 = vmatprep.subr.bf16.mxu0 %v2626
        %2721 = vmatpush1.bf16.msra.mxu0 %v2625
        %2722 = vmatprep.subr.bf16.mxu0 %v2630
        %2723 = vmatpush1.bf16.msra.mxu0 %v2629
        %2724 = vmatprep.subr.bf16.mxu0 %v2634
        %2725 = vmatpush1.bf16.msra.mxu0 %v2633
        %2726 = vmatprep.subr.bf16.mxu0 %v2638
        %2727 = vmatpush1.bf16.msra.mxu0 %v2637
        %2728 = vmatprep.subr.bf16.mxu0 0
        %2729 = vmatpush1.bf16.msra.mxu0 0
        %2730 = vmatprep.subr.bf16.mxu0 0
        %2731 = vmatpush1.bf16.msra.mxu0 0
        %2732 = vmatprep.subr.bf16.mxu0 0
        %2733 = vmatpush1.bf16.msra.mxu0 0
        %2734 = vmatprep.subr.bf16.mxu0 0
        %2735 = vmatpush1.bf16.msra.mxu0 0
        %2736 = vmatprep.subr.bf16.mxu0 0
        %2737 = vmatpush1.bf16.msra.mxu0 0
        %2738 = vmatprep.subr.bf16.mxu0 0
        %2739 = vmatpush1.bf16.msra.mxu0 0
        %2740 = vmatprep.subr.bf16.mxu0 0
        %2741 = vmatpush1.bf16.msra.mxu0 0
        %2742 = vmatprep.subr.bf16.mxu0 0
        %2743 = vmatpush1.bf16.msra.mxu0 0
        %2744 = vmatprep.mubr.bf16.mxu0 0
        %2745 = vmatmul.mubr.bf16.gmra.mrb[0].mxu0 %v2456
        %v2746 = vpop.f32.mrb[0].mxu0
        %v2747 = vadd.f32 %v2502, %v2746
        %v2748 = vpop.f32.mrb[0].mxu0
        %v2749 = vadd.f32 %v2506, %v2748
        %v2750 = vpop.f32.mrb[0].mxu0
        %v2751 = vpop.f32.mrb[0].mxu0
        %2752 = vdwg.mxu0
        %v2753 = vmax.f32 %v2706, 0.0
        %v2754 = vmax.f32 %v2708, 0.0
        %v2755 = vmax.f32 %v2747, 0.0
        %v2756 = vmax.f32 %v2749, 0.0
        %v2757 = vpack.c.bf16 %v2753, %v2753
        %v2758 = vpack.c.bf16 %v2754, %v2754
        %v2759 = vpack.c.bf16 %v2755, %v2755
        %v2760 = vpack.c.bf16 %v2756, %v2756
        %v2761 = vld [vmem:[#allocation17] sm:$0xf]
        %v2762 = vld [vmem:[#allocation17 + $0x4] sm:$0xf]
        %v2763 = vld [vmem:[#allocation17 + $0x8] sm:$0xf]
        %v2764 = vld [vmem:[#allocation17 + $0xc] sm:$0xf]
        %v2765 = vld [vmem:[#allocation17 + $0x10] sm:$0xf]
        %v2766 = vld [vmem:[#allocation17 + $0x14] sm:$0xf]
        %v2767 = vld [vmem:[#allocation17 + $0x18] sm:$0xf]
        %v2768 = vld [vmem:[#allocation17 + $0x1c] sm:$0xf]
        %v2769 = vld [vmem:[#allocation17 + $0x20] sm:$0xf]
        %v2770 = vld [vmem:[#allocation17 + $0x24] sm:$0xf]
        %v2771 = vld [vmem:[#allocation17 + $0x28] sm:$0xf]
        %v2772 = vld [vmem:[#allocation17 + $0x2c] sm:$0xf]
        %v2773 = vld [vmem:[#allocation17 + $0x30] sm:$0xf]
        %v2774 = vld [vmem:[#allocation17 + $0x34] sm:$0xf]
        %v2775 = vld [vmem:[#allocation17 + $0x38] sm:$0xf]
        %v2776 = vld [vmem:[#allocation17 + $0x3c] sm:$0xf]
        %v2777 = vld [vmem:[#allocation17 + $0x40] sm:$0xf]
        %v2778 = vld [vmem:[#allocation17 + $0x44] sm:$0xf]
        %v2779 = vld [vmem:[#allocation17 + $0x48] sm:$0xf]
        %v2780 = vld [vmem:[#allocation17 + $0x4c] sm:$0xf]
        %v2781 = vld [vmem:[#allocation17 + $0x50] sm:$0xf]
        %v2782 = vld [vmem:[#allocation17 + $0x54] sm:$0xf]
        %v2783 = vld [vmem:[#allocation17 + $0x58] sm:$0xf]
        %v2784 = vld [vmem:[#allocation17 + $0x5c] sm:$0xf]
        %v2785 = vld [vmem:[#allocation17 + $0x60] sm:$0xf]
        %v2786 = vld [vmem:[#allocation17 + $0x64] sm:$0xf]
        %v2787 = vld [vmem:[#allocation17 + $0x68] sm:$0xf]
        %v2788 = vld [vmem:[#allocation17 + $0x6c] sm:$0xf]
        %v2789 = vld [vmem:[#allocation17 + $0x70] sm:$0xf]
        %v2790 = vld [vmem:[#allocation17 + $0x74] sm:$0xf]
        %v2791 = vld [vmem:[#allocation17 + $0x78] sm:$0xf]
        %v2792 = vld [vmem:[#allocation17 + $0x7c] sm:$0xf]
        %v2793 = vld [vmem:[#allocation17 + $0x80] sm:$0xf]
        %v2794 = vld [vmem:[#allocation17 + $0x84] sm:$0xf]
        %v2795 = vld [vmem:[#allocation17 + $0x88] sm:$0xf]
        %v2796 = vld [vmem:[#allocation17 + $0x8c] sm:$0xf]
        %v2797 = vld [vmem:[#allocation17 + $0x90] sm:$0xf]
        %v2798 = vld [vmem:[#allocation17 + $0x94] sm:$0xf]
        %v2799 = vld [vmem:[#allocation17 + $0x98] sm:$0xf]
        %v2800 = vld [vmem:[#allocation17 + $0x9c] sm:$0xf]
        %v2801 = vld [vmem:[#allocation17 + $0xa0] sm:$0xf]
        %v2802 = vld [vmem:[#allocation17 + $0xa4] sm:$0xf]
        %v2803 = vld [vmem:[#allocation17 + $0xa8] sm:$0xf]
        %v2804 = vld [vmem:[#allocation17 + $0xac] sm:$0xf]
        %v2805 = vld [vmem:[#allocation17 + $0xb0] sm:$0xf]
        %v2806 = vld [vmem:[#allocation17 + $0xb4] sm:$0xf]
        %v2807 = vld [vmem:[#allocation17 + $0xb8] sm:$0xf]
        %v2808 = vld [vmem:[#allocation17 + $0xbc] sm:$0xf]
        %v2809 = vld [vmem:[#allocation17 + $0xc0] sm:$0xf]
        %v2810 = vld [vmem:[#allocation17 + $0xc4] sm:$0xf]
        %v2811 = vld [vmem:[#allocation17 + $0xc8] sm:$0xf]
        %v2812 = vld [vmem:[#allocation17 + $0xcc] sm:$0xf]
        %v2813 = vld [vmem:[#allocation17 + $0xd0] sm:$0xf]
        %v2814 = vld [vmem:[#allocation17 + $0xd4] sm:$0xf]
        %v2815 = vld [vmem:[#allocation17 + $0xd8] sm:$0xf]
        %v2816 = vld [vmem:[#allocation17 + $0xdc] sm:$0xf]
        %v2817 = vld [vmem:[#allocation17 + $0xe0] sm:$0xf]
        %v2818 = vld [vmem:[#allocation17 + $0xe4] sm:$0xf]
        %v2819 = vld [vmem:[#allocation17 + $0xe8] sm:$0xf]
        %v2820 = vld [vmem:[#allocation17 + $0xec] sm:$0xf]
        %v2821 = vld [vmem:[#allocation17 + $0xf0] sm:$0xf]
        %v2822 = vld [vmem:[#allocation17 + $0xf4] sm:$0xf]
        %v2823 = vld [vmem:[#allocation17 + $0xf8] sm:$0xf]
        %v2824 = vld [vmem:[#allocation17 + $0xfc] sm:$0xf]
        %v2825 = vld [vmem:[%s11 + $0x10] sm:$0xff]
        %v2826 = vld [vmem:[%s11 + $0x18] sm:$0xff]
        %v2827 = vld [vmem:[%s11 + $0x50] sm:$0xff]
        %v2828 = vld [vmem:[%s11 + $0x58] sm:$0xff]
        %v2829 = vld [vmem:[%s11 + $0x90] sm:$0xff]
        %v2830 = vld [vmem:[%s11 + $0x98] sm:$0xff]
        %v2831 = vld [vmem:[%s11 + $0xd0] sm:$0xff]
        %v2832 = vld [vmem:[%s11 + $0xd8] sm:$0xff]
        %v2833 = vld [vmem:[%s11 + $0x110] sm:$0xff]
        %v2834 = vld [vmem:[%s11 + $0x118] sm:$0xff]
        %v2835 = vld [vmem:[%s11 + $0x150] sm:$0xff]
        %v2836 = vld [vmem:[%s11 + $0x158] sm:$0xff]
        %v2837 = vld [vmem:[%s11 + $0x190] sm:$0xff]
        %v2838 = vld [vmem:[%s11 + $0x198] sm:$0xff]
        %v2839 = vld [vmem:[%s11 + $0x1d0] sm:$0xff]
        %v2840 = vld [vmem:[%s11 + $0x1d8] sm:$0xff]
        %v2841 = vld [vmem:[%s11 + $0x210] sm:$0xff]
        %v2842 = vld [vmem:[%s11 + $0x218] sm:$0xff]
        %v2843 = vld [vmem:[%s11 + $0x250] sm:$0xff]
        %v2844 = vld [vmem:[%s11 + $0x258] sm:$0xff]
        %v2845 = vld [vmem:[%s11 + $0x290] sm:$0xff]
        %v2846 = vld [vmem:[%s11 + $0x298] sm:$0xff]
        %v2847 = vld [vmem:[%s11 + $0x2d0] sm:$0xff]
        %v2848 = vld [vmem:[%s11 + $0x2d8] sm:$0xff]
        %v2849 = vld [vmem:[%s11 + $0x310] sm:$0xff]
        %v2850 = vld [vmem:[%s11 + $0x318] sm:$0xff]
        %v2851 = vld [vmem:[%s11 + $0x350] sm:$0xff]
        %v2852 = vld [vmem:[%s11 + $0x358] sm:$0xff]
        %v2853 = vld [vmem:[%s11 + $0x390] sm:$0xff]
        %v2854 = vld [vmem:[%s11 + $0x398] sm:$0xff]
        %v2855 = vld [vmem:[%s11 + $0x3d0] sm:$0xff]
        %v2856 = vld [vmem:[%s11 + $0x3d8] sm:$0xff]
        %v2857 = vld [vmem:[#allocation16 + $0x4] sm:$0xf]
        %v2859 = vlaneseq
        %v2860 = vshrl.u32 %v2859, 7
        %v2861 = vsub.s32 0, %v2860
        %v2862 = vrot.slane %v2857, %v2861
        %v2863 = vlaneseq
        %v2864 = vshrl.u32 %v2863, 7
        %v2865 = vsub.s32 1, %v2864
        %v2866 = vrot.slane %v2857, %v2865
        %v2867 = vlaneseq
        %v2868 = vshrl.u32 %v2867, 7
        %v2869 = vsub.s32 2, %v2868
        %v2870 = vrot.slane %v2857, %v2869
        %v2871 = vlaneseq
        %v2872 = vshrl.u32 %v2871, 7
        %v2873 = vsub.s32 3, %v2872
        %v2874 = vrot.slane %v2857, %v2873
        %v2911 = vunpack.c.l.b16 %v2825
        %v2912 = vunpack.c.h.b16 %v2825
        %v2913 = vunpack.c.l.b16 %v2826
        %v2914 = vunpack.c.h.b16 %v2826
        %v2915 = vunpack.c.l.b16 %v2827
        %v2916 = vunpack.c.h.b16 %v2827
        %v2917 = vunpack.c.l.b16 %v2828
        %v2918 = vunpack.c.h.b16 %v2828
        %v2919 = vunpack.c.l.b16 %v2829
        %v2920 = vunpack.c.h.b16 %v2829
        %v2921 = vunpack.c.l.b16 %v2830
        %v2922 = vunpack.c.h.b16 %v2830
        %v2923 = vunpack.c.l.b16 %v2831
        %v2924 = vunpack.c.h.b16 %v2831
        %v2925 = vunpack.c.l.b16 %v2832
        %v2926 = vunpack.c.h.b16 %v2832
        %v2927 = vunpack.c.l.b16 %v2833
        %v2928 = vunpack.c.h.b16 %v2833
        %v2929 = vunpack.c.l.b16 %v2834
        %v2930 = vunpack.c.h.b16 %v2834
        %v2931 = vunpack.c.l.b16 %v2835
        %v2932 = vunpack.c.h.b16 %v2835
        %v2933 = vunpack.c.l.b16 %v2836
        %v2934 = vunpack.c.h.b16 %v2836
        %v2935 = vunpack.c.l.b16 %v2837
        %v2936 = vunpack.c.h.b16 %v2837
        %v2937 = vunpack.c.l.b16 %v2838
        %v2938 = vunpack.c.h.b16 %v2838
        %v2939 = vunpack.c.l.b16 %v2839
        %v2940 = vunpack.c.h.b16 %v2839
        %v2941 = vunpack.c.l.b16 %v2840
        %v2942 = vunpack.c.h.b16 %v2840
        %v2943 = vunpack.c.l.b16 %v2841
        %v2944 = vunpack.c.h.b16 %v2841
        %v2945 = vunpack.c.l.b16 %v2842
        %v2946 = vunpack.c.h.b16 %v2842
        %v2947 = vunpack.c.l.b16 %v2843
        %v2948 = vunpack.c.h.b16 %v2843
        %v2949 = vunpack.c.l.b16 %v2844
        %v2950 = vunpack.c.h.b16 %v2844
        %v2951 = vunpack.c.l.b16 %v2845
        %v2952 = vunpack.c.h.b16 %v2845
        %v2953 = vunpack.c.l.b16 %v2846
        %v2954 = vunpack.c.h.b16 %v2846
        %v2955 = vunpack.c.l.b16 %v2847
        %v2956 = vunpack.c.h.b16 %v2847
        %v2957 = vunpack.c.l.b16 %v2848
        %v2958 = vunpack.c.h.b16 %v2848
        %v2959 = vunpack.c.l.b16 %v2849
        %v2960 = vunpack.c.h.b16 %v2849
        %v2961 = vunpack.c.l.b16 %v2850
        %v2962 = vunpack.c.h.b16 %v2850
        %v2963 = vunpack.c.l.b16 %v2851
        %v2964 = vunpack.c.h.b16 %v2851
        %v2965 = vunpack.c.l.b16 %v2852
        %v2966 = vunpack.c.h.b16 %v2852
        %v2967 = vunpack.c.l.b16 %v2853
        %v2968 = vunpack.c.h.b16 %v2853
        %v2969 = vunpack.c.l.b16 %v2854
        %v2970 = vunpack.c.h.b16 %v2854
        %v2971 = vunpack.c.l.b16 %v2855
        %v2972 = vunpack.c.h.b16 %v2855
        %v2973 = vunpack.c.l.b16 %v2856
        %v2974 = vunpack.c.h.b16 %v2856
        %v2975 = vpack.c.b16 %v2915, %v2911
        %v2976 = vpack.c.b16 %v2916, %v2912
        %v2977 = vpack.c.b16 %v2917, %v2913
        %v2978 = vpack.c.b16 %v2918, %v2914
        %v2979 = vpack.c.b16 %v2923, %v2919
        %v2980 = vpack.c.b16 %v2924, %v2920
        %v2981 = vpack.c.b16 %v2925, %v2921
        %v2982 = vpack.c.b16 %v2926, %v2922
        %v2983 = vpack.c.b16 %v2931, %v2927
        %v2984 = vpack.c.b16 %v2932, %v2928
        %v2985 = vpack.c.b16 %v2933, %v2929
        %v2986 = vpack.c.b16 %v2934, %v2930
        %v2987 = vpack.c.b16 %v2939, %v2935
        %v2988 = vpack.c.b16 %v2940, %v2936
        %v2989 = vpack.c.b16 %v2941, %v2937
        %v2990 = vpack.c.b16 %v2942, %v2938
        %v2991 = vpack.c.b16 %v2947, %v2943
        %v2992 = vpack.c.b16 %v2948, %v2944
        %v2993 = vpack.c.b16 %v2949, %v2945
        %v2994 = vpack.c.b16 %v2950, %v2946
        %v2995 = vpack.c.b16 %v2955, %v2951
        %v2996 = vpack.c.b16 %v2956, %v2952
        %v2997 = vpack.c.b16 %v2957, %v2953
        %v2998 = vpack.c.b16 %v2958, %v2954
        %v2999 = vpack.c.b16 %v2963, %v2959
        %v3000 = vpack.c.b16 %v2964, %v2960
        %v3001 = vpack.c.b16 %v2965, %v2961
        %v3002 = vpack.c.b16 %v2966, %v2962
        %v3003 = vpack.c.b16 %v2971, %v2967
        %v3004 = vpack.c.b16 %v2972, %v2968
        %v3005 = vpack.c.b16 %v2973, %v2969
        %v3006 = vpack.c.b16 %v2974, %v2970
        %3039 = vmatprep.subr.bf16.mxu0 %v2976
        %3040 = vmatpush1.bf16.msra.mxu0 %v2975
        %3041 = vmatprep.subr.bf16.mxu0 %v2980
        %3042 = vmatpush1.bf16.msra.mxu0 %v2979
        %3043 = vmatprep.subr.bf16.mxu0 %v2984
        %3044 = vmatpush1.bf16.msra.mxu0 %v2983
        %3045 = vmatprep.subr.bf16.mxu0 %v2988
        %3046 = vmatpush1.bf16.msra.mxu0 %v2987
        %3047 = vmatprep.subr.bf16.mxu0 %v2992
        %3048 = vmatpush1.bf16.msra.mxu0 %v2991
        %3049 = vmatprep.subr.bf16.mxu0 %v2996
        %3050 = vmatpush1.bf16.msra.mxu0 %v2995
        %3051 = vmatprep.subr.bf16.mxu0 %v3000
        %3052 = vmatpush1.bf16.msra.mxu0 %v2999
        %3053 = vmatprep.subr.bf16.mxu0 %v3004
        %3054 = vmatpush1.bf16.msra.mxu0 %v3003
        %3055 = vmatprep.subr.bf16.mxu0 0
        %3056 = vmatpush1.bf16.msra.mxu0 0
        %3057 = vmatprep.subr.bf16.mxu0 0
        %3058 = vmatpush1.bf16.msra.mxu0 0
        %3059 = vmatprep.subr.bf16.mxu0 0
        %3060 = vmatpush1.bf16.msra.mxu0 0
        %3061 = vmatprep.subr.bf16.mxu0 0
        %3062 = vmatpush1.bf16.msra.mxu0 0
        %3063 = vmatprep.subr.bf16.mxu0 0
        %3064 = vmatpush1.bf16.msra.mxu0 0
        %3065 = vmatprep.subr.bf16.mxu0 0
        %3066 = vmatpush1.bf16.msra.mxu0 0
        %3067 = vmatprep.subr.bf16.mxu0 0
        %3068 = vmatpush1.bf16.msra.mxu0 0
        %3069 = vmatprep.subr.bf16.mxu0 0
        %3070 = vmatpush1.bf16.msra.mxu0 0
        %3071 = vmatprep.mubr.bf16.mxu0 0
        %3072 = vmatmul.mubr.bf16.gmra.mrb[0].mxu0 %v2456
        %v3073 = vpop.f32.mrb[0].mxu0
        %v3074 = vadd.f32 %v2862, %v3073
        %v3075 = vpop.f32.mrb[0].mxu0
        %v3076 = vadd.f32 %v2866, %v3075
        %v3077 = vpop.f32.mrb[0].mxu0
        %v3078 = vpop.f32.mrb[0].mxu0
        %3079 = vdwg.mxu0
        %3080 = vmatprep.subr.bf16.mxu0 %v2978
        %3081 = vmatpush1.bf16.msra.mxu0 %v2977
        %3082 = vmatprep.subr.bf16.mxu0 %v2982
        %3083 = vmatpush1.bf16.msra.mxu0 %v2981
        %3084 = vmatprep.subr.bf16.mxu0 %v2986
        %3085 = vmatpush1.bf16.msra.mxu0 %v2985
        %3086 = vmatprep.subr.bf16.mxu0 %v2990
        %3087 = vmatpush1.bf16.msra.mxu0 %v2989
        %3088 = vmatprep.subr.bf16.mxu0 %v2994
        %3089 = vmatpush1.bf16.msra.mxu0 %v2993
        %3090 = vmatprep.subr.bf16.mxu0 %v2998
        %3091 = vmatpush1.bf16.msra.mxu0 %v2997
        %3092 = vmatprep.subr.bf16.mxu0 %v3002
        %3093 = vmatpush1.bf16.msra.mxu0 %v3001
        %3094 = vmatprep.subr.bf16.mxu0 %v3006
        %3095 = vmatpush1.bf16.msra.mxu0 %v3005
        %3096 = vmatprep.subr.bf16.mxu0 0
        %3097 = vmatpush1.bf16.msra.mxu0 0
        %3098 = vmatprep.subr.bf16.mxu0 0
        %3099 = vmatpush1.bf16.msra.mxu0 0
        %3100 = vmatprep.subr.bf16.mxu0 0
        %3101 = vmatpush1.bf16.msra.mxu0 0
        %3102 = vmatprep.subr.bf16.mxu0 0
        %3103 = vmatpush1.bf16.msra.mxu0 0
        %3104 = vmatprep.subr.bf16.mxu0 0
        %3105 = vmatpush1.bf16.msra.mxu0 0
        %3106 = vmatprep.subr.bf16.mxu0 0
        %3107 = vmatpush1.bf16.msra.mxu0 0
        %3108 = vmatprep.subr.bf16.mxu0 0
        %3109 = vmatpush1.bf16.msra.mxu0 0
        %3110 = vmatprep.subr.bf16.mxu0 0
        %3111 = vmatpush1.bf16.msra.mxu0 0
        %3112 = vmatprep.mubr.bf16.mxu0 0
        %3113 = vmatmul.mubr.bf16.gmra.mrb[0].mxu0 %v2456
        %v3114 = vpop.f32.mrb[0].mxu0
        %v3115 = vadd.f32 %v2870, %v3114
        %v3116 = vpop.f32.mrb[0].mxu0
        %v3117 = vadd.f32 %v2874, %v3116
        %v3118 = vpop.f32.mrb[0].mxu0
        %v3119 = vpop.f32.mrb[0].mxu0
        %3120 = vdwg.mxu0
        %v3121 = vmax.f32 %v3074, 0.0
        %v3122 = vmax.f32 %v3076, 0.0
        %v3123 = vmax.f32 %v3115, 0.0
        %v3124 = vmax.f32 %v3117, 0.0
        %v3125 = vpack.c.bf16 %v3121, %v3121
        %v3126 = vpack.c.bf16 %v3122, %v3122
        %v3127 = vpack.c.bf16 %v3123, %v3123
        %v3128 = vpack.c.bf16 %v3124, %v3124
        %v3129 = vld [vmem:[#allocation17 + $0x100] sm:$0xf]
        %v3130 = vld [vmem:[#allocation17 + $0x104] sm:$0xf]
        %v3131 = vld [vmem:[#allocation17 + $0x108] sm:$0xf]
        %v3132 = vld [vmem:[#allocation17 + $0x10c] sm:$0xf]
        %v3133 = vld [vmem:[#allocation17 + $0x110] sm:$0xf]
        %v3134 = vld [vmem:[#allocation17 + $0x114] sm:$0xf]
        %v3135 = vld [vmem:[#allocation17 + $0x118] sm:$0xf]
        %v3136 = vld [vmem:[#allocation17 + $0x11c] sm:$0xf]
        %v3137 = vld [vmem:[#allocation17 + $0x120] sm:$0xf]
        %v3138 = vld [vmem:[#allocation17 + $0x124] sm:$0xf]
        %v3139 = vld [vmem:[#allocation17 + $0x128] sm:$0xf]
        %v3140 = vld [vmem:[#allocation17 + $0x12c] sm:$0xf]
        %v3141 = vld [vmem:[#allocation17 + $0x130] sm:$0xf]
        %v3142 = vld [vmem:[#allocation17 + $0x134] sm:$0xf]
        %v3143 = vld [vmem:[#allocation17 + $0x138] sm:$0xf]
        %v3144 = vld [vmem:[#allocation17 + $0x13c] sm:$0xf]
        %v3145 = vld [vmem:[#allocation17 + $0x140] sm:$0xf]
        %v3146 = vld [vmem:[#allocation17 + $0x144] sm:$0xf]
        %v3147 = vld [vmem:[#allocation17 + $0x148] sm:$0xf]
        %v3148 = vld [vmem:[#allocation17 + $0x14c] sm:$0xf]
        %v3149 = vld [vmem:[#allocation17 + $0x150] sm:$0xf]
        %v3150 = vld [vmem:[#allocation17 + $0x154] sm:$0xf]
        %v3151 = vld [vmem:[#allocation17 + $0x158] sm:$0xf]
        %v3152 = vld [vmem:[#allocation17 + $0x15c] sm:$0xf]
        %v3153 = vld [vmem:[#allocation17 + $0x160] sm:$0xf]
        %v3154 = vld [vmem:[#allocation17 + $0x164] sm:$0xf]
        %v3155 = vld [vmem:[#allocation17 + $0x168] sm:$0xf]
        %v3156 = vld [vmem:[#allocation17 + $0x16c] sm:$0xf]
        %v3157 = vld [vmem:[#allocation17 + $0x170] sm:$0xf]
        %v3158 = vld [vmem:[#allocation17 + $0x174] sm:$0xf]
        %v3159 = vld [vmem:[#allocation17 + $0x178] sm:$0xf]
        %v3160 = vld [vmem:[#allocation17 + $0x17c] sm:$0xf]
        %v3161 = vld [vmem:[#allocation17 + $0x180] sm:$0xf]
        %v3162 = vld [vmem:[#allocation17 + $0x184] sm:$0xf]
        %v3163 = vld [vmem:[#allocation17 + $0x188] sm:$0xf]
        %v3164 = vld [vmem:[#allocation17 + $0x18c] sm:$0xf]
        %v3165 = vld [vmem:[#allocation17 + $0x190] sm:$0xf]
        %v3166 = vld [vmem:[#allocation17 + $0x194] sm:$0xf]
        %v3167 = vld [vmem:[#allocation17 + $0x198] sm:$0xf]
        %v3168 = vld [vmem:[#allocation17 + $0x19c] sm:$0xf]
        %v3169 = vld [vmem:[#allocation17 + $0x1a0] sm:$0xf]
        %v3170 = vld [vmem:[#allocation17 + $0x1a4] sm:$0xf]
        %v3171 = vld [vmem:[#allocation17 + $0x1a8] sm:$0xf]
        %v3172 = vld [vmem:[#allocation17 + $0x1ac] sm:$0xf]
        %v3173 = vld [vmem:[#allocation17 + $0x1b0] sm:$0xf]
        %v3174 = vld [vmem:[#allocation17 + $0x1b4] sm:$0xf]
        %v3175 = vld [vmem:[#allocation17 + $0x1b8] sm:$0xf]
        %v3176 = vld [vmem:[#allocation17 + $0x1bc] sm:$0xf]
        %v3177 = vld [vmem:[#allocation17 + $0x1c0] sm:$0xf]
        %v3178 = vld [vmem:[#allocation17 + $0x1c4] sm:$0xf]
        %v3179 = vld [vmem:[#allocation17 + $0x1c8] sm:$0xf]
        %v3180 = vld [vmem:[#allocation17 + $0x1cc] sm:$0xf]
        %v3181 = vld [vmem:[#allocation17 + $0x1d0] sm:$0xf]
        %v3182 = vld [vmem:[#allocation17 + $0x1d4] sm:$0xf]
        %v3183 = vld [vmem:[#allocation17 + $0x1d8] sm:$0xf]
        %v3184 = vld [vmem:[#allocation17 + $0x1dc] sm:$0xf]
        %v3185 = vld [vmem:[#allocation17 + $0x1e0] sm:$0xf]
        %v3186 = vld [vmem:[#allocation17 + $0x1e4] sm:$0xf]
        %v3187 = vld [vmem:[#allocation17 + $0x1e8] sm:$0xf]
        %v3188 = vld [vmem:[#allocation17 + $0x1ec] sm:$0xf]
        %v3189 = vld [vmem:[#allocation17 + $0x1f0] sm:$0xf]
        %v3190 = vld [vmem:[#allocation17 + $0x1f4] sm:$0xf]
        %v3191 = vld [vmem:[#allocation17 + $0x1f8] sm:$0xf]
        %v3192 = vld [vmem:[#allocation17 + $0x1fc] sm:$0xf]
        %v3257 = vunpack.c.l.b16 %v3129
        %v3258 = vunpack.c.l.b16 %v3130
        %v3259 = vunpack.c.l.b16 %v3131
        %v3260 = vunpack.c.l.b16 %v3132
        %v3261 = vunpack.c.l.b16 %v3133
        %v3262 = vunpack.c.l.b16 %v3134
        %v3263 = vunpack.c.l.b16 %v3135
        %v3264 = vunpack.c.l.b16 %v3136
        %v3265 = vunpack.c.l.b16 %v3137
        %v3266 = vunpack.c.l.b16 %v3138
        %v3267 = vunpack.c.l.b16 %v3139
        %v3268 = vunpack.c.l.b16 %v3140
        %v3269 = vunpack.c.l.b16 %v3141
        %v3270 = vunpack.c.l.b16 %v3142
        %v3271 = vunpack.c.l.b16 %v3143
        %v3272 = vunpack.c.l.b16 %v3144
        %v3273 = vunpack.c.l.b16 %v3145
        %v3274 = vunpack.c.l.b16 %v3146
        %v3275 = vunpack.c.l.b16 %v3147
        %v3276 = vunpack.c.l.b16 %v3148
        %v3277 = vunpack.c.l.b16 %v3149
        %v3278 = vunpack.c.l.b16 %v3150
        %v3279 = vunpack.c.l.b16 %v3151
        %v3280 = vunpack.c.l.b16 %v3152
        %v3281 = vunpack.c.l.b16 %v3153
        %v3282 = vunpack.c.l.b16 %v3154
        %v3283 = vunpack.c.l.b16 %v3155
        %v3284 = vunpack.c.l.b16 %v3156
        %v3285 = vunpack.c.l.b16 %v3157
        %v3286 = vunpack.c.l.b16 %v3158
        %v3287 = vunpack.c.l.b16 %v3159
        %v3288 = vunpack.c.l.b16 %v3160
        %v3289 = vunpack.c.l.b16 %v3161
        %v3290 = vunpack.c.l.b16 %v3162
        %v3291 = vunpack.c.l.b16 %v3163
        %v3292 = vunpack.c.l.b16 %v3164
        %v3293 = vunpack.c.l.b16 %v3165
        %v3294 = vunpack.c.l.b16 %v3166
        %v3295 = vunpack.c.l.b16 %v3167
        %v3296 = vunpack.c.l.b16 %v3168
        %v3297 = vunpack.c.l.b16 %v3169
        %v3298 = vunpack.c.l.b16 %v3170
        %v3299 = vunpack.c.l.b16 %v3171
        %v3300 = vunpack.c.l.b16 %v3172
        %v3301 = vunpack.c.l.b16 %v3173
        %v3302 = vunpack.c.l.b16 %v3174
        %v3303 = vunpack.c.l.b16 %v3175
        %v3304 = vunpack.c.l.b16 %v3176
        %v3305 = vunpack.c.l.b16 %v3177
        %v3306 = vunpack.c.l.b16 %v3178
        %v3307 = vunpack.c.l.b16 %v3179
        %v3308 = vunpack.c.l.b16 %v3180
        %v3309 = vunpack.c.l.b16 %v3181
        %v3310 = vunpack.c.l.b16 %v3182
        %v3311 = vunpack.c.l.b16 %v3183
        %v3312 = vunpack.c.l.b16 %v3184
        %v3313 = vunpack.c.l.b16 %v3185
        %v3314 = vunpack.c.l.b16 %v3186
        %v3315 = vunpack.c.l.b16 %v3187
        %v3316 = vunpack.c.l.b16 %v3188
        %v3317 = vunpack.c.l.b16 %v3189
        %v3318 = vunpack.c.l.b16 %v3190
        %v3319 = vunpack.c.l.b16 %v3191
        %v3320 = vunpack.c.l.b16 %v3192
        %v3321 = vpack.c.b16 %v3258, %v3257
        %v3322 = vpack.c.b16 %v3260, %v3259
        %v3323 = vpack.c.b16 %v3262, %v3261
        %v3324 = vpack.c.b16 %v3264, %v3263
        %v3325 = vpack.c.b16 %v3266, %v3265
        %v3326 = vpack.c.b16 %v3268, %v3267
        %v3327 = vpack.c.b16 %v3270, %v3269
        %v3328 = vpack.c.b16 %v3272, %v3271
        %v3329 = vpack.c.b16 %v3274, %v3273
        %v3330 = vpack.c.b16 %v3276, %v3275
        %v3331 = vpack.c.b16 %v3278, %v3277
        %v3332 = vpack.c.b16 %v3280, %v3279
        %v3333 = vpack.c.b16 %v3282, %v3281
        %v3334 = vpack.c.b16 %v3284, %v3283
        %v3335 = vpack.c.b16 %v3286, %v3285
        %v3336 = vpack.c.b16 %v3288, %v3287
        %v3337 = vpack.c.b16 %v3290, %v3289
        %v3338 = vpack.c.b16 %v3292, %v3291
        %v3339 = vpack.c.b16 %v3294, %v3293
        %v3340 = vpack.c.b16 %v3296, %v3295
        %v3341 = vpack.c.b16 %v3298, %v3297
        %v3342 = vpack.c.b16 %v3300, %v3299
        %v3343 = vpack.c.b16 %v3302, %v3301
        %v3344 = vpack.c.b16 %v3304, %v3303
        %v3345 = vpack.c.b16 %v3306, %v3305
        %v3346 = vpack.c.b16 %v3308, %v3307
        %v3347 = vpack.c.b16 %v3310, %v3309
        %v3348 = vpack.c.b16 %v3312, %v3311
        %v3349 = vpack.c.b16 %v3314, %v3313
        %v3350 = vpack.c.b16 %v3316, %v3315
        %v3351 = vpack.c.b16 %v3318, %v3317
        %v3352 = vpack.c.b16 %v3320, %v3319
        %3385 = vmatprep.subr.bf16.mxu0 0
        %3386 = vmatpush1.bf16.msra.mxu0 %v3321
        %3387 = vmatprep.subr.bf16.mxu0 0
        %3388 = vmatpush1.bf16.msra.mxu0 %v3322
        %3389 = vmatprep.subr.bf16.mxu0 0
        %3390 = vmatpush1.bf16.msra.mxu0 %v3323
        %3391 = vmatprep.subr.bf16.mxu0 0
        %3392 = vmatpush1.bf16.msra.mxu0 %v3324
        %3393 = vmatprep.subr.bf16.mxu0 0
        %3394 = vmatpush1.bf16.msra.mxu0 %v3325
        %3395 = vmatprep.subr.bf16.mxu0 0
        %3396 = vmatpush1.bf16.msra.mxu0 %v3326
        %3397 = vmatprep.subr.bf16.mxu0 0
        %3398 = vmatpush1.bf16.msra.mxu0 %v3327
        %3399 = vmatprep.subr.bf16.mxu0 0
        %3400 = vmatpush1.bf16.msra.mxu0 %v3328
        %3401 = vmatprep.subr.bf16.mxu0 0
        %3402 = vmatpush1.bf16.msra.mxu0 %v3329
        %3403 = vmatprep.subr.bf16.mxu0 0
        %3404 = vmatpush1.bf16.msra.mxu0 %v3330
        %3405 = vmatprep.subr.bf16.mxu0 0
        %3406 = vmatpush1.bf16.msra.mxu0 %v3331
        %3407 = vmatprep.subr.bf16.mxu0 0
        %3408 = vmatpush1.bf16.msra.mxu0 %v3332
        %3409 = vmatprep.subr.bf16.mxu0 0
        %3410 = vmatpush1.bf16.msra.mxu0 %v3333
        %3411 = vmatprep.subr.bf16.mxu0 0
        %3412 = vmatpush1.bf16.msra.mxu0 %v3334
        %3413 = vmatprep.subr.bf16.mxu0 0
        %3414 = vmatpush1.bf16.msra.mxu0 %v3335
        %3415 = vmatprep.subr.bf16.mxu0 0
        %3416 = vmatpush1.bf16.msra.mxu0 %v3336
        %3417 = vmatprep.mubr.bf16.mxu0 %v3126
        %3418 = vmatmul.mubr.bf16.gmra.mrb[0].mxu0 %v3125
        %v3419 = vpop.f32.mrb[0].mxu0
        %v3420 = vadd.f32 0.0, %v3419
        %v3421 = vpop.f32.mrb[0].mxu0
        %v3422 = vpop.f32.mrb[0].mxu0
        %v3423 = vpop.f32.mrb[0].mxu0
        %3424 = vdwg.mxu0
        %3425 = vmatprep.subr.bf16.mxu0 0
        %3426 = vmatpush1.bf16.msra.mxu0 %v3337
        %3427 = vmatprep.subr.bf16.mxu0 0
        %3428 = vmatpush1.bf16.msra.mxu0 %v3338
        %3429 = vmatprep.subr.bf16.mxu0 0
        %3430 = vmatpush1.bf16.msra.mxu0 %v3339
        %3431 = vmatprep.subr.bf16.mxu0 0
        %3432 = vmatpush1.bf16.msra.mxu0 %v3340
        %3433 = vmatprep.subr.bf16.mxu0 0
        %3434 = vmatpush1.bf16.msra.mxu0 %v3341
        %3435 = vmatprep.subr.bf16.mxu0 0
        %3436 = vmatpush1.bf16.msra.mxu0 %v3342
        %3437 = vmatprep.subr.bf16.mxu0 0
        %3438 = vmatpush1.bf16.msra.mxu0 %v3343
        %3439 = vmatprep.subr.bf16.mxu0 0
        %3440 = vmatpush1.bf16.msra.mxu0 %v3344
        %3441 = vmatprep.subr.bf16.mxu0 0
        %3442 = vmatpush1.bf16.msra.mxu0 %v3345
        %3443 = vmatprep.subr.bf16.mxu0 0
        %3444 = vmatpush1.bf16.msra.mxu0 %v3346
        %3445 = vmatprep.subr.bf16.mxu0 0
        %3446 = vmatpush1.bf16.msra.mxu0 %v3347
        %3447 = vmatprep.subr.bf16.mxu0 0
        %3448 = vmatpush1.bf16.msra.mxu0 %v3348
        %3449 = vmatprep.subr.bf16.mxu0 0
        %3450 = vmatpush1.bf16.msra.mxu0 %v3349
        %3451 = vmatprep.subr.bf16.mxu0 0
        %3452 = vmatpush1.bf16.msra.mxu0 %v3350
        %3453 = vmatprep.subr.bf16.mxu0 0
        %3454 = vmatpush1.bf16.msra.mxu0 %v3351
        %3455 = vmatprep.subr.bf16.mxu0 0
        %3456 = vmatpush1.bf16.msra.mxu0 %v3352
        %3457 = vmatprep.mubr.bf16.mxu0 %v3128
        %3458 = vmatmul.mubr.bf16.gmra.mrb[0].mxu0 %v3127
        %v3459 = vpop.f32.mrb[0].mxu0
        %v3460 = vadd.f32 %v3420, %v3459
        %v3461 = vpop.f32.mrb[0].mxu0
        %v3462 = vpop.f32.mrb[0].mxu0
        %v3463 = vpop.f32.mrb[0].mxu0
        %3464 = vdwg.mxu0
        %v3529 = vunpack.c.l.b16 %v2761
        %v3530 = vunpack.c.l.b16 %v2762
        %v3531 = vunpack.c.l.b16 %v2763
        %v3532 = vunpack.c.l.b16 %v2764
        %v3533 = vunpack.c.l.b16 %v2765
        %v3534 = vunpack.c.l.b16 %v2766
        %v3535 = vunpack.c.l.b16 %v2767
        %v3536 = vunpack.c.l.b16 %v2768
        %v3537 = vunpack.c.l.b16 %v2769
        %v3538 = vunpack.c.l.b16 %v2770
        %v3539 = vunpack.c.l.b16 %v2771
        %v3540 = vunpack.c.l.b16 %v2772
        %v3541 = vunpack.c.l.b16 %v2773
        %v3542 = vunpack.c.l.b16 %v2774
        %v3543 = vunpack.c.l.b16 %v2775
        %v3544 = vunpack.c.l.b16 %v2776
        %v3545 = vunpack.c.l.b16 %v2777
        %v3546 = vunpack.c.l.b16 %v2778
        %v3547 = vunpack.c.l.b16 %v2779
        %v3548 = vunpack.c.l.b16 %v2780
        %v3549 = vunpack.c.l.b16 %v2781
        %v3550 = vunpack.c.l.b16 %v2782
        %v3551 = vunpack.c.l.b16 %v2783
        %v3552 = vunpack.c.l.b16 %v2784
        %v3553 = vunpack.c.l.b16 %v2785
        %v3554 = vunpack.c.l.b16 %v2786
        %v3555 = vunpack.c.l.b16 %v2787
        %v3556 = vunpack.c.l.b16 %v2788
        %v3557 = vunpack.c.l.b16 %v2789
        %v3558 = vunpack.c.l.b16 %v2790
        %v3559 = vunpack.c.l.b16 %v2791
        %v3560 = vunpack.c.l.b16 %v2792
        %v3561 = vunpack.c.l.b16 %v2793
        %v3562 = vunpack.c.l.b16 %v2794
        %v3563 = vunpack.c.l.b16 %v2795
        %v3564 = vunpack.c.l.b16 %v2796
        %v3565 = vunpack.c.l.b16 %v2797
        %v3566 = vunpack.c.l.b16 %v2798
        %v3567 = vunpack.c.l.b16 %v2799
        %v3568 = vunpack.c.l.b16 %v2800
        %v3569 = vunpack.c.l.b16 %v2801
        %v3570 = vunpack.c.l.b16 %v2802
        %v3571 = vunpack.c.l.b16 %v2803
        %v3572 = vunpack.c.l.b16 %v2804
        %v3573 = vunpack.c.l.b16 %v2805
        %v3574 = vunpack.c.l.b16 %v2806
        %v3575 = vunpack.c.l.b16 %v2807
        %v3576 = vunpack.c.l.b16 %v2808
        %v3577 = vunpack.c.l.b16 %v2809
        %v3578 = vunpack.c.l.b16 %v2810
        %v3579 = vunpack.c.l.b16 %v2811
        %v3580 = vunpack.c.l.b16 %v2812
        %v3581 = vunpack.c.l.b16 %v2813
        %v3582 = vunpack.c.l.b16 %v2814
        %v3583 = vunpack.c.l.b16 %v2815
        %v3584 = vunpack.c.l.b16 %v2816
        %v3585 = vunpack.c.l.b16 %v2817
        %v3586 = vunpack.c.l.b16 %v2818
        %v3587 = vunpack.c.l.b16 %v2819
        %v3588 = vunpack.c.l.b16 %v2820
        %v3589 = vunpack.c.l.b16 %v2821
        %v3590 = vunpack.c.l.b16 %v2822
        %v3591 = vunpack.c.l.b16 %v2823
        %v3592 = vunpack.c.l.b16 %v2824
        %v3593 = vpack.c.b16 %v3530, %v3529
        %v3594 = vpack.c.b16 %v3532, %v3531
        %v3595 = vpack.c.b16 %v3534, %v3533
        %v3596 = vpack.c.b16 %v3536, %v3535
        %v3597 = vpack.c.b16 %v3538, %v3537
        %v3598 = vpack.c.b16 %v3540, %v3539
        %v3599 = vpack.c.b16 %v3542, %v3541
        %v3600 = vpack.c.b16 %v3544, %v3543
        %v3601 = vpack.c.b16 %v3546, %v3545
        %v3602 = vpack.c.b16 %v3548, %v3547
        %v3603 = vpack.c.b16 %v3550, %v3549
        %v3604 = vpack.c.b16 %v3552, %v3551
        %v3605 = vpack.c.b16 %v3554, %v3553
        %v3606 = vpack.c.b16 %v3556, %v3555
        %v3607 = vpack.c.b16 %v3558, %v3557
        %v3608 = vpack.c.b16 %v3560, %v3559
        %v3609 = vpack.c.b16 %v3562, %v3561
        %v3610 = vpack.c.b16 %v3564, %v3563
        %v3611 = vpack.c.b16 %v3566, %v3565
        %v3612 = vpack.c.b16 %v3568, %v3567
        %v3613 = vpack.c.b16 %v3570, %v3569
        %v3614 = vpack.c.b16 %v3572, %v3571
        %v3615 = vpack.c.b16 %v3574, %v3573
        %v3616 = vpack.c.b16 %v3576, %v3575
        %v3617 = vpack.c.b16 %v3578, %v3577
        %v3618 = vpack.c.b16 %v3580, %v3579
        %v3619 = vpack.c.b16 %v3582, %v3581
        %v3620 = vpack.c.b16 %v3584, %v3583
        %v3621 = vpack.c.b16 %v3586, %v3585
        %v3622 = vpack.c.b16 %v3588, %v3587
        %v3623 = vpack.c.b16 %v3590, %v3589
        %v3624 = vpack.c.b16 %v3592, %v3591
        %3657 = vmatprep.subr.bf16.mxu0 0
        %3658 = vmatpush1.bf16.msra.mxu0 %v3593
        %3659 = vmatprep.subr.bf16.mxu0 0
        %3660 = vmatpush1.bf16.msra.mxu0 %v3594
        %3661 = vmatprep.subr.bf16.mxu0 0
        %3662 = vmatpush1.bf16.msra.mxu0 %v3595
        %3663 = vmatprep.subr.bf16.mxu0 0
        %3664 = vmatpush1.bf16.msra.mxu0 %v3596
        %3665 = vmatprep.subr.bf16.mxu0 0
        %3666 = vmatpush1.bf16.msra.mxu0 %v3597
        %3667 = vmatprep.subr.bf16.mxu0 0
        %3668 = vmatpush1.bf16.msra.mxu0 %v3598
        %3669 = vmatprep.subr.bf16.mxu0 0
        %3670 = vmatpush1.bf16.msra.mxu0 %v3599
        %3671 = vmatprep.subr.bf16.mxu0 0
        %3672 = vmatpush1.bf16.msra.mxu0 %v3600
        %3673 = vmatprep.subr.bf16.mxu0 0
        %3674 = vmatpush1.bf16.msra.mxu0 %v3601
        %3675 = vmatprep.subr.bf16.mxu0 0
        %3676 = vmatpush1.bf16.msra.mxu0 %v3602
        %3677 = vmatprep.subr.bf16.mxu0 0
        %3678 = vmatpush1.bf16.msra.mxu0 %v3603
        %3679 = vmatprep.subr.bf16.mxu0 0
        %3680 = vmatpush1.bf16.msra.mxu0 %v3604
        %3681 = vmatprep.subr.bf16.mxu0 0
        %3682 = vmatpush1.bf16.msra.mxu0 %v3605
        %3683 = vmatprep.subr.bf16.mxu0 0
        %3684 = vmatpush1.bf16.msra.mxu0 %v3606
        %3685 = vmatprep.subr.bf16.mxu0 0
        %3686 = vmatpush1.bf16.msra.mxu0 %v3607
        %3687 = vmatprep.subr.bf16.mxu0 0
        %3688 = vmatpush1.bf16.msra.mxu0 %v3608
        %3689 = vmatprep.mubr.bf16.mxu0 %v2758
        %3690 = vmatmul.mubr.bf16.gmra.mrb[0].mxu0 %v2757
        %v3691 = vpop.f32.mrb[0].mxu0
        %v3692 = vadd.f32 %v3460, %v3691
        %v3693 = vpop.f32.mrb[0].mxu0
        %v3694 = vpop.f32.mrb[0].mxu0
        %v3695 = vpop.f32.mrb[0].mxu0
        %3696 = vdwg.mxu0
        %3697 = vmatprep.subr.bf16.mxu0 0
        %3698 = vmatpush1.bf16.msra.mxu0 %v3609
        %3699 = vmatprep.subr.bf16.mxu0 0
        %3700 = vmatpush1.bf16.msra.mxu0 %v3610
        %3701 = vmatprep.subr.bf16.mxu0 0
        %3702 = vmatpush1.bf16.msra.mxu0 %v3611
        %3703 = vmatprep.subr.bf16.mxu0 0
        %3704 = vmatpush1.bf16.msra.mxu0 %v3612
        %3705 = vmatprep.subr.bf16.mxu0 0
        %3706 = vmatpush1.bf16.msra.mxu0 %v3613
        %3707 = vmatprep.subr.bf16.mxu0 0
        %3708 = vmatpush1.bf16.msra.mxu0 %v3614
        %3709 = vmatprep.subr.bf16.mxu0 0
        %3710 = vmatpush1.bf16.msra.mxu0 %v3615
        %3711 = vmatprep.subr.bf16.mxu0 0
        %3712 = vmatpush1.bf16.msra.mxu0 %v3616
        %3713 = vmatprep.subr.bf16.mxu0 0
        %3714 = vmatpush1.bf16.msra.mxu0 %v3617
        %3715 = vmatprep.subr.bf16.mxu0 0
        %3716 = vmatpush1.bf16.msra.mxu0 %v3618
        %3717 = vmatprep.subr.bf16.mxu0 0
        %3718 = vmatpush1.bf16.msra.mxu0 %v3619
        %3719 = vmatprep.subr.bf16.mxu0 0
        %3720 = vmatpush1.bf16.msra.mxu0 %v3620
        %3721 = vmatprep.subr.bf16.mxu0 0
        %3722 = vmatpush1.bf16.msra.mxu0 %v3621
        %3723 = vmatprep.subr.bf16.mxu0 0
        %3724 = vmatpush1.bf16.msra.mxu0 %v3622
        %3725 = vmatprep.subr.bf16.mxu0 0
        %3726 = vmatpush1.bf16.msra.mxu0 %v3623
        %3727 = vmatprep.subr.bf16.mxu0 0
        %3728 = vmatpush1.bf16.msra.mxu0 %v3624
        %3729 = vmatprep.mubr.bf16.mxu0 %v2760
        %3730 = vmatmul.mubr.bf16.gmra.mrb[0].mxu0 %v2759
        %v3731 = vpop.f32.mrb[0].mxu0
        %v3732 = vadd.f32 %v3692, %v3731
        %v3733 = vpop.f32.mrb[0].mxu0
        %v3734 = vpop.f32.mrb[0].mxu0
        %v3735 = vpop.f32.mrb[0].mxu0
        %3736 = vdwg.mxu0
        %v3737 = vld [vmem:[%s11 + $0x20] sm:$0xff]
        %v3738 = vld [vmem:[%s11 + $0x28] sm:$0xff]
        %v3739 = vld [vmem:[%s11 + $0x60] sm:$0xff]
        %v3740 = vld [vmem:[%s11 + $0x68] sm:$0xff]
        %v3741 = vld [vmem:[%s11 + $0xa0] sm:$0xff]
        %v3742 = vld [vmem:[%s11 + $0xa8] sm:$0xff]
        %v3743 = vld [vmem:[%s11 + $0xe0] sm:$0xff]
        %v3744 = vld [vmem:[%s11 + $0xe8] sm:$0xff]
        %v3745 = vld [vmem:[%s11 + $0x120] sm:$0xff]
        %v3746 = vld [vmem:[%s11 + $0x128] sm:$0xff]
        %v3747 = vld [vmem:[%s11 + $0x160] sm:$0xff]
        %v3748 = vld [vmem:[%s11 + $0x168] sm:$0xff]
        %v3749 = vld [vmem:[%s11 + $0x1a0] sm:$0xff]
        %v3750 = vld [vmem:[%s11 + $0x1a8] sm:$0xff]
        %v3751 = vld [vmem:[%s11 + $0x1e0] sm:$0xff]
        %v3752 = vld [vmem:[%s11 + $0x1e8] sm:$0xff]
        %v3753 = vld [vmem:[%s11 + $0x220] sm:$0xff]
        %v3754 = vld [vmem:[%s11 + $0x228] sm:$0xff]
        %v3755 = vld [vmem:[%s11 + $0x260] sm:$0xff]
        %v3756 = vld [vmem:[%s11 + $0x268] sm:$0xff]
        %v3757 = vld [vmem:[%s11 + $0x2a0] sm:$0xff]
        %v3758 = vld [vmem:[%s11 + $0x2a8] sm:$0xff]
        %v3759 = vld [vmem:[%s11 + $0x2e0] sm:$0xff]
        %v3760 = vld [vmem:[%s11 + $0x2e8] sm:$0xff]
        %v3761 = vld [vmem:[%s11 + $0x320] sm:$0xff]
        %v3762 = vld [vmem:[%s11 + $0x328] sm:$0xff]
        %v3763 = vld [vmem:[%s11 + $0x360] sm:$0xff]
        %v3764 = vld [vmem:[%s11 + $0x368] sm:$0xff]
        %v3765 = vld [vmem:[%s11 + $0x3a0] sm:$0xff]
        %v3766 = vld [vmem:[%s11 + $0x3a8] sm:$0xff]
        %v3767 = vld [vmem:[%s11 + $0x3e0] sm:$0xff]
        %v3768 = vld [vmem:[%s11 + $0x3e8] sm:$0xff]
        %v3769 = vld [vmem:[#allocation16 + $0x8] sm:$0xf]
        %v3771 = vlaneseq
        %v3772 = vshrl.u32 %v3771, 7
        %v3773 = vsub.s32 0, %v3772
        %v3774 = vrot.slane %v3769, %v3773
        %v3775 = vlaneseq
        %v3776 = vshrl.u32 %v3775, 7
        %v3777 = vsub.s32 1, %v3776
        %v3778 = vrot.slane %v3769, %v3777
        %v3779 = vlaneseq
        %v3780 = vshrl.u32 %v3779, 7
        %v3781 = vsub.s32 2, %v3780
        %v3782 = vrot.slane %v3769, %v3781
        %v3783 = vlaneseq
        %v3784 = vshrl.u32 %v3783, 7
        %v3785 = vsub.s32 3, %v3784
        %v3786 = vrot.slane %v3769, %v3785
        %v3823 = vunpack.c.l.b16 %v3737
        %v3824 = vunpack.c.h.b16 %v3737
        %v3825 = vunpack.c.l.b16 %v3738
        %v3826 = vunpack.c.h.b16 %v3738
        %v3827 = vunpack.c.l.b16 %v3739
        %v3828 = vunpack.c.h.b16 %v3739
        %v3829 = vunpack.c.l.b16 %v3740
        %v3830 = vunpack.c.h.b16 %v3740
        %v3831 = vunpack.c.l.b16 %v3741
        %v3832 = vunpack.c.h.b16 %v3741
        %v3833 = vunpack.c.l.b16 %v3742
        %v3834 = vunpack.c.h.b16 %v3742
        %v3835 = vunpack.c.l.b16 %v3743
        %v3836 = vunpack.c.h.b16 %v3743
        %v3837 = vunpack.c.l.b16 %v3744
        %v3838 = vunpack.c.h.b16 %v3744
        %v3839 = vunpack.c.l.b16 %v3745
        %v3840 = vunpack.c.h.b16 %v3745
        %v3841 = vunpack.c.l.b16 %v3746
        %v3842 = vunpack.c.h.b16 %v3746
        %v3843 = vunpack.c.l.b16 %v3747
        %v3844 = vunpack.c.h.b16 %v3747
        %v3845 = vunpack.c.l.b16 %v3748
        %v3846 = vunpack.c.h.b16 %v3748
        %v3847 = vunpack.c.l.b16 %v3749
        %v3848 = vunpack.c.h.b16 %v3749
        %v3849 = vunpack.c.l.b16 %v3750
        %v3850 = vunpack.c.h.b16 %v3750
        %v3851 = vunpack.c.l.b16 %v3751
        %v3852 = vunpack.c.h.b16 %v3751
        %v3853 = vunpack.c.l.b16 %v3752
        %v3854 = vunpack.c.h.b16 %v3752
        %v3855 = vunpack.c.l.b16 %v3753
        %v3856 = vunpack.c.h.b16 %v3753
        %v3857 = vunpack.c.l.b16 %v3754
        %v3858 = vunpack.c.h.b16 %v3754
        %v3859 = vunpack.c.l.b16 %v3755
        %v3860 = vunpack.c.h.b16 %v3755
        %v3861 = vunpack.c.l.b16 %v3756
        %v3862 = vunpack.c.h.b16 %v3756
        %v3863 = vunpack.c.l.b16 %v3757
        %v3864 = vunpack.c.h.b16 %v3757
        %v3865 = vunpack.c.l.b16 %v3758
        %v3866 = vunpack.c.h.b16 %v3758
        %v3867 = vunpack.c.l.b16 %v3759
        %v3868 = vunpack.c.h.b16 %v3759
        %v3869 = vunpack.c.l.b16 %v3760
        %v3870 = vunpack.c.h.b16 %v3760
        %v3871 = vunpack.c.l.b16 %v3761
        %v3872 = vunpack.c.h.b16 %v3761
        %v3873 = vunpack.c.l.b16 %v3762
        %v3874 = vunpack.c.h.b16 %v3762
        %v3875 = vunpack.c.l.b16 %v3763
        %v3876 = vunpack.c.h.b16 %v3763
        %v3877 = vunpack.c.l.b16 %v3764
        %v3878 = vunpack.c.h.b16 %v3764
        %v3879 = vunpack.c.l.b16 %v3765
        %v3880 = vunpack.c.h.b16 %v3765
        %v3881 = vunpack.c.l.b16 %v3766
        %v3882 = vunpack.c.h.b16 %v3766
        %v3883 = vunpack.c.l.b16 %v3767
        %v3884 = vunpack.c.h.b16 %v3767
        %v3885 = vunpack.c.l.b16 %v3768
        %v3886 = vunpack.c.h.b16 %v3768
        %v3887 = vpack.c.b16 %v3827, %v3823
        %v3888 = vpack.c.b16 %v3828, %v3824
        %v3889 = vpack.c.b16 %v3829, %v3825
        %v3890 = vpack.c.b16 %v3830, %v3826
        %v3891 = vpack.c.b16 %v3835, %v3831
        %v3892 = vpack.c.b16 %v3836, %v3832
        %v3893 = vpack.c.b16 %v3837, %v3833
        %v3894 = vpack.c.b16 %v3838, %v3834
        %v3895 = vpack.c.b16 %v3843, %v3839
        %v3896 = vpack.c.b16 %v3844, %v3840
        %v3897 = vpack.c.b16 %v3845, %v3841
        %v3898 = vpack.c.b16 %v3846, %v3842
        %v3899 = vpack.c.b16 %v3851, %v3847
        %v3900 = vpack.c.b16 %v3852, %v3848
        %v3901 = vpack.c.b16 %v3853, %v3849
        %v3902 = vpack.c.b16 %v3854, %v3850
        %v3903 = vpack.c.b16 %v3859, %v3855
        %v3904 = vpack.c.b16 %v3860, %v3856
        %v3905 = vpack.c.b16 %v3861, %v3857
        %v3906 = vpack.c.b16 %v3862, %v3858
        %v3907 = vpack.c.b16 %v3867, %v3863
        %v3908 = vpack.c.b16 %v3868, %v3864
        %v3909 = vpack.c.b16 %v3869, %v3865
        %v3910 = vpack.c.b16 %v3870, %v3866
        %v3911 = vpack.c.b16 %v3875, %v3871
        %v3912 = vpack.c.b16 %v3876, %v3872
        %v3913 = vpack.c.b16 %v3877, %v3873
        %v3914 = vpack.c.b16 %v3878, %v3874
        %v3915 = vpack.c.b16 %v3883, %v3879
        %v3916 = vpack.c.b16 %v3884, %v3880
        %v3917 = vpack.c.b16 %v3885, %v3881
        %v3918 = vpack.c.b16 %v3886, %v3882
        %3951 = vmatprep.subr.bf16.mxu0 %v3888
        %3952 = vmatpush1.bf16.msra.mxu0 %v3887
        %3953 = vmatprep.subr.bf16.mxu0 %v3892
        %3954 = vmatpush1.bf16.msra.mxu0 %v3891
        %3955 = vmatprep.subr.bf16.mxu0 %v3896
        %3956 = vmatpush1.bf16.msra.mxu0 %v3895
        %3957 = vmatprep.subr.bf16.mxu0 %v3900
        %3958 = vmatpush1.bf16.msra.mxu0 %v3899
        %3959 = vmatprep.subr.bf16.mxu0 %v3904
        %3960 = vmatpush1.bf16.msra.mxu0 %v3903
        %3961 = vmatprep.subr.bf16.mxu0 %v3908
        %3962 = vmatpush1.bf16.msra.mxu0 %v3907
        %3963 = vmatprep.subr.bf16.mxu0 %v3912
        %3964 = vmatpush1.bf16.msra.mxu0 %v3911
        %3965 = vmatprep.subr.bf16.mxu0 %v3916
        %3966 = vmatpush1.bf16.msra.mxu0 %v3915
        %3967 = vmatprep.subr.bf16.mxu0 0
        %3968 = vmatpush1.bf16.msra.mxu0 0
        %3969 = vmatprep.subr.bf16.mxu0 0
        %3970 = vmatpush1.bf16.msra.mxu0 0
        %3971 = vmatprep.subr.bf16.mxu0 0
        %3972 = vmatpush1.bf16.msra.mxu0 0
        %3973 = vmatprep.subr.bf16.mxu0 0
        %3974 = vmatpush1.bf16.msra.mxu0 0
        %3975 = vmatprep.subr.bf16.mxu0 0
        %3976 = vmatpush1.bf16.msra.mxu0 0
        %3977 = vmatprep.subr.bf16.mxu0 0
        %3978 = vmatpush1.bf16.msra.mxu0 0
        %3979 = vmatprep.subr.bf16.mxu0 0
        %3980 = vmatpush1.bf16.msra.mxu0 0
        %3981 = vmatprep.subr.bf16.mxu0 0
        %3982 = vmatpush1.bf16.msra.mxu0 0
        %3983 = vmatprep.mubr.bf16.mxu0 0
        %3984 = vmatmul.mubr.bf16.gmra.mrb[0].mxu0 %v2456
        %v3985 = vpop.f32.mrb[0].mxu0
        %v3986 = vadd.f32 %v3774, %v3985
        %v3987 = vpop.f32.mrb[0].mxu0
        %v3988 = vadd.f32 %v3778, %v3987
        %v3989 = vpop.f32.mrb[0].mxu0
        %v3990 = vpop.f32.mrb[0].mxu0
        %3991 = vdwg.mxu0
        %3992 = vmatprep.subr.bf16.mxu0 %v3890
        %3993 = vmatpush1.bf16.msra.mxu0 %v3889
        %3994 = vmatprep.subr.bf16.mxu0 %v3894
        %3995 = vmatpush1.bf16.msra.mxu0 %v3893
        %3996 = vmatprep.subr.bf16.mxu0 %v3898
        %3997 = vmatpush1.bf16.msra.mxu0 %v3897
        %3998 = vmatprep.subr.bf16.mxu0 %v3902
        %3999 = vmatpush1.bf16.msra.mxu0 %v3901
        %4000 = vmatprep.subr.bf16.mxu0 %v3906
        %4001 = vmatpush1.bf16.msra.mxu0 %v3905
        %4002 = vmatprep.subr.bf16.mxu0 %v3910
        %4003 = vmatpush1.bf16.msra.mxu0 %v3909
        %4004 = vmatprep.subr.bf16.mxu0 %v3914
        %4005 = vmatpush1.bf16.msra.mxu0 %v3913
        %4006 = vmatprep.subr.bf16.mxu0 %v3918
        %4007 = vmatpush1.bf16.msra.mxu0 %v3917
        %4008 = vmatprep.subr.bf16.mxu0 0
        %4009 = vmatpush1.bf16.msra.mxu0 0
        %4010 = vmatprep.subr.bf16.mxu0 0
        %4011 = vmatpush1.bf16.msra.mxu0 0
        %4012 = vmatprep.subr.bf16.mxu0 0
        %4013 = vmatpush1.bf16.msra.mxu0 0
        %4014 = vmatprep.subr.bf16.mxu0 0
        %4015 = vmatpush1.bf16.msra.mxu0 0
        %4016 = vmatprep.subr.bf16.mxu0 0
        %4017 = vmatpush1.bf16.msra.mxu0 0
        %4018 = vmatprep.subr.bf16.mxu0 0
        %4019 = vmatpush1.bf16.msra.mxu0 0
        %4020 = vmatprep.subr.bf16.mxu0 0
        %4021 = vmatpush1.bf16.msra.mxu0 0
        %4022 = vmatprep.subr.bf16.mxu0 0
        %4023 = vmatpush1.bf16.msra.mxu0 0
        %4024 = vmatprep.mubr.bf16.mxu0 0
        %4025 = vmatmul.mubr.bf16.gmra.mrb[0].mxu0 %v2456
        %v4026 = vpop.f32.mrb[0].mxu0
        %v4027 = vadd.f32 %v3782, %v4026
        %v4028 = vpop.f32.mrb[0].mxu0
        %v4029 = vadd.f32 %v3786, %v4028
        %v4030 = vpop.f32.mrb[0].mxu0
        %v4031 = vpop.f32.mrb[0].mxu0
        %4032 = vdwg.mxu0
        %v4033 = vmax.f32 %v3986, 0.0
        %v4034 = vmax.f32 %v3988, 0.0
        %v4035 = vmax.f32 %v4027, 0.0
        %v4036 = vmax.f32 %v4029, 0.0
        %v4037 = vpack.c.bf16 %v4033, %v4033
        %v4038 = vpack.c.bf16 %v4034, %v4034
        %v4039 = vpack.c.bf16 %v4035, %v4035
        %v4040 = vpack.c.bf16 %v4036, %v4036
        %v4041 = vld [vmem:[#allocation17 + $0x200] sm:$0xf]
        %v4042 = vld [vmem:[#allocation17 + $0x204] sm:$0xf]
        %v4043 = vld [vmem:[#allocation17 + $0x208] sm:$0xf]
        %v4044 = vld [vmem:[#allocation17 + $0x20c] sm:$0xf]
        %v4045 = vld [vmem:[#allocation17 + $0x210] sm:$0xf]
        %v4046 = vld [vmem:[#allocation17 + $0x214] sm:$0xf]
        %v4047 = vld [vmem:[#allocation17 + $0x218] sm:$0xf]
        %v4048 = vld [vmem:[#allocation17 + $0x21c] sm:$0xf]
        %v4049 = vld [vmem:[#allocation17 + $0x220] sm:$0xf]
        %v4050 = vld [vmem:[#allocation17 + $0x224] sm:$0xf]
        %v4051 = vld [vmem:[#allocation17 + $0x228] sm:$0xf]
        %v4052 = vld [vmem:[#allocation17 + $0x22c] sm:$0xf]
        %v4053 = vld [vmem:[#allocation17 + $0x230] sm:$0xf]
        %v4054 = vld [vmem:[#allocation17 + $0x234] sm:$0xf]
        %v4055 = vld [vmem:[#allocation17 + $0x238] sm:$0xf]
        %v4056 = vld [vmem:[#allocation17 + $0x23c] sm:$0xf]
        %v4057 = vld [vmem:[#allocation17 + $0x240] sm:$0xf]
        %v4058 = vld [vmem:[#allocation17 + $0x244] sm:$0xf]
        %v4059 = vld [vmem:[#allocation17 + $0x248] sm:$0xf]
        %v4060 = vld [vmem:[#allocation17 + $0x24c] sm:$0xf]
        %v4061 = vld [vmem:[#allocation17 + $0x250] sm:$0xf]
        %v4062 = vld [vmem:[#allocation17 + $0x254] sm:$0xf]
        %v4063 = vld [vmem:[#allocation17 + $0x258] sm:$0xf]
        %v4064 = vld [vmem:[#allocation17 + $0x25c] sm:$0xf]
        %v4065 = vld [vmem:[#allocation17 + $0x260] sm:$0xf]
        %v4066 = vld [vmem:[#allocation17 + $0x264] sm:$0xf]
        %v4067 = vld [vmem:[#allocation17 + $0x268] sm:$0xf]
        %v4068 = vld [vmem:[#allocation17 + $0x26c] sm:$0xf]
        %v4069 = vld [vmem:[#allocation17 + $0x270] sm:$0xf]
        %v4070 = vld [vmem:[#allocation17 + $0x274] sm:$0xf]
        %v4071 = vld [vmem:[#allocation17 + $0x278] sm:$0xf]
        %v4072 = vld [vmem:[#allocation17 + $0x27c] sm:$0xf]
        %v4073 = vld [vmem:[#allocation17 + $0x280] sm:$0xf]
        %v4074 = vld [vmem:[#allocation17 + $0x284] sm:$0xf]
        %v4075 = vld [vmem:[#allocation17 + $0x288] sm:$0xf]
        %v4076 = vld [vmem:[#allocation17 + $0x28c] sm:$0xf]
        %v4077 = vld [vmem:[#allocation17 + $0x290] sm:$0xf]
        %v4078 = vld [vmem:[#allocation17 + $0x294] sm:$0xf]
        %v4079 = vld [vmem:[#allocation17 + $0x298] sm:$0xf]
        %v4080 = vld [vmem:[#allocation17 + $0x29c] sm:$0xf]
        %v4081 = vld [vmem:[#allocation17 + $0x2a0] sm:$0xf]
        %v4082 = vld [vmem:[#allocation17 + $0x2a4] sm:$0xf]
        %v4083 = vld [vmem:[#allocation17 + $0x2a8] sm:$0xf]
        %v4084 = vld [vmem:[#allocation17 + $0x2ac] sm:$0xf]
        %v4085 = vld [vmem:[#allocation17 + $0x2b0] sm:$0xf]
        %v4086 = vld [vmem:[#allocation17 + $0x2b4] sm:$0xf]
        %v4087 = vld [vmem:[#allocation17 + $0x2b8] sm:$0xf]
        %v4088 = vld [vmem:[#allocation17 + $0x2bc] sm:$0xf]
        %v4089 = vld [vmem:[#allocation17 + $0x2c0] sm:$0xf]
        %v4090 = vld [vmem:[#allocation17 + $0x2c4] sm:$0xf]
        %v4091 = vld [vmem:[#allocation17 + $0x2c8] sm:$0xf]
        %v4092 = vld [vmem:[#allocation17 + $0x2cc] sm:$0xf]
        %v4093 = vld [vmem:[#allocation17 + $0x2d0] sm:$0xf]
        %v4094 = vld [vmem:[#allocation17 + $0x2d4] sm:$0xf]
        %v4095 = vld [vmem:[#allocation17 + $0x2d8] sm:$0xf]
        %v4096 = vld [vmem:[#allocation17 + $0x2dc] sm:$0xf]
        %v4097 = vld [vmem:[#allocation17 + $0x2e0] sm:$0xf]
        %v4098 = vld [vmem:[#allocation17 + $0x2e4] sm:$0xf]
        %v4099 = vld [vmem:[#allocation17 + $0x2e8] sm:$0xf]
        %v4100 = vld [vmem:[#allocation17 + $0x2ec] sm:$0xf]
        %v4101 = vld [vmem:[#allocation17 + $0x2f0] sm:$0xf]
        %v4102 = vld [vmem:[#allocation17 + $0x2f4] sm:$0xf]
        %v4103 = vld [vmem:[#allocation17 + $0x2f8] sm:$0xf]
        %v4104 = vld [vmem:[#allocation17 + $0x2fc] sm:$0xf]
        %v4169 = vunpack.c.l.b16 %v4041
        %v4170 = vunpack.c.l.b16 %v4042
        %v4171 = vunpack.c.l.b16 %v4043
        %v4172 = vunpack.c.l.b16 %v4044
        %v4173 = vunpack.c.l.b16 %v4045
        %v4174 = vunpack.c.l.b16 %v4046
        %v4175 = vunpack.c.l.b16 %v4047
        %v4176 = vunpack.c.l.b16 %v4048
        %v4177 = vunpack.c.l.b16 %v4049
        %v4178 = vunpack.c.l.b16 %v4050
        %v4179 = vunpack.c.l.b16 %v4051
        %v4180 = vunpack.c.l.b16 %v4052
        %v4181 = vunpack.c.l.b16 %v4053
        %v4182 = vunpack.c.l.b16 %v4054
        %v4183 = vunpack.c.l.b16 %v4055
        %v4184 = vunpack.c.l.b16 %v4056
        %v4185 = vunpack.c.l.b16 %v4057
        %v4186 = vunpack.c.l.b16 %v4058
        %v4187 = vunpack.c.l.b16 %v4059
        %v4188 = vunpack.c.l.b16 %v4060
        %v4189 = vunpack.c.l.b16 %v4061
        %v4190 = vunpack.c.l.b16 %v4062
        %v4191 = vunpack.c.l.b16 %v4063
        %v4192 = vunpack.c.l.b16 %v4064
        %v4193 = vunpack.c.l.b16 %v4065
        %v4194 = vunpack.c.l.b16 %v4066
        %v4195 = vunpack.c.l.b16 %v4067
        %v4196 = vunpack.c.l.b16 %v4068
        %v4197 = vunpack.c.l.b16 %v4069
        %v4198 = vunpack.c.l.b16 %v4070
        %v4199 = vunpack.c.l.b16 %v4071
        %v4200 = vunpack.c.l.b16 %v4072
        %v4201 = vunpack.c.l.b16 %v4073
        %v4202 = vunpack.c.l.b16 %v4074
        %v4203 = vunpack.c.l.b16 %v4075
        %v4204 = vunpack.c.l.b16 %v4076
        %v4205 = vunpack.c.l.b16 %v4077
        %v4206 = vunpack.c.l.b16 %v4078
        %v4207 = vunpack.c.l.b16 %v4079
        %v4208 = vunpack.c.l.b16 %v4080
        %v4209 = vunpack.c.l.b16 %v4081
        %v4210 = vunpack.c.l.b16 %v4082
        %v4211 = vunpack.c.l.b16 %v4083
        %v4212 = vunpack.c.l.b16 %v4084
        %v4213 = vunpack.c.l.b16 %v4085
        %v4214 = vunpack.c.l.b16 %v4086
        %v4215 = vunpack.c.l.b16 %v4087
        %v4216 = vunpack.c.l.b16 %v4088
        %v4217 = vunpack.c.l.b16 %v4089
        %v4218 = vunpack.c.l.b16 %v4090
        %v4219 = vunpack.c.l.b16 %v4091
        %v4220 = vunpack.c.l.b16 %v4092
        %v4221 = vunpack.c.l.b16 %v4093
        %v4222 = vunpack.c.l.b16 %v4094
        %v4223 = vunpack.c.l.b16 %v4095
        %v4224 = vunpack.c.l.b16 %v4096
        %v4225 = vunpack.c.l.b16 %v4097
        %v4226 = vunpack.c.l.b16 %v4098
        %v4227 = vunpack.c.l.b16 %v4099
        %v4228 = vunpack.c.l.b16 %v4100
        %v4229 = vunpack.c.l.b16 %v4101
        %v4230 = vunpack.c.l.b16 %v4102
        %v4231 = vunpack.c.l.b16 %v4103
        %v4232 = vunpack.c.l.b16 %v4104
        %v4233 = vpack.c.b16 %v4170, %v4169
        %v4234 = vpack.c.b16 %v4172, %v4171
        %v4235 = vpack.c.b16 %v4174, %v4173
        %v4236 = vpack.c.b16 %v4176, %v4175
        %v4237 = vpack.c.b16 %v4178, %v4177
        %v4238 = vpack.c.b16 %v4180, %v4179
        %v4239 = vpack.c.b16 %v4182, %v4181
        %v4240 = vpack.c.b16 %v4184, %v4183
        %v4241 = vpack.c.b16 %v4186, %v4185
        %v4242 = vpack.c.b16 %v4188, %v4187
        %v4243 = vpack.c.b16 %v4190, %v4189
        %v4244 = vpack.c.b16 %v4192, %v4191
        %v4245 = vpack.c.b16 %v4194, %v4193
        %v4246 = vpack.c.b16 %v4196, %v4195
        %v4247 = vpack.c.b16 %v4198, %v4197
        %v4248 = vpack.c.b16 %v4200, %v4199
        %v4249 = vpack.c.b16 %v4202, %v4201
        %v4250 = vpack.c.b16 %v4204, %v4203
        %v4251 = vpack.c.b16 %v4206, %v4205
        %v4252 = vpack.c.b16 %v4208, %v4207
        %v4253 = vpack.c.b16 %v4210, %v4209
        %v4254 = vpack.c.b16 %v4212, %v4211
        %v4255 = vpack.c.b16 %v4214, %v4213
        %v4256 = vpack.c.b16 %v4216, %v4215
        %v4257 = vpack.c.b16 %v4218, %v4217
        %v4258 = vpack.c.b16 %v4220, %v4219
        %v4259 = vpack.c.b16 %v4222, %v4221
        %v4260 = vpack.c.b16 %v4224, %v4223
        %v4261 = vpack.c.b16 %v4226, %v4225
        %v4262 = vpack.c.b16 %v4228, %v4227
        %v4263 = vpack.c.b16 %v4230, %v4229
        %v4264 = vpack.c.b16 %v4232, %v4231
        %4297 = vmatprep.subr.bf16.mxu0 0
        %4298 = vmatpush1.bf16.msra.mxu0 %v4233
        %4299 = vmatprep.subr.bf16.mxu0 0
        %4300 = vmatpush1.bf16.msra.mxu0 %v4234
        %4301 = vmatprep.subr.bf16.mxu0 0
        %4302 = vmatpush1.bf16.msra.mxu0 %v4235
        %4303 = vmatprep.subr.bf16.mxu0 0
        %4304 = vmatpush1.bf16.msra.mxu0 %v4236
        %4305 = vmatprep.subr.bf16.mxu0 0
        %4306 = vmatpush1.bf16.msra.mxu0 %v4237
        %4307 = vmatprep.subr.bf16.mxu0 0
        %4308 = vmatpush1.bf16.msra.mxu0 %v4238
        %4309 = vmatprep.subr.bf16.mxu0 0
        %4310 = vmatpush1.bf16.msra.mxu0 %v4239
        %4311 = vmatprep.subr.bf16.mxu0 0
        %4312 = vmatpush1.bf16.msra.mxu0 %v4240
        %4313 = vmatprep.subr.bf16.mxu0 0
        %4314 = vmatpush1.bf16.msra.mxu0 %v4241
        %4315 = vmatprep.subr.bf16.mxu0 0
        %4316 = vmatpush1.bf16.msra.mxu0 %v4242
        %4317 = vmatprep.subr.bf16.mxu0 0
        %4318 = vmatpush1.bf16.msra.mxu0 %v4243
        %4319 = vmatprep.subr.bf16.mxu0 0
        %4320 = vmatpush1.bf16.msra.mxu0 %v4244
        %4321 = vmatprep.subr.bf16.mxu0 0
        %4322 = vmatpush1.bf16.msra.mxu0 %v4245
        %4323 = vmatprep.subr.bf16.mxu0 0
        %4324 = vmatpush1.bf16.msra.mxu0 %v4246
        %4325 = vmatprep.subr.bf16.mxu0 0
        %4326 = vmatpush1.bf16.msra.mxu0 %v4247
        %4327 = vmatprep.subr.bf16.mxu0 0
        %4328 = vmatpush1.bf16.msra.mxu0 %v4248
        %4329 = vmatprep.mubr.bf16.mxu0 %v4038
        %4330 = vmatmul.mubr.bf16.gmra.mrb[0].mxu0 %v4037
        %v4331 = vpop.f32.mrb[0].mxu0
        %v4332 = vadd.f32 0.0, %v4331
        %v4333 = vpop.f32.mrb[0].mxu0
        %v4334 = vpop.f32.mrb[0].mxu0
        %v4335 = vpop.f32.mrb[0].mxu0
        %4336 = vdwg.mxu0
        %4337 = vmatprep.subr.bf16.mxu0 0
        %4338 = vmatpush1.bf16.msra.mxu0 %v4249
        %4339 = vmatprep.subr.bf16.mxu0 0
        %4340 = vmatpush1.bf16.msra.mxu0 %v4250
        %4341 = vmatprep.subr.bf16.mxu0 0
        %4342 = vmatpush1.bf16.msra.mxu0 %v4251
        %4343 = vmatprep.subr.bf16.mxu0 0
        %4344 = vmatpush1.bf16.msra.mxu0 %v4252
        %4345 = vmatprep.subr.bf16.mxu0 0
        %4346 = vmatpush1.bf16.msra.mxu0 %v4253
        %4347 = vmatprep.subr.bf16.mxu0 0
        %4348 = vmatpush1.bf16.msra.mxu0 %v4254
        %4349 = vmatprep.subr.bf16.mxu0 0
        %4350 = vmatpush1.bf16.msra.mxu0 %v4255
        %4351 = vmatprep.subr.bf16.mxu0 0
        %4352 = vmatpush1.bf16.msra.mxu0 %v4256
        %4353 = vmatprep.subr.bf16.mxu0 0
        %4354 = vmatpush1.bf16.msra.mxu0 %v4257
        %4355 = vmatprep.subr.bf16.mxu0 0
        %4356 = vmatpush1.bf16.msra.mxu0 %v4258
        %4357 = vmatprep.subr.bf16.mxu0 0
        %4358 = vmatpush1.bf16.msra.mxu0 %v4259
        %4359 = vmatprep.subr.bf16.mxu0 0
        %4360 = vmatpush1.bf16.msra.mxu0 %v4260
        %4361 = vmatprep.subr.bf16.mxu0 0
        %4362 = vmatpush1.bf16.msra.mxu0 %v4261
        %4363 = vmatprep.subr.bf16.mxu0 0
        %4364 = vmatpush1.bf16.msra.mxu0 %v4262
        %4365 = vmatprep.subr.bf16.mxu0 0
        %4366 = vmatpush1.bf16.msra.mxu0 %v4263
        %4367 = vmatprep.subr.bf16.mxu0 0
        %4368 = vmatpush1.bf16.msra.mxu0 %v4264
        %4369 = vmatprep.mubr.bf16.mxu0 %v4040
        %4370 = vmatmul.mubr.bf16.gmra.mrb[0].mxu0 %v4039
        %v4371 = vpop.f32.mrb[0].mxu0
        %v4372 = vadd.f32 %v4332, %v4371
        %v4373 = vpop.f32.mrb[0].mxu0
        %v4374 = vpop.f32.mrb[0].mxu0
        %v4375 = vpop.f32.mrb[0].mxu0
        %4376 = vdwg.mxu0
        %v4377 = vadd.f32 %v3732, %v4372
        %v4378 = vld [vmem:[%s11 + $0x30] sm:$0xff]
        %v4379 = vld [vmem:[%s11 + $0x38] sm:$0xff]
        %v4380 = vld [vmem:[%s11 + $0x70] sm:$0xff]
        %v4381 = vld [vmem:[%s11 + $0x78] sm:$0xff]
        %v4382 = vld [vmem:[%s11 + $0xb0] sm:$0xff]
        %v4383 = vld [vmem:[%s11 + $0xb8] sm:$0xff]
        %v4384 = vld [vmem:[%s11 + $0xf0] sm:$0xff]
        %v4385 = vld [vmem:[%s11 + $0xf8] sm:$0xff]
        %v4386 = vld [vmem:[%s11 + $0x130] sm:$0xff]
        %v4387 = vld [vmem:[%s11 + $0x138] sm:$0xff]
        %v4388 = vld [vmem:[%s11 + $0x170] sm:$0xff]
        %v4389 = vld [vmem:[%s11 + $0x178] sm:$0xff]
        %v4390 = vld [vmem:[%s11 + $0x1b0] sm:$0xff]
        %v4391 = vld [vmem:[%s11 + $0x1b8] sm:$0xff]
        %v4392 = vld [vmem:[%s11 + $0x1f0] sm:$0xff]
        %v4393 = vld [vmem:[%s11 + $0x1f8] sm:$0xff]
        %v4394 = vld [vmem:[%s11 + $0x230] sm:$0xff]
        %v4395 = vld [vmem:[%s11 + $0x238] sm:$0xff]
        %v4396 = vld [vmem:[%s11 + $0x270] sm:$0xff]
        %v4397 = vld [vmem:[%s11 + $0x278] sm:$0xff]
        %v4398 = vld [vmem:[%s11 + $0x2b0] sm:$0xff]
        %v4399 = vld [vmem:[%s11 + $0x2b8] sm:$0xff]
        %v4400 = vld [vmem:[%s11 + $0x2f0] sm:$0xff]
        %v4401 = vld [vmem:[%s11 + $0x2f8] sm:$0xff]
        %v4402 = vld [vmem:[%s11 + $0x330] sm:$0xff]
        %v4403 = vld [vmem:[%s11 + $0x338] sm:$0xff]
        %v4404 = vld [vmem:[%s11 + $0x370] sm:$0xff]
        %v4405 = vld [vmem:[%s11 + $0x378] sm:$0xff]
        %v4406 = vld [vmem:[%s11 + $0x3b0] sm:$0xff]
        %v4407 = vld [vmem:[%s11 + $0x3b8] sm:$0xff]
        %v4408 = vld [vmem:[%s11 + $0x3f0] sm:$0xff]
        %v4409 = vld [vmem:[%s11 + $0x3f8] sm:$0xff]
        %v4410 = vld [vmem:[#allocation16 + $0xc] sm:$0xf]
        %v4412 = vlaneseq
        %v4413 = vshrl.u32 %v4412, 7
        %v4414 = vsub.s32 0, %v4413
        %v4415 = vrot.slane %v4410, %v4414
        %v4416 = vlaneseq
        %v4417 = vshrl.u32 %v4416, 7
        %v4418 = vsub.s32 1, %v4417
        %v4419 = vrot.slane %v4410, %v4418
        %v4420 = vlaneseq
        %v4421 = vshrl.u32 %v4420, 7
        %v4422 = vsub.s32 2, %v4421
        %v4423 = vrot.slane %v4410, %v4422
        %v4424 = vlaneseq
        %v4425 = vshrl.u32 %v4424, 7
        %v4426 = vsub.s32 3, %v4425
        %v4427 = vrot.slane %v4410, %v4426
        %v4464 = vunpack.c.l.b16 %v4378
        %v4465 = vunpack.c.h.b16 %v4378
        %v4466 = vunpack.c.l.b16 %v4379
        %v4467 = vunpack.c.h.b16 %v4379
        %v4468 = vunpack.c.l.b16 %v4380
        %v4469 = vunpack.c.h.b16 %v4380
        %v4470 = vunpack.c.l.b16 %v4381
        %v4471 = vunpack.c.h.b16 %v4381
        %v4472 = vunpack.c.l.b16 %v4382
        %v4473 = vunpack.c.h.b16 %v4382
        %v4474 = vunpack.c.l.b16 %v4383
        %v4475 = vunpack.c.h.b16 %v4383
        %v4476 = vunpack.c.l.b16 %v4384
        %v4477 = vunpack.c.h.b16 %v4384
        %v4478 = vunpack.c.l.b16 %v4385
        %v4479 = vunpack.c.h.b16 %v4385
        %v4480 = vunpack.c.l.b16 %v4386
        %v4481 = vunpack.c.h.b16 %v4386
        %v4482 = vunpack.c.l.b16 %v4387
        %v4483 = vunpack.c.h.b16 %v4387
        %v4484 = vunpack.c.l.b16 %v4388
        %v4485 = vunpack.c.h.b16 %v4388
        %v4486 = vunpack.c.l.b16 %v4389
        %v4487 = vunpack.c.h.b16 %v4389
        %v4488 = vunpack.c.l.b16 %v4390
        %v4489 = vunpack.c.h.b16 %v4390
        %v4490 = vunpack.c.l.b16 %v4391
        %v4491 = vunpack.c.h.b16 %v4391
        %v4492 = vunpack.c.l.b16 %v4392
        %v4493 = vunpack.c.h.b16 %v4392
        %v4494 = vunpack.c.l.b16 %v4393
        %v4495 = vunpack.c.h.b16 %v4393
        %v4496 = vunpack.c.l.b16 %v4394
        %v4497 = vunpack.c.h.b16 %v4394
        %v4498 = vunpack.c.l.b16 %v4395
        %v4499 = vunpack.c.h.b16 %v4395
        %v4500 = vunpack.c.l.b16 %v4396
        %v4501 = vunpack.c.h.b16 %v4396
        %v4502 = vunpack.c.l.b16 %v4397
        %v4503 = vunpack.c.h.b16 %v4397
        %v4504 = vunpack.c.l.b16 %v4398
        %v4505 = vunpack.c.h.b16 %v4398
        %v4506 = vunpack.c.l.b16 %v4399
        %v4507 = vunpack.c.h.b16 %v4399
        %v4508 = vunpack.c.l.b16 %v4400
        %v4509 = vunpack.c.h.b16 %v4400
        %v4510 = vunpack.c.l.b16 %v4401
        %v4511 = vunpack.c.h.b16 %v4401
        %v4512 = vunpack.c.l.b16 %v4402
        %v4513 = vunpack.c.h.b16 %v4402
        %v4514 = vunpack.c.l.b16 %v4403
        %v4515 = vunpack.c.h.b16 %v4403
        %v4516 = vunpack.c.l.b16 %v4404
        %v4517 = vunpack.c.h.b16 %v4404
        %v4518 = vunpack.c.l.b16 %v4405
        %v4519 = vunpack.c.h.b16 %v4405
        %v4520 = vunpack.c.l.b16 %v4406
        %v4521 = vunpack.c.h.b16 %v4406
        %v4522 = vunpack.c.l.b16 %v4407
        %v4523 = vunpack.c.h.b16 %v4407
        %v4524 = vunpack.c.l.b16 %v4408
        %v4525 = vunpack.c.h.b16 %v4408
        %v4526 = vunpack.c.l.b16 %v4409
        %v4527 = vunpack.c.h.b16 %v4409
        %v4528 = vpack.c.b16 %v4468, %v4464
        %v4529 = vpack.c.b16 %v4469, %v4465
        %v4530 = vpack.c.b16 %v4470, %v4466
        %v4531 = vpack.c.b16 %v4471, %v4467
        %v4532 = vpack.c.b16 %v4476, %v4472
        %v4533 = vpack.c.b16 %v4477, %v4473
        %v4534 = vpack.c.b16 %v4478, %v4474
        %v4535 = vpack.c.b16 %v4479, %v4475
        %v4536 = vpack.c.b16 %v4484, %v4480
        %v4537 = vpack.c.b16 %v4485, %v4481
        %v4538 = vpack.c.b16 %v4486, %v4482
        %v4539 = vpack.c.b16 %v4487, %v4483
        %v4540 = vpack.c.b16 %v4492, %v4488
        %v4541 = vpack.c.b16 %v4493, %v4489
        %v4542 = vpack.c.b16 %v4494, %v4490
        %v4543 = vpack.c.b16 %v4495, %v4491
        %v4544 = vpack.c.b16 %v4500, %v4496
        %v4545 = vpack.c.b16 %v4501, %v4497
        %v4546 = vpack.c.b16 %v4502, %v4498
        %v4547 = vpack.c.b16 %v4503, %v4499
        %v4548 = vpack.c.b16 %v4508, %v4504
        %v4549 = vpack.c.b16 %v4509, %v4505
        %v4550 = vpack.c.b16 %v4510, %v4506
        %v4551 = vpack.c.b16 %v4511, %v4507
        %v4552 = vpack.c.b16 %v4516, %v4512
        %v4553 = vpack.c.b16 %v4517, %v4513
        %v4554 = vpack.c.b16 %v4518, %v4514
        %v4555 = vpack.c.b16 %v4519, %v4515
        %v4556 = vpack.c.b16 %v4524, %v4520
        %v4557 = vpack.c.b16 %v4525, %v4521
        %v4558 = vpack.c.b16 %v4526, %v4522
        %v4559 = vpack.c.b16 %v4527, %v4523
        %4592 = vmatprep.subr.bf16.mxu0 %v4529
        %4593 = vmatpush1.bf16.msra.mxu0 %v4528
        %4594 = vmatprep.subr.bf16.mxu0 %v4533
        %4595 = vmatpush1.bf16.msra.mxu0 %v4532
        %4596 = vmatprep.subr.bf16.mxu0 %v4537
        %4597 = vmatpush1.bf16.msra.mxu0 %v4536
        %4598 = vmatprep.subr.bf16.mxu0 %v4541
        %4599 = vmatpush1.bf16.msra.mxu0 %v4540
        %4600 = vmatprep.subr.bf16.mxu0 %v4545
        %4601 = vmatpush1.bf16.msra.mxu0 %v4544
        %4602 = vmatprep.subr.bf16.mxu0 %v4549
        %4603 = vmatpush1.bf16.msra.mxu0 %v4548
        %4604 = vmatprep.subr.bf16.mxu0 %v4553
        %4605 = vmatpush1.bf16.msra.mxu0 %v4552
        %4606 = vmatprep.subr.bf16.mxu0 %v4557
        %4607 = vmatpush1.bf16.msra.mxu0 %v4556
        %4608 = vmatprep.subr.bf16.mxu0 0
        %4609 = vmatpush1.bf16.msra.mxu0 0
        %4610 = vmatprep.subr.bf16.mxu0 0
        %4611 = vmatpush1.bf16.msra.mxu0 0
        %4612 = vmatprep.subr.bf16.mxu0 0
        %4613 = vmatpush1.bf16.msra.mxu0 0
        %4614 = vmatprep.subr.bf16.mxu0 0
        %4615 = vmatpush1.bf16.msra.mxu0 0
        %4616 = vmatprep.subr.bf16.mxu0 0
        %4617 = vmatpush1.bf16.msra.mxu0 0
        %4618 = vmatprep.subr.bf16.mxu0 0
        %4619 = vmatpush1.bf16.msra.mxu0 0
        %4620 = vmatprep.subr.bf16.mxu0 0
        %4621 = vmatpush1.bf16.msra.mxu0 0
        %4622 = vmatprep.subr.bf16.mxu0 0
        %4623 = vmatpush1.bf16.msra.mxu0 0
        %4624 = vmatprep.mubr.bf16.mxu0 0
        %4625 = vmatmul.mubr.bf16.gmra.mrb[0].mxu0 %v2456
        %v4626 = vpop.f32.mrb[0].mxu0
        %v4627 = vadd.f32 %v4415, %v4626
        %v4628 = vpop.f32.mrb[0].mxu0
        %v4629 = vadd.f32 %v4419, %v4628
        %v4630 = vpop.f32.mrb[0].mxu0
        %v4631 = vpop.f32.mrb[0].mxu0
        %4632 = vdwg.mxu0
        %4633 = vmatprep.subr.bf16.mxu0 %v4531
        %4634 = vmatpush1.bf16.msra.mxu0 %v4530
        %4635 = vmatprep.subr.bf16.mxu0 %v4535
        %4636 = vmatpush1.bf16.msra.mxu0 %v4534
        %4637 = vmatprep.subr.bf16.mxu0 %v4539
        %4638 = vmatpush1.bf16.msra.mxu0 %v4538
        %4639 = vmatprep.subr.bf16.mxu0 %v4543
        %4640 = vmatpush1.bf16.msra.mxu0 %v4542
        %4641 = vmatprep.subr.bf16.mxu0 %v4547
        %4642 = vmatpush1.bf16.msra.mxu0 %v4546
        %4643 = vmatprep.subr.bf16.mxu0 %v4551
        %4644 = vmatpush1.bf16.msra.mxu0 %v4550
        %4645 = vmatprep.subr.bf16.mxu0 %v4555
        %4646 = vmatpush1.bf16.msra.mxu0 %v4554
        %4647 = vmatprep.subr.bf16.mxu0 %v4559
        %4648 = vmatpush1.bf16.msra.mxu0 %v4558
        %4649 = vmatprep.subr.bf16.mxu0 0
        %4650 = vmatpush1.bf16.msra.mxu0 0
        %4651 = vmatprep.subr.bf16.mxu0 0
        %4652 = vmatpush1.bf16.msra.mxu0 0
        %4653 = vmatprep.subr.bf16.mxu0 0
        %4654 = vmatpush1.bf16.msra.mxu0 0
        %4655 = vmatprep.subr.bf16.mxu0 0
        %4656 = vmatpush1.bf16.msra.mxu0 0
        %4657 = vmatprep.subr.bf16.mxu0 0
        %4658 = vmatpush1.bf16.msra.mxu0 0
        %4659 = vmatprep.subr.bf16.mxu0 0
        %4660 = vmatpush1.bf16.msra.mxu0 0
        %4661 = vmatprep.subr.bf16.mxu0 0
        %4662 = vmatpush1.bf16.msra.mxu0 0
        %4663 = vmatprep.subr.bf16.mxu0 0
        %4664 = vmatpush1.bf16.msra.mxu0 0
        %4665 = vmatprep.mubr.bf16.mxu0 0
        %4666 = vmatmul.mubr.bf16.gmra.mrb[0].mxu0 %v2456
        %v4667 = vpop.f32.mrb[0].mxu0
        %v4668 = vadd.f32 %v4423, %v4667
        %v4669 = vpop.f32.mrb[0].mxu0
        %v4670 = vadd.f32 %v4427, %v4669
        %v4671 = vpop.f32.mrb[0].mxu0
        %v4672 = vpop.f32.mrb[0].mxu0
        %4673 = vdwg.mxu0
        %v4674 = vmax.f32 %v4627, 0.0
        %v4675 = vmax.f32 %v4629, 0.0
        %v4676 = vmax.f32 %v4668, 0.0
        %v4677 = vmax.f32 %v4670, 0.0
        %v4678 = vpack.c.bf16 %v4674, %v4674
        %v4679 = vpack.c.bf16 %v4675, %v4675
        %v4680 = vpack.c.bf16 %v4676, %v4676
        %v4681 = vpack.c.bf16 %v4677, %v4677
        %v4682 = vld [vmem:[#allocation17 + $0x300] sm:$0xf]
        %v4683 = vld [vmem:[#allocation17 + $0x304] sm:$0xf]
        %v4684 = vld [vmem:[#allocation17 + $0x308] sm:$0xf]
        %v4685 = vld [vmem:[#allocation17 + $0x30c] sm:$0xf]
        %v4686 = vld [vmem:[#allocation17 + $0x310] sm:$0xf]
        %v4687 = vld [vmem:[#allocation17 + $0x314] sm:$0xf]
        %v4688 = vld [vmem:[#allocation17 + $0x318] sm:$0xf]
        %v4689 = vld [vmem:[#allocation17 + $0x31c] sm:$0xf]
        %v4690 = vld [vmem:[#allocation17 + $0x320] sm:$0xf]
        %v4691 = vld [vmem:[#allocation17 + $0x324] sm:$0xf]
        %v4692 = vld [vmem:[#allocation17 + $0x328] sm:$0xf]
        %v4693 = vld [vmem:[#allocation17 + $0x32c] sm:$0xf]
        %v4694 = vld [vmem:[#allocation17 + $0x330] sm:$0xf]
        %v4695 = vld [vmem:[#allocation17 + $0x334] sm:$0xf]
        %v4696 = vld [vmem:[#allocation17 + $0x338] sm:$0xf]
        %v4697 = vld [vmem:[#allocation17 + $0x33c] sm:$0xf]
        %v4698 = vld [vmem:[#allocation17 + $0x340] sm:$0xf]
        %v4699 = vld [vmem:[#allocation17 + $0x344] sm:$0xf]
        %v4700 = vld [vmem:[#allocation17 + $0x348] sm:$0xf]
        %v4701 = vld [vmem:[#allocation17 + $0x34c] sm:$0xf]
        %v4702 = vld [vmem:[#allocation17 + $0x350] sm:$0xf]
        %v4703 = vld [vmem:[#allocation17 + $0x354] sm:$0xf]
        %v4704 = vld [vmem:[#allocation17 + $0x358] sm:$0xf]
        %v4705 = vld [vmem:[#allocation17 + $0x35c] sm:$0xf]
        %v4706 = vld [vmem:[#allocation17 + $0x360] sm:$0xf]
        %v4707 = vld [vmem:[#allocation17 + $0x364] sm:$0xf]
        %v4708 = vld [vmem:[#allocation17 + $0x368] sm:$0xf]
        %v4709 = vld [vmem:[#allocation17 + $0x36c] sm:$0xf]
        %v4710 = vld [vmem:[#allocation17 + $0x370] sm:$0xf]
        %v4711 = vld [vmem:[#allocation17 + $0x374] sm:$0xf]
        %v4712 = vld [vmem:[#allocation17 + $0x378] sm:$0xf]
        %v4713 = vld [vmem:[#allocation17 + $0x37c] sm:$0xf]
        %v4714 = vld [vmem:[#allocation17 + $0x380] sm:$0xf]
        %v4715 = vld [vmem:[#allocation17 + $0x384] sm:$0xf]
        %v4716 = vld [vmem:[#allocation17 + $0x388] sm:$0xf]
        %v4717 = vld [vmem:[#allocation17 + $0x38c] sm:$0xf]
        %v4718 = vld [vmem:[#allocation17 + $0x390] sm:$0xf]
        %v4719 = vld [vmem:[#allocation17 + $0x394] sm:$0xf]
        %v4720 = vld [vmem:[#allocation17 + $0x398] sm:$0xf]
        %v4721 = vld [vmem:[#allocation17 + $0x39c] sm:$0xf]
        %v4722 = vld [vmem:[#allocation17 + $0x3a0] sm:$0xf]
        %v4723 = vld [vmem:[#allocation17 + $0x3a4] sm:$0xf]
        %v4724 = vld [vmem:[#allocation17 + $0x3a8] sm:$0xf]
        %v4725 = vld [vmem:[#allocation17 + $0x3ac] sm:$0xf]
        %v4726 = vld [vmem:[#allocation17 + $0x3b0] sm:$0xf]
        %v4727 = vld [vmem:[#allocation17 + $0x3b4] sm:$0xf]
        %v4728 = vld [vmem:[#allocation17 + $0x3b8] sm:$0xf]
        %v4729 = vld [vmem:[#allocation17 + $0x3bc] sm:$0xf]
        %v4730 = vld [vmem:[#allocation17 + $0x3c0] sm:$0xf]
        %v4731 = vld [vmem:[#allocation17 + $0x3c4] sm:$0xf]
        %v4732 = vld [vmem:[#allocation17 + $0x3c8] sm:$0xf]
        %v4733 = vld [vmem:[#allocation17 + $0x3cc] sm:$0xf]
        %v4734 = vld [vmem:[#allocation17 + $0x3d0] sm:$0xf]
        %v4735 = vld [vmem:[#allocation17 + $0x3d4] sm:$0xf]
        %v4736 = vld [vmem:[#allocation17 + $0x3d8] sm:$0xf]
        %v4737 = vld [vmem:[#allocation17 + $0x3dc] sm:$0xf]
        %v4738 = vld [vmem:[#allocation17 + $0x3e0] sm:$0xf]
        %v4739 = vld [vmem:[#allocation17 + $0x3e4] sm:$0xf]
        %v4740 = vld [vmem:[#allocation17 + $0x3e8] sm:$0xf]
        %v4741 = vld [vmem:[#allocation17 + $0x3ec] sm:$0xf]
        %v4742 = vld [vmem:[#allocation17 + $0x3f0] sm:$0xf]
        %v4743 = vld [vmem:[#allocation17 + $0x3f4] sm:$0xf]
        %v4744 = vld [vmem:[#allocation17 + $0x3f8] sm:$0xf]
        %v4745 = vld [vmem:[#allocation17 + $0x3fc] sm:$0xf]
        %v4810 = vunpack.c.l.b16 %v4682
        %v4811 = vunpack.c.l.b16 %v4683
        %v4812 = vunpack.c.l.b16 %v4684
        %v4813 = vunpack.c.l.b16 %v4685
        %v4814 = vunpack.c.l.b16 %v4686
        %v4815 = vunpack.c.l.b16 %v4687
        %v4816 = vunpack.c.l.b16 %v4688
        %v4817 = vunpack.c.l.b16 %v4689
        %v4818 = vunpack.c.l.b16 %v4690
        %v4819 = vunpack.c.l.b16 %v4691
        %v4820 = vunpack.c.l.b16 %v4692
        %v4821 = vunpack.c.l.b16 %v4693
        %v4822 = vunpack.c.l.b16 %v4694
        %v4823 = vunpack.c.l.b16 %v4695
        %v4824 = vunpack.c.l.b16 %v4696
        %v4825 = vunpack.c.l.b16 %v4697
        %v4826 = vunpack.c.l.b16 %v4698
        %v4827 = vunpack.c.l.b16 %v4699
        %v4828 = vunpack.c.l.b16 %v4700
        %v4829 = vunpack.c.l.b16 %v4701
        %v4830 = vunpack.c.l.b16 %v4702
        %v4831 = vunpack.c.l.b16 %v4703
        %v4832 = vunpack.c.l.b16 %v4704
        %v4833 = vunpack.c.l.b16 %v4705
        %v4834 = vunpack.c.l.b16 %v4706
        %v4835 = vunpack.c.l.b16 %v4707
        %v4836 = vunpack.c.l.b16 %v4708
        %v4837 = vunpack.c.l.b16 %v4709
        %v4838 = vunpack.c.l.b16 %v4710
        %v4839 = vunpack.c.l.b16 %v4711
        %v4840 = vunpack.c.l.b16 %v4712
        %v4841 = vunpack.c.l.b16 %v4713
        %v4842 = vunpack.c.l.b16 %v4714
        %v4843 = vunpack.c.l.b16 %v4715
        %v4844 = vunpack.c.l.b16 %v4716
        %v4845 = vunpack.c.l.b16 %v4717
        %v4846 = vunpack.c.l.b16 %v4718
        %v4847 = vunpack.c.l.b16 %v4719
        %v4848 = vunpack.c.l.b16 %v4720
        %v4849 = vunpack.c.l.b16 %v4721
        %v4850 = vunpack.c.l.b16 %v4722
        %v4851 = vunpack.c.l.b16 %v4723
        %v4852 = vunpack.c.l.b16 %v4724
        %v4853 = vunpack.c.l.b16 %v4725
        %v4854 = vunpack.c.l.b16 %v4726
        %v4855 = vunpack.c.l.b16 %v4727
        %v4856 = vunpack.c.l.b16 %v4728
        %v4857 = vunpack.c.l.b16 %v4729
        %v4858 = vunpack.c.l.b16 %v4730
        %v4859 = vunpack.c.l.b16 %v4731
        %v4860 = vunpack.c.l.b16 %v4732
        %v4861 = vunpack.c.l.b16 %v4733
        %v4862 = vunpack.c.l.b16 %v4734
        %v4863 = vunpack.c.l.b16 %v4735
        %v4864 = vunpack.c.l.b16 %v4736
        %v4865 = vunpack.c.l.b16 %v4737
        %v4866 = vunpack.c.l.b16 %v4738
        %v4867 = vunpack.c.l.b16 %v4739
        %v4868 = vunpack.c.l.b16 %v4740
        %v4869 = vunpack.c.l.b16 %v4741
        %v4870 = vunpack.c.l.b16 %v4742
        %v4871 = vunpack.c.l.b16 %v4743
        %v4872 = vunpack.c.l.b16 %v4744
        %v4873 = vunpack.c.l.b16 %v4745
        %v4874 = vpack.c.b16 %v4811, %v4810
        %v4875 = vpack.c.b16 %v4813, %v4812
        %v4876 = vpack.c.b16 %v4815, %v4814
        %v4877 = vpack.c.b16 %v4817, %v4816
        %v4878 = vpack.c.b16 %v4819, %v4818
        %v4879 = vpack.c.b16 %v4821, %v4820
        %v4880 = vpack.c.b16 %v4823, %v4822
        %v4881 = vpack.c.b16 %v4825, %v4824
        %v4882 = vpack.c.b16 %v4827, %v4826
        %v4883 = vpack.c.b16 %v4829, %v4828
        %v4884 = vpack.c.b16 %v4831, %v4830
        %v4885 = vpack.c.b16 %v4833, %v4832
        %v4886 = vpack.c.b16 %v4835, %v4834
        %v4887 = vpack.c.b16 %v4837, %v4836
        %v4888 = vpack.c.b16 %v4839, %v4838
        %v4889 = vpack.c.b16 %v4841, %v4840
        %v4890 = vpack.c.b16 %v4843, %v4842
        %v4891 = vpack.c.b16 %v4845, %v4844
        %v4892 = vpack.c.b16 %v4847, %v4846
        %v4893 = vpack.c.b16 %v4849, %v4848
        %v4894 = vpack.c.b16 %v4851, %v4850
        %v4895 = vpack.c.b16 %v4853, %v4852
        %v4896 = vpack.c.b16 %v4855, %v4854
        %v4897 = vpack.c.b16 %v4857, %v4856
        %v4898 = vpack.c.b16 %v4859, %v4858
        %v4899 = vpack.c.b16 %v4861, %v4860
        %v4900 = vpack.c.b16 %v4863, %v4862
        %v4901 = vpack.c.b16 %v4865, %v4864
        %v4902 = vpack.c.b16 %v4867, %v4866
        %v4903 = vpack.c.b16 %v4869, %v4868
        %v4904 = vpack.c.b16 %v4871, %v4870
        %v4905 = vpack.c.b16 %v4873, %v4872
        %4938 = vmatprep.subr.bf16.mxu0 0
        %4939 = vmatpush1.bf16.msra.mxu0 %v4874
        %4940 = vmatprep.subr.bf16.mxu0 0
        %4941 = vmatpush1.bf16.msra.mxu0 %v4875
        %4942 = vmatprep.subr.bf16.mxu0 0
        %4943 = vmatpush1.bf16.msra.mxu0 %v4876
        %4944 = vmatprep.subr.bf16.mxu0 0
        %4945 = vmatpush1.bf16.msra.mxu0 %v4877
        %4946 = vmatprep.subr.bf16.mxu0 0
        %4947 = vmatpush1.bf16.msra.mxu0 %v4878
        %4948 = vmatprep.subr.bf16.mxu0 0
        %4949 = vmatpush1.bf16.msra.mxu0 %v4879
        %4950 = vmatprep.subr.bf16.mxu0 0
        %4951 = vmatpush1.bf16.msra.mxu0 %v4880
        %4952 = vmatprep.subr.bf16.mxu0 0
        %4953 = vmatpush1.bf16.msra.mxu0 %v4881
        %4954 = vmatprep.subr.bf16.mxu0 0
        %4955 = vmatpush1.bf16.msra.mxu0 %v4882
        %4956 = vmatprep.subr.bf16.mxu0 0
        %4957 = vmatpush1.bf16.msra.mxu0 %v4883
        %4958 = vmatprep.subr.bf16.mxu0 0
        %4959 = vmatpush1.bf16.msra.mxu0 %v4884
        %4960 = vmatprep.subr.bf16.mxu0 0
        %4961 = vmatpush1.bf16.msra.mxu0 %v4885
        %4962 = vmatprep.subr.bf16.mxu0 0
        %4963 = vmatpush1.bf16.msra.mxu0 %v4886
        %4964 = vmatprep.subr.bf16.mxu0 0
        %4965 = vmatpush1.bf16.msra.mxu0 %v4887
        %4966 = vmatprep.subr.bf16.mxu0 0
        %4967 = vmatpush1.bf16.msra.mxu0 %v4888
        %4968 = vmatprep.subr.bf16.mxu0 0
        %4969 = vmatpush1.bf16.msra.mxu0 %v4889
        %4970 = vmatprep.mubr.bf16.mxu0 %v4679
        %4971 = vmatmul.mubr.bf16.gmra.mrb[0].mxu0 %v4678
        %v4972 = vpop.f32.mrb[0].mxu0
        %v4973 = vadd.f32 0.0, %v4972
        %v4974 = vpop.f32.mrb[0].mxu0
        %v4975 = vpop.f32.mrb[0].mxu0
        %v4976 = vpop.f32.mrb[0].mxu0
        %4977 = vdwg.mxu0
        %4978 = vmatprep.subr.bf16.mxu0 0
        %4979 = vmatpush1.bf16.msra.mxu0 %v4890
        %4980 = vmatprep.subr.bf16.mxu0 0
        %4981 = vmatpush1.bf16.msra.mxu0 %v4891
        %4982 = vmatprep.subr.bf16.mxu0 0
        %4983 = vmatpush1.bf16.msra.mxu0 %v4892
        %4984 = vmatprep.subr.bf16.mxu0 0
        %4985 = vmatpush1.bf16.msra.mxu0 %v4893
        %4986 = vmatprep.subr.bf16.mxu0 0
        %4987 = vmatpush1.bf16.msra.mxu0 %v4894
        %4988 = vmatprep.subr.bf16.mxu0 0
        %4989 = vmatpush1.bf16.msra.mxu0 %v4895
        %4990 = vmatprep.subr.bf16.mxu0 0
        %4991 = vmatpush1.bf16.msra.mxu0 %v4896
        %4992 = vmatprep.subr.bf16.mxu0 0
        %4993 = vmatpush1.bf16.msra.mxu0 %v4897
        %4994 = vmatprep.subr.bf16.mxu0 0
        %4995 = vmatpush1.bf16.msra.mxu0 %v4898
        %4996 = vmatprep.subr.bf16.mxu0 0
        %4997 = vmatpush1.bf16.msra.mxu0 %v4899
        %4998 = vmatprep.subr.bf16.mxu0 0
        %4999 = vmatpush1.bf16.msra.mxu0 %v4900
        %5000 = vmatprep.subr.bf16.mxu0 0
        %5001 = vmatpush1.bf16.msra.mxu0 %v4901
        %5002 = vmatprep.subr.bf16.mxu0 0
        %5003 = vmatpush1.bf16.msra.mxu0 %v4902
        %5004 = vmatprep.subr.bf16.mxu0 0
        %5005 = vmatpush1.bf16.msra.mxu0 %v4903
        %5006 = vmatprep.subr.bf16.mxu0 0
        %5007 = vmatpush1.bf16.msra.mxu0 %v4904
        %5008 = vmatprep.subr.bf16.mxu0 0
        %5009 = vmatpush1.bf16.msra.mxu0 %v4905
        %5010 = vmatprep.mubr.bf16.mxu0 %v4681
        %5011 = vmatmul.mubr.bf16.gmra.mrb[0].mxu0 %v4680
        %v5012 = vpop.f32.mrb[0].mxu0
        %v5013 = vadd.f32 %v4973, %v5012
        %v5014 = vpop.f32.mrb[0].mxu0
        %v5015 = vpop.f32.mrb[0].mxu0
        %v5016 = vpop.f32.mrb[0].mxu0
        %5017 = vdwg.mxu0
        %v5018 = vadd.f32 %v4377, %v5013
        %v5019 = vadd.f32 %v2455, %v5018
        %v5020 = vld [vmem:[#allocation19] sm:$0x1]
        %v5022 = vlaneseq
        %v5023 = vshrl.u32 %v5022, 7
        %v5024 = vsub.s32 0, %v5023
        %v5025 = vrot.slane %v5020, %v5024
        %v5027 = vadd.f32 %v5019, %v5025
        %s5028 = scalar_lea.vmem %s15, 2
        %v5029 = vld [vmem:[%s5028] sm:$0x1]
        %s5030 = scalar_lea.vmem %s16, 2
        %v5031 = vld [vmem:[%s5030] sm:$0x1]
        %5032 = vadd.xlane.f32.xlu0 %v5027
        %v5033 = vpop.xlane.xlu0 %5032
        %v5034 = vmul.f32 %v5033, %v1558
        %v5035 = vsub.f32 %v5027, %v5034
        %v5036 = vmul.f32 %v5035, %v5035
        %5037 = vadd.xlane.f32.xlu0 %v5036
        %v5038 = vpop.xlane.xlu0 %5037
        %v5039 = vmul.f32 %v5038, %v1558
        %v5040 = vadd.f32 %v5039, 1e-05
        %v5041 = vrsqrt.pop %v5040
        %v5042 = vmul.f32 %v5035, %v5041
        %v5044 = vlaneseq
        %v5045 = vshrl.u32 %v5044, 7
        %v5046 = vsub.s32 0, %v5045
        %v5047 = vrot.slane %v5029, %v5046
        %v5049 = vmul.f32 %v5042, %v5047
        %v5051 = vlaneseq
        %v5052 = vshrl.u32 %v5051, 7
        %v5053 = vsub.s32 0, %v5052
        %v5054 = vrot.slane %v5031, %v5053
        %v5056 = vadd.f32 %v5049, %v5054
        %v5057 = vpack.c.bf16 %v5056, %v5056
        %s5058 = scalar_lea.vmem %s1, 192
        %v5059 = vld [vmem:[%s5058] sm:$0xff]
        %v5060 = vld [vmem:[%s5058 + $0x8] sm:$0xf]
        %v5061 = vld [vmem:[%s5058 + $0xc] sm:$0xff]
        %v5062 = vld [vmem:[%s5058 + $0x14] sm:$0xf]
        %v5063 = vld [vmem:[%s5058 + $0x18] sm:$0xff]
        %v5064 = vld [vmem:[%s5058 + $0x20] sm:$0xf]
        %v5065 = vld [vmem:[%s5058 + $0x24] sm:$0xff]
        %v5066 = vld [vmem:[%s5058 + $0x2c] sm:$0xf]
        %v5067 = vld [vmem:[%s5058 + $0x30] sm:$0xff]
        %v5068 = vld [vmem:[%s5058 + $0x38] sm:$0xf]
        %v5069 = vld [vmem:[%s5058 + $0x3c] sm:$0xff]
        %v5070 = vld [vmem:[%s5058 + $0x44] sm:$0xf]
        %v5071 = vld [vmem:[%s5058 + $0x48] sm:$0xff]
        %v5072 = vld [vmem:[%s5058 + $0x50] sm:$0xf]
        %v5073 = vld [vmem:[%s5058 + $0x54] sm:$0xff]
        %v5074 = vld [vmem:[%s5058 + $0x5c] sm:$0xf]
        %v5075 = vld [vmem:[%s5058 + $0x60] sm:$0xff]
        %v5076 = vld [vmem:[%s5058 + $0x68] sm:$0xf]
        %v5077 = vld [vmem:[%s5058 + $0x6c] sm:$0xff]
        %v5078 = vld [vmem:[%s5058 + $0x74] sm:$0xf]
        %v5079 = vld [vmem:[%s5058 + $0x78] sm:$0xff]
        %v5080 = vld [vmem:[%s5058 + $0x80] sm:$0xf]
        %v5081 = vld [vmem:[%s5058 + $0x84] sm:$0xff]
        %v5082 = vld [vmem:[%s5058 + $0x8c] sm:$0xf]
        %v5083 = vld [vmem:[%s5058 + $0x90] sm:$0xff]
        %v5084 = vld [vmem:[%s5058 + $0x98] sm:$0xf]
        %v5085 = vld [vmem:[%s5058 + $0x9c] sm:$0xff]
        %v5086 = vld [vmem:[%s5058 + $0xa4] sm:$0xf]
        %v5087 = vld [vmem:[%s5058 + $0xa8] sm:$0xff]
        %v5088 = vld [vmem:[%s5058 + $0xb0] sm:$0xf]
        %v5089 = vld [vmem:[%s5058 + $0xb4] sm:$0xff]
        %v5090 = vld [vmem:[%s5058 + $0xbc] sm:$0xf]
        %s5091 = scalar_lea.vmem [#allocation2], 3
        %v5092 = vld [vmem:[%s5091] sm:$0x7]
        %v5094 = vlaneseq
        %v5095 = vshrl.u32 %v5094, 7
        %v5096 = vsub.s32 0, %v5095
        %v5097 = vrot.slane %v5092, %v5096
        %v5098 = vlaneseq
        %v5099 = vshrl.u32 %v5098, 7
        %v5100 = vsub.s32 1, %v5099
        %v5101 = vrot.slane %v5092, %v5100
        %v5102 = vlaneseq
        %v5103 = vshrl.u32 %v5102, 7
        %v5104 = vsub.s32 2, %v5103
        %v5105 = vrot.slane %v5092, %v5104
        %v5141 = vunpack.c.l.b16 %v5059
        %v5142 = vunpack.c.h.b16 %v5059
        %v5143 = vunpack.c.l.b16 %v5060
        %v5144 = vunpack.c.l.b16 %v5061
        %v5145 = vunpack.c.h.b16 %v5061
        %v5146 = vunpack.c.l.b16 %v5062
        %v5147 = vunpack.c.l.b16 %v5063
        %v5148 = vunpack.c.h.b16 %v5063
        %v5149 = vunpack.c.l.b16 %v5064
        %v5150 = vunpack.c.l.b16 %v5065
        %v5151 = vunpack.c.h.b16 %v5065
        %v5152 = vunpack.c.l.b16 %v5066
        %v5153 = vunpack.c.l.b16 %v5067
        %v5154 = vunpack.c.h.b16 %v5067
        %v5155 = vunpack.c.l.b16 %v5068
        %v5156 = vunpack.c.l.b16 %v5069
        %v5157 = vunpack.c.h.b16 %v5069
        %v5158 = vunpack.c.l.b16 %v5070
        %v5159 = vunpack.c.l.b16 %v5071
        %v5160 = vunpack.c.h.b16 %v5071
        %v5161 = vunpack.c.l.b16 %v5072
        %v5162 = vunpack.c.l.b16 %v5073
        %v5163 = vunpack.c.h.b16 %v5073
        %v5164 = vunpack.c.l.b16 %v5074
        %v5165 = vunpack.c.l.b16 %v5075
        %v5166 = vunpack.c.h.b16 %v5075
        %v5167 = vunpack.c.l.b16 %v5076
        %v5168 = vunpack.c.l.b16 %v5077
        %v5169 = vunpack.c.h.b16 %v5077
        %v5170 = vunpack.c.l.b16 %v5078
        %v5171 = vunpack.c.l.b16 %v5079
        %v5172 = vunpack.c.h.b16 %v5079
        %v5173 = vunpack.c.l.b16 %v5080
        %v5174 = vunpack.c.l.b16 %v5081
        %v5175 = vunpack.c.h.b16 %v5081
        %v5176 = vunpack.c.l.b16 %v5082
        %v5177 = vunpack.c.l.b16 %v5083
        %v5178 = vunpack.c.h.b16 %v5083
        %v5179 = vunpack.c.l.b16 %v5084
        %v5180 = vunpack.c.l.b16 %v5085
        %v5181 = vunpack.c.h.b16 %v5085
        %v5182 = vunpack.c.l.b16 %v5086
        %v5183 = vunpack.c.l.b16 %v5087
        %v5184 = vunpack.c.h.b16 %v5087
        %v5185 = vunpack.c.l.b16 %v5088
        %v5186 = vunpack.c.l.b16 %v5089
        %v5187 = vunpack.c.h.b16 %v5089
        %v5188 = vunpack.c.l.b16 %v5090
        %v5189 = vpack.c.b16 %v5144, %v5141
        %v5190 = vpack.c.b16 %v5145, %v5142
        %v5191 = vpack.c.b16 %v5146, %v5143
        %v5192 = vpack.c.b16 %v5150, %v5147
        %v5193 = vpack.c.b16 %v5151, %v5148
        %v5194 = vpack.c.b16 %v5152, %v5149
        %v5195 = vpack.c.b16 %v5156, %v5153
        %v5196 = vpack.c.b16 %v5157, %v5154
        %v5197 = vpack.c.b16 %v5158, %v5155
        %v5198 = vpack.c.b16 %v5162, %v5159
        %v5199 = vpack.c.b16 %v5163, %v5160
        %v5200 = vpack.c.b16 %v5164, %v5161
        %v5201 = vpack.c.b16 %v5168, %v5165
        %v5202 = vpack.c.b16 %v5169, %v5166
        %v5203 = vpack.c.b16 %v5170, %v5167
        %v5204 = vpack.c.b16 %v5174, %v5171
        %v5205 = vpack.c.b16 %v5175, %v5172
        %v5206 = vpack.c.b16 %v5176, %v5173
        %v5207 = vpack.c.b16 %v5180, %v5177
        %v5208 = vpack.c.b16 %v5181, %v5178
        %v5209 = vpack.c.b16 %v5182, %v5179
        %v5210 = vpack.c.b16 %v5186, %v5183
        %v5211 = vpack.c.b16 %v5187, %v5184
        %v5212 = vpack.c.b16 %v5188, %v5185
        %5237 = vmatprep.subr.bf16.mxu0 %v5190
        %5238 = vmatpush1.bf16.msra.mxu0 %v5189
        %5239 = vmatprep.subr.bf16.mxu0 %v5193
        %5240 = vmatpush1.bf16.msra.mxu0 %v5192
        %5241 = vmatprep.subr.bf16.mxu0 %v5196
        %5242 = vmatpush1.bf16.msra.mxu0 %v5195
        %5243 = vmatprep.subr.bf16.mxu0 %v5199
        %5244 = vmatpush1.bf16.msra.mxu0 %v5198
        %5245 = vmatprep.subr.bf16.mxu0 %v5202
        %5246 = vmatpush1.bf16.msra.mxu0 %v5201
        %5247 = vmatprep.subr.bf16.mxu0 %v5205
        %5248 = vmatpush1.bf16.msra.mxu0 %v5204
        %5249 = vmatprep.subr.bf16.mxu0 %v5208
        %5250 = vmatpush1.bf16.msra.mxu0 %v5207
        %5251 = vmatprep.subr.bf16.mxu0 %v5211
        %5252 = vmatpush1.bf16.msra.mxu0 %v5210
        %5253 = vmatprep.subr.bf16.mxu0 0
        %5254 = vmatpush1.bf16.msra.mxu0 0
        %5255 = vmatprep.subr.bf16.mxu0 0
        %5256 = vmatpush1.bf16.msra.mxu0 0
        %5257 = vmatprep.subr.bf16.mxu0 0
        %5258 = vmatpush1.bf16.msra.mxu0 0
        %5259 = vmatprep.subr.bf16.mxu0 0
        %5260 = vmatpush1.bf16.msra.mxu0 0
        %5261 = vmatprep.subr.bf16.mxu0 0
        %5262 = vmatpush1.bf16.msra.mxu0 0
        %5263 = vmatprep.subr.bf16.mxu0 0
        %5264 = vmatpush1.bf16.msra.mxu0 0
        %5265 = vmatprep.subr.bf16.mxu0 0
        %5266 = vmatpush1.bf16.msra.mxu0 0
        %5267 = vmatprep.subr.bf16.mxu0 0
        %5268 = vmatpush1.bf16.msra.mxu0 0
        %5269 = vmatprep.mubr.bf16.mxu0 0
        %5270 = vmatmul.mubr.bf16.gmra.mrb[0].mxu0 %v5057
        %v5271 = vpop.f32.mrb[0].mxu0
        %v5272 = vadd.f32 %v5097, %v5271
        %v5273 = vpop.f32.mrb[0].mxu0
        %v5274 = vadd.f32 %v5101, %v5273
        %v5275 = vpop.f32.mrb[0].mxu0
        %v5276 = vpop.f32.mrb[0].mxu0
        %5277 = vdwg.mxu0
        %5278 = vmatprep.subr.bf16.mxu0 0
        %5279 = vmatpush1.bf16.msra.mxu0 %v5191
        %5280 = vmatprep.subr.bf16.mxu0 0
        %5281 = vmatpush1.bf16.msra.mxu0 %v5194
        %5282 = vmatprep.subr.bf16.mxu0 0
        %5283 = vmatpush1.bf16.msra.mxu0 %v5197
        %5284 = vmatprep.subr.bf16.mxu0 0
        %5285 = vmatpush1.bf16.msra.mxu0 %v5200
        %5286 = vmatprep.subr.bf16.mxu0 0
        %5287 = vmatpush1.bf16.msra.mxu0 %v5203
        %5288 = vmatprep.subr.bf16.mxu0 0
        %5289 = vmatpush1.bf16.msra.mxu0 %v5206
        %5290 = vmatprep.subr.bf16.mxu0 0
        %5291 = vmatpush1.bf16.msra.mxu0 %v5209
        %5292 = vmatprep.subr.bf16.mxu0 0
        %5293 = vmatpush1.bf16.msra.mxu0 %v5212
        %5294 = vmatprep.subr.bf16.mxu0 0
        %5295 = vmatpush1.bf16.msra.mxu0 0
        %5296 = vmatprep.subr.bf16.mxu0 0
        %5297 = vmatpush1.bf16.msra.mxu0 0
        %5298 = vmatprep.subr.bf16.mxu0 0
        %5299 = vmatpush1.bf16.msra.mxu0 0
        %5300 = vmatprep.subr.bf16.mxu0 0
        %5301 = vmatpush1.bf16.msra.mxu0 0
        %5302 = vmatprep.subr.bf16.mxu0 0
        %5303 = vmatpush1.bf16.msra.mxu0 0
        %5304 = vmatprep.subr.bf16.mxu0 0
        %5305 = vmatpush1.bf16.msra.mxu0 0
        %5306 = vmatprep.subr.bf16.mxu0 0
        %5307 = vmatpush1.bf16.msra.mxu0 0
        %5308 = vmatprep.subr.bf16.mxu0 0
        %5309 = vmatpush1.bf16.msra.mxu0 0
        %5310 = vmatprep.mubr.bf16.mxu0 0
        %5311 = vmatmul.mubr.bf16.gmra.mrb[0].mxu0 %v5057
        %v5312 = vpop.f32.mrb[0].mxu0
        %v5313 = vadd.f32 %v5105, %v5312
        %v5314 = vpop.f32.mrb[0].mxu0
        %v5315 = vpop.f32.mrb[0].mxu0
        %v5316 = vpop.f32.mrb[0].mxu0
        %5317 = vdwg.mxu0
        %s5318 = scalar_lea.vmem [#allocation5], 64
        %v5319 = vld [vmem:[%s5318] sm:$0xf]
        %v5320 = vld [vmem:[%s5318 + $0x4] sm:$0xf]
        %v5321 = vld [vmem:[%s5318 + $0x8] sm:$0xf]
        %v5322 = vld [vmem:[%s5318 + $0xc] sm:$0xf]
        %v5323 = vld [vmem:[%s5318 + $0x10] sm:$0xf]
        %v5324 = vld [vmem:[%s5318 + $0x14] sm:$0xf]
        %v5325 = vld [vmem:[%s5318 + $0x18] sm:$0xf]
        %v5326 = vld [vmem:[%s5318 + $0x1c] sm:$0xf]
        %v5327 = vld [vmem:[%s5318 + $0x20] sm:$0xf]
        %v5328 = vld [vmem:[%s5318 + $0x24] sm:$0xf]
        %v5329 = vld [vmem:[%s5318 + $0x28] sm:$0xf]
        %v5330 = vld [vmem:[%s5318 + $0x2c] sm:$0xf]
        %v5331 = vld [vmem:[%s5318 + $0x30] sm:$0xf]
        %v5332 = vld [vmem:[%s5318 + $0x34] sm:$0xf]
        %v5333 = vld [vmem:[%s5318 + $0x38] sm:$0xf]
        %v5334 = vld [vmem:[%s5318 + $0x3c] sm:$0xf]
        %s5335 = scalar_lea.vmem [#allocation7], 1
        %v5336 = vld [vmem:[%s5335] sm:$0x1]
        %v5337 = vpack.c.bf16 %v5272, %v5272
        %v5338 = vpack.c.bf16 %v5274, %v5274
        %v5339 = vpack.c.bf16 %v5313, %v5313
        %v5341 = vsel %vm985, %v5337, 0
        %v5344 = vsel %vm985, %v5338, 0
        %5346 = vmatprep.subr.bf16.mxu0 0
        %5347 = vmatpush1.bf16.xpose.msra.mxu0 %v5344
        %5348 = vmatprep.subr.bf16.mxu0 0
        %5349 = vmatpush1.bf16.xpose.msra.mxu0 0
        %5350 = vmatprep.subr.bf16.mxu0 0
        %5351 = vmatpush1.bf16.xpose.msra.mxu0 0
        %5352 = vmatprep.subr.bf16.mxu0 0
        %5353 = vmatpush1.bf16.xpose.msra.mxu0 0
        %5354 = vmatprep.subr.bf16.mxu0 0
        %5355 = vmatpush1.bf16.xpose.msra.mxu0 0
        %5356 = vmatprep.subr.bf16.mxu0 0
        %5357 = vmatpush1.bf16.xpose.msra.mxu0 0
        %5358 = vmatprep.subr.bf16.mxu0 0
        %5359 = vmatpush1.bf16.xpose.msra.mxu0 0
        %5360 = vmatprep.subr.bf16.mxu0 0
        %5361 = vmatpush1.bf16.xpose.msra.mxu0 0
        %5362 = vmatprep.subr.bf16.mxu0 0
        %5363 = vmatpush1.bf16.xpose.msra.mxu0 0
        %5364 = vmatprep.subr.bf16.mxu0 0
        %5365 = vmatpush1.bf16.xpose.msra.mxu0 0
        %5366 = vmatprep.subr.bf16.mxu0 0
        %5367 = vmatpush1.bf16.xpose.msra.mxu0 0
        %5368 = vmatprep.subr.bf16.mxu0 0
        %5369 = vmatpush1.bf16.xpose.msra.mxu0 0
        %5370 = vmatprep.subr.bf16.mxu0 0
        %5371 = vmatpush1.bf16.xpose.msra.mxu0 0
        %5372 = vmatprep.subr.bf16.mxu0 0
        %5373 = vmatpush1.bf16.xpose.msra.mxu0 0
        %5374 = vmatprep.subr.bf16.mxu0 0
        %5375 = vmatpush1.bf16.xpose.msra.mxu0 0
        %5376 = vmatprep.subr.bf16.mxu0 0
        %5377 = vmatpush1.bf16.xpose.msra.mxu0 0
        %5378 = vmatprep.mubr.bf16.mxu0 0
        %5379 = vmatmul.mubr.bf16.gmra.mrb[0].mxu0 %v5341
        %v5380 = vpop.f32.mrb[0].mxu0
        %v5381 = vadd.f32 0.0, %v5380
        %v5382 = vpop.f32.mrb[0].mxu0
        %v5383 = vpop.f32.mrb[0].mxu0
        %v5384 = vpop.f32.mrb[0].mxu0
        %5385 = vdwg.mxu0
        %v5386 = vmul.f32 %v5381, 0.17677669
        %v5387 = vsel %vm1033, %v5386, -inf
        %5388 = vmax.xlane.f32.xlu0 %v5387
        %v5389 = vpop.xlane.xlu0 %5388
        %v5390 = vsub.f32 %v5386, %v5389
        %v5391 = vmul.f32 %v5390, 1.442695
        %v5392 = vpow.pop %v5391
        %v5393 = vsel %vm1033, %v5392, 0.0
        %5394 = vadd.xlane.f32.xlu0 %v5393
        %v5395 = vpop.xlane.xlu0 %5394
        %v5396 = vrcp.pop %v5395
        %v5397 = vmul.f32 %v5395, %v5396
        %v5398 = vsub.f32 2.0, %v5397
        %v5399 = vmul.f32 %v5396, %v5398
        %v5400 = vmul.f32 %v5392, %v5399
        %v5401 = vpack.c.bf16 %v5400, %v5400
        %v5403 = vsel %vm1033, %v5401, 0
        %v5406 = vsel %vm1052, %v5339, 0
        %5408 = vmatprep.subr.bf16.mxu0 0
        %5409 = vmatpush1.bf16.msra.mxu0 %v5406
        %5410 = vmatprep.subr.bf16.mxu0 0
        %5411 = vmatpush1.bf16.msra.mxu0 0
        %5412 = vmatprep.subr.bf16.mxu0 0
        %5413 = vmatpush1.bf16.msra.mxu0 0
        %5414 = vmatprep.subr.bf16.mxu0 0
        %5415 = vmatpush1.bf16.msra.mxu0 0
        %5416 = vmatprep.subr.bf16.mxu0 0
        %5417 = vmatpush1.bf16.msra.mxu0 0
        %5418 = vmatprep.subr.bf16.mxu0 0
        %5419 = vmatpush1.bf16.msra.mxu0 0
        %5420 = vmatprep.subr.bf16.mxu0 0
        %5421 = vmatpush1.bf16.msra.mxu0 0
        %5422 = vmatprep.subr.bf16.mxu0 0
        %5423 = vmatpush1.bf16.msra.mxu0 0
        %5424 = vmatprep.subr.bf16.mxu0 0
        %5425 = vmatpush1.bf16.msra.mxu0 0
        %5426 = vmatprep.subr.bf16.mxu0 0
        %5427 = vmatpush1.bf16.msra.mxu0 0
        %5428 = vmatprep.subr.bf16.mxu0 0
        %5429 = vmatpush1.bf16.msra.mxu0 0
        %5430 = vmatprep.subr.bf16.mxu0 0
        %5431 = vmatpush1.bf16.msra.mxu0 0
        %5432 = vmatprep.subr.bf16.mxu0 0
        %5433 = vmatpush1.bf16.msra.mxu0 0
        %5434 = vmatprep.subr.bf16.mxu0 0
        %5435 = vmatpush1.bf16.msra.mxu0 0
        %5436 = vmatprep.subr.bf16.mxu0 0
        %5437 = vmatpush1.bf16.msra.mxu0 0
        %5438 = vmatprep.subr.bf16.mxu0 0
        %5439 = vmatpush1.bf16.msra.mxu0 0
        %5440 = vmatprep.mubr.bf16.mxu0 0
        %5441 = vmatmul.mubr.bf16.gmra.mrb[0].mxu0 %v5403
        %v5442 = vpop.f32.mrb[0].mxu0
        %v5443 = vadd.f32 0.0, %v5442
        %v5444 = vpop.f32.mrb[0].mxu0
        %v5445 = vpop.f32.mrb[0].mxu0
        %v5446 = vpop.f32.mrb[0].mxu0
        %5447 = vdwg.mxu0
        %5449 = vrot.lane.b32.xlu0 %v5337, 96
        %v5450 = vpop.permute.xlu0 %5449
        %5452 = vrot.lane.b32.xlu0 %v5338, 96
        %v5453 = vpop.permute.xlu0 %5452
        %v5455 = vsel %vm985, %v5450, 0
        %v5458 = vsel %vm985, %v5453, 0
        %5460 = vmatprep.subr.bf16.mxu0 0
        %5461 = vmatpush1.bf16.xpose.msra.mxu0 %v5458
        %5462 = vmatprep.subr.bf16.mxu0 0
        %5463 = vmatpush1.bf16.xpose.msra.mxu0 0
        %5464 = vmatprep.subr.bf16.mxu0 0
        %5465 = vmatpush1.bf16.xpose.msra.mxu0 0
        %5466 = vmatprep.subr.bf16.mxu0 0
        %5467 = vmatpush1.bf16.xpose.msra.mxu0 0
        %5468 = vmatprep.subr.bf16.mxu0 0
        %5469 = vmatpush1.bf16.xpose.msra.mxu0 0
        %5470 = vmatprep.subr.bf16.mxu0 0
        %5471 = vmatpush1.bf16.xpose.msra.mxu0 0
        %5472 = vmatprep.subr.bf16.mxu0 0
        %5473 = vmatpush1.bf16.xpose.msra.mxu0 0
        %5474 = vmatprep.subr.bf16.mxu0 0
        %5475 = vmatpush1.bf16.xpose.msra.mxu0 0
        %5476 = vmatprep.subr.bf16.mxu0 0
        %5477 = vmatpush1.bf16.xpose.msra.mxu0 0
        %5478 = vmatprep.subr.bf16.mxu0 0
        %5479 = vmatpush1.bf16.xpose.msra.mxu0 0
        %5480 = vmatprep.subr.bf16.mxu0 0
        %5481 = vmatpush1.bf16.xpose.msra.mxu0 0
        %5482 = vmatprep.subr.bf16.mxu0 0
        %5483 = vmatpush1.bf16.xpose.msra.mxu0 0
        %5484 = vmatprep.subr.bf16.mxu0 0
        %5485 = vmatpush1.bf16.xpose.msra.mxu0 0
        %5486 = vmatprep.subr.bf16.mxu0 0
        %5487 = vmatpush1.bf16.xpose.msra.mxu0 0
        %5488 = vmatprep.subr.bf16.mxu0 0
        %5489 = vmatpush1.bf16.xpose.msra.mxu0 0
        %5490 = vmatprep.subr.bf16.mxu0 0
        %5491 = vmatpush1.bf16.xpose.msra.mxu0 0
        %5492 = vmatprep.mubr.bf16.mxu0 0
        %5493 = vmatmul.mubr.bf16.gmra.mrb[0].mxu0 %v5455
        %v5494 = vpop.f32.mrb[0].mxu0
        %v5495 = vadd.f32 0.0, %v5494
        %v5496 = vpop.f32.mrb[0].mxu0
        %v5497 = vpop.f32.mrb[0].mxu0
        %v5498 = vpop.f32.mrb[0].mxu0
        %5499 = vdwg.mxu0
        %v5500 = vmul.f32 %v5495, 0.17677669
        %v5501 = vsel %vm1033, %v5500, -inf
        %5502 = vmax.xlane.f32.xlu0 %v5501
        %v5503 = vpop.xlane.xlu0 %5502
        %v5504 = vsub.f32 %v5500, %v5503
        %v5505 = vmul.f32 %v5504, 1.442695
        %v5506 = vpow.pop %v5505
        %v5507 = vsel %vm1033, %v5506, 0.0
        %5508 = vadd.xlane.f32.xlu0 %v5507
        %v5509 = vpop.xlane.xlu0 %5508
        %v5510 = vrcp.pop %v5509
        %v5511 = vmul.f32 %v5509, %v5510
        %v5512 = vsub.f32 2.0, %v5511
        %v5513 = vmul.f32 %v5510, %v5512
        %v5514 = vmul.f32 %v5506, %v5513
        %v5515 = vpack.c.bf16 %v5514, %v5514
        %5517 = vrot.lane.b32.xlu0 %v5339, 96
        %v5518 = vpop.permute.xlu0 %5517
        %v5520 = vsel %vm1033, %v5515, 0
        %v5523 = vsel %vm1052, %v5518, 0
        %5525 = vmatprep.subr.bf16.mxu0 0
        %5526 = vmatpush1.bf16.msra.mxu0 %v5523
        %5527 = vmatprep.subr.bf16.mxu0 0
        %5528 = vmatpush1.bf16.msra.mxu0 0
        %5529 = vmatprep.subr.bf16.mxu0 0
        %5530 = vmatpush1.bf16.msra.mxu0 0
        %5531 = vmatprep.subr.bf16.mxu0 0
        %5532 = vmatpush1.bf16.msra.mxu0 0
        %5533 = vmatprep.subr.bf16.mxu0 0
        %5534 = vmatpush1.bf16.msra.mxu0 0
        %5535 = vmatprep.subr.bf16.mxu0 0
        %5536 = vmatpush1.bf16.msra.mxu0 0
        %5537 = vmatprep.subr.bf16.mxu0 0
        %5538 = vmatpush1.bf16.msra.mxu0 0
        %5539 = vmatprep.subr.bf16.mxu0 0
        %5540 = vmatpush1.bf16.msra.mxu0 0
        %5541 = vmatprep.subr.bf16.mxu0 0
        %5542 = vmatpush1.bf16.msra.mxu0 0
        %5543 = vmatprep.subr.bf16.mxu0 0
        %5544 = vmatpush1.bf16.msra.mxu0 0
        %5545 = vmatprep.subr.bf16.mxu0 0
        %5546 = vmatpush1.bf16.msra.mxu0 0
        %5547 = vmatprep.subr.bf16.mxu0 0
        %5548 = vmatpush1.bf16.msra.mxu0 0
        %5549 = vmatprep.subr.bf16.mxu0 0
        %5550 = vmatpush1.bf16.msra.mxu0 0
        %5551 = vmatprep.subr.bf16.mxu0 0
        %5552 = vmatpush1.bf16.msra.mxu0 0
        %5553 = vmatprep.subr.bf16.mxu0 0
        %5554 = vmatpush1.bf16.msra.mxu0 0
        %5555 = vmatprep.subr.bf16.mxu0 0
        %5556 = vmatpush1.bf16.msra.mxu0 0
        %5557 = vmatprep.mubr.bf16.mxu0 0
        %5558 = vmatmul.mubr.bf16.gmra.mrb[0].mxu0 %v5520
        %v5559 = vpop.f32.mrb[0].mxu0
        %v5560 = vadd.f32 0.0, %v5559
        %v5561 = vpop.f32.mrb[0].mxu0
        %v5562 = vpop.f32.mrb[0].mxu0
        %v5563 = vpop.f32.mrb[0].mxu0
        %5564 = vdwg.mxu0
        %5565 = vrot.lane.b32.xlu0 %v5337, 64
        %v5566 = vpop.permute.xlu0 %5565
        %5567 = vrot.lane.b32.xlu0 %v5338, 64
        %v5568 = vpop.permute.xlu0 %5567
        %v5570 = vsel %vm985, %v5566, 0
        %v5573 = vsel %vm985, %v5568, 0
        %5575 = vmatprep.subr.bf16.mxu0 0
        %5576 = vmatpush1.bf16.xpose.msra.mxu0 %v5573
        %5577 = vmatprep.subr.bf16.mxu0 0
        %5578 = vmatpush1.bf16.xpose.msra.mxu0 0
        %5579 = vmatprep.subr.bf16.mxu0 0
        %5580 = vmatpush1.bf16.xpose.msra.mxu0 0
        %5581 = vmatprep.subr.bf16.mxu0 0
        %5582 = vmatpush1.bf16.xpose.msra.mxu0 0
        %5583 = vmatprep.subr.bf16.mxu0 0
        %5584 = vmatpush1.bf16.xpose.msra.mxu0 0
        %5585 = vmatprep.subr.bf16.mxu0 0
        %5586 = vmatpush1.bf16.xpose.msra.mxu0 0
        %5587 = vmatprep.subr.bf16.mxu0 0
        %5588 = vmatpush1.bf16.xpose.msra.mxu0 0
        %5589 = vmatprep.subr.bf16.mxu0 0
        %5590 = vmatpush1.bf16.xpose.msra.mxu0 0
        %5591 = vmatprep.subr.bf16.mxu0 0
        %5592 = vmatpush1.bf16.xpose.msra.mxu0 0
        %5593 = vmatprep.subr.bf16.mxu0 0
        %5594 = vmatpush1.bf16.xpose.msra.mxu0 0
        %5595 = vmatprep.subr.bf16.mxu0 0
        %5596 = vmatpush1.bf16.xpose.msra.mxu0 0
        %5597 = vmatprep.subr.bf16.mxu0 0
        %5598 = vmatpush1.bf16.xpose.msra.mxu0 0
        %5599 = vmatprep.subr.bf16.mxu0 0
        %5600 = vmatpush1.bf16.xpose.msra.mxu0 0
        %5601 = vmatprep.subr.bf16.mxu0 0
        %5602 = vmatpush1.bf16.xpose.msra.mxu0 0
        %5603 = vmatprep.subr.bf16.mxu0 0
        %5604 = vmatpush1.bf16.xpose.msra.mxu0 0
        %5605 = vmatprep.subr.bf16.mxu0 0
        %5606 = vmatpush1.bf16.xpose.msra.mxu0 0
        %5607 = vmatprep.mubr.bf16.mxu0 0
        %5608 = vmatmul.mubr.bf16.gmra.mrb[0].mxu0 %v5570
        %v5609 = vpop.f32.mrb[0].mxu0
        %v5610 = vadd.f32 0.0, %v5609
        %v5611 = vpop.f32.mrb[0].mxu0
        %v5612 = vpop.f32.mrb[0].mxu0
        %v5613 = vpop.f32.mrb[0].mxu0
        %5614 = vdwg.mxu0
        %v5615 = vmul.f32 %v5610, 0.17677669
        %v5616 = vsel %vm1033, %v5615, -inf
        %5617 = vmax.xlane.f32.xlu0 %v5616
        %v5618 = vpop.xlane.xlu0 %5617
        %v5619 = vsub.f32 %v5615, %v5618
        %v5620 = vmul.f32 %v5619, 1.442695
        %v5621 = vpow.pop %v5620
        %v5622 = vsel %vm1033, %v5621, 0.0
        %5623 = vadd.xlane.f32.xlu0 %v5622
        %v5624 = vpop.xlane.xlu0 %5623
        %v5625 = vrcp.pop %v5624
        %v5626 = vmul.f32 %v5624, %v5625
        %v5627 = vsub.f32 2.0, %v5626
        %v5628 = vmul.f32 %v5625, %v5627
        %v5629 = vmul.f32 %v5621, %v5628
        %v5630 = vpack.c.bf16 %v5629, %v5629
        %5631 = vrot.lane.b32.xlu0 %v5339, 64
        %v5632 = vpop.permute.xlu0 %5631
        %v5634 = vsel %vm1033, %v5630, 0
        %v5637 = vsel %vm1052, %v5632, 0
        %5639 = vmatprep.subr.bf16.mxu0 0
        %5640 = vmatpush1.bf16.msra.mxu0 %v5637
        %5641 = vmatprep.subr.bf16.mxu0 0
        %5642 = vmatpush1.bf16.msra.mxu0 0
        %5643 = vmatprep.subr.bf16.mxu0 0
        %5644 = vmatpush1.bf16.msra.mxu0 0
        %5645 = vmatprep.subr.bf16.mxu0 0
        %5646 = vmatpush1.bf16.msra.mxu0 0
        %5647 = vmatprep.subr.bf16.mxu0 0
        %5648 = vmatpush1.bf16.msra.mxu0 0
        %5649 = vmatprep.subr.bf16.mxu0 0
        %5650 = vmatpush1.bf16.msra.mxu0 0
        %5651 = vmatprep.subr.bf16.mxu0 0
        %5652 = vmatpush1.bf16.msra.mxu0 0
        %5653 = vmatprep.subr.bf16.mxu0 0
        %5654 = vmatpush1.bf16.msra.mxu0 0
        %5655 = vmatprep.subr.bf16.mxu0 0
        %5656 = vmatpush1.bf16.msra.mxu0 0
        %5657 = vmatprep.subr.bf16.mxu0 0
        %5658 = vmatpush1.bf16.msra.mxu0 0
        %5659 = vmatprep.subr.bf16.mxu0 0
        %5660 = vmatpush1.bf16.msra.mxu0 0
        %5661 = vmatprep.subr.bf16.mxu0 0
        %5662 = vmatpush1.bf16.msra.mxu0 0
        %5663 = vmatprep.subr.bf16.mxu0 0
        %5664 = vmatpush1.bf16.msra.mxu0 0
        %5665 = vmatprep.subr.bf16.mxu0 0
        %5666 = vmatpush1.bf16.msra.mxu0 0
        %5667 = vmatprep.subr.bf16.mxu0 0
        %5668 = vmatpush1.bf16.msra.mxu0 0
        %5669 = vmatprep.subr.bf16.mxu0 0
        %5670 = vmatpush1.bf16.msra.mxu0 0
        %5671 = vmatprep.mubr.bf16.mxu0 0
        %5672 = vmatmul.mubr.bf16.gmra.mrb[0].mxu0 %v5634
        %v5673 = vpop.f32.mrb[0].mxu0
        %v5674 = vadd.f32 0.0, %v5673
        %v5675 = vpop.f32.mrb[0].mxu0
        %v5676 = vpop.f32.mrb[0].mxu0
        %v5677 = vpop.f32.mrb[0].mxu0
        %5678 = vdwg.mxu0
        %5679 = vrot.lane.b32.xlu0 %v5337, 32
        %v5680 = vpop.permute.xlu0 %5679
        %5681 = vrot.lane.b32.xlu0 %v5338, 32
        %v5682 = vpop.permute.xlu0 %5681
        %v5684 = vsel %vm985, %v5680, 0
        %v5687 = vsel %vm985, %v5682, 0
        %5689 = vmatprep.subr.bf16.mxu0 0
        %5690 = vmatpush1.bf16.xpose.msra.mxu0 %v5687
        %5691 = vmatprep.subr.bf16.mxu0 0
        %5692 = vmatpush1.bf16.xpose.msra.mxu0 0
        %5693 = vmatprep.subr.bf16.mxu0 0
        %5694 = vmatpush1.bf16.xpose.msra.mxu0 0
        %5695 = vmatprep.subr.bf16.mxu0 0
        %5696 = vmatpush1.bf16.xpose.msra.mxu0 0
        %5697 = vmatprep.subr.bf16.mxu0 0
        %5698 = vmatpush1.bf16.xpose.msra.mxu0 0
        %5699 = vmatprep.subr.bf16.mxu0 0
        %5700 = vmatpush1.bf16.xpose.msra.mxu0 0
        %5701 = vmatprep.subr.bf16.mxu0 0
        %5702 = vmatpush1.bf16.xpose.msra.mxu0 0
        %5703 = vmatprep.subr.bf16.mxu0 0
        %5704 = vmatpush1.bf16.xpose.msra.mxu0 0
        %5705 = vmatprep.subr.bf16.mxu0 0
        %5706 = vmatpush1.bf16.xpose.msra.mxu0 0
        %5707 = vmatprep.subr.bf16.mxu0 0
        %5708 = vmatpush1.bf16.xpose.msra.mxu0 0
        %5709 = vmatprep.subr.bf16.mxu0 0
        %5710 = vmatpush1.bf16.xpose.msra.mxu0 0
        %5711 = vmatprep.subr.bf16.mxu0 0
        %5712 = vmatpush1.bf16.xpose.msra.mxu0 0
        %5713 = vmatprep.subr.bf16.mxu0 0
        %5714 = vmatpush1.bf16.xpose.msra.mxu0 0
        %5715 = vmatprep.subr.bf16.mxu0 0
        %5716 = vmatpush1.bf16.xpose.msra.mxu0 0
        %5717 = vmatprep.subr.bf16.mxu0 0
        %5718 = vmatpush1.bf16.xpose.msra.mxu0 0
        %5719 = vmatprep.subr.bf16.mxu0 0
        %5720 = vmatpush1.bf16.xpose.msra.mxu0 0
        %5721 = vmatprep.mubr.bf16.mxu0 0
        %5722 = vmatmul.mubr.bf16.gmra.mrb[0].mxu0 %v5684
        %v5723 = vpop.f32.mrb[0].mxu0
        %v5724 = vadd.f32 0.0, %v5723
        %v5725 = vpop.f32.mrb[0].mxu0
        %v5726 = vpop.f32.mrb[0].mxu0
        %v5727 = vpop.f32.mrb[0].mxu0
        %5728 = vdwg.mxu0
        %v5729 = vmul.f32 %v5724, 0.17677669
        %v5730 = vsel %vm1033, %v5729, -inf
        %5731 = vmax.xlane.f32.xlu0 %v5730
        %v5732 = vpop.xlane.xlu0 %5731
        %v5733 = vsub.f32 %v5729, %v5732
        %v5734 = vmul.f32 %v5733, 1.442695
        %v5735 = vpow.pop %v5734
        %v5736 = vsel %vm1033, %v5735, 0.0
        %5737 = vadd.xlane.f32.xlu0 %v5736
        %v5738 = vpop.xlane.xlu0 %5737
        %v5739 = vrcp.pop %v5738
        %v5740 = vmul.f32 %v5738, %v5739
        %v5741 = vsub.f32 2.0, %v5740
        %v5742 = vmul.f32 %v5739, %v5741
        %v5743 = vmul.f32 %v5735, %v5742
        %v5744 = vpack.c.bf16 %v5743, %v5743
        %5745 = vrot.lane.b32.xlu0 %v5339, 32
        %v5746 = vpop.permute.xlu0 %5745
        %v5748 = vsel %vm1033, %v5744, 0
        %v5751 = vsel %vm1052, %v5746, 0
        %5753 = vmatprep.subr.bf16.mxu0 0
        %5754 = vmatpush1.bf16.msra.mxu0 %v5751
        %5755 = vmatprep.subr.bf16.mxu0 0
        %5756 = vmatpush1.bf16.msra.mxu0 0
        %5757 = vmatprep.subr.bf16.mxu0 0
        %5758 = vmatpush1.bf16.msra.mxu0 0
        %5759 = vmatprep.subr.bf16.mxu0 0
        %5760 = vmatpush1.bf16.msra.mxu0 0
        %5761 = vmatprep.subr.bf16.mxu0 0
        %5762 = vmatpush1.bf16.msra.mxu0 0
        %5763 = vmatprep.subr.bf16.mxu0 0
        %5764 = vmatpush1.bf16.msra.mxu0 0
        %5765 = vmatprep.subr.bf16.mxu0 0
        %5766 = vmatpush1.bf16.msra.mxu0 0
        %5767 = vmatprep.subr.bf16.mxu0 0
        %5768 = vmatpush1.bf16.msra.mxu0 0
        %5769 = vmatprep.subr.bf16.mxu0 0
        %5770 = vmatpush1.bf16.msra.mxu0 0
        %5771 = vmatprep.subr.bf16.mxu0 0
        %5772 = vmatpush1.bf16.msra.mxu0 0
        %5773 = vmatprep.subr.bf16.mxu0 0
        %5774 = vmatpush1.bf16.msra.mxu0 0
        %5775 = vmatprep.subr.bf16.mxu0 0
        %5776 = vmatpush1.bf16.msra.mxu0 0
        %5777 = vmatprep.subr.bf16.mxu0 0
        %5778 = vmatpush1.bf16.msra.mxu0 0
        %5779 = vmatprep.subr.bf16.mxu0 0
        %5780 = vmatpush1.bf16.msra.mxu0 0
        %5781 = vmatprep.subr.bf16.mxu0 0
        %5782 = vmatpush1.bf16.msra.mxu0 0
        %5783 = vmatprep.subr.bf16.mxu0 0
        %5784 = vmatpush1.bf16.msra.mxu0 0
        %5785 = vmatprep.mubr.bf16.mxu0 0
        %5786 = vmatmul.mubr.bf16.gmra.mrb[0].mxu0 %v5748
        %v5787 = vpop.f32.mrb[0].mxu0
        %v5788 = vadd.f32 0.0, %v5787
        %v5789 = vpop.f32.mrb[0].mxu0
        %v5790 = vpop.f32.mrb[0].mxu0
        %v5791 = vpop.f32.mrb[0].mxu0
        %5792 = vdwg.mxu0
        %5794 = vrot.lane.b32.xlu0 %v5560, 32
        %v5795 = vpop.permute.xlu0 %5794
        %5798 = vrot.lane.b32.xlu0 %v5674, 64
        %v5799 = vpop.permute.xlu0 %5798
        %5802 = vrot.lane.b32.xlu0 %v5788, 96
        %v5803 = vpop.permute.xlu0 %5802
        %v5805 = vsel %vm985, %v5443, %v5795
        %v5806 = vsel %vm1454, %v5805, %v5799
        %v5807 = vsel %vm1456, %v5806, %v5803
        %v5808 = vpack.c.bf16 %v5807, %v5807
        %v5810 = vlaneseq
        %v5811 = vshrl.u32 %v5810, 7
        %v5812 = vsub.s32 0, %v5811
        %v5813 = vrot.slane %v5336, %v5812
        %v5831 = vunpack.c.l.b16 %v5319
        %v5832 = vunpack.c.l.b16 %v5320
        %v5833 = vunpack.c.l.b16 %v5321
        %v5834 = vunpack.c.l.b16 %v5322
        %v5835 = vunpack.c.l.b16 %v5323
        %v5836 = vunpack.c.l.b16 %v5324
        %v5837 = vunpack.c.l.b16 %v5325
        %v5838 = vunpack.c.l.b16 %v5326
        %v5839 = vunpack.c.l.b16 %v5327
        %v5840 = vunpack.c.l.b16 %v5328
        %v5841 = vunpack.c.l.b16 %v5329
        %v5842 = vunpack.c.l.b16 %v5330
        %v5843 = vunpack.c.l.b16 %v5331
        %v5844 = vunpack.c.l.b16 %v5332
        %v5845 = vunpack.c.l.b16 %v5333
        %v5846 = vunpack.c.l.b16 %v5334
        %v5847 = vpack.c.b16 %v5832, %v5831
        %v5848 = vpack.c.b16 %v5834, %v5833
        %v5849 = vpack.c.b16 %v5836, %v5835
        %v5850 = vpack.c.b16 %v5838, %v5837
        %v5851 = vpack.c.b16 %v5840, %v5839
        %v5852 = vpack.c.b16 %v5842, %v5841
        %v5853 = vpack.c.b16 %v5844, %v5843
        %v5854 = vpack.c.b16 %v5846, %v5845
        %5863 = vmatprep.subr.bf16.mxu0 0
        %5864 = vmatpush1.bf16.msra.mxu0 %v5847
        %5865 = vmatprep.subr.bf16.mxu0 0
        %5866 = vmatpush1.bf16.msra.mxu0 %v5848
        %5867 = vmatprep.subr.bf16.mxu0 0
        %5868 = vmatpush1.bf16.msra.mxu0 %v5849
        %5869 = vmatprep.subr.bf16.mxu0 0
        %5870 = vmatpush1.bf16.msra.mxu0 %v5850
        %5871 = vmatprep.subr.bf16.mxu0 0
        %5872 = vmatpush1.bf16.msra.mxu0 %v5851
        %5873 = vmatprep.subr.bf16.mxu0 0
        %5874 = vmatpush1.bf16.msra.mxu0 %v5852
        %5875 = vmatprep.subr.bf16.mxu0 0
        %5876 = vmatpush1.bf16.msra.mxu0 %v5853
        %5877 = vmatprep.subr.bf16.mxu0 0
        %5878 = vmatpush1.bf16.msra.mxu0 %v5854
        %5879 = vmatprep.subr.bf16.mxu0 0
        %5880 = vmatpush1.bf16.msra.mxu0 0
        %5881 = vmatprep.subr.bf16.mxu0 0
        %5882 = vmatpush1.bf16.msra.mxu0 0
        %5883 = vmatprep.subr.bf16.mxu0 0
        %5884 = vmatpush1.bf16.msra.mxu0 0
        %5885 = vmatprep.subr.bf16.mxu0 0
        %5886 = vmatpush1.bf16.msra.mxu0 0
        %5887 = vmatprep.subr.bf16.mxu0 0
        %5888 = vmatpush1.bf16.msra.mxu0 0
        %5889 = vmatprep.subr.bf16.mxu0 0
        %5890 = vmatpush1.bf16.msra.mxu0 0
        %5891 = vmatprep.subr.bf16.mxu0 0
        %5892 = vmatpush1.bf16.msra.mxu0 0
        %5893 = vmatprep.subr.bf16.mxu0 0
        %5894 = vmatpush1.bf16.msra.mxu0 0
        %5895 = vmatprep.mubr.bf16.mxu0 0
        %5896 = vmatmul.mubr.bf16.gmra.mrb[0].mxu0 %v5808
        %v5897 = vpop.f32.mrb[0].mxu0
        %v5898 = vadd.f32 %v5813, %v5897
        %v5899 = vpop.f32.mrb[0].mxu0
        %v5900 = vpop.f32.mrb[0].mxu0
        %v5901 = vpop.f32.mrb[0].mxu0
        %5902 = vdwg.mxu0
        %v5903 = vadd.f32 %v5056, %v5898
        %s5904 = scalar_lea.vmem %s15, 3
        %v5905 = vld [vmem:[%s5904] sm:$0x1]
        %s5906 = scalar_lea.vmem %s16, 3
        %v5907 = vld [vmem:[%s5906] sm:$0x1]
        %5908 = vadd.xlane.f32.xlu0 %v5903
        %v5909 = vpop.xlane.xlu0 %5908
        %v5910 = vmul.f32 %v5909, %v1558
        %v5911 = vsub.f32 %v5903, %v5910
        %v5912 = vmul.f32 %v5911, %v5911
        %5913 = vadd.xlane.f32.xlu0 %v5912
        %v5914 = vpop.xlane.xlu0 %5913
        %v5915 = vmul.f32 %v5914, %v1558
        %v5916 = vadd.f32 %v5915, 1e-05
        %v5917 = vrsqrt.pop %v5916
        %v5918 = vmul.f32 %v5911, %v5917
        %v5920 = vlaneseq
        %v5921 = vshrl.u32 %v5920, 7
        %v5922 = vsub.s32 0, %v5921
        %v5923 = vrot.slane %v5905, %v5922
        %v5925 = vmul.f32 %v5918, %v5923
        %v5927 = vlaneseq
        %v5928 = vshrl.u32 %v5927, 7
        %v5929 = vsub.s32 0, %v5928
        %v5930 = vrot.slane %v5907, %v5929
        %v5932 = vadd.f32 %v5925, %v5930
        %v5933 = vpack.c.bf16 %v5932, %v5932
        %s5934 = scalar_lea.vmem [#allocation8], 64
        %v5935 = vld [vmem:[%s5934] sm:$0xf]
        %v5936 = vld [vmem:[%s5934 + $0x4] sm:$0xf]
        %v5937 = vld [vmem:[%s5934 + $0x8] sm:$0xf]
        %v5938 = vld [vmem:[%s5934 + $0xc] sm:$0xf]
        %v5939 = vld [vmem:[%s5934 + $0x10] sm:$0xf]
        %v5940 = vld [vmem:[%s5934 + $0x14] sm:$0xf]
        %v5941 = vld [vmem:[%s5934 + $0x18] sm:$0xf]
        %v5942 = vld [vmem:[%s5934 + $0x1c] sm:$0xf]
        %v5943 = vld [vmem:[%s5934 + $0x20] sm:$0xf]
        %v5944 = vld [vmem:[%s5934 + $0x24] sm:$0xf]
        %v5945 = vld [vmem:[%s5934 + $0x28] sm:$0xf]
        %v5946 = vld [vmem:[%s5934 + $0x2c] sm:$0xf]
        %v5947 = vld [vmem:[%s5934 + $0x30] sm:$0xf]
        %v5948 = vld [vmem:[%s5934 + $0x34] sm:$0xf]
        %v5949 = vld [vmem:[%s5934 + $0x38] sm:$0xf]
        %v5950 = vld [vmem:[%s5934 + $0x3c] sm:$0xf]
        %s5951 = scalar_lea.vmem [#allocation10], 1
        %v5952 = vld [vmem:[%s5951] sm:$0x1]
        %v5954 = vlaneseq
        %v5955 = vshrl.u32 %v5954, 7
        %v5956 = vsub.s32 0, %v5955
        %v5957 = vrot.slane %v5952, %v5956
        %v5975 = vunpack.c.l.b16 %v5935
        %v5976 = vunpack.c.l.b16 %v5936
        %v5977 = vunpack.c.l.b16 %v5937
        %v5978 = vunpack.c.l.b16 %v5938
        %v5979 = vunpack.c.l.b16 %v5939
        %v5980 = vunpack.c.l.b16 %v5940
        %v5981 = vunpack.c.l.b16 %v5941
        %v5982 = vunpack.c.l.b16 %v5942
        %v5983 = vunpack.c.l.b16 %v5943
        %v5984 = vunpack.c.l.b16 %v5944
        %v5985 = vunpack.c.l.b16 %v5945
        %v5986 = vunpack.c.l.b16 %v5946
        %v5987 = vunpack.c.l.b16 %v5947
        %v5988 = vunpack.c.l.b16 %v5948
        %v5989 = vunpack.c.l.b16 %v5949
        %v5990 = vunpack.c.l.b16 %v5950
        %v5991 = vpack.c.b16 %v5976, %v5975
        %v5992 = vpack.c.b16 %v5978, %v5977
        %v5993 = vpack.c.b16 %v5980, %v5979
        %v5994 = vpack.c.b16 %v5982, %v5981
        %v5995 = vpack.c.b16 %v5984, %v5983
        %v5996 = vpack.c.b16 %v5986, %v5985
        %v5997 = vpack.c.b16 %v5988, %v5987
        %v5998 = vpack.c.b16 %v5990, %v5989
        %6007 = vmatprep.subr.bf16.mxu0 0
        %6008 = vmatpush1.bf16.msra.mxu0 %v5991
        %6009 = vmatprep.subr.bf16.mxu0 0
        %6010 = vmatpush1.bf16.msra.mxu0 %v5992
        %6011 = vmatprep.subr.bf16.mxu0 0
        %6012 = vmatpush1.bf16.msra.mxu0 %v5993
        %6013 = vmatprep.subr.bf16.mxu0 0
        %6014 = vmatpush1.bf16.msra.mxu0 %v5994
        %6015 = vmatprep.subr.bf16.mxu0 0
        %6016 = vmatpush1.bf16.msra.mxu0 %v5995
        %6017 = vmatprep.subr.bf16.mxu0 0
        %6018 = vmatpush1.bf16.msra.mxu0 %v5996
        %6019 = vmatprep.subr.bf16.mxu0 0
        %6020 = vmatpush1.bf16.msra.mxu0 %v5997
        %6021 = vmatprep.subr.bf16.mxu0 0
        %6022 = vmatpush1.bf16.msra.mxu0 %v5998
        %6023 = vmatprep.subr.bf16.mxu0 0
        %6024 = vmatpush1.bf16.msra.mxu0 0
        %6025 = vmatprep.subr.bf16.mxu0 0
        %6026 = vmatpush1.bf16.msra.mxu0 0
        %6027 = vmatprep.subr.bf16.mxu0 0
        %6028 = vmatpush1.bf16.msra.mxu0 0
        %6029 = vmatprep.subr.bf16.mxu0 0
        %6030 = vmatpush1.bf16.msra.mxu0 0
        %6031 = vmatprep.subr.bf16.mxu0 0
        %6032 = vmatpush1.bf16.msra.mxu0 0
        %6033 = vmatprep.subr.bf16.mxu0 0
        %6034 = vmatpush1.bf16.msra.mxu0 0
        %6035 = vmatprep.subr.bf16.mxu0 0
        %6036 = vmatpush1.bf16.msra.mxu0 0
        %6037 = vmatprep.subr.bf16.mxu0 0
        %6038 = vmatpush1.bf16.msra.mxu0 0
        %6039 = vmatprep.mubr.bf16.mxu0 0
        %6040 = vmatmul.mubr.bf16.gmra.mrb[0].mxu0 %v5933
        %v6041 = vpop.f32.mrb[0].mxu0
        %v6042 = vadd.f32 %v5957, %v6041
        %v6043 = vpop.f32.mrb[0].mxu0
        %v6044 = vpop.f32.mrb[0].mxu0
        %v6045 = vpop.f32.mrb[0].mxu0
        %6046 = vdwg.mxu0
        %s6047 = scalar_lea.vmem %s7, 128
        %v6048 = vld [vmem:[%s6047] sm:$0xff]
        %v6049 = vld [vmem:[%s6047 + $0x8] sm:$0xff]
        %v6050 = vld [vmem:[%s6047 + $0x10] sm:$0xff]
        %v6051 = vld [vmem:[%s6047 + $0x18] sm:$0xff]
        %v6052 = vld [vmem:[%s6047 + $0x20] sm:$0xff]
        %v6053 = vld [vmem:[%s6047 + $0x28] sm:$0xff]
        %v6054 = vld [vmem:[%s6047 + $0x30] sm:$0xff]
        %v6055 = vld [vmem:[%s6047 + $0x38] sm:$0xff]
        %v6056 = vld [vmem:[%s6047 + $0x40] sm:$0xff]
        %v6057 = vld [vmem:[%s6047 + $0x48] sm:$0xff]
        %v6058 = vld [vmem:[%s6047 + $0x50] sm:$0xff]
        %v6059 = vld [vmem:[%s6047 + $0x58] sm:$0xff]
        %v6060 = vld [vmem:[%s6047 + $0x60] sm:$0xff]
        %v6061 = vld [vmem:[%s6047 + $0x68] sm:$0xff]
        %v6062 = vld [vmem:[%s6047 + $0x70] sm:$0xff]
        %v6063 = vld [vmem:[%s6047 + $0x78] sm:$0xff]
        %s6064 = scalar_lea.vmem [#allocation11], 2
        %v6065 = vld [vmem:[%s6064] sm:$0x3]
        %v6067 = vlaneseq
        %v6068 = vshrl.u32 %v6067, 7
        %v6069 = vsub.s32 0, %v6068
        %v6070 = vrot.slane %v6065, %v6069
        %v6071 = vlaneseq
        %v6072 = vshrl.u32 %v6071, 7
        %v6073 = vsub.s32 1, %v6072
        %v6074 = vrot.slane %v6065, %v6073
        %v6093 = vunpack.c.l.b16 %v6048
        %v6094 = vunpack.c.h.b16 %v6048
        %v6095 = vunpack.c.l.b16 %v6049
        %v6096 = vunpack.c.h.b16 %v6049
        %v6097 = vunpack.c.l.b16 %v6050
        %v6098 = vunpack.c.h.b16 %v6050
        %v6099 = vunpack.c.l.b16 %v6051
        %v6100 = vunpack.c.h.b16 %v6051
        %v6101 = vunpack.c.l.b16 %v6052
        %v6102 = vunpack.c.h.b16 %v6052
        %v6103 = vunpack.c.l.b16 %v6053
        %v6104 = vunpack.c.h.b16 %v6053
        %v6105 = vunpack.c.l.b16 %v6054
        %v6106 = vunpack.c.h.b16 %v6054
        %v6107 = vunpack.c.l.b16 %v6055
        %v6108 = vunpack.c.h.b16 %v6055
        %v6109 = vunpack.c.l.b16 %v6056
        %v6110 = vunpack.c.h.b16 %v6056
        %v6111 = vunpack.c.l.b16 %v6057
        %v6112 = vunpack.c.h.b16 %v6057
        %v6113 = vunpack.c.l.b16 %v6058
        %v6114 = vunpack.c.h.b16 %v6058
        %v6115 = vunpack.c.l.b16 %v6059
        %v6116 = vunpack.c.h.b16 %v6059
        %v6117 = vunpack.c.l.b16 %v6060
        %v6118 = vunpack.c.h.b16 %v6060
        %v6119 = vunpack.c.l.b16 %v6061
        %v6120 = vunpack.c.h.b16 %v6061
        %v6121 = vunpack.c.l.b16 %v6062
        %v6122 = vunpack.c.h.b16 %v6062
        %v6123 = vunpack.c.l.b16 %v6063
        %v6124 = vunpack.c.h.b16 %v6063
        %v6125 = vpack.c.b16 %v6095, %v6093
        %v6126 = vpack.c.b16 %v6096, %v6094
        %v6127 = vpack.c.b16 %v6099, %v6097
        %v6128 = vpack.c.b16 %v6100, %v6098
        %v6129 = vpack.c.b16 %v6103, %v6101
        %v6130 = vpack.c.b16 %v6104, %v6102
        %v6131 = vpack.c.b16 %v6107, %v6105
        %v6132 = vpack.c.b16 %v6108, %v6106
        %v6133 = vpack.c.b16 %v6111, %v6109
        %v6134 = vpack.c.b16 %v6112, %v6110
        %v6135 = vpack.c.b16 %v6115, %v6113
        %v6136 = vpack.c.b16 %v6116, %v6114
        %v6137 = vpack.c.b16 %v6119, %v6117
        %v6138 = vpack.c.b16 %v6120, %v6118
        %v6139 = vpack.c.b16 %v6123, %v6121
        %v6140 = vpack.c.b16 %v6124, %v6122
        %6157 = vmatprep.subr.bf16.mxu0 %v6126
        %6158 = vmatpush1.bf16.msra.mxu0 %v6125
        %6159 = vmatprep.subr.bf16.mxu0 %v6128
        %6160 = vmatpush1.bf16.msra.mxu0 %v6127
        %6161 = vmatprep.subr.bf16.mxu0 %v6130
        %6162 = vmatpush1.bf16.msra.mxu0 %v6129
        %6163 = vmatprep.subr.bf16.mxu0 %v6132
        %6164 = vmatpush1.bf16.msra.mxu0 %v6131
        %6165 = vmatprep.subr.bf16.mxu0 %v6134
        %6166 = vmatpush1.bf16.msra.mxu0 %v6133
        %6167 = vmatprep.subr.bf16.mxu0 %v6136
        %6168 = vmatpush1.bf16.msra.mxu0 %v6135
        %6169 = vmatprep.subr.bf16.mxu0 %v6138
        %6170 = vmatpush1.bf16.msra.mxu0 %v6137
        %6171 = vmatprep.subr.bf16.mxu0 %v6140
        %6172 = vmatpush1.bf16.msra.mxu0 %v6139
        %6173 = vmatprep.subr.bf16.mxu0 0
        %6174 = vmatpush1.bf16.msra.mxu0 0
        %6175 = vmatprep.subr.bf16.mxu0 0
        %6176 = vmatpush1.bf16.msra.mxu0 0
        %6177 = vmatprep.subr.bf16.mxu0 0
        %6178 = vmatpush1.bf16.msra.mxu0 0
        %6179 = vmatprep.subr.bf16.mxu0 0
        %6180 = vmatpush1.bf16.msra.mxu0 0
        %6181 = vmatprep.subr.bf16.mxu0 0
        %6182 = vmatpush1.bf16.msra.mxu0 0
        %6183 = vmatprep.subr.bf16.mxu0 0
        %6184 = vmatpush1.bf16.msra.mxu0 0
        %6185 = vmatprep.subr.bf16.mxu0 0
        %6186 = vmatpush1.bf16.msra.mxu0 0
        %6187 = vmatprep.subr.bf16.mxu0 0
        %6188 = vmatpush1.bf16.msra.mxu0 0
        %6189 = vmatprep.mubr.bf16.mxu0 0
        %6190 = vmatmul.mubr.bf16.gmra.mrb[0].mxu0 %v706
        %v6191 = vpop.f32.mrb[0].mxu0
        %v6192 = vadd.f32 %v6070, %v6191
        %v6193 = vpop.f32.mrb[0].mxu0
        %v6194 = vadd.f32 %v6074, %v6193
        %v6195 = vpop.f32.mrb[0].mxu0
        %v6196 = vpop.f32.mrb[0].mxu0
        %6197 = vdwg.mxu0
        %s6198 = scalar_lea.vmem [#allocation13], 64
        %v6199 = vld [vmem:[%s6198] sm:$0xf]
        %v6200 = vld [vmem:[%s6198 + $0x4] sm:$0xf]
        %v6201 = vld [vmem:[%s6198 + $0x8] sm:$0xf]
        %v6202 = vld [vmem:[%s6198 + $0xc] sm:$0xf]
        %v6203 = vld [vmem:[%s6198 + $0x10] sm:$0xf]
        %v6204 = vld [vmem:[%s6198 + $0x14] sm:$0xf]
        %v6205 = vld [vmem:[%s6198 + $0x18] sm:$0xf]
        %v6206 = vld [vmem:[%s6198 + $0x1c] sm:$0xf]
        %v6207 = vld [vmem:[%s6198 + $0x20] sm:$0xf]
        %v6208 = vld [vmem:[%s6198 + $0x24] sm:$0xf]
        %v6209 = vld [vmem:[%s6198 + $0x28] sm:$0xf]
        %v6210 = vld [vmem:[%s6198 + $0x2c] sm:$0xf]
        %v6211 = vld [vmem:[%s6198 + $0x30] sm:$0xf]
        %v6212 = vld [vmem:[%s6198 + $0x34] sm:$0xf]
        %v6213 = vld [vmem:[%s6198 + $0x38] sm:$0xf]
        %v6214 = vld [vmem:[%s6198 + $0x3c] sm:$0xf]
        %s6215 = scalar_lea.vmem [#allocation14], 1
        %v6216 = vld [vmem:[%s6215] sm:$0x1]
        %v6217 = vpack.c.bf16 %v6042, %v6042
        %v6218 = vpack.c.bf16 %v6192, %v6192
        %v6219 = vpack.c.bf16 %v6194, %v6194
        %v6221 = vsel %vm985, %v6217, 0
        %v6224 = vsel %vm985, %v6218, 0
        %6226 = vmatprep.subr.bf16.mxu0 0
        %6227 = vmatpush1.bf16.xpose.msra.mxu0 %v6224
        %6228 = vmatprep.subr.bf16.mxu0 0
        %6229 = vmatpush1.bf16.xpose.msra.mxu0 0
        %6230 = vmatprep.subr.bf16.mxu0 0
        %6231 = vmatpush1.bf16.xpose.msra.mxu0 0
        %6232 = vmatprep.subr.bf16.mxu0 0
        %6233 = vmatpush1.bf16.xpose.msra.mxu0 0
        %6234 = vmatprep.subr.bf16.mxu0 0
        %6235 = vmatpush1.bf16.xpose.msra.mxu0 0
        %6236 = vmatprep.subr.bf16.mxu0 0
        %6237 = vmatpush1.bf16.xpose.msra.mxu0 0
        %6238 = vmatprep.subr.bf16.mxu0 0
        %6239 = vmatpush1.bf16.xpose.msra.mxu0 0
        %6240 = vmatprep.subr.bf16.mxu0 0
        %6241 = vmatpush1.bf16.xpose.msra.mxu0 0
        %6242 = vmatprep.subr.bf16.mxu0 0
        %6243 = vmatpush1.bf16.xpose.msra.mxu0 0
        %6244 = vmatprep.subr.bf16.mxu0 0
        %6245 = vmatpush1.bf16.xpose.msra.mxu0 0
        %6246 = vmatprep.subr.bf16.mxu0 0
        %6247 = vmatpush1.bf16.xpose.msra.mxu0 0
        %6248 = vmatprep.subr.bf16.mxu0 0
        %6249 = vmatpush1.bf16.xpose.msra.mxu0 0
        %6250 = vmatprep.subr.bf16.mxu0 0
        %6251 = vmatpush1.bf16.xpose.msra.mxu0 0
        %6252 = vmatprep.subr.bf16.mxu0 0
        %6253 = vmatpush1.bf16.xpose.msra.mxu0 0
        %6254 = vmatprep.subr.bf16.mxu0 0
        %6255 = vmatpush1.bf16.xpose.msra.mxu0 0
        %6256 = vmatprep.subr.bf16.mxu0 0
        %6257 = vmatpush1.bf16.xpose.msra.mxu0 0
        %6258 = vmatprep.mubr.bf16.mxu0 0
        %6259 = vmatmul.mubr.bf16.gmra.mrb[0].mxu0 %v6221
        %v6260 = vpop.f32.mrb[0].mxu0
        %v6261 = vadd.f32 0.0, %v6260
        %v6262 = vpop.f32.mrb[0].mxu0
        %v6263 = vpop.f32.mrb[0].mxu0
        %v6264 = vpop.f32.mrb[0].mxu0
        %6265 = vdwg.mxu0
        %v6266 = vmul.f32 %v6261, 0.17677669
        %v6267 = vsel %vm1033, %v6266, -inf
        %6268 = vmax.xlane.f32.xlu0 %v6267
        %v6269 = vpop.xlane.xlu0 %6268
        %v6270 = vsub.f32 %v6266, %v6269
        %v6271 = vmul.f32 %v6270, 1.442695
        %v6272 = vpow.pop %v6271
        %v6273 = vsel %vm1033, %v6272, 0.0
        %6274 = vadd.xlane.f32.xlu0 %v6273
        %v6275 = vpop.xlane.xlu0 %6274
        %v6276 = vrcp.pop %v6275
        %v6277 = vmul.f32 %v6275, %v6276
        %v6278 = vsub.f32 2.0, %v6277
        %v6279 = vmul.f32 %v6276, %v6278
        %v6280 = vmul.f32 %v6272, %v6279
        %v6281 = vpack.c.bf16 %v6280, %v6280
        %v6283 = vsel %vm1033, %v6281, 0
        %v6286 = vsel %vm1052, %v6219, 0
        %6288 = vmatprep.subr.bf16.mxu0 0
        %6289 = vmatpush1.bf16.msra.mxu0 %v6286
        %6290 = vmatprep.subr.bf16.mxu0 0
        %6291 = vmatpush1.bf16.msra.mxu0 0
        %6292 = vmatprep.subr.bf16.mxu0 0
        %6293 = vmatpush1.bf16.msra.mxu0 0
        %6294 = vmatprep.subr.bf16.mxu0 0
        %6295 = vmatpush1.bf16.msra.mxu0 0
        %6296 = vmatprep.subr.bf16.mxu0 0
        %6297 = vmatpush1.bf16.msra.mxu0 0
        %6298 = vmatprep.subr.bf16.mxu0 0
        %6299 = vmatpush1.bf16.msra.mxu0 0
        %6300 = vmatprep.subr.bf16.mxu0 0
        %6301 = vmatpush1.bf16.msra.mxu0 0
        %6302 = vmatprep.subr.bf16.mxu0 0
        %6303 = vmatpush1.bf16.msra.mxu0 0
        %6304 = vmatprep.subr.bf16.mxu0 0
        %6305 = vmatpush1.bf16.msra.mxu0 0
        %6306 = vmatprep.subr.bf16.mxu0 0
        %6307 = vmatpush1.bf16.msra.mxu0 0
        %6308 = vmatprep.subr.bf16.mxu0 0
        %6309 = vmatpush1.bf16.msra.mxu0 0
        %6310 = vmatprep.subr.bf16.mxu0 0
        %6311 = vmatpush1.bf16.msra.mxu0 0
        %6312 = vmatprep.subr.bf16.mxu0 0
        %6313 = vmatpush1.bf16.msra.mxu0 0
        %6314 = vmatprep.subr.bf16.mxu0 0
        %6315 = vmatpush1.bf16.msra.mxu0 0
        %6316 = vmatprep.subr.bf16.mxu0 0
        %6317 = vmatpush1.bf16.msra.mxu0 0
        %6318 = vmatprep.subr.bf16.mxu0 0
        %6319 = vmatpush1.bf16.msra.mxu0 0
        %6320 = vmatprep.mubr.bf16.mxu0 0
        %6321 = vmatmul.mubr.bf16.gmra.mrb[0].mxu0 %v6283
        %v6322 = vpop.f32.mrb[0].mxu0
        %v6323 = vadd.f32 0.0, %v6322
        %v6324 = vpop.f32.mrb[0].mxu0
        %v6325 = vpop.f32.mrb[0].mxu0
        %v6326 = vpop.f32.mrb[0].mxu0
        %6327 = vdwg.mxu0
        %6329 = vrot.lane.b32.xlu0 %v6217, 96
        %v6330 = vpop.permute.xlu0 %6329
        %6332 = vrot.lane.b32.xlu0 %v6218, 96
        %v6333 = vpop.permute.xlu0 %6332
        %v6335 = vsel %vm985, %v6330, 0
        %v6338 = vsel %vm985, %v6333, 0
        %6340 = vmatprep.subr.bf16.mxu0 0
        %6341 = vmatpush1.bf16.xpose.msra.mxu0 %v6338
        %6342 = vmatprep.subr.bf16.mxu0 0
        %6343 = vmatpush1.bf16.xpose.msra.mxu0 0
        %6344 = vmatprep.subr.bf16.mxu0 0
        %6345 = vmatpush1.bf16.xpose.msra.mxu0 0
        %6346 = vmatprep.subr.bf16.mxu0 0
        %6347 = vmatpush1.bf16.xpose.msra.mxu0 0
        %6348 = vmatprep.subr.bf16.mxu0 0
        %6349 = vmatpush1.bf16.xpose.msra.mxu0 0
        %6350 = vmatprep.subr.bf16.mxu0 0
        %6351 = vmatpush1.bf16.xpose.msra.mxu0 0
        %6352 = vmatprep.subr.bf16.mxu0 0
        %6353 = vmatpush1.bf16.xpose.msra.mxu0 0
        %6354 = vmatprep.subr.bf16.mxu0 0
        %6355 = vmatpush1.bf16.xpose.msra.mxu0 0
        %6356 = vmatprep.subr.bf16.mxu0 0
        %6357 = vmatpush1.bf16.xpose.msra.mxu0 0
        %6358 = vmatprep.subr.bf16.mxu0 0
        %6359 = vmatpush1.bf16.xpose.msra.mxu0 0
        %6360 = vmatprep.subr.bf16.mxu0 0
        %6361 = vmatpush1.bf16.xpose.msra.mxu0 0
        %6362 = vmatprep.subr.bf16.mxu0 0
        %6363 = vmatpush1.bf16.xpose.msra.mxu0 0
        %6364 = vmatprep.subr.bf16.mxu0 0
        %6365 = vmatpush1.bf16.xpose.msra.mxu0 0
        %6366 = vmatprep.subr.bf16.mxu0 0
        %6367 = vmatpush1.bf16.xpose.msra.mxu0 0
        %6368 = vmatprep.subr.bf16.mxu0 0
        %6369 = vmatpush1.bf16.xpose.msra.mxu0 0
        %6370 = vmatprep.subr.bf16.mxu0 0
        %6371 = vmatpush1.bf16.xpose.msra.mxu0 0
        %6372 = vmatprep.mubr.bf16.mxu0 0
        %6373 = vmatmul.mubr.bf16.gmra.mrb[0].mxu0 %v6335
        %v6374 = vpop.f32.mrb[0].mxu0
        %v6375 = vadd.f32 0.0, %v6374
        %v6376 = vpop.f32.mrb[0].mxu0
        %v6377 = vpop.f32.mrb[0].mxu0
        %v6378 = vpop.f32.mrb[0].mxu0
        %6379 = vdwg.mxu0
        %v6380 = vmul.f32 %v6375, 0.17677669
        %v6381 = vsel %vm1033, %v6380, -inf
        %6382 = vmax.xlane.f32.xlu0 %v6381
        %v6383 = vpop.xlane.xlu0 %6382
        %v6384 = vsub.f32 %v6380, %v6383
        %v6385 = vmul.f32 %v6384, 1.442695
        %v6386 = vpow.pop %v6385
        %v6387 = vsel %vm1033, %v6386, 0.0
        %6388 = vadd.xlane.f32.xlu0 %v6387
        %v6389 = vpop.xlane.xlu0 %6388
        %v6390 = vrcp.pop %v6389
        %v6391 = vmul.f32 %v6389, %v6390
        %v6392 = vsub.f32 2.0, %v6391
        %v6393 = vmul.f32 %v6390, %v6392
        %v6394 = vmul.f32 %v6386, %v6393
        %v6395 = vpack.c.bf16 %v6394, %v6394
        %6397 = vrot.lane.b32.xlu0 %v6219, 96
        %v6398 = vpop.permute.xlu0 %6397
        %v6400 = vsel %vm1033, %v6395, 0
        %v6403 = vsel %vm1052, %v6398, 0
        %6405 = vmatprep.subr.bf16.mxu0 0
        %6406 = vmatpush1.bf16.msra.mxu0 %v6403
        %6407 = vmatprep.subr.bf16.mxu0 0
        %6408 = vmatpush1.bf16.msra.mxu0 0
        %6409 = vmatprep.subr.bf16.mxu0 0
        %6410 = vmatpush1.bf16.msra.mxu0 0
        %6411 = vmatprep.subr.bf16.mxu0 0
        %6412 = vmatpush1.bf16.msra.mxu0 0
        %6413 = vmatprep.subr.bf16.mxu0 0
        %6414 = vmatpush1.bf16.msra.mxu0 0
        %6415 = vmatprep.subr.bf16.mxu0 0
        %6416 = vmatpush1.bf16.msra.mxu0 0
        %6417 = vmatprep.subr.bf16.mxu0 0
        %6418 = vmatpush1.bf16.msra.mxu0 0
        %6419 = vmatprep.subr.bf16.mxu0 0
        %6420 = vmatpush1.bf16.msra.mxu0 0
        %6421 = vmatprep.subr.bf16.mxu0 0
        %6422 = vmatpush1.bf16.msra.mxu0 0
        %6423 = vmatprep.subr.bf16.mxu0 0
        %6424 = vmatpush1.bf16.msra.mxu0 0
        %6425 = vmatprep.subr.bf16.mxu0 0
        %6426 = vmatpush1.bf16.msra.mxu0 0
        %6427 = vmatprep.subr.bf16.mxu0 0
        %6428 = vmatpush1.bf16.msra.mxu0 0
        %6429 = vmatprep.subr.bf16.mxu0 0
        %6430 = vmatpush1.bf16.msra.mxu0 0
        %6431 = vmatprep.subr.bf16.mxu0 0
        %6432 = vmatpush1.bf16.msra.mxu0 0
        %6433 = vmatprep.subr.bf16.mxu0 0
        %6434 = vmatpush1.bf16.msra.mxu0 0
        %6435 = vmatprep.subr.bf16.mxu0 0
        %6436 = vmatpush1.bf16.msra.mxu0 0
        %6437 = vmatprep.mubr.bf16.mxu0 0
        %6438 = vmatmul.mubr.bf16.gmra.mrb[0].mxu0 %v6400
        %v6439 = vpop.f32.mrb[0].mxu0
        %v6440 = vadd.f32 0.0, %v6439
        %v6441 = vpop.f32.mrb[0].mxu0
        %v6442 = vpop.f32.mrb[0].mxu0
        %v6443 = vpop.f32.mrb[0].mxu0
        %6444 = vdwg.mxu0
        %6445 = vrot.lane.b32.xlu0 %v6217, 64
        %v6446 = vpop.permute.xlu0 %6445
        %6447 = vrot.lane.b32.xlu0 %v6218, 64
        %v6448 = vpop.permute.xlu0 %6447
        %v6450 = vsel %vm985, %v6446, 0
        %v6453 = vsel %vm985, %v6448, 0
        %6455 = vmatprep.subr.bf16.mxu0 0
        %6456 = vmatpush1.bf16.xpose.msra.mxu0 %v6453
        %6457 = vmatprep.subr.bf16.mxu0 0
        %6458 = vmatpush1.bf16.xpose.msra.mxu0 0
        %6459 = vmatprep.subr.bf16.mxu0 0
        %6460 = vmatpush1.bf16.xpose.msra.mxu0 0
        %6461 = vmatprep.subr.bf16.mxu0 0
        %6462 = vmatpush1.bf16.xpose.msra.mxu0 0
        %6463 = vmatprep.subr.bf16.mxu0 0
        %6464 = vmatpush1.bf16.xpose.msra.mxu0 0
        %6465 = vmatprep.subr.bf16.mxu0 0
        %6466 = vmatpush1.bf16.xpose.msra.mxu0 0
        %6467 = vmatprep.subr.bf16.mxu0 0
        %6468 = vmatpush1.bf16.xpose.msra.mxu0 0
        %6469 = vmatprep.subr.bf16.mxu0 0
        %6470 = vmatpush1.bf16.xpose.msra.mxu0 0
        %6471 = vmatprep.subr.bf16.mxu0 0
        %6472 = vmatpush1.bf16.xpose.msra.mxu0 0
        %6473 = vmatprep.subr.bf16.mxu0 0
        %6474 = vmatpush1.bf16.xpose.msra.mxu0 0
        %6475 = vmatprep.subr.bf16.mxu0 0
        %6476 = vmatpush1.bf16.xpose.msra.mxu0 0
        %6477 = vmatprep.subr.bf16.mxu0 0
        %6478 = vmatpush1.bf16.xpose.msra.mxu0 0
        %6479 = vmatprep.subr.bf16.mxu0 0
        %6480 = vmatpush1.bf16.xpose.msra.mxu0 0
        %6481 = vmatprep.subr.bf16.mxu0 0
        %6482 = vmatpush1.bf16.xpose.msra.mxu0 0
        %6483 = vmatprep.subr.bf16.mxu0 0
        %6484 = vmatpush1.bf16.xpose.msra.mxu0 0
        %6485 = vmatprep.subr.bf16.mxu0 0
        %6486 = vmatpush1.bf16.xpose.msra.mxu0 0
        %6487 = vmatprep.mubr.bf16.mxu0 0
        %6488 = vmatmul.mubr.bf16.gmra.mrb[0].mxu0 %v6450
        %v6489 = vpop.f32.mrb[0].mxu0
        %v6490 = vadd.f32 0.0, %v6489
        %v6491 = vpop.f32.mrb[0].mxu0
        %v6492 = vpop.f32.mrb[0].mxu0
        %v6493 = vpop.f32.mrb[0].mxu0
        %6494 = vdwg.mxu0
        %v6495 = vmul.f32 %v6490, 0.17677669
        %v6496 = vsel %vm1033, %v6495, -inf
        %6497 = vmax.xlane.f32.xlu0 %v6496
        %v6498 = vpop.xlane.xlu0 %6497
        %v6499 = vsub.f32 %v6495, %v6498
        %v6500 = vmul.f32 %v6499, 1.442695
        %v6501 = vpow.pop %v6500
        %v6502 = vsel %vm1033, %v6501, 0.0
        %6503 = vadd.xlane.f32.xlu0 %v6502
        %v6504 = vpop.xlane.xlu0 %6503
        %v6505 = vrcp.pop %v6504
        %v6506 = vmul.f32 %v6504, %v6505
        %v6507 = vsub.f32 2.0, %v6506
        %v6508 = vmul.f32 %v6505, %v6507
        %v6509 = vmul.f32 %v6501, %v6508
        %v6510 = vpack.c.bf16 %v6509, %v6509
        %6511 = vrot.lane.b32.xlu0 %v6219, 64
        %v6512 = vpop.permute.xlu0 %6511
        %v6514 = vsel %vm1033, %v6510, 0
        %v6517 = vsel %vm1052, %v6512, 0
        %6519 = vmatprep.subr.bf16.mxu0 0
        %6520 = vmatpush1.bf16.msra.mxu0 %v6517
        %6521 = vmatprep.subr.bf16.mxu0 0
        %6522 = vmatpush1.bf16.msra.mxu0 0
        %6523 = vmatprep.subr.bf16.mxu0 0
        %6524 = vmatpush1.bf16.msra.mxu0 0
        %6525 = vmatprep.subr.bf16.mxu0 0
        %6526 = vmatpush1.bf16.msra.mxu0 0
        %6527 = vmatprep.subr.bf16.mxu0 0
        %6528 = vmatpush1.bf16.msra.mxu0 0
        %6529 = vmatprep.subr.bf16.mxu0 0
        %6530 = vmatpush1.bf16.msra.mxu0 0
        %6531 = vmatprep.subr.bf16.mxu0 0
        %6532 = vmatpush1.bf16.msra.mxu0 0
        %6533 = vmatprep.subr.bf16.mxu0 0
        %6534 = vmatpush1.bf16.msra.mxu0 0
        %6535 = vmatprep.subr.bf16.mxu0 0
        %6536 = vmatpush1.bf16.msra.mxu0 0
        %6537 = vmatprep.subr.bf16.mxu0 0
        %6538 = vmatpush1.bf16.msra.mxu0 0
        %6539 = vmatprep.subr.bf16.mxu0 0
        %6540 = vmatpush1.bf16.msra.mxu0 0
        %6541 = vmatprep.subr.bf16.mxu0 0
        %6542 = vmatpush1.bf16.msra.mxu0 0
        %6543 = vmatprep.subr.bf16.mxu0 0
        %6544 = vmatpush1.bf16.msra.mxu0 0
        %6545 = vmatprep.subr.bf16.mxu0 0
        %6546 = vmatpush1.bf16.msra.mxu0 0
        %6547 = vmatprep.subr.bf16.mxu0 0
        %6548 = vmatpush1.bf16.msra.mxu0 0
        %6549 = vmatprep.subr.bf16.mxu0 0
        %6550 = vmatpush1.bf16.msra.mxu0 0
        %6551 = vmatprep.mubr.bf16.mxu0 0
        %6552 = vmatmul.mubr.bf16.gmra.mrb[0].mxu0 %v6514
        %v6553 = vpop.f32.mrb[0].mxu0
        %v6554 = vadd.f32 0.0, %v6553
        %v6555 = vpop.f32.mrb[0].mxu0
        %v6556 = vpop.f32.mrb[0].mxu0
        %v6557 = vpop.f32.mrb[0].mxu0
        %6558 = vdwg.mxu0
        %6559 = vrot.lane.b32.xlu0 %v6217, 32
        %v6560 = vpop.permute.xlu0 %6559
        %6561 = vrot.lane.b32.xlu0 %v6218, 32
        %v6562 = vpop.permute.xlu0 %6561
        %v6564 = vsel %vm985, %v6560, 0
        %v6567 = vsel %vm985, %v6562, 0
        %6569 = vmatprep.subr.bf16.mxu0 0
        %6570 = vmatpush1.bf16.xpose.msra.mxu0 %v6567
        %6571 = vmatprep.subr.bf16.mxu0 0
        %6572 = vmatpush1.bf16.xpose.msra.mxu0 0
        %6573 = vmatprep.subr.bf16.mxu0 0
        %6574 = vmatpush1.bf16.xpose.msra.mxu0 0
        %6575 = vmatprep.subr.bf16.mxu0 0
        %6576 = vmatpush1.bf16.xpose.msra.mxu0 0
        %6577 = vmatprep.subr.bf16.mxu0 0
        %6578 = vmatpush1.bf16.xpose.msra.mxu0 0
        %6579 = vmatprep.subr.bf16.mxu0 0
        %6580 = vmatpush1.bf16.xpose.msra.mxu0 0
        %6581 = vmatprep.subr.bf16.mxu0 0
        %6582 = vmatpush1.bf16.xpose.msra.mxu0 0
        %6583 = vmatprep.subr.bf16.mxu0 0
        %6584 = vmatpush1.bf16.xpose.msra.mxu0 0
        %6585 = vmatprep.subr.bf16.mxu0 0
        %6586 = vmatpush1.bf16.xpose.msra.mxu0 0
        %6587 = vmatprep.subr.bf16.mxu0 0
        %6588 = vmatpush1.bf16.xpose.msra.mxu0 0
        %6589 = vmatprep.subr.bf16.mxu0 0
        %6590 = vmatpush1.bf16.xpose.msra.mxu0 0
        %6591 = vmatprep.subr.bf16.mxu0 0
        %6592 = vmatpush1.bf16.xpose.msra.mxu0 0
        %6593 = vmatprep.subr.bf16.mxu0 0
        %6594 = vmatpush1.bf16.xpose.msra.mxu0 0
        %6595 = vmatprep.subr.bf16.mxu0 0
        %6596 = vmatpush1.bf16.xpose.msra.mxu0 0
        %6597 = vmatprep.subr.bf16.mxu0 0
        %6598 = vmatpush1.bf16.xpose.msra.mxu0 0
        %6599 = vmatprep.subr.bf16.mxu0 0
        %6600 = vmatpush1.bf16.xpose.msra.mxu0 0
        %6601 = vmatprep.mubr.bf16.mxu0 0
        %6602 = vmatmul.mubr.bf16.gmra.mrb[0].mxu0 %v6564
        %v6603 = vpop.f32.mrb[0].mxu0
        %v6604 = vadd.f32 0.0, %v6603
        %v6605 = vpop.f32.mrb[0].mxu0
        %v6606 = vpop.f32.mrb[0].mxu0
        %v6607 = vpop.f32.mrb[0].mxu0
        %6608 = vdwg.mxu0
        %v6609 = vmul.f32 %v6604, 0.17677669
        %v6610 = vsel %vm1033, %v6609, -inf
        %6611 = vmax.xlane.f32.xlu0 %v6610
        %v6612 = vpop.xlane.xlu0 %6611
        %v6613 = vsub.f32 %v6609, %v6612
        %v6614 = vmul.f32 %v6613, 1.442695
        %v6615 = vpow.pop %v6614
        %v6616 = vsel %vm1033, %v6615, 0.0
        %6617 = vadd.xlane.f32.xlu0 %v6616
        %v6618 = vpop.xlane.xlu0 %6617
        %v6619 = vrcp.pop %v6618
        %v6620 = vmul.f32 %v6618, %v6619
        %v6621 = vsub.f32 2.0, %v6620
        %v6622 = vmul.f32 %v6619, %v6621
        %v6623 = vmul.f32 %v6615, %v6622
        %v6624 = vpack.c.bf16 %v6623, %v6623
        %6625 = vrot.lane.b32.xlu0 %v6219, 32
        %v6626 = vpop.permute.xlu0 %6625
        %v6628 = vsel %vm1033, %v6624, 0
        %v6631 = vsel %vm1052, %v6626, 0
        %6633 = vmatprep.subr.bf16.mxu0 0
        %6634 = vmatpush1.bf16.msra.mxu0 %v6631
        %6635 = vmatprep.subr.bf16.mxu0 0
        %6636 = vmatpush1.bf16.msra.mxu0 0
        %6637 = vmatprep.subr.bf16.mxu0 0
        %6638 = vmatpush1.bf16.msra.mxu0 0
        %6639 = vmatprep.subr.bf16.mxu0 0
        %6640 = vmatpush1.bf16.msra.mxu0 0
        %6641 = vmatprep.subr.bf16.mxu0 0
        %6642 = vmatpush1.bf16.msra.mxu0 0
        %6643 = vmatprep.subr.bf16.mxu0 0
        %6644 = vmatpush1.bf16.msra.mxu0 0
        %6645 = vmatprep.subr.bf16.mxu0 0
        %6646 = vmatpush1.bf16.msra.mxu0 0
        %6647 = vmatprep.subr.bf16.mxu0 0
        %6648 = vmatpush1.bf16.msra.mxu0 0
        %6649 = vmatprep.subr.bf16.mxu0 0
        %6650 = vmatpush1.bf16.msra.mxu0 0
        %6651 = vmatprep.subr.bf16.mxu0 0
        %6652 = vmatpush1.bf16.msra.mxu0 0
        %6653 = vmatprep.subr.bf16.mxu0 0
        %6654 = vmatpush1.bf16.msra.mxu0 0
        %6655 = vmatprep.subr.bf16.mxu0 0
        %6656 = vmatpush1.bf16.msra.mxu0 0
        %6657 = vmatprep.subr.bf16.mxu0 0
        %6658 = vmatpush1.bf16.msra.mxu0 0
        %6659 = vmatprep.subr.bf16.mxu0 0
        %6660 = vmatpush1.bf16.msra.mxu0 0
        %6661 = vmatprep.subr.bf16.mxu0 0
        %6662 = vmatpush1.bf16.msra.mxu0 0
        %6663 = vmatprep.subr.bf16.mxu0 0
        %6664 = vmatpush1.bf16.msra.mxu0 0
        %6665 = vmatprep.mubr.bf16.mxu0 0
        %6666 = vmatmul.mubr.bf16.gmra.mrb[0].mxu0 %v6628
        %v6667 = vpop.f32.mrb[0].mxu0
        %v6668 = vadd.f32 0.0, %v6667
        %v6669 = vpop.f32.mrb[0].mxu0
        %v6670 = vpop.f32.mrb[0].mxu0
        %v6671 = vpop.f32.mrb[0].mxu0
        %6672 = vdwg.mxu0
        %6674 = vrot.lane.b32.xlu0 %v6440, 32
        %v6675 = vpop.permute.xlu0 %6674
        %6678 = vrot.lane.b32.xlu0 %v6554, 64
        %v6679 = vpop.permute.xlu0 %6678
        %6682 = vrot.lane.b32.xlu0 %v6668, 96
        %v6683 = vpop.permute.xlu0 %6682
        %v6685 = vsel %vm985, %v6323, %v6675
        %v6686 = vsel %vm1454, %v6685, %v6679
        %v6687 = vsel %vm1456, %v6686, %v6683
        %v6688 = vpack.c.bf16 %v6687, %v6687
        %v6690 = vlaneseq
        %v6691 = vshrl.u32 %v6690, 7
        %v6692 = vsub.s32 0, %v6691
        %v6693 = vrot.slane %v6216, %v6692
        %v6711 = vunpack.c.l.b16 %v6199
        %v6712 = vunpack.c.l.b16 %v6200
        %v6713 = vunpack.c.l.b16 %v6201
        %v6714 = vunpack.c.l.b16 %v6202
        %v6715 = vunpack.c.l.b16 %v6203
        %v6716 = vunpack.c.l.b16 %v6204
        %v6717 = vunpack.c.l.b16 %v6205
        %v6718 = vunpack.c.l.b16 %v6206
        %v6719 = vunpack.c.l.b16 %v6207
        %v6720 = vunpack.c.l.b16 %v6208
        %v6721 = vunpack.c.l.b16 %v6209
        %v6722 = vunpack.c.l.b16 %v6210
        %v6723 = vunpack.c.l.b16 %v6211
        %v6724 = vunpack.c.l.b16 %v6212
        %v6725 = vunpack.c.l.b16 %v6213
        %v6726 = vunpack.c.l.b16 %v6214
        %v6727 = vpack.c.b16 %v6712, %v6711
        %v6728 = vpack.c.b16 %v6714, %v6713
        %v6729 = vpack.c.b16 %v6716, %v6715
        %v6730 = vpack.c.b16 %v6718, %v6717
        %v6731 = vpack.c.b16 %v6720, %v6719
        %v6732 = vpack.c.b16 %v6722, %v6721
        %v6733 = vpack.c.b16 %v6724, %v6723
        %v6734 = vpack.c.b16 %v6726, %v6725
        %6743 = vmatprep.subr.bf16.mxu0 0
        %6744 = vmatpush1.bf16.msra.mxu0 %v6727
        %6745 = vmatprep.subr.bf16.mxu0 0
        %6746 = vmatpush1.bf16.msra.mxu0 %v6728
        %6747 = vmatprep.subr.bf16.mxu0 0
        %6748 = vmatpush1.bf16.msra.mxu0 %v6729
        %6749 = vmatprep.subr.bf16.mxu0 0
        %6750 = vmatpush1.bf16.msra.mxu0 %v6730
        %6751 = vmatprep.subr.bf16.mxu0 0
        %6752 = vmatpush1.bf16.msra.mxu0 %v6731
        %6753 = vmatprep.subr.bf16.mxu0 0
        %6754 = vmatpush1.bf16.msra.mxu0 %v6732
        %6755 = vmatprep.subr.bf16.mxu0 0
        %6756 = vmatpush1.bf16.msra.mxu0 %v6733
        %6757 = vmatprep.subr.bf16.mxu0 0
        %6758 = vmatpush1.bf16.msra.mxu0 %v6734
        %6759 = vmatprep.subr.bf16.mxu0 0
        %6760 = vmatpush1.bf16.msra.mxu0 0
        %6761 = vmatprep.subr.bf16.mxu0 0
        %6762 = vmatpush1.bf16.msra.mxu0 0
        %6763 = vmatprep.subr.bf16.mxu0 0
        %6764 = vmatpush1.bf16.msra.mxu0 0
        %6765 = vmatprep.subr.bf16.mxu0 0
        %6766 = vmatpush1.bf16.msra.mxu0 0
        %6767 = vmatprep.subr.bf16.mxu0 0
        %6768 = vmatpush1.bf16.msra.mxu0 0
        %6769 = vmatprep.subr.bf16.mxu0 0
        %6770 = vmatpush1.bf16.msra.mxu0 0
        %6771 = vmatprep.subr.bf16.mxu0 0
        %6772 = vmatpush1.bf16.msra.mxu0 0
        %6773 = vmatprep.subr.bf16.mxu0 0
        %6774 = vmatpush1.bf16.msra.mxu0 0
        %6775 = vmatprep.mubr.bf16.mxu0 0
        %6776 = vmatmul.mubr.bf16.gmra.mrb[0].mxu0 %v6688
        %v6777 = vpop.f32.mrb[0].mxu0
        %v6778 = vadd.f32 %v6693, %v6777
        %v6779 = vpop.f32.mrb[0].mxu0
        %v6780 = vpop.f32.mrb[0].mxu0
        %v6781 = vpop.f32.mrb[0].mxu0
        %6782 = vdwg.mxu0
        %v6783 = vadd.f32 %v5932, %v6778
        %s6784 = scalar_lea.vmem %s15, 4
        %v6785 = vld [vmem:[%s6784] sm:$0x1]
        %s6786 = scalar_lea.vmem %s16, 4
        %v6787 = vld [vmem:[%s6786] sm:$0x1]
        %6788 = vadd.xlane.f32.xlu0 %v6783
        %v6789 = vpop.xlane.xlu0 %6788
        %v6790 = vmul.f32 %v6789, %v1558
        %v6791 = vsub.f32 %v6783, %v6790
        %v6792 = vmul.f32 %v6791, %v6791
        %6793 = vadd.xlane.f32.xlu0 %v6792
        %v6794 = vpop.xlane.xlu0 %6793
        %v6795 = vmul.f32 %v6794, %v1558
        %v6796 = vadd.f32 %v6795, 1e-05
        %v6797 = vrsqrt.pop %v6796
        %v6798 = vmul.f32 %v6791, %v6797
        %v6800 = vlaneseq
        %v6801 = vshrl.u32 %v6800, 7
        %v6802 = vsub.s32 0, %v6801
        %v6803 = vrot.slane %v6785, %v6802
        %v6805 = vmul.f32 %v6798, %v6803
        %v6807 = vlaneseq
        %v6808 = vshrl.u32 %v6807, 7
        %v6809 = vsub.s32 0, %v6808
        %v6810 = vrot.slane %v6787, %v6809
        %v6812 = vadd.f32 %v6805, %v6810
        %v6813 = vpack.c.bf16 %v6812, %v6812
        %s6814 = scalar_lea.vmem %s11, 1024
        %v6815 = vld [vmem:[%s6814] sm:$0xff]
        %v6816 = vld [vmem:[%s6814 + $0x8] sm:$0xff]
        %v6817 = vld [vmem:[%s6814 + $0x40] sm:$0xff]
        %v6818 = vld [vmem:[%s6814 + $0x48] sm:$0xff]
        %v6819 = vld [vmem:[%s6814 + $0x80] sm:$0xff]
        %v6820 = vld [vmem:[%s6814 + $0x88] sm:$0xff]
        %v6821 = vld [vmem:[%s6814 + $0xc0] sm:$0xff]
        %v6822 = vld [vmem:[%s6814 + $0xc8] sm:$0xff]
        %v6823 = vld [vmem:[%s6814 + $0x100] sm:$0xff]
        %v6824 = vld [vmem:[%s6814 + $0x108] sm:$0xff]
        %v6825 = vld [vmem:[%s6814 + $0x140] sm:$0xff]
        %v6826 = vld [vmem:[%s6814 + $0x148] sm:$0xff]
        %v6827 = vld [vmem:[%s6814 + $0x180] sm:$0xff]
        %v6828 = vld [vmem:[%s6814 + $0x188] sm:$0xff]
        %v6829 = vld [vmem:[%s6814 + $0x1c0] sm:$0xff]
        %v6830 = vld [vmem:[%s6814 + $0x1c8] sm:$0xff]
        %v6831 = vld [vmem:[%s6814 + $0x200] sm:$0xff]
        %v6832 = vld [vmem:[%s6814 + $0x208] sm:$0xff]
        %v6833 = vld [vmem:[%s6814 + $0x240] sm:$0xff]
        %v6834 = vld [vmem:[%s6814 + $0x248] sm:$0xff]
        %v6835 = vld [vmem:[%s6814 + $0x280] sm:$0xff]
        %v6836 = vld [vmem:[%s6814 + $0x288] sm:$0xff]
        %v6837 = vld [vmem:[%s6814 + $0x2c0] sm:$0xff]
        %v6838 = vld [vmem:[%s6814 + $0x2c8] sm:$0xff]
        %v6839 = vld [vmem:[%s6814 + $0x300] sm:$0xff]
        %v6840 = vld [vmem:[%s6814 + $0x308] sm:$0xff]
        %v6841 = vld [vmem:[%s6814 + $0x340] sm:$0xff]
        %v6842 = vld [vmem:[%s6814 + $0x348] sm:$0xff]
        %v6843 = vld [vmem:[%s6814 + $0x380] sm:$0xff]
        %v6844 = vld [vmem:[%s6814 + $0x388] sm:$0xff]
        %v6845 = vld [vmem:[%s6814 + $0x3c0] sm:$0xff]
        %v6846 = vld [vmem:[%s6814 + $0x3c8] sm:$0xff]
        %s6847 = scalar_lea.vmem [#allocation16], 16
        %v6848 = vld [vmem:[%s6847] sm:$0xf]
        %v6850 = vlaneseq
        %v6851 = vshrl.u32 %v6850, 7
        %v6852 = vsub.s32 0, %v6851
        %v6853 = vrot.slane %v6848, %v6852
        %v6854 = vlaneseq
        %v6855 = vshrl.u32 %v6854, 7
        %v6856 = vsub.s32 1, %v6855
        %v6857 = vrot.slane %v6848, %v6856
        %v6858 = vlaneseq
        %v6859 = vshrl.u32 %v6858, 7
        %v6860 = vsub.s32 2, %v6859
        %v6861 = vrot.slane %v6848, %v6860
        %v6862 = vlaneseq
        %v6863 = vshrl.u32 %v6862, 7
        %v6864 = vsub.s32 3, %v6863
        %v6865 = vrot.slane %v6848, %v6864
        %v6902 = vunpack.c.l.b16 %v6815
        %v6903 = vunpack.c.h.b16 %v6815
        %v6904 = vunpack.c.l.b16 %v6816
        %v6905 = vunpack.c.h.b16 %v6816
        %v6906 = vunpack.c.l.b16 %v6817
        %v6907 = vunpack.c.h.b16 %v6817
        %v6908 = vunpack.c.l.b16 %v6818
        %v6909 = vunpack.c.h.b16 %v6818
        %v6910 = vunpack.c.l.b16 %v6819
        %v6911 = vunpack.c.h.b16 %v6819
        %v6912 = vunpack.c.l.b16 %v6820
        %v6913 = vunpack.c.h.b16 %v6820
        %v6914 = vunpack.c.l.b16 %v6821
        %v6915 = vunpack.c.h.b16 %v6821
        %v6916 = vunpack.c.l.b16 %v6822
        %v6917 = vunpack.c.h.b16 %v6822
        %v6918 = vunpack.c.l.b16 %v6823
        %v6919 = vunpack.c.h.b16 %v6823
        %v6920 = vunpack.c.l.b16 %v6824
        %v6921 = vunpack.c.h.b16 %v6824
        %v6922 = vunpack.c.l.b16 %v6825
        %v6923 = vunpack.c.h.b16 %v6825
        %v6924 = vunpack.c.l.b16 %v6826
        %v6925 = vunpack.c.h.b16 %v6826
        %v6926 = vunpack.c.l.b16 %v6827
        %v6927 = vunpack.c.h.b16 %v6827
        %v6928 = vunpack.c.l.b16 %v6828
        %v6929 = vunpack.c.h.b16 %v6828
        %v6930 = vunpack.c.l.b16 %v6829
        %v6931 = vunpack.c.h.b16 %v6829
        %v6932 = vunpack.c.l.b16 %v6830
        %v6933 = vunpack.c.h.b16 %v6830
        %v6934 = vunpack.c.l.b16 %v6831
        %v6935 = vunpack.c.h.b16 %v6831
        %v6936 = vunpack.c.l.b16 %v6832
        %v6937 = vunpack.c.h.b16 %v6832
        %v6938 = vunpack.c.l.b16 %v6833
        %v6939 = vunpack.c.h.b16 %v6833
        %v6940 = vunpack.c.l.b16 %v6834
        %v6941 = vunpack.c.h.b16 %v6834
        %v6942 = vunpack.c.l.b16 %v6835
        %v6943 = vunpack.c.h.b16 %v6835
        %v6944 = vunpack.c.l.b16 %v6836
        %v6945 = vunpack.c.h.b16 %v6836
        %v6946 = vunpack.c.l.b16 %v6837
        %v6947 = vunpack.c.h.b16 %v6837
        %v6948 = vunpack.c.l.b16 %v6838
        %v6949 = vunpack.c.h.b16 %v6838
        %v6950 = vunpack.c.l.b16 %v6839
        %v6951 = vunpack.c.h.b16 %v6839
        %v6952 = vunpack.c.l.b16 %v6840
        %v6953 = vunpack.c.h.b16 %v6840
        %v6954 = vunpack.c.l.b16 %v6841
        %v6955 = vunpack.c.h.b16 %v6841
        %v6956 = vunpack.c.l.b16 %v6842
        %v6957 = vunpack.c.h.b16 %v6842
        %v6958 = vunpack.c.l.b16 %v6843
        %v6959 = vunpack.c.h.b16 %v6843
        %v6960 = vunpack.c.l.b16 %v6844
        %v6961 = vunpack.c.h.b16 %v6844
        %v6962 = vunpack.c.l.b16 %v6845
        %v6963 = vunpack.c.h.b16 %v6845
        %v6964 = vunpack.c.l.b16 %v6846
        %v6965 = vunpack.c.h.b16 %v6846
        %v6966 = vpack.c.b16 %v6906, %v6902
        %v6967 = vpack.c.b16 %v6907, %v6903
        %v6968 = vpack.c.b16 %v6908, %v6904
        %v6969 = vpack.c.b16 %v6909, %v6905
        %v6970 = vpack.c.b16 %v6914, %v6910
        %v6971 = vpack.c.b16 %v6915, %v6911
        %v6972 = vpack.c.b16 %v6916, %v6912
        %v6973 = vpack.c.b16 %v6917, %v6913
        %v6974 = vpack.c.b16 %v6922, %v6918
        %v6975 = vpack.c.b16 %v6923, %v6919
        %v6976 = vpack.c.b16 %v6924, %v6920
        %v6977 = vpack.c.b16 %v6925, %v6921
        %v6978 = vpack.c.b16 %v6930, %v6926
        %v6979 = vpack.c.b16 %v6931, %v6927
        %v6980 = vpack.c.b16 %v6932, %v6928
        %v6981 = vpack.c.b16 %v6933, %v6929
        %v6982 = vpack.c.b16 %v6938, %v6934
        %v6983 = vpack.c.b16 %v6939, %v6935
        %v6984 = vpack.c.b16 %v6940, %v6936
        %v6985 = vpack.c.b16 %v6941, %v6937
        %v6986 = vpack.c.b16 %v6946, %v6942
        %v6987 = vpack.c.b16 %v6947, %v6943
        %v6988 = vpack.c.b16 %v6948, %v6944
        %v6989 = vpack.c.b16 %v6949, %v6945
        %v6990 = vpack.c.b16 %v6954, %v6950
        %v6991 = vpack.c.b16 %v6955, %v6951
        %v6992 = vpack.c.b16 %v6956, %v6952
        %v6993 = vpack.c.b16 %v6957, %v6953
        %v6994 = vpack.c.b16 %v6962, %v6958
        %v6995 = vpack.c.b16 %v6963, %v6959
        %v6996 = vpack.c.b16 %v6964, %v6960
        %v6997 = vpack.c.b16 %v6965, %v6961
        %7030 = vmatprep.subr.bf16.mxu0 %v6967
        %7031 = vmatpush1.bf16.msra.mxu0 %v6966
        %7032 = vmatprep.subr.bf16.mxu0 %v6971
        %7033 = vmatpush1.bf16.msra.mxu0 %v6970
        %7034 = vmatprep.subr.bf16.mxu0 %v6975
        %7035 = vmatpush1.bf16.msra.mxu0 %v6974
        %7036 = vmatprep.subr.bf16.mxu0 %v6979
        %7037 = vmatpush1.bf16.msra.mxu0 %v6978
        %7038 = vmatprep.subr.bf16.mxu0 %v6983
        %7039 = vmatpush1.bf16.msra.mxu0 %v6982
        %7040 = vmatprep.subr.bf16.mxu0 %v6987
        %7041 = vmatpush1.bf16.msra.mxu0 %v6986
        %7042 = vmatprep.subr.bf16.mxu0 %v6991
        %7043 = vmatpush1.bf16.msra.mxu0 %v6990
        %7044 = vmatprep.subr.bf16.mxu0 %v6995
        %7045 = vmatpush1.bf16.msra.mxu0 %v6994
        %7046 = vmatprep.subr.bf16.mxu0 0
        %7047 = vmatpush1.bf16.msra.mxu0 0
        %7048 = vmatprep.subr.bf16.mxu0 0
        %7049 = vmatpush1.bf16.msra.mxu0 0
        %7050 = vmatprep.subr.bf16.mxu0 0
        %7051 = vmatpush1.bf16.msra.mxu0 0
        %7052 = vmatprep.subr.bf16.mxu0 0
        %7053 = vmatpush1.bf16.msra.mxu0 0
        %7054 = vmatprep.subr.bf16.mxu0 0
        %7055 = vmatpush1.bf16.msra.mxu0 0
        %7056 = vmatprep.subr.bf16.mxu0 0
        %7057 = vmatpush1.bf16.msra.mxu0 0
        %7058 = vmatprep.subr.bf16.mxu0 0
        %7059 = vmatpush1.bf16.msra.mxu0 0
        %7060 = vmatprep.subr.bf16.mxu0 0
        %7061 = vmatpush1.bf16.msra.mxu0 0
        %7062 = vmatprep.mubr.bf16.mxu0 0
        %7063 = vmatmul.mubr.bf16.gmra.mrb[0].mxu0 %v6813
        %v7064 = vpop.f32.mrb[0].mxu0
        %v7065 = vadd.f32 %v6853, %v7064
        %v7066 = vpop.f32.mrb[0].mxu0
        %v7067 = vadd.f32 %v6857, %v7066
        %v7068 = vpop.f32.mrb[0].mxu0
        %v7069 = vpop.f32.mrb[0].mxu0
        %7070 = vdwg.mxu0
        %7071 = vmatprep.subr.bf16.mxu0 %v6969
        %7072 = vmatpush1.bf16.msra.mxu0 %v6968
        %7073 = vmatprep.subr.bf16.mxu0 %v6973
        %7074 = vmatpush1.bf16.msra.mxu0 %v6972
        %7075 = vmatprep.subr.bf16.mxu0 %v6977
        %7076 = vmatpush1.bf16.msra.mxu0 %v6976
        %7077 = vmatprep.subr.bf16.mxu0 %v6981
        %7078 = vmatpush1.bf16.msra.mxu0 %v6980
        %7079 = vmatprep.subr.bf16.mxu0 %v6985
        %7080 = vmatpush1.bf16.msra.mxu0 %v6984
        %7081 = vmatprep.subr.bf16.mxu0 %v6989
        %7082 = vmatpush1.bf16.msra.mxu0 %v6988
        %7083 = vmatprep.subr.bf16.mxu0 %v6993
        %7084 = vmatpush1.bf16.msra.mxu0 %v6992
        %7085 = vmatprep.subr.bf16.mxu0 %v6997
        %7086 = vmatpush1.bf16.msra.mxu0 %v6996
        %7087 = vmatprep.subr.bf16.mxu0 0
        %7088 = vmatpush1.bf16.msra.mxu0 0
        %7089 = vmatprep.subr.bf16.mxu0 0
        %7090 = vmatpush1.bf16.msra.mxu0 0
        %7091 = vmatprep.subr.bf16.mxu0 0
        %7092 = vmatpush1.bf16.msra.mxu0 0
        %7093 = vmatprep.subr.bf16.mxu0 0
        %7094 = vmatpush1.bf16.msra.mxu0 0
        %7095 = vmatprep.subr.bf16.mxu0 0
        %7096 = vmatpush1.bf16.msra.mxu0 0
        %7097 = vmatprep.subr.bf16.mxu0 0
        %7098 = vmatpush1.bf16.msra.mxu0 0
        %7099 = vmatprep.subr.bf16.mxu0 0
        %7100 = vmatpush1.bf16.msra.mxu0 0
        %7101 = vmatprep.subr.bf16.mxu0 0
        %7102 = vmatpush1.bf16.msra.mxu0 0
        %7103 = vmatprep.mubr.bf16.mxu0 0
        %7104 = vmatmul.mubr.bf16.gmra.mrb[0].mxu0 %v6813
        %v7105 = vpop.f32.mrb[0].mxu0
        %v7106 = vadd.f32 %v6861, %v7105
        %v7107 = vpop.f32.mrb[0].mxu0
        %v7108 = vadd.f32 %v6865, %v7107
        %v7109 = vpop.f32.mrb[0].mxu0
        %v7110 = vpop.f32.mrb[0].mxu0
        %7111 = vdwg.mxu0
        %v7112 = vmax.f32 %v7065, 0.0
        %v7113 = vmax.f32 %v7067, 0.0
        %v7114 = vmax.f32 %v7106, 0.0
        %v7115 = vmax.f32 %v7108, 0.0
        %v7116 = vpack.c.bf16 %v7112, %v7112
        %v7117 = vpack.c.bf16 %v7113, %v7113
        %v7118 = vpack.c.bf16 %v7114, %v7114
        %v7119 = vpack.c.bf16 %v7115, %v7115
        %s7120 = scalar_lea.vmem [#allocation17], 1024
        %v7121 = vld [vmem:[%s7120] sm:$0xf]
        %v7122 = vld [vmem:[%s7120 + $0x4] sm:$0xf]
        %v7123 = vld [vmem:[%s7120 + $0x8] sm:$0xf]
        %v7124 = vld [vmem:[%s7120 + $0xc] sm:$0xf]
        %v7125 = vld [vmem:[%s7120 + $0x10] sm:$0xf]
        %v7126 = vld [vmem:[%s7120 + $0x14] sm:$0xf]
        %v7127 = vld [vmem:[%s7120 + $0x18] sm:$0xf]
        %v7128 = vld [vmem:[%s7120 + $0x1c] sm:$0xf]
        %v7129 = vld [vmem:[%s7120 + $0x20] sm:$0xf]
        %v7130 = vld [vmem:[%s7120 + $0x24] sm:$0xf]
        %v7131 = vld [vmem:[%s7120 + $0x28] sm:$0xf]
        %v7132 = vld [vmem:[%s7120 + $0x2c] sm:$0xf]
        %v7133 = vld [vmem:[%s7120 + $0x30] sm:$0xf]
        %v7134 = vld [vmem:[%s7120 + $0x34] sm:$0xf]
        %v7135 = vld [vmem:[%s7120 + $0x38] sm:$0xf]
        %v7136 = vld [vmem:[%s7120 + $0x3c] sm:$0xf]
        %v7137 = vld [vmem:[%s7120 + $0x40] sm:$0xf]
        %v7138 = vld [vmem:[%s7120 + $0x44] sm:$0xf]
        %v7139 = vld [vmem:[%s7120 + $0x48] sm:$0xf]
        %v7140 = vld [vmem:[%s7120 + $0x4c] sm:$0xf]
        %v7141 = vld [vmem:[%s7120 + $0x50] sm:$0xf]
        %v7142 = vld [vmem:[%s7120 + $0x54] sm:$0xf]
        %v7143 = vld [vmem:[%s7120 + $0x58] sm:$0xf]
        %v7144 = vld [vmem:[%s7120 + $0x5c] sm:$0xf]
        %v7145 = vld [vmem:[%s7120 + $0x60] sm:$0xf]
        %v7146 = vld [vmem:[%s7120 + $0x64] sm:$0xf]
        %v7147 = vld [vmem:[%s7120 + $0x68] sm:$0xf]
        %v7148 = vld [vmem:[%s7120 + $0x6c] sm:$0xf]
        %v7149 = vld [vmem:[%s7120 + $0x70] sm:$0xf]
        %v7150 = vld [vmem:[%s7120 + $0x74] sm:$0xf]
        %v7151 = vld [vmem:[%s7120 + $0x78] sm:$0xf]
        %v7152 = vld [vmem:[%s7120 + $0x7c] sm:$0xf]
        %v7153 = vld [vmem:[%s7120 + $0x80] sm:$0xf]
        %v7154 = vld [vmem:[%s7120 + $0x84] sm:$0xf]
        %v7155 = vld [vmem:[%s7120 + $0x88] sm:$0xf]
        %v7156 = vld [vmem:[%s7120 + $0x8c] sm:$0xf]
        %v7157 = vld [vmem:[%s7120 + $0x90] sm:$0xf]
        %v7158 = vld [vmem:[%s7120 + $0x94] sm:$0xf]
        %v7159 = vld [vmem:[%s7120 + $0x98] sm:$0xf]
        %v7160 = vld [vmem:[%s7120 + $0x9c] sm:$0xf]
        %v7161 = vld [vmem:[%s7120 + $0xa0] sm:$0xf]
        %v7162 = vld [vmem:[%s7120 + $0xa4] sm:$0xf]
        %v7163 = vld [vmem:[%s7120 + $0xa8] sm:$0xf]
        %v7164 = vld [vmem:[%s7120 + $0xac] sm:$0xf]
        %v7165 = vld [vmem:[%s7120 + $0xb0] sm:$0xf]
        %v7166 = vld [vmem:[%s7120 + $0xb4] sm:$0xf]
        %v7167 = vld [vmem:[%s7120 + $0xb8] sm:$0xf]
        %v7168 = vld [vmem:[%s7120 + $0xbc] sm:$0xf]
        %v7169 = vld [vmem:[%s7120 + $0xc0] sm:$0xf]
        %v7170 = vld [vmem:[%s7120 + $0xc4] sm:$0xf]
        %v7171 = vld [vmem:[%s7120 + $0xc8] sm:$0xf]
        %v7172 = vld [vmem:[%s7120 + $0xcc] sm:$0xf]
        %v7173 = vld [vmem:[%s7120 + $0xd0] sm:$0xf]
        %v7174 = vld [vmem:[%s7120 + $0xd4] sm:$0xf]
        %v7175 = vld [vmem:[%s7120 + $0xd8] sm:$0xf]
        %v7176 = vld [vmem:[%s7120 + $0xdc] sm:$0xf]
        %v7177 = vld [vmem:[%s7120 + $0xe0] sm:$0xf]
        %v7178 = vld [vmem:[%s7120 + $0xe4] sm:$0xf]
        %v7179 = vld [vmem:[%s7120 + $0xe8] sm:$0xf]
        %v7180 = vld [vmem:[%s7120 + $0xec] sm:$0xf]
        %v7181 = vld [vmem:[%s7120 + $0xf0] sm:$0xf]
        %v7182 = vld [vmem:[%s7120 + $0xf4] sm:$0xf]
        %v7183 = vld [vmem:[%s7120 + $0xf8] sm:$0xf]
        %v7184 = vld [vmem:[%s7120 + $0xfc] sm:$0xf]
        %v7185 = vld [vmem:[%s6814 + $0x10] sm:$0xff]
        %v7186 = vld [vmem:[%s6814 + $0x18] sm:$0xff]
        %v7187 = vld [vmem:[%s6814 + $0x50] sm:$0xff]
        %v7188 = vld [vmem:[%s6814 + $0x58] sm:$0xff]
        %v7189 = vld [vmem:[%s6814 + $0x90] sm:$0xff]
        %v7190 = vld [vmem:[%s6814 + $0x98] sm:$0xff]
        %v7191 = vld [vmem:[%s6814 + $0xd0] sm:$0xff]
        %v7192 = vld [vmem:[%s6814 + $0xd8] sm:$0xff]
        %v7193 = vld [vmem:[%s6814 + $0x110] sm:$0xff]
        %v7194 = vld [vmem:[%s6814 + $0x118] sm:$0xff]
        %v7195 = vld [vmem:[%s6814 + $0x150] sm:$0xff]
        %v7196 = vld [vmem:[%s6814 + $0x158] sm:$0xff]
        %v7197 = vld [vmem:[%s6814 + $0x190] sm:$0xff]
        %v7198 = vld [vmem:[%s6814 + $0x198] sm:$0xff]
        %v7199 = vld [vmem:[%s6814 + $0x1d0] sm:$0xff]
        %v7200 = vld [vmem:[%s6814 + $0x1d8] sm:$0xff]
        %v7201 = vld [vmem:[%s6814 + $0x210] sm:$0xff]
        %v7202 = vld [vmem:[%s6814 + $0x218] sm:$0xff]
        %v7203 = vld [vmem:[%s6814 + $0x250] sm:$0xff]
        %v7204 = vld [vmem:[%s6814 + $0x258] sm:$0xff]
        %v7205 = vld [vmem:[%s6814 + $0x290] sm:$0xff]
        %v7206 = vld [vmem:[%s6814 + $0x298] sm:$0xff]
        %v7207 = vld [vmem:[%s6814 + $0x2d0] sm:$0xff]
        %v7208 = vld [vmem:[%s6814 + $0x2d8] sm:$0xff]
        %v7209 = vld [vmem:[%s6814 + $0x310] sm:$0xff]
        %v7210 = vld [vmem:[%s6814 + $0x318] sm:$0xff]
        %v7211 = vld [vmem:[%s6814 + $0x350] sm:$0xff]
        %v7212 = vld [vmem:[%s6814 + $0x358] sm:$0xff]
        %v7213 = vld [vmem:[%s6814 + $0x390] sm:$0xff]
        %v7214 = vld [vmem:[%s6814 + $0x398] sm:$0xff]
        %v7215 = vld [vmem:[%s6814 + $0x3d0] sm:$0xff]
        %v7216 = vld [vmem:[%s6814 + $0x3d8] sm:$0xff]
        %v7217 = vld [vmem:[%s6847 + $0x4] sm:$0xf]
        %v7219 = vlaneseq
        %v7220 = vshrl.u32 %v7219, 7
        %v7221 = vsub.s32 0, %v7220
        %v7222 = vrot.slane %v7217, %v7221
        %v7223 = vlaneseq
        %v7224 = vshrl.u32 %v7223, 7
        %v7225 = vsub.s32 1, %v7224
        %v7226 = vrot.slane %v7217, %v7225
        %v7227 = vlaneseq
        %v7228 = vshrl.u32 %v7227, 7
        %v7229 = vsub.s32 2, %v7228
        %v7230 = vrot.slane %v7217, %v7229
        %v7231 = vlaneseq
        %v7232 = vshrl.u32 %v7231, 7
        %v7233 = vsub.s32 3, %v7232
        %v7234 = vrot.slane %v7217, %v7233
        %v7271 = vunpack.c.l.b16 %v7185
        %v7272 = vunpack.c.h.b16 %v7185
        %v7273 = vunpack.c.l.b16 %v7186
        %v7274 = vunpack.c.h.b16 %v7186
        %v7275 = vunpack.c.l.b16 %v7187
        %v7276 = vunpack.c.h.b16 %v7187
        %v7277 = vunpack.c.l.b16 %v7188
        %v7278 = vunpack.c.h.b16 %v7188
        %v7279 = vunpack.c.l.b16 %v7189
        %v7280 = vunpack.c.h.b16 %v7189
        %v7281 = vunpack.c.l.b16 %v7190
        %v7282 = vunpack.c.h.b16 %v7190
        %v7283 = vunpack.c.l.b16 %v7191
        %v7284 = vunpack.c.h.b16 %v7191
        %v7285 = vunpack.c.l.b16 %v7192
        %v7286 = vunpack.c.h.b16 %v7192
        %v7287 = vunpack.c.l.b16 %v7193
        %v7288 = vunpack.c.h.b16 %v7193
        %v7289 = vunpack.c.l.b16 %v7194
        %v7290 = vunpack.c.h.b16 %v7194
        %v7291 = vunpack.c.l.b16 %v7195
        %v7292 = vunpack.c.h.b16 %v7195
        %v7293 = vunpack.c.l.b16 %v7196
        %v7294 = vunpack.c.h.b16 %v7196
        %v7295 = vunpack.c.l.b16 %v7197
        %v7296 = vunpack.c.h.b16 %v7197
        %v7297 = vunpack.c.l.b16 %v7198
        %v7298 = vunpack.c.h.b16 %v7198
        %v7299 = vunpack.c.l.b16 %v7199
        %v7300 = vunpack.c.h.b16 %v7199
        %v7301 = vunpack.c.l.b16 %v7200
        %v7302 = vunpack.c.h.b16 %v7200
        %v7303 = vunpack.c.l.b16 %v7201
        %v7304 = vunpack.c.h.b16 %v7201
        %v7305 = vunpack.c.l.b16 %v7202
        %v7306 = vunpack.c.h.b16 %v7202
        %v7307 = vunpack.c.l.b16 %v7203
        %v7308 = vunpack.c.h.b16 %v7203
        %v7309 = vunpack.c.l.b16 %v7204
        %v7310 = vunpack.c.h.b16 %v7204
        %v7311 = vunpack.c.l.b16 %v7205
        %v7312 = vunpack.c.h.b16 %v7205
        %v7313 = vunpack.c.l.b16 %v7206
        %v7314 = vunpack.c.h.b16 %v7206
        %v7315 = vunpack.c.l.b16 %v7207
        %v7316 = vunpack.c.h.b16 %v7207
        %v7317 = vunpack.c.l.b16 %v7208
        %v7318 = vunpack.c.h.b16 %v7208
        %v7319 = vunpack.c.l.b16 %v7209
        %v7320 = vunpack.c.h.b16 %v7209
        %v7321 = vunpack.c.l.b16 %v7210
        %v7322 = vunpack.c.h.b16 %v7210
        %v7323 = vunpack.c.l.b16 %v7211
        %v7324 = vunpack.c.h.b16 %v7211
        %v7325 = vunpack.c.l.b16 %v7212
        %v7326 = vunpack.c.h.b16 %v7212
        %v7327 = vunpack.c.l.b16 %v7213
        %v7328 = vunpack.c.h.b16 %v7213
        %v7329 = vunpack.c.l.b16 %v7214
        %v7330 = vunpack.c.h.b16 %v7214
        %v7331 = vunpack.c.l.b16 %v7215
        %v7332 = vunpack.c.h.b16 %v7215
        %v7333 = vunpack.c.l.b16 %v7216
        %v7334 = vunpack.c.h.b16 %v7216
        %v7335 = vpack.c.b16 %v7275, %v7271
        %v7336 = vpack.c.b16 %v7276, %v7272
        %v7337 = vpack.c.b16 %v7277, %v7273
        %v7338 = vpack.c.b16 %v7278, %v7274
        %v7339 = vpack.c.b16 %v7283, %v7279
        %v7340 = vpack.c.b16 %v7284, %v7280
        %v7341 = vpack.c.b16 %v7285, %v7281
        %v7342 = vpack.c.b16 %v7286, %v7282
        %v7343 = vpack.c.b16 %v7291, %v7287
        %v7344 = vpack.c.b16 %v7292, %v7288
        %v7345 = vpack.c.b16 %v7293, %v7289
        %v7346 = vpack.c.b16 %v7294, %v7290
        %v7347 = vpack.c.b16 %v7299, %v7295
        %v7348 = vpack.c.b16 %v7300, %v7296
        %v7349 = vpack.c.b16 %v7301, %v7297
        %v7350 = vpack.c.b16 %v7302, %v7298
        %v7351 = vpack.c.b16 %v7307, %v7303
        %v7352 = vpack.c.b16 %v7308, %v7304
        %v7353 = vpack.c.b16 %v7309, %v7305
        %v7354 = vpack.c.b16 %v7310, %v7306
        %v7355 = vpack.c.b16 %v7315, %v7311
        %v7356 = vpack.c.b16 %v7316, %v7312
        %v7357 = vpack.c.b16 %v7317, %v7313
        %v7358 = vpack.c.b16 %v7318, %v7314
        %v7359 = vpack.c.b16 %v7323, %v7319
        %v7360 = vpack.c.b16 %v7324, %v7320
        %v7361 = vpack.c.b16 %v7325, %v7321
        %v7362 = vpack.c.b16 %v7326, %v7322
        %v7363 = vpack.c.b16 %v7331, %v7327
        %v7364 = vpack.c.b16 %v7332, %v7328
        %v7365 = vpack.c.b16 %v7333, %v7329
        %v7366 = vpack.c.b16 %v7334, %v7330
        %7399 = vmatprep.subr.bf16.mxu0 %v7336
        %7400 = vmatpush1.bf16.msra.mxu0 %v7335
        %7401 = vmatprep.subr.bf16.mxu0 %v7340
        %7402 = vmatpush1.bf16.msra.mxu0 %v7339
        %7403 = vmatprep.subr.bf16.mxu0 %v7344
        %7404 = vmatpush1.bf16.msra.mxu0 %v7343
        %7405 = vmatprep.subr.bf16.mxu0 %v7348
        %7406 = vmatpush1.bf16.msra.mxu0 %v7347
        %7407 = vmatprep.subr.bf16.mxu0 %v7352
        %7408 = vmatpush1.bf16.msra.mxu0 %v7351
        %7409 = vmatprep.subr.bf16.mxu0 %v7356
        %7410 = vmatpush1.bf16.msra.mxu0 %v7355
        %7411 = vmatprep.subr.bf16.mxu0 %v7360
        %7412 = vmatpush1.bf16.msra.mxu0 %v7359
        %7413 = vmatprep.subr.bf16.mxu0 %v7364
        %7414 = vmatpush1.bf16.msra.mxu0 %v7363
        %7415 = vmatprep.subr.bf16.mxu0 0
        %7416 = vmatpush1.bf16.msra.mxu0 0
        %7417 = vmatprep.subr.bf16.mxu0 0
        %7418 = vmatpush1.bf16.msra.mxu0 0
        %7419 = vmatprep.subr.bf16.mxu0 0
        %7420 = vmatpush1.bf16.msra.mxu0 0
        %7421 = vmatprep.subr.bf16.mxu0 0
        %7422 = vmatpush1.bf16.msra.mxu0 0
        %7423 = vmatprep.subr.bf16.mxu0 0
        %7424 = vmatpush1.bf16.msra.mxu0 0
        %7425 = vmatprep.subr.bf16.mxu0 0
        %7426 = vmatpush1.bf16.msra.mxu0 0
        %7427 = vmatprep.subr.bf16.mxu0 0
        %7428 = vmatpush1.bf16.msra.mxu0 0
        %7429 = vmatprep.subr.bf16.mxu0 0
        %7430 = vmatpush1.bf16.msra.mxu0 0
        %7431 = vmatprep.mubr.bf16.mxu0 0
        %7432 = vmatmul.mubr.bf16.gmra.mrb[0].mxu0 %v6813
        %v7433 = vpop.f32.mrb[0].mxu0
        %v7434 = vadd.f32 %v7222, %v7433
        %v7435 = vpop.f32.mrb[0].mxu0
        %v7436 = vadd.f32 %v7226, %v7435
        %v7437 = vpop.f32.mrb[0].mxu0
        %v7438 = vpop.f32.mrb[0].mxu0
        %7439 = vdwg.mxu0
        %7440 = vmatprep.subr.bf16.mxu0 %v7338
        %7441 = vmatpush1.bf16.msra.mxu0 %v7337
        %7442 = vmatprep.subr.bf16.mxu0 %v7342
        %7443 = vmatpush1.bf16.msra.mxu0 %v7341
        %7444 = vmatprep.subr.bf16.mxu0 %v7346
        %7445 = vmatpush1.bf16.msra.mxu0 %v7345
        %7446 = vmatprep.subr.bf16.mxu0 %v7350
        %7447 = vmatpush1.bf16.msra.mxu0 %v7349
        %7448 = vmatprep.subr.bf16.mxu0 %v7354
        %7449 = vmatpush1.bf16.msra.mxu0 %v7353
        %7450 = vmatprep.subr.bf16.mxu0 %v7358
        %7451 = vmatpush1.bf16.msra.mxu0 %v7357
        %7452 = vmatprep.subr.bf16.mxu0 %v7362
        %7453 = vmatpush1.bf16.msra.mxu0 %v7361
        %7454 = vmatprep.subr.bf16.mxu0 %v7366
        %7455 = vmatpush1.bf16.msra.mxu0 %v7365
        %7456 = vmatprep.subr.bf16.mxu0 0
        %7457 = vmatpush1.bf16.msra.mxu0 0
        %7458 = vmatprep.subr.bf16.mxu0 0
        %7459 = vmatpush1.bf16.msra.mxu0 0
        %7460 = vmatprep.subr.bf16.mxu0 0
        %7461 = vmatpush1.bf16.msra.mxu0 0
        %7462 = vmatprep.subr.bf16.mxu0 0
        %7463 = vmatpush1.bf16.msra.mxu0 0
        %7464 = vmatprep.subr.bf16.mxu0 0
        %7465 = vmatpush1.bf16.msra.mxu0 0
        %7466 = vmatprep.subr.bf16.mxu0 0
        %7467 = vmatpush1.bf16.msra.mxu0 0
        %7468 = vmatprep.subr.bf16.mxu0 0
        %7469 = vmatpush1.bf16.msra.mxu0 0
        %7470 = vmatprep.subr.bf16.mxu0 0
        %7471 = vmatpush1.bf16.msra.mxu0 0
        %7472 = vmatprep.mubr.bf16.mxu0 0
        %7473 = vmatmul.mubr.bf16.gmra.mrb[0].mxu0 %v6813
        %v7474 = vpop.f32.mrb[0].mxu0
        %v7475 = vadd.f32 %v7230, %v7474
        %v7476 = vpop.f32.mrb[0].mxu0
        %v7477 = vadd.f32 %v7234, %v7476
        %v7478 = vpop.f32.mrb[0].mxu0
        %v7479 = vpop.f32.mrb[0].mxu0
        %7480 = vdwg.mxu0
        %v7481 = vmax.f32 %v7434, 0.0
        %v7482 = vmax.f32 %v7436, 0.0
        %v7483 = vmax.f32 %v7475, 0.0
        %v7484 = vmax.f32 %v7477, 0.0
        %v7485 = vpack.c.bf16 %v7481, %v7481
        %v7486 = vpack.c.bf16 %v7482, %v7482
        %v7487 = vpack.c.bf16 %v7483, %v7483
        %v7488 = vpack.c.bf16 %v7484, %v7484
        %v7489 = vld [vmem:[%s7120 + $0x100] sm:$0xf]
        %v7490 = vld [vmem:[%s7120 + $0x104] sm:$0xf]
        %v7491 = vld [vmem:[%s7120 + $0x108] sm:$0xf]
        %v7492 = vld [vmem:[%s7120 + $0x10c] sm:$0xf]
        %v7493 = vld [vmem:[%s7120 + $0x110] sm:$0xf]
        %v7494 = vld [vmem:[%s7120 + $0x114] sm:$0xf]
        %v7495 = vld [vmem:[%s7120 + $0x118] sm:$0xf]
        %v7496 = vld [vmem:[%s7120 + $0x11c] sm:$0xf]
        %v7497 = vld [vmem:[%s7120 + $0x120] sm:$0xf]
        %v7498 = vld [vmem:[%s7120 + $0x124] sm:$0xf]
        %v7499 = vld [vmem:[%s7120 + $0x128] sm:$0xf]
        %v7500 = vld [vmem:[%s7120 + $0x12c] sm:$0xf]
        %v7501 = vld [vmem:[%s7120 + $0x130] sm:$0xf]
        %v7502 = vld [vmem:[%s7120 + $0x134] sm:$0xf]
        %v7503 = vld [vmem:[%s7120 + $0x138] sm:$0xf]
        %v7504 = vld [vmem:[%s7120 + $0x13c] sm:$0xf]
        %v7505 = vld [vmem:[%s7120 + $0x140] sm:$0xf]
        %v7506 = vld [vmem:[%s7120 + $0x144] sm:$0xf]
        %v7507 = vld [vmem:[%s7120 + $0x148] sm:$0xf]
        %v7508 = vld [vmem:[%s7120 + $0x14c] sm:$0xf]
        %v7509 = vld [vmem:[%s7120 + $0x150] sm:$0xf]
        %v7510 = vld [vmem:[%s7120 + $0x154] sm:$0xf]
        %v7511 = vld [vmem:[%s7120 + $0x158] sm:$0xf]
        %v7512 = vld [vmem:[%s7120 + $0x15c] sm:$0xf]
        %v7513 = vld [vmem:[%s7120 + $0x160] sm:$0xf]
        %v7514 = vld [vmem:[%s7120 + $0x164] sm:$0xf]
        %v7515 = vld [vmem:[%s7120 + $0x168] sm:$0xf]
        %v7516 = vld [vmem:[%s7120 + $0x16c] sm:$0xf]
        %v7517 = vld [vmem:[%s7120 + $0x170] sm:$0xf]
        %v7518 = vld [vmem:[%s7120 + $0x174] sm:$0xf]
        %v7519 = vld [vmem:[%s7120 + $0x178] sm:$0xf]
        %v7520 = vld [vmem:[%s7120 + $0x17c] sm:$0xf]
        %v7521 = vld [vmem:[%s7120 + $0x180] sm:$0xf]
        %v7522 = vld [vmem:[%s7120 + $0x184] sm:$0xf]
        %v7523 = vld [vmem:[%s7120 + $0x188] sm:$0xf]
        %v7524 = vld [vmem:[%s7120 + $0x18c] sm:$0xf]
        %v7525 = vld [vmem:[%s7120 + $0x190] sm:$0xf]
        %v7526 = vld [vmem:[%s7120 + $0x194] sm:$0xf]
        %v7527 = vld [vmem:[%s7120 + $0x198] sm:$0xf]
        %v7528 = vld [vmem:[%s7120 + $0x19c] sm:$0xf]
        %v7529 = vld [vmem:[%s7120 + $0x1a0] sm:$0xf]
        %v7530 = vld [vmem:[%s7120 + $0x1a4] sm:$0xf]
        %v7531 = vld [vmem:[%s7120 + $0x1a8] sm:$0xf]
        %v7532 = vld [vmem:[%s7120 + $0x1ac] sm:$0xf]
        %v7533 = vld [vmem:[%s7120 + $0x1b0] sm:$0xf]
        %v7534 = vld [vmem:[%s7120 + $0x1b4] sm:$0xf]
        %v7535 = vld [vmem:[%s7120 + $0x1b8] sm:$0xf]
        %v7536 = vld [vmem:[%s7120 + $0x1bc] sm:$0xf]
        %v7537 = vld [vmem:[%s7120 + $0x1c0] sm:$0xf]
        %v7538 = vld [vmem:[%s7120 + $0x1c4] sm:$0xf]
        %v7539 = vld [vmem:[%s7120 + $0x1c8] sm:$0xf]
        %v7540 = vld [vmem:[%s7120 + $0x1cc] sm:$0xf]
        %v7541 = vld [vmem:[%s7120 + $0x1d0] sm:$0xf]
        %v7542 = vld [vmem:[%s7120 + $0x1d4] sm:$0xf]
        %v7543 = vld [vmem:[%s7120 + $0x1d8] sm:$0xf]
        %v7544 = vld [vmem:[%s7120 + $0x1dc] sm:$0xf]
        %v7545 = vld [vmem:[%s7120 + $0x1e0] sm:$0xf]
        %v7546 = vld [vmem:[%s7120 + $0x1e4] sm:$0xf]
        %v7547 = vld [vmem:[%s7120 + $0x1e8] sm:$0xf]
        %v7548 = vld [vmem:[%s7120 + $0x1ec] sm:$0xf]
        %v7549 = vld [vmem:[%s7120 + $0x1f0] sm:$0xf]
        %v7550 = vld [vmem:[%s7120 + $0x1f4] sm:$0xf]
        %v7551 = vld [vmem:[%s7120 + $0x1f8] sm:$0xf]
        %v7552 = vld [vmem:[%s7120 + $0x1fc] sm:$0xf]
        %v7617 = vunpack.c.l.b16 %v7489
        %v7618 = vunpack.c.l.b16 %v7490
        %v7619 = vunpack.c.l.b16 %v7491
        %v7620 = vunpack.c.l.b16 %v7492
        %v7621 = vunpack.c.l.b16 %v7493
        %v7622 = vunpack.c.l.b16 %v7494
        %v7623 = vunpack.c.l.b16 %v7495
        %v7624 = vunpack.c.l.b16 %v7496
        %v7625 = vunpack.c.l.b16 %v7497
        %v7626 = vunpack.c.l.b16 %v7498
        %v7627 = vunpack.c.l.b16 %v7499
        %v7628 = vunpack.c.l.b16 %v7500
        %v7629 = vunpack.c.l.b16 %v7501
        %v7630 = vunpack.c.l.b16 %v7502
        %v7631 = vunpack.c.l.b16 %v7503
        %v7632 = vunpack.c.l.b16 %v7504
        %v7633 = vunpack.c.l.b16 %v7505
        %v7634 = vunpack.c.l.b16 %v7506
        %v7635 = vunpack.c.l.b16 %v7507
        %v7636 = vunpack.c.l.b16 %v7508
        %v7637 = vunpack.c.l.b16 %v7509
        %v7638 = vunpack.c.l.b16 %v7510
        %v7639 = vunpack.c.l.b16 %v7511
        %v7640 = vunpack.c.l.b16 %v7512
        %v7641 = vunpack.c.l.b16 %v7513
        %v7642 = vunpack.c.l.b16 %v7514
        %v7643 = vunpack.c.l.b16 %v7515
        %v7644 = vunpack.c.l.b16 %v7516
        %v7645 = vunpack.c.l.b16 %v7517
        %v7646 = vunpack.c.l.b16 %v7518
        %v7647 = vunpack.c.l.b16 %v7519
        %v7648 = vunpack.c.l.b16 %v7520
        %v7649 = vunpack.c.l.b16 %v7521
        %v7650 = vunpack.c.l.b16 %v7522
        %v7651 = vunpack.c.l.b16 %v7523
        %v7652 = vunpack.c.l.b16 %v7524
        %v7653 = vunpack.c.l.b16 %v7525
        %v7654 = vunpack.c.l.b16 %v7526
        %v7655 = vunpack.c.l.b16 %v7527
        %v7656 = vunpack.c.l.b16 %v7528
        %v7657 = vunpack.c.l.b16 %v7529
        %v7658 = vunpack.c.l.b16 %v7530
        %v7659 = vunpack.c.l.b16 %v7531
        %v7660 = vunpack.c.l.b16 %v7532
        %v7661 = vunpack.c.l.b16 %v7533
        %v7662 = vunpack.c.l.b16 %v7534
        %v7663 = vunpack.c.l.b16 %v7535
        %v7664 = vunpack.c.l.b16 %v7536
        %v7665 = vunpack.c.l.b16 %v7537
        %v7666 = vunpack.c.l.b16 %v7538
        %v7667 = vunpack.c.l.b16 %v7539
        %v7668 = vunpack.c.l.b16 %v7540
        %v7669 = vunpack.c.l.b16 %v7541
        %v7670 = vunpack.c.l.b16 %v7542
        %v7671 = vunpack.c.l.b16 %v7543
        %v7672 = vunpack.c.l.b16 %v7544
        %v7673 = vunpack.c.l.b16 %v7545
        %v7674 = vunpack.c.l.b16 %v7546
        %v7675 = vunpack.c.l.b16 %v7547
        %v7676 = vunpack.c.l.b16 %v7548
        %v7677 = vunpack.c.l.b16 %v7549
        %v7678 = vunpack.c.l.b16 %v7550
        %v7679 = vunpack.c.l.b16 %v7551
        %v7680 = vunpack.c.l.b16 %v7552
        %v7681 = vpack.c.b16 %v7618, %v7617
        %v7682 = vpack.c.b16 %v7620, %v7619
        %v7683 = vpack.c.b16 %v7622, %v7621
        %v7684 = vpack.c.b16 %v7624, %v7623
        %v7685 = vpack.c.b16 %v7626, %v7625
        %v7686 = vpack.c.b16 %v7628, %v7627
        %v7687 = vpack.c.b16 %v7630, %v7629
        %v7688 = vpack.c.b16 %v7632, %v7631
        %v7689 = vpack.c.b16 %v7634, %v7633
        %v7690 = vpack.c.b16 %v7636, %v7635
        %v7691 = vpack.c.b16 %v7638, %v7637
        %v7692 = vpack.c.b16 %v7640, %v7639
        %v7693 = vpack.c.b16 %v7642, %v7641
        %v7694 = vpack.c.b16 %v7644, %v7643
        %v7695 = vpack.c.b16 %v7646, %v7645
        %v7696 = vpack.c.b16 %v7648, %v7647
        %v7697 = vpack.c.b16 %v7650, %v7649
        %v7698 = vpack.c.b16 %v7652, %v7651
        %v7699 = vpack.c.b16 %v7654, %v7653
        %v7700 = vpack.c.b16 %v7656, %v7655
        %v7701 = vpack.c.b16 %v7658, %v7657
        %v7702 = vpack.c.b16 %v7660, %v7659
        %v7703 = vpack.c.b16 %v7662, %v7661
        %v7704 = vpack.c.b16 %v7664, %v7663
        %v7705 = vpack.c.b16 %v7666, %v7665
        %v7706 = vpack.c.b16 %v7668, %v7667
        %v7707 = vpack.c.b16 %v7670, %v7669
        %v7708 = vpack.c.b16 %v7672, %v7671
        %v7709 = vpack.c.b16 %v7674, %v7673
        %v7710 = vpack.c.b16 %v7676, %v7675
        %v7711 = vpack.c.b16 %v7678, %v7677
        %v7712 = vpack.c.b16 %v7680, %v7679
        %7745 = vmatprep.subr.bf16.mxu0 0
        %7746 = vmatpush1.bf16.msra.mxu0 %v7681
        %7747 = vmatprep.subr.bf16.mxu0 0
        %7748 = vmatpush1.bf16.msra.mxu0 %v7682
        %7749 = vmatprep.subr.bf16.mxu0 0
        %7750 = vmatpush1.bf16.msra.mxu0 %v7683
        %7751 = vmatprep.subr.bf16.mxu0 0
        %7752 = vmatpush1.bf16.msra.mxu0 %v7684
        %7753 = vmatprep.subr.bf16.mxu0 0
        %7754 = vmatpush1.bf16.msra.mxu0 %v7685
        %7755 = vmatprep.subr.bf16.mxu0 0
        %7756 = vmatpush1.bf16.msra.mxu0 %v7686
        %7757 = vmatprep.subr.bf16.mxu0 0
        %7758 = vmatpush1.bf16.msra.mxu0 %v7687
        %7759 = vmatprep.subr.bf16.mxu0 0
        %7760 = vmatpush1.bf16.msra.mxu0 %v7688
        %7761 = vmatprep.subr.bf16.mxu0 0
        %7762 = vmatpush1.bf16.msra.mxu0 %v7689
        %7763 = vmatprep.subr.bf16.mxu0 0
        %7764 = vmatpush1.bf16.msra.mxu0 %v7690
        %7765 = vmatprep.subr.bf16.mxu0 0
        %7766 = vmatpush1.bf16.msra.mxu0 %v7691
        %7767 = vmatprep.subr.bf16.mxu0 0
        %7768 = vmatpush1.bf16.msra.mxu0 %v7692
        %7769 = vmatprep.subr.bf16.mxu0 0
        %7770 = vmatpush1.bf16.msra.mxu0 %v7693
        %7771 = vmatprep.subr.bf16.mxu0 0
        %7772 = vmatpush1.bf16.msra.mxu0 %v7694
        %7773 = vmatprep.subr.bf16.mxu0 0
        %7774 = vmatpush1.bf16.msra.mxu0 %v7695
        %7775 = vmatprep.subr.bf16.mxu0 0
        %7776 = vmatpush1.bf16.msra.mxu0 %v7696
        %7777 = vmatprep.mubr.bf16.mxu0 %v7486
        %7778 = vmatmul.mubr.bf16.gmra.mrb[0].mxu0 %v7485
        %v7779 = vpop.f32.mrb[0].mxu0
        %v7780 = vadd.f32 0.0, %v7779
        %v7781 = vpop.f32.mrb[0].mxu0
        %v7782 = vpop.f32.mrb[0].mxu0
        %v7783 = vpop.f32.mrb[0].mxu0
        %7784 = vdwg.mxu0
        %7785 = vmatprep.subr.bf16.mxu0 0
        %7786 = vmatpush1.bf16.msra.mxu0 %v7697
        %7787 = vmatprep.subr.bf16.mxu0 0
        %7788 = vmatpush1.bf16.msra.mxu0 %v7698
        %7789 = vmatprep.subr.bf16.mxu0 0
        %7790 = vmatpush1.bf16.msra.mxu0 %v7699
        %7791 = vmatprep.subr.bf16.mxu0 0
        %7792 = vmatpush1.bf16.msra.mxu0 %v7700
        %7793 = vmatprep.subr.bf16.mxu0 0
        %7794 = vmatpush1.bf16.msra.mxu0 %v7701
        %7795 = vmatprep.subr.bf16.mxu0 0
        %7796 = vmatpush1.bf16.msra.mxu0 %v7702
        %7797 = vmatprep.subr.bf16.mxu0 0
        %7798 = vmatpush1.bf16.msra.mxu0 %v7703
        %7799 = vmatprep.subr.bf16.mxu0 0
        %7800 = vmatpush1.bf16.msra.mxu0 %v7704
        %7801 = vmatprep.subr.bf16.mxu0 0
        %7802 = vmatpush1.bf16.msra.mxu0 %v7705
        %7803 = vmatprep.subr.bf16.mxu0 0
        %7804 = vmatpush1.bf16.msra.mxu0 %v7706
        %7805 = vmatprep.subr.bf16.mxu0 0
        %7806 = vmatpush1.bf16.msra.mxu0 %v7707
        %7807 = vmatprep.subr.bf16.mxu0 0
        %7808 = vmatpush1.bf16.msra.mxu0 %v7708
        %7809 = vmatprep.subr.bf16.mxu0 0
        %7810 = vmatpush1.bf16.msra.mxu0 %v7709
        %7811 = vmatprep.subr.bf16.mxu0 0
        %7812 = vmatpush1.bf16.msra.mxu0 %v7710
        %7813 = vmatprep.subr.bf16.mxu0 0
        %7814 = vmatpush1.bf16.msra.mxu0 %v7711
        %7815 = vmatprep.subr.bf16.mxu0 0
        %7816 = vmatpush1.bf16.msra.mxu0 %v7712
        %7817 = vmatprep.mubr.bf16.mxu0 %v7488
        %7818 = vmatmul.mubr.bf16.gmra.mrb[0].mxu0 %v7487
        %v7819 = vpop.f32.mrb[0].mxu0
        %v7820 = vadd.f32 %v7780, %v7819
        %v7821 = vpop.f32.mrb[0].mxu0
        %v7822 = vpop.f32.mrb[0].mxu0
        %v7823 = vpop.f32.mrb[0].mxu0
        %7824 = vdwg.mxu0
        %v7889 = vunpack.c.l.b16 %v7121
        %v7890 = vunpack.c.l.b16 %v7122
        %v7891 = vunpack.c.l.b16 %v7123
        %v7892 = vunpack.c.l.b16 %v7124
        %v7893 = vunpack.c.l.b16 %v7125
        %v7894 = vunpack.c.l.b16 %v7126
        %v7895 = vunpack.c.l.b16 %v7127
        %v7896 = vunpack.c.l.b16 %v7128
        %v7897 = vunpack.c.l.b16 %v7129
        %v7898 = vunpack.c.l.b16 %v7130
        %v7899 = vunpack.c.l.b16 %v7131
        %v7900 = vunpack.c.l.b16 %v7132
        %v7901 = vunpack.c.l.b16 %v7133
        %v7902 = vunpack.c.l.b16 %v7134
        %v7903 = vunpack.c.l.b16 %v7135
        %v7904 = vunpack.c.l.b16 %v7136
        %v7905 = vunpack.c.l.b16 %v7137
        %v7906 = vunpack.c.l.b16 %v7138
        %v7907 = vunpack.c.l.b16 %v7139
        %v7908 = vunpack.c.l.b16 %v7140
        %v7909 = vunpack.c.l.b16 %v7141
        %v7910 = vunpack.c.l.b16 %v7142
        %v7911 = vunpack.c.l.b16 %v7143
        %v7912 = vunpack.c.l.b16 %v7144
        %v7913 = vunpack.c.l.b16 %v7145
        %v7914 = vunpack.c.l.b16 %v7146
        %v7915 = vunpack.c.l.b16 %v7147
        %v7916 = vunpack.c.l.b16 %v7148
        %v7917 = vunpack.c.l.b16 %v7149
        %v7918 = vunpack.c.l.b16 %v7150
        %v7919 = vunpack.c.l.b16 %v7151
        %v7920 = vunpack.c.l.b16 %v7152
        %v7921 = vunpack.c.l.b16 %v7153
        %v7922 = vunpack.c.l.b16 %v7154
        %v7923 = vunpack.c.l.b16 %v7155
        %v7924 = vunpack.c.l.b16 %v7156
        %v7925 = vunpack.c.l.b16 %v7157
        %v7926 = vunpack.c.l.b16 %v7158
        %v7927 = vunpack.c.l.b16 %v7159
        %v7928 = vunpack.c.l.b16 %v7160
        %v7929 = vunpack.c.l.b16 %v7161
        %v7930 = vunpack.c.l.b16 %v7162
        %v7931 = vunpack.c.l.b16 %v7163
        %v7932 = vunpack.c.l.b16 %v7164
        %v7933 = vunpack.c.l.b16 %v7165
        %v7934 = vunpack.c.l.b16 %v7166
        %v7935 = vunpack.c.l.b16 %v7167
        %v7936 = vunpack.c.l.b16 %v7168
        %v7937 = vunpack.c.l.b16 %v7169
        %v7938 = vunpack.c.l.b16 %v7170
        %v7939 = vunpack.c.l.b16 %v7171
        %v7940 = vunpack.c.l.b16 %v7172
        %v7941 = vunpack.c.l.b16 %v7173
        %v7942 = vunpack.c.l.b16 %v7174
        %v7943 = vunpack.c.l.b16 %v7175
        %v7944 = vunpack.c.l.b16 %v7176
        %v7945 = vunpack.c.l.b16 %v7177
        %v7946 = vunpack.c.l.b16 %v7178
        %v7947 = vunpack.c.l.b16 %v7179
        %v7948 = vunpack.c.l.b16 %v7180
        %v7949 = vunpack.c.l.b16 %v7181
        %v7950 = vunpack.c.l.b16 %v7182
        %v7951 = vunpack.c.l.b16 %v7183
        %v7952 = vunpack.c.l.b16 %v7184
        %v7953 = vpack.c.b16 %v7890, %v7889
        %v7954 = vpack.c.b16 %v7892, %v7891
        %v7955 = vpack.c.b16 %v7894, %v7893
        %v7956 = vpack.c.b16 %v7896, %v7895
        %v7957 = vpack.c.b16 %v7898, %v7897
        %v7958 = vpack.c.b16 %v7900, %v7899
        %v7959 = vpack.c.b16 %v7902, %v7901
        %v7960 = vpack.c.b16 %v7904, %v7903
        %v7961 = vpack.c.b16 %v7906, %v7905
        %v7962 = vpack.c.b16 %v7908, %v7907
        %v7963 = vpack.c.b16 %v7910, %v7909
        %v7964 = vpack.c.b16 %v7912, %v7911
        %v7965 = vpack.c.b16 %v7914, %v7913
        %v7966 = vpack.c.b16 %v7916, %v7915
        %v7967 = vpack.c.b16 %v7918, %v7917
        %v7968 = vpack.c.b16 %v7920, %v7919
        %v7969 = vpack.c.b16 %v7922, %v7921
        %v7970 = vpack.c.b16 %v7924, %v7923
        %v7971 = vpack.c.b16 %v7926, %v7925
        %v7972 = vpack.c.b16 %v7928, %v7927
        %v7973 = vpack.c.b16 %v7930, %v7929
        %v7974 = vpack.c.b16 %v7932, %v7931
        %v7975 = vpack.c.b16 %v7934, %v7933
        %v7976 = vpack.c.b16 %v7936, %v7935
        %v7977 = vpack.c.b16 %v7938, %v7937
        %v7978 = vpack.c.b16 %v7940, %v7939
        %v7979 = vpack.c.b16 %v7942, %v7941
        %v7980 = vpack.c.b16 %v7944, %v7943
        %v7981 = vpack.c.b16 %v7946, %v7945
        %v7982 = vpack.c.b16 %v7948, %v7947
        %v7983 = vpack.c.b16 %v7950, %v7949
        %v7984 = vpack.c.b16 %v7952, %v7951
        %8017 = vmatprep.subr.bf16.mxu0 0
        %8018 = vmatpush1.bf16.msra.mxu0 %v7953
        %8019 = vmatprep.subr.bf16.mxu0 0
        %8020 = vmatpush1.bf16.msra.mxu0 %v7954
        %8021 = vmatprep.subr.bf16.mxu0 0
        %8022 = vmatpush1.bf16.msra.mxu0 %v7955
        %8023 = vmatprep.subr.bf16.mxu0 0
        %8024 = vmatpush1.bf16.msra.mxu0 %v7956
        %8025 = vmatprep.subr.bf16.mxu0 0
        %8026 = vmatpush1.bf16.msra.mxu0 %v7957
        %8027 = vmatprep.subr.bf16.mxu0 0
        %8028 = vmatpush1.bf16.msra.mxu0 %v7958
        %8029 = vmatprep.subr.bf16.mxu0 0
        %8030 = vmatpush1.bf16.msra.mxu0 %v7959
        %8031 = vmatprep.subr.bf16.mxu0 0
        %8032 = vmatpush1.bf16.msra.mxu0 %v7960
        %8033 = vmatprep.subr.bf16.mxu0 0
        %8034 = vmatpush1.bf16.msra.mxu0 %v7961
        %8035 = vmatprep.subr.bf16.mxu0 0
        %8036 = vmatpush1.bf16.msra.mxu0 %v7962
        %8037 = vmatprep.subr.bf16.mxu0 0
        %8038 = vmatpush1.bf16.msra.mxu0 %v7963
        %8039 = vmatprep.subr.bf16.mxu0 0
        %8040 = vmatpush1.bf16.msra.mxu0 %v7964
        %8041 = vmatprep.subr.bf16.mxu0 0
        %8042 = vmatpush1.bf16.msra.mxu0 %v7965
        %8043 = vmatprep.subr.bf16.mxu0 0
        %8044 = vmatpush1.bf16.msra.mxu0 %v7966
        %8045 = vmatprep.subr.bf16.mxu0 0
        %8046 = vmatpush1.bf16.msra.mxu0 %v7967
        %8047 = vmatprep.subr.bf16.mxu0 0
        %8048 = vmatpush1.bf16.msra.mxu0 %v7968
        %8049 = vmatprep.mubr.bf16.mxu0 %v7117
        %8050 = vmatmul.mubr.bf16.gmra.mrb[0].mxu0 %v7116
        %v8051 = vpop.f32.mrb[0].mxu0
        %v8052 = vadd.f32 %v7820, %v8051
        %v8053 = vpop.f32.mrb[0].mxu0
        %v8054 = vpop.f32.mrb[0].mxu0
        %v8055 = vpop.f32.mrb[0].mxu0
        %8056 = vdwg.mxu0
        %8057 = vmatprep.subr.bf16.mxu0 0
        %8058 = vmatpush1.bf16.msra.mxu0 %v7969
        %8059 = vmatprep.subr.bf16.mxu0 0
        %8060 = vmatpush1.bf16.msra.mxu0 %v7970
        %8061 = vmatprep.subr.bf16.mxu0 0
        %8062 = vmatpush1.bf16.msra.mxu0 %v7971
        %8063 = vmatprep.subr.bf16.mxu0 0
        %8064 = vmatpush1.bf16.msra.mxu0 %v7972
        %8065 = vmatprep.subr.bf16.mxu0 0
        %8066 = vmatpush1.bf16.msra.mxu0 %v7973
        %8067 = vmatprep.subr.bf16.mxu0 0
        %8068 = vmatpush1.bf16.msra.mxu0 %v7974
        %8069 = vmatprep.subr.bf16.mxu0 0
        %8070 = vmatpush1.bf16.msra.mxu0 %v7975
        %8071 = vmatprep.subr.bf16.mxu0 0
        %8072 = vmatpush1.bf16.msra.mxu0 %v7976
        %8073 = vmatprep.subr.bf16.mxu0 0
        %8074 = vmatpush1.bf16.msra.mxu0 %v7977
        %8075 = vmatprep.subr.bf16.mxu0 0
        %8076 = vmatpush1.bf16.msra.mxu0 %v7978
        %8077 = vmatprep.subr.bf16.mxu0 0
        %8078 = vmatpush1.bf16.msra.mxu0 %v7979
        %8079 = vmatprep.subr.bf16.mxu0 0
        %8080 = vmatpush1.bf16.msra.mxu0 %v7980
        %8081 = vmatprep.subr.bf16.mxu0 0
        %8082 = vmatpush1.bf16.msra.mxu0 %v7981
        %8083 = vmatprep.subr.bf16.mxu0 0
        %8084 = vmatpush1.bf16.msra.mxu0 %v7982
        %8085 = vmatprep.subr.bf16.mxu0 0
        %8086 = vmatpush1.bf16.msra.mxu0 %v7983
        %8087 = vmatprep.subr.bf16.mxu0 0
        %8088 = vmatpush1.bf16.msra.mxu0 %v7984
        %8089 = vmatprep.mubr.bf16.mxu0 %v7119
        %8090 = vmatmul.mubr.bf16.gmra.mrb[0].mxu0 %v7118
        %v8091 = vpop.f32.mrb[0].mxu0
        %v8092 = vadd.f32 %v8052, %v8091
        %v8093 = vpop.f32.mrb[0].mxu0
        %v8094 = vpop.f32.mrb[0].mxu0
        %v8095 = vpop.f32.mrb[0].mxu0
        %8096 = vdwg.mxu0
        %v8097 = vld [vmem:[%s6814 + $0x20] sm:$0xff]
        %v8098 = vld [vmem:[%s6814 + $0x28] sm:$0xff]
        %v8099 = vld [vmem:[%s6814 + $0x60] sm:$0xff]
        %v8100 = vld [vmem:[%s6814 + $0x68] sm:$0xff]
        %v8101 = vld [vmem:[%s6814 + $0xa0] sm:$0xff]
        %v8102 = vld [vmem:[%s6814 + $0xa8] sm:$0xff]
        %v8103 = vld [vmem:[%s6814 + $0xe0] sm:$0xff]
        %v8104 = vld [vmem:[%s6814 + $0xe8] sm:$0xff]
        %v8105 = vld [vmem:[%s6814 + $0x120] sm:$0xff]
        %v8106 = vld [vmem:[%s6814 + $0x128] sm:$0xff]
        %v8107 = vld [vmem:[%s6814 + $0x160] sm:$0xff]
        %v8108 = vld [vmem:[%s6814 + $0x168] sm:$0xff]
        %v8109 = vld [vmem:[%s6814 + $0x1a0] sm:$0xff]
        %v8110 = vld [vmem:[%s6814 + $0x1a8] sm:$0xff]
        %v8111 = vld [vmem:[%s6814 + $0x1e0] sm:$0xff]
        %v8112 = vld [vmem:[%s6814 + $0x1e8] sm:$0xff]
        %v8113 = vld [vmem:[%s6814 + $0x220] sm:$0xff]
        %v8114 = vld [vmem:[%s6814 + $0x228] sm:$0xff]
        %v8115 = vld [vmem:[%s6814 + $0x260] sm:$0xff]
        %v8116 = vld [vmem:[%s6814 + $0x268] sm:$0xff]
        %v8117 = vld [vmem:[%s6814 + $0x2a0] sm:$0xff]
        %v8118 = vld [vmem:[%s6814 + $0x2a8] sm:$0xff]
        %v8119 = vld [vmem:[%s6814 + $0x2e0] sm:$0xff]
        %v8120 = vld [vmem:[%s6814 + $0x2e8] sm:$0xff]
        %v8121 = vld [vmem:[%s6814 + $0x320] sm:$0xff]
        %v8122 = vld [vmem:[%s6814 + $0x328] sm:$0xff]
        %v8123 = vld [vmem:[%s6814 + $0x360] sm:$0xff]
        %v8124 = vld [vmem:[%s6814 + $0x368] sm:$0xff]
        %v8125 = vld [vmem:[%s6814 + $0x3a0] sm:$0xff]
        %v8126 = vld [vmem:[%s6814 + $0x3a8] sm:$0xff]
        %v8127 = vld [vmem:[%s6814 + $0x3e0] sm:$0xff]
        %v8128 = vld [vmem:[%s6814 + $0x3e8] sm:$0xff]
        %v8129 = vld [vmem:[%s6847 + $0x8] sm:$0xf]
        %v8131 = vlaneseq
        %v8132 = vshrl.u32 %v8131, 7
        %v8133 = vsub.s32 0, %v8132
        %v8134 = vrot.slane %v8129, %v8133
        %v8135 = vlaneseq
        %v8136 = vshrl.u32 %v8135, 7
        %v8137 = vsub.s32 1, %v8136
        %v8138 = vrot.slane %v8129, %v8137
        %v8139 = vlaneseq
        %v8140 = vshrl.u32 %v8139, 7
        %v8141 = vsub.s32 2, %v8140
        %v8142 = vrot.slane %v8129, %v8141
        %v8143 = vlaneseq
        %v8144 = vshrl.u32 %v8143, 7
        %v8145 = vsub.s32 3, %v8144
        %v8146 = vrot.slane %v8129, %v8145
        %v8183 = vunpack.c.l.b16 %v8097
        %v8184 = vunpack.c.h.b16 %v8097
        %v8185 = vunpack.c.l.b16 %v8098
        %v8186 = vunpack.c.h.b16 %v8098
        %v8187 = vunpack.c.l.b16 %v8099
        %v8188 = vunpack.c.h.b16 %v8099
        %v8189 = vunpack.c.l.b16 %v8100
        %v8190 = vunpack.c.h.b16 %v8100
        %v8191 = vunpack.c.l.b16 %v8101
        %v8192 = vunpack.c.h.b16 %v8101
        %v8193 = vunpack.c.l.b16 %v8102
        %v8194 = vunpack.c.h.b16 %v8102
        %v8195 = vunpack.c.l.b16 %v8103
        %v8196 = vunpack.c.h.b16 %v8103
        %v8197 = vunpack.c.l.b16 %v8104
        %v8198 = vunpack.c.h.b16 %v8104
        %v8199 = vunpack.c.l.b16 %v8105
        %v8200 = vunpack.c.h.b16 %v8105
        %v8201 = vunpack.c.l.b16 %v8106
        %v8202 = vunpack.c.h.b16 %v8106
        %v8203 = vunpack.c.l.b16 %v8107
        %v8204 = vunpack.c.h.b16 %v8107
        %v8205 = vunpack.c.l.b16 %v8108
        %v8206 = vunpack.c.h.b16 %v8108
        %v8207 = vunpack.c.l.b16 %v8109
        %v8208 = vunpack.c.h.b16 %v8109
        %v8209 = vunpack.c.l.b16 %v8110
        %v8210 = vunpack.c.h.b16 %v8110
        %v8211 = vunpack.c.l.b16 %v8111
        %v8212 = vunpack.c.h.b16 %v8111
        %v8213 = vunpack.c.l.b16 %v8112
        %v8214 = vunpack.c.h.b16 %v8112
        %v8215 = vunpack.c.l.b16 %v8113
        %v8216 = vunpack.c.h.b16 %v8113
        %v8217 = vunpack.c.l.b16 %v8114
        %v8218 = vunpack.c.h.b16 %v8114
        %v8219 = vunpack.c.l.b16 %v8115
        %v8220 = vunpack.c.h.b16 %v8115
        %v8221 = vunpack.c.l.b16 %v8116
        %v8222 = vunpack.c.h.b16 %v8116
        %v8223 = vunpack.c.l.b16 %v8117
        %v8224 = vunpack.c.h.b16 %v8117
        %v8225 = vunpack.c.l.b16 %v8118
        %v8226 = vunpack.c.h.b16 %v8118
        %v8227 = vunpack.c.l.b16 %v8119
        %v8228 = vunpack.c.h.b16 %v8119
        %v8229 = vunpack.c.l.b16 %v8120
        %v8230 = vunpack.c.h.b16 %v8120
        %v8231 = vunpack.c.l.b16 %v8121
        %v8232 = vunpack.c.h.b16 %v8121
        %v8233 = vunpack.c.l.b16 %v8122
        %v8234 = vunpack.c.h.b16 %v8122
        %v8235 = vunpack.c.l.b16 %v8123
        %v8236 = vunpack.c.h.b16 %v8123
        %v8237 = vunpack.c.l.b16 %v8124
        %v8238 = vunpack.c.h.b16 %v8124
        %v8239 = vunpack.c.l.b16 %v8125
        %v8240 = vunpack.c.h.b16 %v8125
        %v8241 = vunpack.c.l.b16 %v8126
        %v8242 = vunpack.c.h.b16 %v8126
        %v8243 = vunpack.c.l.b16 %v8127
        %v8244 = vunpack.c.h.b16 %v8127
        %v8245 = vunpack.c.l.b16 %v8128
        %v8246 = vunpack.c.h.b16 %v8128
        %v8247 = vpack.c.b16 %v8187, %v8183
        %v8248 = vpack.c.b16 %v8188, %v8184
        %v8249 = vpack.c.b16 %v8189, %v8185
        %v8250 = vpack.c.b16 %v8190, %v8186
        %v8251 = vpack.c.b16 %v8195, %v8191
        %v8252 = vpack.c.b16 %v8196, %v8192
        %v8253 = vpack.c.b16 %v8197, %v8193
        %v8254 = vpack.c.b16 %v8198, %v8194
        %v8255 = vpack.c.b16 %v8203, %v8199
        %v8256 = vpack.c.b16 %v8204, %v8200
        %v8257 = vpack.c.b16 %v8205, %v8201
        %v8258 = vpack.c.b16 %v8206, %v8202
        %v8259 = vpack.c.b16 %v8211, %v8207
        %v8260 = vpack.c.b16 %v8212, %v8208
        %v8261 = vpack.c.b16 %v8213, %v8209
        %v8262 = vpack.c.b16 %v8214, %v8210
        %v8263 = vpack.c.b16 %v8219, %v8215
        %v8264 = vpack.c.b16 %v8220, %v8216
        %v8265 = vpack.c.b16 %v8221, %v8217
        %v8266 = vpack.c.b16 %v8222, %v8218
        %v8267 = vpack.c.b16 %v8227, %v8223
        %v8268 = vpack.c.b16 %v8228, %v8224
        %v8269 = vpack.c.b16 %v8229, %v8225
        %v8270 = vpack.c.b16 %v8230, %v8226
        %v8271 = vpack.c.b16 %v8235, %v8231
        %v8272 = vpack.c.b16 %v8236, %v8232
        %v8273 = vpack.c.b16 %v8237, %v8233
        %v8274 = vpack.c.b16 %v8238, %v8234
        %v8275 = vpack.c.b16 %v8243, %v8239
        %v8276 = vpack.c.b16 %v8244, %v8240
        %v8277 = vpack.c.b16 %v8245, %v8241
        %v8278 = vpack.c.b16 %v8246, %v8242
        %8311 = vmatprep.subr.bf16.mxu0 %v8248
        %8312 = vmatpush1.bf16.msra.mxu0 %v8247
        %8313 = vmatprep.subr.bf16.mxu0 %v8252
        %8314 = vmatpush1.bf16.msra.mxu0 %v8251
        %8315 = vmatprep.subr.bf16.mxu0 %v8256
        %8316 = vmatpush1.bf16.msra.mxu0 %v8255
        %8317 = vmatprep.subr.bf16.mxu0 %v8260
        %8318 = vmatpush1.bf16.msra.mxu0 %v8259
        %8319 = vmatprep.subr.bf16.mxu0 %v8264
        %8320 = vmatpush1.bf16.msra.mxu0 %v8263
        %8321 = vmatprep.subr.bf16.mxu0 %v8268
        %8322 = vmatpush1.bf16.msra.mxu0 %v8267
        %8323 = vmatprep.subr.bf16.mxu0 %v8272
        %8324 = vmatpush1.bf16.msra.mxu0 %v8271
        %8325 = vmatprep.subr.bf16.mxu0 %v8276
        %8326 = vmatpush1.bf16.msra.mxu0 %v8275
        %8327 = vmatprep.subr.bf16.mxu0 0
        %8328 = vmatpush1.bf16.msra.mxu0 0
        %8329 = vmatprep.subr.bf16.mxu0 0
        %8330 = vmatpush1.bf16.msra.mxu0 0
        %8331 = vmatprep.subr.bf16.mxu0 0
        %8332 = vmatpush1.bf16.msra.mxu0 0
        %8333 = vmatprep.subr.bf16.mxu0 0
        %8334 = vmatpush1.bf16.msra.mxu0 0
        %8335 = vmatprep.subr.bf16.mxu0 0
        %8336 = vmatpush1.bf16.msra.mxu0 0
        %8337 = vmatprep.subr.bf16.mxu0 0
        %8338 = vmatpush1.bf16.msra.mxu0 0
        %8339 = vmatprep.subr.bf16.mxu0 0
        %8340 = vmatpush1.bf16.msra.mxu0 0
        %8341 = vmatprep.subr.bf16.mxu0 0
        %8342 = vmatpush1.bf16.msra.mxu0 0
        %8343 = vmatprep.mubr.bf16.mxu0 0
        %8344 = vmatmul.mubr.bf16.gmra.mrb[0].mxu0 %v6813
        %v8345 = vpop.f32.mrb[0].mxu0
        %v8346 = vadd.f32 %v8134, %v8345
        %v8347 = vpop.f32.mrb[0].mxu0
        %v8348 = vadd.f32 %v8138, %v8347
        %v8349 = vpop.f32.mrb[0].mxu0
        %v8350 = vpop.f32.mrb[0].mxu0
        %8351 = vdwg.mxu0
        %8352 = vmatprep.subr.bf16.mxu0 %v8250
        %8353 = vmatpush1.bf16.msra.mxu0 %v8249
        %8354 = vmatprep.subr.bf16.mxu0 %v8254
        %8355 = vmatpush1.bf16.msra.mxu0 %v8253
        %8356 = vmatprep.subr.bf16.mxu0 %v8258
        %8357 = vmatpush1.bf16.msra.mxu0 %v8257
        %8358 = vmatprep.subr.bf16.mxu0 %v8262
        %8359 = vmatpush1.bf16.msra.mxu0 %v8261
        %8360 = vmatprep.subr.bf16.mxu0 %v8266
        %8361 = vmatpush1.bf16.msra.mxu0 %v8265
        %8362 = vmatprep.subr.bf16.mxu0 %v8270
        %8363 = vmatpush1.bf16.msra.mxu0 %v8269
        %8364 = vmatprep.subr.bf16.mxu0 %v8274
        %8365 = vmatpush1.bf16.msra.mxu0 %v8273
        %8366 = vmatprep.subr.bf16.mxu0 %v8278
        %8367 = vmatpush1.bf16.msra.mxu0 %v8277
        %8368 = vmatprep.subr.bf16.mxu0 0
        %8369 = vmatpush1.bf16.msra.mxu0 0
        %8370 = vmatprep.subr.bf16.mxu0 0
        %8371 = vmatpush1.bf16.msra.mxu0 0
        %8372 = vmatprep.subr.bf16.mxu0 0
        %8373 = vmatpush1.bf16.msra.mxu0 0
        %8374 = vmatprep.subr.bf16.mxu0 0
        %8375 = vmatpush1.bf16.msra.mxu0 0
        %8376 = vmatprep.subr.bf16.mxu0 0
        %8377 = vmatpush1.bf16.msra.mxu0 0
        %8378 = vmatprep.subr.bf16.mxu0 0
        %8379 = vmatpush1.bf16.msra.mxu0 0
        %8380 = vmatprep.subr.bf16.mxu0 0
        %8381 = vmatpush1.bf16.msra.mxu0 0
        %8382 = vmatprep.subr.bf16.mxu0 0
        %8383 = vmatpush1.bf16.msra.mxu0 0
        %8384 = vmatprep.mubr.bf16.mxu0 0
        %8385 = vmatmul.mubr.bf16.gmra.mrb[0].mxu0 %v6813
        %v8386 = vpop.f32.mrb[0].mxu0
        %v8387 = vadd.f32 %v8142, %v8386
        %v8388 = vpop.f32.mrb[0].mxu0
        %v8389 = vadd.f32 %v8146, %v8388
        %v8390 = vpop.f32.mrb[0].mxu0
        %v8391 = vpop.f32.mrb[0].mxu0
        %8392 = vdwg.mxu0
        %v8393 = vmax.f32 %v8346, 0.0
        %v8394 = vmax.f32 %v8348, 0.0
        %v8395 = vmax.f32 %v8387, 0.0
        %v8396 = vmax.f32 %v8389, 0.0
        %v8397 = vpack.c.bf16 %v8393, %v8393
        %v8398 = vpack.c.bf16 %v8394, %v8394
        %v8399 = vpack.c.bf16 %v8395, %v8395
        %v8400 = vpack.c.bf16 %v8396, %v8396
        %v8401 = vld [vmem:[%s7120 + $0x200] sm:$0xf]
        %v8402 = vld [vmem:[%s7120 + $0x204] sm:$0xf]
        %v8403 = vld [vmem:[%s7120 + $0x208] sm:$0xf]
        %v8404 = vld [vmem:[%s7120 + $0x20c] sm:$0xf]
        %v8405 = vld [vmem:[%s7120 + $0x210] sm:$0xf]
        %v8406 = vld [vmem:[%s7120 + $0x214] sm:$0xf]
        %v8407 = vld [vmem:[%s7120 + $0x218] sm:$0xf]
        %v8408 = vld [vmem:[%s7120 + $0x21c] sm:$0xf]
        %v8409 = vld [vmem:[%s7120 + $0x220] sm:$0xf]
        %v8410 = vld [vmem:[%s7120 + $0x224] sm:$0xf]
        %v8411 = vld [vmem:[%s7120 + $0x228] sm:$0xf]
        %v8412 = vld [vmem:[%s7120 + $0x22c] sm:$0xf]
        %v8413 = vld [vmem:[%s7120 + $0x230] sm:$0xf]
        %v8414 = vld [vmem:[%s7120 + $0x234] sm:$0xf]
        %v8415 = vld [vmem:[%s7120 + $0x238] sm:$0xf]
        %v8416 = vld [vmem:[%s7120 + $0x23c] sm:$0xf]
        %v8417 = vld [vmem:[%s7120 + $0x240] sm:$0xf]
        %v8418 = vld [vmem:[%s7120 + $0x244] sm:$0xf]
        %v8419 = vld [vmem:[%s7120 + $0x248] sm:$0xf]
        %v8420 = vld [vmem:[%s7120 + $0x24c] sm:$0xf]
        %v8421 = vld [vmem:[%s7120 + $0x250] sm:$0xf]
        %v8422 = vld [vmem:[%s7120 + $0x254] sm:$0xf]
        %v8423 = vld [vmem:[%s7120 + $0x258] sm:$0xf]
        %v8424 = vld [vmem:[%s7120 + $0x25c] sm:$0xf]
        %v8425 = vld [vmem:[%s7120 + $0x260] sm:$0xf]
        %v8426 = vld [vmem:[%s7120 + $0x264] sm:$0xf]
        %v8427 = vld [vmem:[%s7120 + $0x268] sm:$0xf]
        %v8428 = vld [vmem:[%s7120 + $0x26c] sm:$0xf]
        %v8429 = vld [vmem:[%s7120 + $0x270] sm:$0xf]
        %v8430 = vld [vmem:[%s7120 + $0x274] sm:$0xf]
        %v8431 = vld [vmem:[%s7120 + $0x278] sm:$0xf]
        %v8432 = vld [vmem:[%s7120 + $0x27c] sm:$0xf]
        %v8433 = vld [vmem:[%s7120 + $0x280] sm:$0xf]
        %v8434 = vld [vmem:[%s7120 + $0x284] sm:$0xf]
        %v8435 = vld [vmem:[%s7120 + $0x288] sm:$0xf]
        %v8436 = vld [vmem:[%s7120 + $0x28c] sm:$0xf]
        %v8437 = vld [vmem:[%s7120 + $0x290] sm:$0xf]
        %v8438 = vld [vmem:[%s7120 + $0x294] sm:$0xf]
        %v8439 = vld [vmem:[%s7120 + $0x298] sm:$0xf]
        %v8440 = vld [vmem:[%s7120 + $0x29c] sm:$0xf]
        %v8441 = vld [vmem:[%s7120 + $0x2a0] sm:$0xf]
        %v8442 = vld [vmem:[%s7120 + $0x2a4] sm:$0xf]
        %v8443 = vld [vmem:[%s7120 + $0x2a8] sm:$0xf]
        %v8444 = vld [vmem:[%s7120 + $0x2ac] sm:$0xf]
        %v8445 = vld [vmem:[%s7120 + $0x2b0] sm:$0xf]
        %v8446 = vld [vmem:[%s7120 + $0x2b4] sm:$0xf]
        %v8447 = vld [vmem:[%s7120 + $0x2b8] sm:$0xf]
        %v8448 = vld [vmem:[%s7120 + $0x2bc] sm:$0xf]
        %v8449 = vld [vmem:[%s7120 + $0x2c0] sm:$0xf]
        %v8450 = vld [vmem:[%s7120 + $0x2c4] sm:$0xf]
        %v8451 = vld [vmem:[%s7120 + $0x2c8] sm:$0xf]
        %v8452 = vld [vmem:[%s7120 + $0x2cc] sm:$0xf]
        %v8453 = vld [vmem:[%s7120 + $0x2d0] sm:$0xf]
        %v8454 = vld [vmem:[%s7120 + $0x2d4] sm:$0xf]
        %v8455 = vld [vmem:[%s7120 + $0x2d8] sm:$0xf]
        %v8456 = vld [vmem:[%s7120 + $0x2dc] sm:$0xf]
        %v8457 = vld [vmem:[%s7120 + $0x2e0] sm:$0xf]
        %v8458 = vld [vmem:[%s7120 + $0x2e4] sm:$0xf]
        %v8459 = vld [vmem:[%s7120 + $0x2e8] sm:$0xf]
        %v8460 = vld [vmem:[%s7120 + $0x2ec] sm:$0xf]
        %v8461 = vld [vmem:[%s7120 + $0x2f0] sm:$0xf]
        %v8462 = vld [vmem:[%s7120 + $0x2f4] sm:$0xf]
        %v8463 = vld [vmem:[%s7120 + $0x2f8] sm:$0xf]
        %v8464 = vld [vmem:[%s7120 + $0x2fc] sm:$0xf]
        %v8529 = vunpack.c.l.b16 %v8401
        %v8530 = vunpack.c.l.b16 %v8402
        %v8531 = vunpack.c.l.b16 %v8403
        %v8532 = vunpack.c.l.b16 %v8404
        %v8533 = vunpack.c.l.b16 %v8405
        %v8534 = vunpack.c.l.b16 %v8406
        %v8535 = vunpack.c.l.b16 %v8407
        %v8536 = vunpack.c.l.b16 %v8408
        %v8537 = vunpack.c.l.b16 %v8409
        %v8538 = vunpack.c.l.b16 %v8410
        %v8539 = vunpack.c.l.b16 %v8411
        %v8540 = vunpack.c.l.b16 %v8412
        %v8541 = vunpack.c.l.b16 %v8413
        %v8542 = vunpack.c.l.b16 %v8414
        %v8543 = vunpack.c.l.b16 %v8415
        %v8544 = vunpack.c.l.b16 %v8416
        %v8545 = vunpack.c.l.b16 %v8417
        %v8546 = vunpack.c.l.b16 %v8418
        %v8547 = vunpack.c.l.b16 %v8419
        %v8548 = vunpack.c.l.b16 %v8420
        %v8549 = vunpack.c.l.b16 %v8421
        %v8550 = vunpack.c.l.b16 %v8422
        %v8551 = vunpack.c.l.b16 %v8423
        %v8552 = vunpack.c.l.b16 %v8424
        %v8553 = vunpack.c.l.b16 %v8425
        %v8554 = vunpack.c.l.b16 %v8426
        %v8555 = vunpack.c.l.b16 %v8427
        %v8556 = vunpack.c.l.b16 %v8428
        %v8557 = vunpack.c.l.b16 %v8429
        %v8558 = vunpack.c.l.b16 %v8430
        %v8559 = vunpack.c.l.b16 %v8431
        %v8560 = vunpack.c.l.b16 %v8432
        %v8561 = vunpack.c.l.b16 %v8433
        %v8562 = vunpack.c.l.b16 %v8434
        %v8563 = vunpack.c.l.b16 %v8435
        %v8564 = vunpack.c.l.b16 %v8436
        %v8565 = vunpack.c.l.b16 %v8437
        %v8566 = vunpack.c.l.b16 %v8438
        %v8567 = vunpack.c.l.b16 %v8439
        %v8568 = vunpack.c.l.b16 %v8440
        %v8569 = vunpack.c.l.b16 %v8441
        %v8570 = vunpack.c.l.b16 %v8442
        %v8571 = vunpack.c.l.b16 %v8443
        %v8572 = vunpack.c.l.b16 %v8444
        %v8573 = vunpack.c.l.b16 %v8445
        %v8574 = vunpack.c.l.b16 %v8446
        %v8575 = vunpack.c.l.b16 %v8447
        %v8576 = vunpack.c.l.b16 %v8448
        %v8577 = vunpack.c.l.b16 %v8449
        %v8578 = vunpack.c.l.b16 %v8450
        %v8579 = vunpack.c.l.b16 %v8451
        %v8580 = vunpack.c.l.b16 %v8452
        %v8581 = vunpack.c.l.b16 %v8453
        %v8582 = vunpack.c.l.b16 %v8454
        %v8583 = vunpack.c.l.b16 %v8455
        %v8584 = vunpack.c.l.b16 %v8456
        %v8585 = vunpack.c.l.b16 %v8457
        %v8586 = vunpack.c.l.b16 %v8458
        %v8587 = vunpack.c.l.b16 %v8459
        %v8588 = vunpack.c.l.b16 %v8460
        %v8589 = vunpack.c.l.b16 %v8461
        %v8590 = vunpack.c.l.b16 %v8462
        %v8591 = vunpack.c.l.b16 %v8463
        %v8592 = vunpack.c.l.b16 %v8464
        %v8593 = vpack.c.b16 %v8530, %v8529
        %v8594 = vpack.c.b16 %v8532, %v8531
        %v8595 = vpack.c.b16 %v8534, %v8533
        %v8596 = vpack.c.b16 %v8536, %v8535
        %v8597 = vpack.c.b16 %v8538, %v8537
        %v8598 = vpack.c.b16 %v8540, %v8539
        %v8599 = vpack.c.b16 %v8542, %v8541
        %v8600 = vpack.c.b16 %v8544, %v8543
        %v8601 = vpack.c.b16 %v8546, %v8545
        %v8602 = vpack.c.b16 %v8548, %v8547
        %v8603 = vpack.c.b16 %v8550, %v8549
        %v8604 = vpack.c.b16 %v8552, %v8551
        %v8605 = vpack.c.b16 %v8554, %v8553
        %v8606 = vpack.c.b16 %v8556, %v8555
        %v8607 = vpack.c.b16 %v8558, %v8557
        %v8608 = vpack.c.b16 %v8560, %v8559
        %v8609 = vpack.c.b16 %v8562, %v8561
        %v8610 = vpack.c.b16 %v8564, %v8563
        %v8611 = vpack.c.b16 %v8566, %v8565
        %v8612 = vpack.c.b16 %v8568, %v8567
        %v8613 = vpack.c.b16 %v8570, %v8569
        %v8614 = vpack.c.b16 %v8572, %v8571
        %v8615 = vpack.c.b16 %v8574, %v8573
        %v8616 = vpack.c.b16 %v8576, %v8575
        %v8617 = vpack.c.b16 %v8578, %v8577
        %v8618 = vpack.c.b16 %v8580, %v8579
        %v8619 = vpack.c.b16 %v8582, %v8581
        %v8620 = vpack.c.b16 %v8584, %v8583
        %v8621 = vpack.c.b16 %v8586, %v8585
        %v8622 = vpack.c.b16 %v8588, %v8587
        %v8623 = vpack.c.b16 %v8590, %v8589
        %v8624 = vpack.c.b16 %v8592, %v8591
        %8657 = vmatprep.subr.bf16.mxu0 0
        %8658 = vmatpush1.bf16.msra.mxu0 %v8593
        %8659 = vmatprep.subr.bf16.mxu0 0
        %8660 = vmatpush1.bf16.msra.mxu0 %v8594
        %8661 = vmatprep.subr.bf16.mxu0 0
        %8662 = vmatpush1.bf16.msra.mxu0 %v8595
        %8663 = vmatprep.subr.bf16.mxu0 0
        %8664 = vmatpush1.bf16.msra.mxu0 %v8596
        %8665 = vmatprep.subr.bf16.mxu0 0
        %8666 = vmatpush1.bf16.msra.mxu0 %v8597
        %8667 = vmatprep.subr.bf16.mxu0 0
        %8668 = vmatpush1.bf16.msra.mxu0 %v8598
        %8669 = vmatprep.subr.bf16.mxu0 0
        %8670 = vmatpush1.bf16.msra.mxu0 %v8599
        %8671 = vmatprep.subr.bf16.mxu0 0
        %8672 = vmatpush1.bf16.msra.mxu0 %v8600
        %8673 = vmatprep.subr.bf16.mxu0 0
        %8674 = vmatpush1.bf16.msra.mxu0 %v8601
        %8675 = vmatprep.subr.bf16.mxu0 0
        %8676 = vmatpush1.bf16.msra.mxu0 %v8602
        %8677 = vmatprep.subr.bf16.mxu0 0
        %8678 = vmatpush1.bf16.msra.mxu0 %v8603
        %8679 = vmatprep.subr.bf16.mxu0 0
        %8680 = vmatpush1.bf16.msra.mxu0 %v8604
        %8681 = vmatprep.subr.bf16.mxu0 0
        %8682 = vmatpush1.bf16.msra.mxu0 %v8605
        %8683 = vmatprep.subr.bf16.mxu0 0
        %8684 = vmatpush1.bf16.msra.mxu0 %v8606
        %8685 = vmatprep.subr.bf16.mxu0 0
        %8686 = vmatpush1.bf16.msra.mxu0 %v8607
        %8687 = vmatprep.subr.bf16.mxu0 0
        %8688 = vmatpush1.bf16.msra.mxu0 %v8608
        %8689 = vmatprep.mubr.bf16.mxu0 %v8398
        %8690 = vmatmul.mubr.bf16.gmra.mrb[0].mxu0 %v8397
        %v8691 = vpop.f32.mrb[0].mxu0
        %v8692 = vadd.f32 0.0, %v8691
        %v8693 = vpop.f32.mrb[0].mxu0
        %v8694 = vpop.f32.mrb[0].mxu0
        %v8695 = vpop.f32.mrb[0].mxu0
        %8696 = vdwg.mxu0
        %8697 = vmatprep.subr.bf16.mxu0 0
        %8698 = vmatpush1.bf16.msra.mxu0 %v8609
        %8699 = vmatprep.subr.bf16.mxu0 0
        %8700 = vmatpush1.bf16.msra.mxu0 %v8610
        %8701 = vmatprep.subr.bf16.mxu0 0
        %8702 = vmatpush1.bf16.msra.mxu0 %v8611
        %8703 = vmatprep.subr.bf16.mxu0 0
        %8704 = vmatpush1.bf16.msra.mxu0 %v8612
        %8705 = vmatprep.subr.bf16.mxu0 0
        %8706 = vmatpush1.bf16.msra.mxu0 %v8613
        %8707 = vmatprep.subr.bf16.mxu0 0
        %8708 = vmatpush1.bf16.msra.mxu0 %v8614
        %8709 = vmatprep.subr.bf16.mxu0 0
        %8710 = vmatpush1.bf16.msra.mxu0 %v8615
        %8711 = vmatprep.subr.bf16.mxu0 0
        %8712 = vmatpush1.bf16.msra.mxu0 %v8616
        %8713 = vmatprep.subr.bf16.mxu0 0
        %8714 = vmatpush1.bf16.msra.mxu0 %v8617
        %8715 = vmatprep.subr.bf16.mxu0 0
        %8716 = vmatpush1.bf16.msra.mxu0 %v8618
        %8717 = vmatprep.subr.bf16.mxu0 0
        %8718 = vmatpush1.bf16.msra.mxu0 %v8619
        %8719 = vmatprep.subr.bf16.mxu0 0
        %8720 = vmatpush1.bf16.msra.mxu0 %v8620
        %8721 = vmatprep.subr.bf16.mxu0 0
        %8722 = vmatpush1.bf16.msra.mxu0 %v8621
        %8723 = vmatprep.subr.bf16.mxu0 0
        %8724 = vmatpush1.bf16.msra.mxu0 %v8622
        %8725 = vmatprep.subr.bf16.mxu0 0
        %8726 = vmatpush1.bf16.msra.mxu0 %v8623
        %8727 = vmatprep.subr.bf16.mxu0 0
        %8728 = vmatpush1.bf16.msra.mxu0 %v8624
        %8729 = vmatprep.mubr.bf16.mxu0 %v8400
        %8730 = vmatmul.mubr.bf16.gmra.mrb[0].mxu0 %v8399
        %v8731 = vpop.f32.mrb[0].mxu0
        %v8732 = vadd.f32 %v8692, %v8731
        %v8733 = vpop.f32.mrb[0].mxu0
        %v8734 = vpop.f32.mrb[0].mxu0
        %v8735 = vpop.f32.mrb[0].mxu0
        %8736 = vdwg.mxu0
        %v8737 = vadd.f32 %v8092, %v8732
        %v8738 = vld [vmem:[%s6814 + $0x30] sm:$0xff]
        %v8739 = vld [vmem:[%s6814 + $0x38] sm:$0xff]
        %v8740 = vld [vmem:[%s6814 + $0x70] sm:$0xff]
        %v8741 = vld [vmem:[%s6814 + $0x78] sm:$0xff]
        %v8742 = vld [vmem:[%s6814 + $0xb0] sm:$0xff]
        %v8743 = vld [vmem:[%s6814 + $0xb8] sm:$0xff]
        %v8744 = vld [vmem:[%s6814 + $0xf0] sm:$0xff]
        %v8745 = vld [vmem:[%s6814 + $0xf8] sm:$0xff]
        %v8746 = vld [vmem:[%s6814 + $0x130] sm:$0xff]
        %v8747 = vld [vmem:[%s6814 + $0x138] sm:$0xff]
        %v8748 = vld [vmem:[%s6814 + $0x170] sm:$0xff]
        %v8749 = vld [vmem:[%s6814 + $0x178] sm:$0xff]
        %v8750 = vld [vmem:[%s6814 + $0x1b0] sm:$0xff]
        %v8751 = vld [vmem:[%s6814 + $0x1b8] sm:$0xff]
        %v8752 = vld [vmem:[%s6814 + $0x1f0] sm:$0xff]
        %v8753 = vld [vmem:[%s6814 + $0x1f8] sm:$0xff]
        %v8754 = vld [vmem:[%s6814 + $0x230] sm:$0xff]
        %v8755 = vld [vmem:[%s6814 + $0x238] sm:$0xff]
        %v8756 = vld [vmem:[%s6814 + $0x270] sm:$0xff]
        %v8757 = vld [vmem:[%s6814 + $0x278] sm:$0xff]
        %v8758 = vld [vmem:[%s6814 + $0x2b0] sm:$0xff]
        %v8759 = vld [vmem:[%s6814 + $0x2b8] sm:$0xff]
        %v8760 = vld [vmem:[%s6814 + $0x2f0] sm:$0xff]
        %v8761 = vld [vmem:[%s6814 + $0x2f8] sm:$0xff]
        %v8762 = vld [vmem:[%s6814 + $0x330] sm:$0xff]
        %v8763 = vld [vmem:[%s6814 + $0x338] sm:$0xff]
        %v8764 = vld [vmem:[%s6814 + $0x370] sm:$0xff]
        %v8765 = vld [vmem:[%s6814 + $0x378] sm:$0xff]
        %v8766 = vld [vmem:[%s6814 + $0x3b0] sm:$0xff]
        %v8767 = vld [vmem:[%s6814 + $0x3b8] sm:$0xff]
        %v8768 = vld [vmem:[%s6814 + $0x3f0] sm:$0xff]
        %v8769 = vld [vmem:[%s6814 + $0x3f8] sm:$0xff]
        %v8770 = vld [vmem:[%s6847 + $0xc] sm:$0xf]
        %v8772 = vlaneseq
        %v8773 = vshrl.u32 %v8772, 7
        %v8774 = vsub.s32 0, %v8773
        %v8775 = vrot.slane %v8770, %v8774
        %v8776 = vlaneseq
        %v8777 = vshrl.u32 %v8776, 7
        %v8778 = vsub.s32 1, %v8777
        %v8779 = vrot.slane %v8770, %v8778
        %v8780 = vlaneseq
        %v8781 = vshrl.u32 %v8780, 7
        %v8782 = vsub.s32 2, %v8781
        %v8783 = vrot.slane %v8770, %v8782
        %v8784 = vlaneseq
        %v8785 = vshrl.u32 %v8784, 7
        %v8786 = vsub.s32 3, %v8785
        %v8787 = vrot.slane %v8770, %v8786
        %v8824 = vunpack.c.l.b16 %v8738
        %v8825 = vunpack.c.h.b16 %v8738
        %v8826 = vunpack.c.l.b16 %v8739
        %v8827 = vunpack.c.h.b16 %v8739
        %v8828 = vunpack.c.l.b16 %v8740
        %v8829 = vunpack.c.h.b16 %v8740
        %v8830 = vunpack.c.l.b16 %v8741
        %v8831 = vunpack.c.h.b16 %v8741
        %v8832 = vunpack.c.l.b16 %v8742
        %v8833 = vunpack.c.h.b16 %v8742
        %v8834 = vunpack.c.l.b16 %v8743
        %v8835 = vunpack.c.h.b16 %v8743
        %v8836 = vunpack.c.l.b16 %v8744
        %v8837 = vunpack.c.h.b16 %v8744
        %v8838 = vunpack.c.l.b16 %v8745
        %v8839 = vunpack.c.h.b16 %v8745
        %v8840 = vunpack.c.l.b16 %v8746
        %v8841 = vunpack.c.h.b16 %v8746
        %v8842 = vunpack.c.l.b16 %v8747
        %v8843 = vunpack.c.h.b16 %v8747
        %v8844 = vunpack.c.l.b16 %v8748
        %v8845 = vunpack.c.h.b16 %v8748
        %v8846 = vunpack.c.l.b16 %v8749
        %v8847 = vunpack.c.h.b16 %v8749
        %v8848 = vunpack.c.l.b16 %v8750
        %v8849 = vunpack.c.h.b16 %v8750
        %v8850 = vunpack.c.l.b16 %v8751
        %v8851 = vunpack.c.h.b16 %v8751
        %v8852 = vunpack.c.l.b16 %v8752
        %v8853 = vunpack.c.h.b16 %v8752
        %v8854 = vunpack.c.l.b16 %v8753
        %v8855 = vunpack.c.h.b16 %v8753
        %v8856 = vunpack.c.l.b16 %v8754
        %v8857 = vunpack.c.h.b16 %v8754
        %v8858 = vunpack.c.l.b16 %v8755
        %v8859 = vunpack.c.h.b16 %v8755
        %v8860 = vunpack.c.l.b16 %v8756
        %v8861 = vunpack.c.h.b16 %v8756
        %v8862 = vunpack.c.l.b16 %v8757
        %v8863 = vunpack.c.h.b16 %v8757
        %v8864 = vunpack.c.l.b16 %v8758
        %v8865 = vunpack.c.h.b16 %v8758
        %v8866 = vunpack.c.l.b16 %v8759
        %v8867 = vunpack.c.h.b16 %v8759
        %v8868 = vunpack.c.l.b16 %v8760
        %v8869 = vunpack.c.h.b16 %v8760
        %v8870 = vunpack.c.l.b16 %v8761
        %v8871 = vunpack.c.h.b16 %v8761
        %v8872 = vunpack.c.l.b16 %v8762
        %v8873 = vunpack.c.h.b16 %v8762
        %v8874 = vunpack.c.l.b16 %v8763
        %v8875 = vunpack.c.h.b16 %v8763
        %v8876 = vunpack.c.l.b16 %v8764
        %v8877 = vunpack.c.h.b16 %v8764
        %v8878 = vunpack.c.l.b16 %v8765
        %v8879 = vunpack.c.h.b16 %v8765
        %v8880 = vunpack.c.l.b16 %v8766
        %v8881 = vunpack.c.h.b16 %v8766
        %v8882 = vunpack.c.l.b16 %v8767
        %v8883 = vunpack.c.h.b16 %v8767
        %v8884 = vunpack.c.l.b16 %v8768
        %v8885 = vunpack.c.h.b16 %v8768
        %v8886 = vunpack.c.l.b16 %v8769
        %v8887 = vunpack.c.h.b16 %v8769
        %v8888 = vpack.c.b16 %v8828, %v8824
        %v8889 = vpack.c.b16 %v8829, %v8825
        %v8890 = vpack.c.b16 %v8830, %v8826
        %v8891 = vpack.c.b16 %v8831, %v8827
        %v8892 = vpack.c.b16 %v8836, %v8832
        %v8893 = vpack.c.b16 %v8837, %v8833
        %v8894 = vpack.c.b16 %v8838, %v8834
        %v8895 = vpack.c.b16 %v8839, %v8835
        %v8896 = vpack.c.b16 %v8844, %v8840
        %v8897 = vpack.c.b16 %v8845, %v8841
        %v8898 = vpack.c.b16 %v8846, %v8842
        %v8899 = vpack.c.b16 %v8847, %v8843
        %v8900 = vpack.c.b16 %v8852, %v8848
        %v8901 = vpack.c.b16 %v8853, %v8849
        %v8902 = vpack.c.b16 %v8854, %v8850
        %v8903 = vpack.c.b16 %v8855, %v8851
        %v8904 = vpack.c.b16 %v8860, %v8856
        %v8905 = vpack.c.b16 %v8861, %v8857
        %v8906 = vpack.c.b16 %v8862, %v8858
        %v8907 = vpack.c.b16 %v8863, %v8859
        %v8908 = vpack.c.b16 %v8868, %v8864
        %v8909 = vpack.c.b16 %v8869, %v8865
        %v8910 = vpack.c.b16 %v8870, %v8866
        %v8911 = vpack.c.b16 %v8871, %v8867
        %v8912 = vpack.c.b16 %v8876, %v8872
        %v8913 = vpack.c.b16 %v8877, %v8873
        %v8914 = vpack.c.b16 %v8878, %v8874
        %v8915 = vpack.c.b16 %v8879, %v8875
        %v8916 = vpack.c.b16 %v8884, %v8880
        %v8917 = vpack.c.b16 %v8885, %v8881
        %v8918 = vpack.c.b16 %v8886, %v8882
        %v8919 = vpack.c.b16 %v8887, %v8883
        %8952 = vmatprep.subr.bf16.mxu0 %v8889
        %8953 = vmatpush1.bf16.msra.mxu0 %v8888
        %8954 = vmatprep.subr.bf16.mxu0 %v8893
        %8955 = vmatpush1.bf16.msra.mxu0 %v8892
        %8956 = vmatprep.subr.bf16.mxu0 %v8897
        %8957 = vmatpush1.bf16.msra.mxu0 %v8896
        %8958 = vmatprep.subr.bf16.mxu0 %v8901
        %8959 = vmatpush1.bf16.msra.mxu0 %v8900
        %8960 = vmatprep.subr.bf16.mxu0 %v8905
        %8961 = vmatpush1.bf16.msra.mxu0 %v8904
        %8962 = vmatprep.subr.bf16.mxu0 %v8909
        %8963 = vmatpush1.bf16.msra.mxu0 %v8908
        %8964 = vmatprep.subr.bf16.mxu0 %v8913
        %8965 = vmatpush1.bf16.msra.mxu0 %v8912
        %8966 = vmatprep.subr.bf16.mxu0 %v8917
        %8967 = vmatpush1.bf16.msra.mxu0 %v8916
        %8968 = vmatprep.subr.bf16.mxu0 0
        %8969 = vmatpush1.bf16.msra.mxu0 0
        %8970 = vmatprep.subr.bf16.mxu0 0
        %8971 = vmatpush1.bf16.msra.mxu0 0
        %8972 = vmatprep.subr.bf16.mxu0 0
        %8973 = vmatpush1.bf16.msra.mxu0 0
        %8974 = vmatprep.subr.bf16.mxu0 0
        %8975 = vmatpush1.bf16.msra.mxu0 0
        %8976 = vmatprep.subr.bf16.mxu0 0
        %8977 = vmatpush1.bf16.msra.mxu0 0
        %8978 = vmatprep.subr.bf16.mxu0 0
        %8979 = vmatpush1.bf16.msra.mxu0 0
        %8980 = vmatprep.subr.bf16.mxu0 0
        %8981 = vmatpush1.bf16.msra.mxu0 0
        %8982 = vmatprep.subr.bf16.mxu0 0
        %8983 = vmatpush1.bf16.msra.mxu0 0
        %8984 = vmatprep.mubr.bf16.mxu0 0
        %8985 = vmatmul.mubr.bf16.gmra.mrb[0].mxu0 %v6813
        %v8986 = vpop.f32.mrb[0].mxu0
        %v8987 = vadd.f32 %v8775, %v8986
        %v8988 = vpop.f32.mrb[0].mxu0
        %v8989 = vadd.f32 %v8779, %v8988
        %v8990 = vpop.f32.mrb[0].mxu0
        %v8991 = vpop.f32.mrb[0].mxu0
        %8992 = vdwg.mxu0
        %8993 = vmatprep.subr.bf16.mxu0 %v8891
        %8994 = vmatpush1.bf16.msra.mxu0 %v8890
        %8995 = vmatprep.subr.bf16.mxu0 %v8895
        %8996 = vmatpush1.bf16.msra.mxu0 %v8894
        %8997 = vmatprep.subr.bf16.mxu0 %v8899
        %8998 = vmatpush1.bf16.msra.mxu0 %v8898
        %8999 = vmatprep.subr.bf16.mxu0 %v8903
        %9000 = vmatpush1.bf16.msra.mxu0 %v8902
        %9001 = vmatprep.subr.bf16.mxu0 %v8907
        %9002 = vmatpush1.bf16.msra.mxu0 %v8906
        %9003 = vmatprep.subr.bf16.mxu0 %v8911
        %9004 = vmatpush1.bf16.msra.mxu0 %v8910
        %9005 = vmatprep.subr.bf16.mxu0 %v8915
        %9006 = vmatpush1.bf16.msra.mxu0 %v8914
        %9007 = vmatprep.subr.bf16.mxu0 %v8919
        %9008 = vmatpush1.bf16.msra.mxu0 %v8918
        %9009 = vmatprep.subr.bf16.mxu0 0
        %9010 = vmatpush1.bf16.msra.mxu0 0
        %9011 = vmatprep.subr.bf16.mxu0 0
        %9012 = vmatpush1.bf16.msra.mxu0 0
        %9013 = vmatprep.subr.bf16.mxu0 0
        %9014 = vmatpush1.bf16.msra.mxu0 0
        %9015 = vmatprep.subr.bf16.mxu0 0
        %9016 = vmatpush1.bf16.msra.mxu0 0
        %9017 = vmatprep.subr.bf16.mxu0 0
        %9018 = vmatpush1.bf16.msra.mxu0 0
        %9019 = vmatprep.subr.bf16.mxu0 0
        %9020 = vmatpush1.bf16.msra.mxu0 0
        %9021 = vmatprep.subr.bf16.mxu0 0
        %9022 = vmatpush1.bf16.msra.mxu0 0
        %9023 = vmatprep.subr.bf16.mxu0 0
        %9024 = vmatpush1.bf16.msra.mxu0 0
        %9025 = vmatprep.mubr.bf16.mxu0 0
        %9026 = vmatmul.mubr.bf16.gmra.mrb[0].mxu0 %v6813
        %v9027 = vpop.f32.mrb[0].mxu0
        %v9028 = vadd.f32 %v8783, %v9027
        %v9029 = vpop.f32.mrb[0].mxu0
        %v9030 = vadd.f32 %v8787, %v9029
        %v9031 = vpop.f32.mrb[0].mxu0
        %v9032 = vpop.f32.mrb[0].mxu0
        %9033 = vdwg.mxu0
        %v9034 = vmax.f32 %v8987, 0.0
        %v9035 = vmax.f32 %v8989, 0.0
        %v9036 = vmax.f32 %v9028, 0.0
        %v9037 = vmax.f32 %v9030, 0.0
        %v9038 = vpack.c.bf16 %v9034, %v9034
        %v9039 = vpack.c.bf16 %v9035, %v9035
        %v9040 = vpack.c.bf16 %v9036, %v9036
        %v9041 = vpack.c.bf16 %v9037, %v9037
        %v9042 = vld [vmem:[%s7120 + $0x300] sm:$0xf]
        %v9043 = vld [vmem:[%s7120 + $0x304] sm:$0xf]
        %v9044 = vld [vmem:[%s7120 + $0x308] sm:$0xf]
        %v9045 = vld [vmem:[%s7120 + $0x30c] sm:$0xf]
        %v9046 = vld [vmem:[%s7120 + $0x310] sm:$0xf]
        %v9047 = vld [vmem:[%s7120 + $0x314] sm:$0xf]
        %v9048 = vld [vmem:[%s7120 + $0x318] sm:$0xf]
        %v9049 = vld [vmem:[%s7120 + $0x31c] sm:$0xf]
        %v9050 = vld [vmem:[%s7120 + $0x320] sm:$0xf]
        %v9051 = vld [vmem:[%s7120 + $0x324] sm:$0xf]
        %v9052 = vld [vmem:[%s7120 + $0x328] sm:$0xf]
        %v9053 = vld [vmem:[%s7120 + $0x32c] sm:$0xf]
        %v9054 = vld [vmem:[%s7120 + $0x330] sm:$0xf]
        %v9055 = vld [vmem:[%s7120 + $0x334] sm:$0xf]
        %v9056 = vld [vmem:[%s7120 + $0x338] sm:$0xf]
        %v9057 = vld [vmem:[%s7120 + $0x33c] sm:$0xf]
        %v9058 = vld [vmem:[%s7120 + $0x340] sm:$0xf]
        %v9059 = vld [vmem:[%s7120 + $0x344] sm:$0xf]
        %v9060 = vld [vmem:[%s7120 + $0x348] sm:$0xf]
        %v9061 = vld [vmem:[%s7120 + $0x34c] sm:$0xf]
        %v9062 = vld [vmem:[%s7120 + $0x350] sm:$0xf]
        %v9063 = vld [vmem:[%s7120 + $0x354] sm:$0xf]
        %v9064 = vld [vmem:[%s7120 + $0x358] sm:$0xf]
        %v9065 = vld [vmem:[%s7120 + $0x35c] sm:$0xf]
        %v9066 = vld [vmem:[%s7120 + $0x360] sm:$0xf]
        %v9067 = vld [vmem:[%s7120 + $0x364] sm:$0xf]
        %v9068 = vld [vmem:[%s7120 + $0x368] sm:$0xf]
        %v9069 = vld [vmem:[%s7120 + $0x36c] sm:$0xf]
        %v9070 = vld [vmem:[%s7120 + $0x370] sm:$0xf]
        %v9071 = vld [vmem:[%s7120 + $0x374] sm:$0xf]
        %v9072 = vld [vmem:[%s7120 + $0x378] sm:$0xf]
        %v9073 = vld [vmem:[%s7120 + $0x37c] sm:$0xf]
        %v9074 = vld [vmem:[%s7120 + $0x380] sm:$0xf]
        %v9075 = vld [vmem:[%s7120 + $0x384] sm:$0xf]
        %v9076 = vld [vmem:[%s7120 + $0x388] sm:$0xf]
        %v9077 = vld [vmem:[%s7120 + $0x38c] sm:$0xf]
        %v9078 = vld [vmem:[%s7120 + $0x390] sm:$0xf]
        %v9079 = vld [vmem:[%s7120 + $0x394] sm:$0xf]
        %v9080 = vld [vmem:[%s7120 + $0x398] sm:$0xf]
        %v9081 = vld [vmem:[%s7120 + $0x39c] sm:$0xf]
        %v9082 = vld [vmem:[%s7120 + $0x3a0] sm:$0xf]
        %v9083 = vld [vmem:[%s7120 + $0x3a4] sm:$0xf]
        %v9084 = vld [vmem:[%s7120 + $0x3a8] sm:$0xf]
        %v9085 = vld [vmem:[%s7120 + $0x3ac] sm:$0xf]
        %v9086 = vld [vmem:[%s7120 + $0x3b0] sm:$0xf]
        %v9087 = vld [vmem:[%s7120 + $0x3b4] sm:$0xf]
        %v9088 = vld [vmem:[%s7120 + $0x3b8] sm:$0xf]
        %v9089 = vld [vmem:[%s7120 + $0x3bc] sm:$0xf]
        %v9090 = vld [vmem:[%s7120 + $0x3c0] sm:$0xf]
        %v9091 = vld [vmem:[%s7120 + $0x3c4] sm:$0xf]
        %v9092 = vld [vmem:[%s7120 + $0x3c8] sm:$0xf]
        %v9093 = vld [vmem:[%s7120 + $0x3cc] sm:$0xf]
        %v9094 = vld [vmem:[%s7120 + $0x3d0] sm:$0xf]
        %v9095 = vld [vmem:[%s7120 + $0x3d4] sm:$0xf]
        %v9096 = vld [vmem:[%s7120 + $0x3d8] sm:$0xf]
        %v9097 = vld [vmem:[%s7120 + $0x3dc] sm:$0xf]
        %v9098 = vld [vmem:[%s7120 + $0x3e0] sm:$0xf]
        %v9099 = vld [vmem:[%s7120 + $0x3e4] sm:$0xf]
        %v9100 = vld [vmem:[%s7120 + $0x3e8] sm:$0xf]
        %v9101 = vld [vmem:[%s7120 + $0x3ec] sm:$0xf]
        %v9102 = vld [vmem:[%s7120 + $0x3f0] sm:$0xf]
        %v9103 = vld [vmem:[%s7120 + $0x3f4] sm:$0xf]
        %v9104 = vld [vmem:[%s7120 + $0x3f8] sm:$0xf]
        %v9105 = vld [vmem:[%s7120 + $0x3fc] sm:$0xf]
        %v9170 = vunpack.c.l.b16 %v9042
        %v9171 = vunpack.c.l.b16 %v9043
        %v9172 = vunpack.c.l.b16 %v9044
        %v9173 = vunpack.c.l.b16 %v9045
        %v9174 = vunpack.c.l.b16 %v9046
        %v9175 = vunpack.c.l.b16 %v9047
        %v9176 = vunpack.c.l.b16 %v9048
        %v9177 = vunpack.c.l.b16 %v9049
        %v9178 = vunpack.c.l.b16 %v9050
        %v9179 = vunpack.c.l.b16 %v9051
        %v9180 = vunpack.c.l.b16 %v9052
        %v9181 = vunpack.c.l.b16 %v9053
        %v9182 = vunpack.c.l.b16 %v9054
        %v9183 = vunpack.c.l.b16 %v9055
        %v9184 = vunpack.c.l.b16 %v9056
        %v9185 = vunpack.c.l.b16 %v9057
        %v9186 = vunpack.c.l.b16 %v9058
        %v9187 = vunpack.c.l.b16 %v9059
        %v9188 = vunpack.c.l.b16 %v9060
        %v9189 = vunpack.c.l.b16 %v9061
        %v9190 = vunpack.c.l.b16 %v9062
        %v9191 = vunpack.c.l.b16 %v9063
        %v9192 = vunpack.c.l.b16 %v9064
        %v9193 = vunpack.c.l.b16 %v9065
        %v9194 = vunpack.c.l.b16 %v9066
        %v9195 = vunpack.c.l.b16 %v9067
        %v9196 = vunpack.c.l.b16 %v9068
        %v9197 = vunpack.c.l.b16 %v9069
        %v9198 = vunpack.c.l.b16 %v9070
        %v9199 = vunpack.c.l.b16 %v9071
        %v9200 = vunpack.c.l.b16 %v9072
        %v9201 = vunpack.c.l.b16 %v9073
        %v9202 = vunpack.c.l.b16 %v9074
        %v9203 = vunpack.c.l.b16 %v9075
        %v9204 = vunpack.c.l.b16 %v9076
        %v9205 = vunpack.c.l.b16 %v9077
        %v9206 = vunpack.c.l.b16 %v9078
        %v9207 = vunpack.c.l.b16 %v9079
        %v9208 = vunpack.c.l.b16 %v9080
        %v9209 = vunpack.c.l.b16 %v9081
        %v9210 = vunpack.c.l.b16 %v9082
        %v9211 = vunpack.c.l.b16 %v9083
        %v9212 = vunpack.c.l.b16 %v9084
        %v9213 = vunpack.c.l.b16 %v9085
        %v9214 = vunpack.c.l.b16 %v9086
        %v9215 = vunpack.c.l.b16 %v9087
        %v9216 = vunpack.c.l.b16 %v9088
        %v9217 = vunpack.c.l.b16 %v9089
        %v9218 = vunpack.c.l.b16 %v9090
        %v9219 = vunpack.c.l.b16 %v9091
        %v9220 = vunpack.c.l.b16 %v9092
        %v9221 = vunpack.c.l.b16 %v9093
        %v9222 = vunpack.c.l.b16 %v9094
        %v9223 = vunpack.c.l.b16 %v9095
        %v9224 = vunpack.c.l.b16 %v9096
        %v9225 = vunpack.c.l.b16 %v9097
        %v9226 = vunpack.c.l.b16 %v9098
        %v9227 = vunpack.c.l.b16 %v9099
        %v9228 = vunpack.c.l.b16 %v9100
        %v9229 = vunpack.c.l.b16 %v9101
        %v9230 = vunpack.c.l.b16 %v9102
        %v9231 = vunpack.c.l.b16 %v9103
        %v9232 = vunpack.c.l.b16 %v9104
        %v9233 = vunpack.c.l.b16 %v9105
        %v9234 = vpack.c.b16 %v9171, %v9170
        %v9235 = vpack.c.b16 %v9173, %v9172
        %v9236 = vpack.c.b16 %v9175, %v9174
        %v9237 = vpack.c.b16 %v9177, %v9176
        %v9238 = vpack.c.b16 %v9179, %v9178
        %v9239 = vpack.c.b16 %v9181, %v9180
        %v9240 = vpack.c.b16 %v9183, %v9182
        %v9241 = vpack.c.b16 %v9185, %v9184
        %v9242 = vpack.c.b16 %v9187, %v9186
        %v9243 = vpack.c.b16 %v9189, %v9188
        %v9244 = vpack.c.b16 %v9191, %v9190
        %v9245 = vpack.c.b16 %v9193, %v9192
        %v9246 = vpack.c.b16 %v9195, %v9194
        %v9247 = vpack.c.b16 %v9197, %v9196
        %v9248 = vpack.c.b16 %v9199, %v9198
        %v9249 = vpack.c.b16 %v9201, %v9200
        %v9250 = vpack.c.b16 %v9203, %v9202
        %v9251 = vpack.c.b16 %v9205, %v9204
        %v9252 = vpack.c.b16 %v9207, %v9206
        %v9253 = vpack.c.b16 %v9209, %v9208
        %v9254 = vpack.c.b16 %v9211, %v9210
        %v9255 = vpack.c.b16 %v9213, %v9212
        %v9256 = vpack.c.b16 %v9215, %v9214
        %v9257 = vpack.c.b16 %v9217, %v9216
        %v9258 = vpack.c.b16 %v9219, %v9218
        %v9259 = vpack.c.b16 %v9221, %v9220
        %v9260 = vpack.c.b16 %v9223, %v9222
        %v9261 = vpack.c.b16 %v9225, %v9224
        %v9262 = vpack.c.b16 %v9227, %v9226
        %v9263 = vpack.c.b16 %v9229, %v9228
        %v9264 = vpack.c.b16 %v9231, %v9230
        %v9265 = vpack.c.b16 %v9233, %v9232
        %9298 = vmatprep.subr.bf16.mxu0 0
        %9299 = vmatpush1.bf16.msra.mxu0 %v9234
        %9300 = vmatprep.subr.bf16.mxu0 0
        %9301 = vmatpush1.bf16.msra.mxu0 %v9235
        %9302 = vmatprep.subr.bf16.mxu0 0
        %9303 = vmatpush1.bf16.msra.mxu0 %v9236
        %9304 = vmatprep.subr.bf16.mxu0 0
        %9305 = vmatpush1.bf16.msra.mxu0 %v9237
        %9306 = vmatprep.subr.bf16.mxu0 0
        %9307 = vmatpush1.bf16.msra.mxu0 %v9238
        %9308 = vmatprep.subr.bf16.mxu0 0
        %9309 = vmatpush1.bf16.msra.mxu0 %v9239
        %9310 = vmatprep.subr.bf16.mxu0 0
        %9311 = vmatpush1.bf16.msra.mxu0 %v9240
        %9312 = vmatprep.subr.bf16.mxu0 0
        %9313 = vmatpush1.bf16.msra.mxu0 %v9241
        %9314 = vmatprep.subr.bf16.mxu0 0
        %9315 = vmatpush1.bf16.msra.mxu0 %v9242
        %9316 = vmatprep.subr.bf16.mxu0 0
        %9317 = vmatpush1.bf16.msra.mxu0 %v9243
        %9318 = vmatprep.subr.bf16.mxu0 0
        %9319 = vmatpush1.bf16.msra.mxu0 %v9244
        %9320 = vmatprep.subr.bf16.mxu0 0
        %9321 = vmatpush1.bf16.msra.mxu0 %v9245
        %9322 = vmatprep.subr.bf16.mxu0 0
        %9323 = vmatpush1.bf16.msra.mxu0 %v9246
        %9324 = vmatprep.subr.bf16.mxu0 0
        %9325 = vmatpush1.bf16.msra.mxu0 %v9247
        %9326 = vmatprep.subr.bf16.mxu0 0
        %9327 = vmatpush1.bf16.msra.mxu0 %v9248
        %9328 = vmatprep.subr.bf16.mxu0 0
        %9329 = vmatpush1.bf16.msra.mxu0 %v9249
        %9330 = vmatprep.mubr.bf16.mxu0 %v9039
        %9331 = vmatmul.mubr.bf16.gmra.mrb[0].mxu0 %v9038
        %v9332 = vpop.f32.mrb[0].mxu0
        %v9333 = vadd.f32 0.0, %v9332
        %v9334 = vpop.f32.mrb[0].mxu0
        %v9335 = vpop.f32.mrb[0].mxu0
        %v9336 = vpop.f32.mrb[0].mxu0
        %9337 = vdwg.mxu0
        %9338 = vmatprep.subr.bf16.mxu0 0
        %9339 = vmatpush1.bf16.msra.mxu0 %v9250
        %9340 = vmatprep.subr.bf16.mxu0 0
        %9341 = vmatpush1.bf16.msra.mxu0 %v9251
        %9342 = vmatprep.subr.bf16.mxu0 0
        %9343 = vmatpush1.bf16.msra.mxu0 %v9252
        %9344 = vmatprep.subr.bf16.mxu0 0
        %9345 = vmatpush1.bf16.msra.mxu0 %v9253
        %9346 = vmatprep.subr.bf16.mxu0 0
        %9347 = vmatpush1.bf16.msra.mxu0 %v9254
        %9348 = vmatprep.subr.bf16.mxu0 0
        %9349 = vmatpush1.bf16.msra.mxu0 %v9255
        %9350 = vmatprep.subr.bf16.mxu0 0
        %9351 = vmatpush1.bf16.msra.mxu0 %v9256
        %9352 = vmatprep.subr.bf16.mxu0 0
        %9353 = vmatpush1.bf16.msra.mxu0 %v9257
        %9354 = vmatprep.subr.bf16.mxu0 0
        %9355 = vmatpush1.bf16.msra.mxu0 %v9258
        %9356 = vmatprep.subr.bf16.mxu0 0
        %9357 = vmatpush1.bf16.msra.mxu0 %v9259
        %9358 = vmatprep.subr.bf16.mxu0 0
        %9359 = vmatpush1.bf16.msra.mxu0 %v9260
        %9360 = vmatprep.subr.bf16.mxu0 0
        %9361 = vmatpush1.bf16.msra.mxu0 %v9261
        %9362 = vmatprep.subr.bf16.mxu0 0
        %9363 = vmatpush1.bf16.msra.mxu0 %v9262
        %9364 = vmatprep.subr.bf16.mxu0 0
        %9365 = vmatpush1.bf16.msra.mxu0 %v9263
        %9366 = vmatprep.subr.bf16.mxu0 0
        %9367 = vmatpush1.bf16.msra.mxu0 %v9264
        %9368 = vmatprep.subr.bf16.mxu0 0
        %9369 = vmatpush1.bf16.msra.mxu0 %v9265
        %9370 = vmatprep.mubr.bf16.mxu0 %v9041
        %9371 = vmatmul.mubr.bf16.gmra.mrb[0].mxu0 %v9040
        %v9372 = vpop.f32.mrb[0].mxu0
        %v9373 = vadd.f32 %v9333, %v9372
        %v9374 = vpop.f32.mrb[0].mxu0
        %v9375 = vpop.f32.mrb[0].mxu0
        %v9376 = vpop.f32.mrb[0].mxu0
        %9377 = vdwg.mxu0
        %v9378 = vadd.f32 %v8737, %v9373
        %v9379 = vadd.f32 %v6812, %v9378
        %s9380 = scalar_lea.vmem [#allocation19], 1
        %v9381 = vld [vmem:[%s9380] sm:$0x1]
        %v9383 = vlaneseq
        %v9384 = vshrl.u32 %v9383, 7
        %v9385 = vsub.s32 0, %v9384
        %v9386 = vrot.slane %v9381, %v9385
        %v9388 = vadd.f32 %v9379, %v9386
        %s9389 = scalar_lea.vmem %s15, 5
        %v9390 = vld [vmem:[%s9389] sm:$0x1]
        %s9391 = scalar_lea.vmem %s16, 5
        %v9392 = vld [vmem:[%s9391] sm:$0x1]
        %9393 = vadd.xlane.f32.xlu0 %v9388
        %v9394 = vpop.xlane.xlu0 %9393
        %v9395 = vmul.f32 %v9394, %v1558
        %v9396 = vsub.f32 %v9388, %v9395
        %v9397 = vmul.f32 %v9396, %v9396
        %9398 = vadd.xlane.f32.xlu0 %v9397
        %v9399 = vpop.xlane.xlu0 %9398
        %v9400 = vmul.f32 %v9399, %v1558
        %v9401 = vadd.f32 %v9400, 1e-05
        %v9402 = vrsqrt.pop %v9401
        %v9403 = vmul.f32 %v9396, %v9402
        %v9405 = vlaneseq
        %v9406 = vshrl.u32 %v9405, 7
        %v9407 = vsub.s32 0, %v9406
        %v9408 = vrot.slane %v9390, %v9407
        %v9410 = vmul.f32 %v9403, %v9408
        %v9412 = vlaneseq
        %v9413 = vshrl.u32 %v9412, 7
        %v9414 = vsub.s32 0, %v9413
        %v9415 = vrot.slane %v9392, %v9414
        %v9417 = vadd.f32 %v9410, %v9415
        %9418 = vst [vmem:[%s699] sm:$0xff] %v9417
        %s9419 = sand.u32 %s407, 1
        %s9420 = scalar_lea.sflag [#allocation4], %s9419
        %s9421 = sand.u32 %s407, 1
        %s9422 = smul.addr %s9421, 8
        %s9423 = scalar_lea.vmem [#allocation20], %s9422
        // Predicated region
        $region133: #{user_tower_forward.1} parent=87 // pred_check
          %p9424 = pneg %p417
        $region134: #{user_tower_forward.1} parent=87 // pred_check_branch
          %9426 = sbr.rel (%p9424) target = $region136
        $region135: #{user_tower_forward.1} parent=87 // pred_region
          %s9428 = ssub.s32 128, 128
          %9429 = vsyncadd %s9420, %s9428
          %s9430 = smul.addr %s37, 128
          %s9431 = scalar_lea.hbm %s17, %s9430
          %s9433 = sshll.u32 %s9423, 4
          %s9434 = int_to_ptr.vmem [resolvable:$true] %s9433
          %9436 = dma.vmem_to_hbm [thread:$0]  %s9434, 128, %s9431, %s9420
        $region136: #{user_tower_forward.1} parent=87 // pred_fallthru
          _
      $region88: #{user_tower_forward.1} parent=5 // pred_fallthru
        _
      %p9437 = scmp.le.s32.totalorder 2, %s32
      // Predicated region
      $region137: #{user_tower_forward.1} parent=5 // pred_check
        %p9438 = pneg %p9437
      $region138: #{user_tower_forward.1} parent=5 // pred_check_branch
        %9440 = sbr.rel (%p9438) target = $region140
      $region139: #{user_tower_forward.1} parent=5 // pred_region
        %s9441 = ssub.s32 %s32, 2
        // Predicated region
        $region141: #{user_tower_forward.1} parent=139 // pred_check
          %p9442 = pneg %p423
        $region142: #{user_tower_forward.1} parent=139 // pred_check_branch
          %9444 = sbr.rel (%p9442) target = $region144
        $region143: #{user_tower_forward.1} parent=139 // pred_region
          %s9445 = sand.u32 %s408, 1
          %s9446 = scalar_lea.sflag [#allocation4], %s9445
          %s9447 = sand.u32 %s408, 1
          %s9448 = smul.addr %s9447, 8
          %s9449 = scalar_lea.vmem [#allocation20], %s9448
          %9450 = dma.done %s9446, 128
        $region144: #{user_tower_forward.1} parent=139 // pred_fallthru
          _
      $region140: #{user_tower_forward.1} parent=5 // pred_fallthru
        _
    $region6: #{user_tower_forward.1} parent=1 // loop_footer
      %s36 = sadd.s32 1, %s32
    $region7: #{user_tower_forward.1} parent=1 // loop_footer_branch
      %31 = sbr.rel target = $region3
    $region8: #{user_tower_forward.1} parent=1 // loop_exit
      _
    %9451 = vsyncpa [#allocation3], 1
    %s9452 = scalar_lea.sflag [#allocation3], 1
    %9453 = vsyncpa %s9452, 1
    %9454 = vsyncpa [#allocation6], 1
    %9455 = vsyncpa [#allocation9], 1
    %9456 = vsyncpa [#allocation12], 1
    %9457 = vsyncpa [#allocation15], 1
    %9458 = vsyncpa [#allocation18], 1
    %9459 = vsyncpa [#allocation4], 1
    %s9460 = scalar_lea.sflag [#allocation4], 1
    %9461 = vsyncpa %s9460, 1

</llo_original>
